<compile_context>
chip_gen: v5e
topology: v5e:2x2
jax: 0.10.0
libtpu: 0.0.40
codegen_flags: <defaults>
</compile_context>

<pallas_src>
import math

import jax
import jax.numpy as jnp
from jax import lax
from jax.experimental import pallas as pl
from jax.experimental.pallas import tpu as pltpu

# ------------------------- model configuration (small) -----------------------
INPUT_SIZE = 16                 # S : sequence length
CHANNELS   = 8                  # C : transformer d_model
NUM_HEADS  = 2
NUM_LAYERS = 2
HIDDEN     = 16                 # fc1 hidden size
N_OUTPUTS  = 4
HEAD_DIM   = CHANNELS // NUM_HEADS
FFN_DIM    = 4 * CHANNELS
LN_EPS     = 1e-5
NEG_SLOPE  = 0.01               # F.leaky_relu default
SC         = CHANNELS * INPUT_SIZE   # 128 : flattened (channel, position) rows
OUT_ROWS   = 8                  # n_outputs padded to one sublane tile
MAX_BATCH_TILE = 128            # lane width: batch elements per grid step


# ------------------------------- Pallas kernel -------------------------------
def xpformer2_kernel(x_ref,
                     g_ref, c0_ref,
                     qkv_w_ref, qkv_b_ref, out_w_ref, out_b_ref,
                     ln1_g_ref, ln1_b_ref,
                     w1_ref, b1_ref, w2_ref, b2_ref,
                     ln2_g_ref, ln2_b_ref,
                     fc1_w_ref, fc1_b_ref, fc2_w_ref, fc2_b_ref,
                     o_ref):
    """One grid step == one batch tile (BB samples in the lane dimension).

    Activations are (C*S, BB) f32, row r = c*INPUT_SIZE + s (channel-major,
    position-minor), batch in lanes.  All linears are 2-D MXU matmuls against
    wrapper-prepared block weights; vector ops run on lane-dense vregs.
    """
    S, C, H, hd = INPUT_SIZE, CHANNELS, NUM_HEADS, HEAD_DIM

    # Fused input projection + positional encoding + .view/.permute: 1 matmul.
    xt = x_ref[0]                                                   # (S, BB)
    x = jnp.dot(g_ref[...], xt,
                preferred_element_type=jnp.float32) + c0_ref[...]   # (C*S, BB)

    def layer_norm(y, g, b):
        yr = y.reshape(C, S, -1)                    # channels on leading axis
        mu = jnp.mean(yr, axis=0, keepdims=True)
        var = jnp.mean((yr - mu) ** 2, axis=0, keepdims=True)
        yn = ((yr - mu) * lax.rsqrt(var + LN_EPS)).reshape(C * S, -1)
        return yn * g + b

    # TODO(synk): nn.Dropout has no inference-time effect; omitted (identity).
    for l in range(NUM_LAYERS):                                     # static unroll
        # --------- multi-head self-attention (fused QKV, K=128 matmul) ------
        qkv = jnp.dot(qkv_w_ref[l], x,
                      preferred_element_type=jnp.float32) + qkv_b_ref[l]  # (3CS,BB)

        def slab(block, h, d):
            j = block * C + h * hd + d            # static row offset, tile-aligned
            return qkv[j * S:(j + 1) * S]         # (S, BB)

        o_slabs = []
        for h in range(H):                                           # static unroll
            # scores[q, k, b] = sum_d q[d, q, b] * k[d, k, b]   (scale folded in W)
            sc = slab(0, h, 0)[:, None, :] * slab(1, h, 0)[None, :, :]
            for d in range(1, hd):
                sc = sc + slab(0, h, d)[:, None, :] * slab(1, h, d)[None, :, :]
            sc = sc - jnp.max(sc, axis=1, keepdims=True)             # (S, S, BB)
            p = jnp.exp(sc)
            p = p * pl.reciprocal(jnp.sum(p, axis=1, keepdims=True), approx=True)
            for d in range(hd):                                      # attn @ V
                o_slabs.append(jnp.sum(p * slab(2, h, d)[None, :, :], axis=1))
        # concat of (16, BB) slabs along sublane-tile boundaries: no relayout.
        o = jnp.concatenate(o_slabs, axis=0)                         # (C*S, BB)
        attn = jnp.dot(out_w_ref[l], o,
                       preferred_element_type=jnp.float32) + out_b_ref[l]
        x = layer_norm(x + attn, ln1_g_ref[l], ln1_b_ref[l])

        # --------- feed forward (K=128 and K=512 matmuls) --------------------
        f = jnp.dot(w1_ref[l], x,
                    preferred_element_type=jnp.float32) + b1_ref[l]  # (4CS, BB)
        f = jnp.maximum(f, 0.0)                                      # ReLU
        f = jnp.dot(w2_ref[l], f,
                    preferred_element_type=jnp.float32) + b2_ref[l]  # (CS, BB)
        x = layer_norm(x + f, ln2_g_ref[l], ln2_b_ref[l])

    # --------- head: fc1 (single K=128 contraction) -> leaky_relu -> fc2 -----
    h1 = jnp.dot(fc1_w_ref[...], x,
                 preferred_element_type=jnp.float32) + fc1_b_ref[...]  # (HID, BB)
    h1 = jnp.where(h1 > 0, h1, NEG_SLOPE * h1)                         # leaky_relu
    out = jnp.dot(fc2_w_ref[...], h1,
                  preferred_element_type=jnp.float32) + fc2_b_ref[...]  # (8, BB)
    o_ref[0] = out


# ------------------------- parameters (deterministic) -------------------------
def make_params(key):
    ks = jax.random.split(key, 14)

    def w(k, shape, scale=0.1):
        return scale * jax.random.normal(k, shape, jnp.float32)

    L, C = NUM_LAYERS, CHANNELS
    p = {}
    p["inp_w"] = w(ks[0], (C, 1))                    # nn.Linear(1, channels)
    p["inp_b"] = w(ks[1], (C,))
    p["qkv_w"] = w(ks[2], (L, 3 * C, C))             # MHA in_proj_weight
    p["qkv_b"] = w(ks[3], (L, 3 * C))
    p["out_w"] = w(ks[4], (L, C, C))                 # MHA out_proj
    p["out_b"] = w(ks[5], (L, C))
    p["ln1_g"] = jnp.ones((L, C), jnp.float32)
    p["ln1_b"] = jnp.zeros((L, C), jnp.float32)
    p["w1"]    = w(ks[6], (L, FFN_DIM, C))           # linear1
    p["b1"]    = w(ks[7], (L, FFN_DIM))
    p["w2"]    = w(ks[8], (L, C, FFN_DIM))           # linear2
    p["b2"]    = w(ks[9], (L, C))
    p["ln2_g"] = jnp.ones((L, C), jnp.float32)
    p["ln2_b"] = jnp.zeros((L, C), jnp.float32)
    p["fc1_w"] = w(ks[10], (HIDDEN, C * INPUT_SIZE))
    p["fc1_b"] = w(ks[11], (HIDDEN,))
    p["fc2_w"] = w(ks[12], (N_OUTPUTS, HIDDEN))
    p["fc2_b"] = w(ks[13], (N_OUTPUTS,))
    return p


def position_encoding():
    k, C = INPUT_SIZE, CHANNELS
    pe = jnp.zeros((C, k), jnp.float32)
    position = jnp.arange(C, dtype=jnp.float32)[:, None]
    div_term = jnp.exp(jnp.arange(0, k, 2, dtype=jnp.float32)
                       * (-math.log(10000.0) / k))
    pe = pe.at[:, 0::2].set(jnp.sin(position * div_term))
    pe = pe.at[:, 1::2].set(jnp.cos(position * div_term))
    return pe                                         # (C, S)


# ------------------------- wrapper-side weight preparation --------------------
def _round_up(a, m):
    return ((a + m - 1) // m) * m


def _per_position_weight(w):
    """Expand a per-position channel-mixing weight (Rout, Rin) to a block
    matrix (Rout*S, Rin*S) acting on channel-major / position-minor rows."""
    S = INPUT_SIZE
    eye = jnp.eye(S, dtype=jnp.float32)
    big = w[:, None, :, None] * eye[None, :, None, :]
    return big.reshape(w.shape[0] * S, w.shape[1] * S)


def _rep_rows(v):
    """(R,) per-channel vector -> (R*S, 1) column replicated over positions."""
    return jnp.repeat(v, INPUT_SIZE)[:, None]


def prepare_weights(params):
    L, C, S = NUM_LAYERS, CHANNELS, INPUT_SIZE
    r = jnp.arange(C * S)

    # Input projection + pos-encoding + torch .view/.permute folded into one
    # (C*S, S) matrix G and a (C*S, 1) constant: x_enc[r,b] = sum_m G[r,m]*x[b,m] + c0[r].
    inp_w = params["inp_w"].reshape(C)
    g_mat = jax.nn.one_hot(r // C, S, dtype=jnp.float32) * inp_w[r % C][:, None]
    c0 = (params["inp_b"][r % C] + position_encoding().reshape(-1))[:, None]

    # Softmax 1/sqrt(head_dim) scale folded into the Q rows of the QKV weights.
    qscale = jnp.concatenate([jnp.full((C,), 1.0 / math.sqrt(HEAD_DIM), jnp.float32),
                              jnp.ones((2 * C,), jnp.float32)])
    qkv_w = jnp.stack([_per_position_weight(params["qkv_w"][l] * qscale[:, None])
                       for l in range(L)])                       # (L, 3CS, CS)
    qkv_b = jnp.stack([_rep_rows(params["qkv_b"][l] * qscale) for l in range(L)])

    out_w = jnp.stack([_per_position_weight(params["out_w"][l]) for l in range(L)])
    out_b = jnp.stack([_rep_rows(params["out_b"][l]) for l in range(L)])
    ln1_g = jnp.stack([_rep_rows(params["ln1_g"][l]) for l in range(L)])
    ln1_b = jnp.stack([_rep_rows(params["ln1_b"][l]) for l in range(L)])
    w1 = jnp.stack([_per_position_weight(params["w1"][l]) for l in range(L)])
    b1 = jnp.stack([_rep_rows(params["b1"][l]) for l in range(L)])
    w2 = jnp.stack([_per_position_weight(params["w2"][l]) for l in range(L)])
    b2 = jnp.stack([_rep_rows(params["b2"][l]) for l in range(L)])
    ln2_g = jnp.stack([_rep_rows(params["ln2_g"][l]) for l in range(L)])
    ln2_b = jnp.stack([_rep_rows(params["ln2_b"][l]) for l in range(L)])

    # fc1 columns permuted from torch flatten order (s*C + c) to row r = c*S + s.
    perm = (r % S) * C + (r // S)
    fc1_w = params["fc1_w"][:, perm]                             # (HIDDEN, C*S)
    fc1_b = params["fc1_b"][:, None]                             # (HIDDEN, 1)
    fc2_w = jnp.zeros((OUT_ROWS, HIDDEN), jnp.float32).at[:N_OUTPUTS].set(
        params["fc2_w"])
    fc2_b = jnp.zeros((OUT_ROWS, 1), jnp.float32).at[:N_OUTPUTS, 0].set(
        params["fc2_b"])

    return (g_mat, c0, qkv_w, qkv_b, out_w, out_b, ln1_g, ln1_b,
            w1, b1, w2, b2, ln2_g, ln2_b, fc1_w, fc1_b, fc2_w, fc2_b)


# ------------------------------- wrapper --------------------------------------
def xpformer2_forward(x, params, *, batch_tile=MAX_BATCH_TILE):
    B, S = x.shape
    assert S == INPUT_SIZE
    batch_tile = max(8, _round_up(int(batch_tile), 8))

    # Batch tile: multiple of 8, <= batch_tile lanes, and aim for >= 2 grid
    # steps so both v7x TensorCores get work (no-op on v5e/v6e single-TC).
    if B > batch_tile:
        BB = batch_tile
    else:
        BB = min(batch_tile, max(8, _round_up((B + 1) // 2, 8)))
    B_pad = _round_up(B, BB)
    nsteps = B_pad // BB

    # Raw per-sample inputs, batch folded into the lane dimension per tile.
    x_pad = jnp.pad(x.astype(jnp.float32), ((0, B_pad - B), (0, 0)))
    x_tiles = x_pad.reshape(nsteps, BB, S).transpose(0, 2, 1)    # (nsteps, S, BB)

    weights = prepare_weights(params)

    def full_spec(a):
        return pl.BlockSpec(a.shape, lambda g, _nd=a.ndim: (0,) * _nd)

    out_tiles = pl.pallas_call(
        xpformer2_kernel,
        out_shape=jax.ShapeDtypeStruct((nsteps, OUT_ROWS, BB), jnp.float32),
        grid_spec=pltpu.PrefetchScalarGridSpec(
            num_scalar_prefetch=0,
            grid=(nsteps,),
            in_specs=[pl.BlockSpec((1, S, BB), lambda g: (g, 0, 0))]
                     + [full_spec(a) for a in weights],
            out_specs=pl.BlockSpec((1, OUT_ROWS, BB), lambda g: (g, 0, 0)),
        ),
        compiler_params=pltpu.CompilerParams(
            dimension_semantics=("parallel",),
            vmem_limit_bytes=32 * 1024 * 1024),
    )(x_tiles, *weights)

    out = out_tiles.transpose(0, 2, 1).reshape(B_pad, OUT_ROWS)
    return out[:B, :N_OUTPUTS]


# ------------------------- pure-JAX reference (for checking) ------------------
def _layer_norm_ref(y, g, b):
    mu = jnp.mean(y, axis=-1, keepdims=True)
    var = jnp.mean((y - mu) ** 2, axis=-1, keepdims=True)
    return (y - mu) * lax.rsqrt(var + LN_EPS) * g + b


def reference_forward(x, params):
    B = x.shape[0]
    L, C, S, H, hd = NUM_LAYERS, CHANNELS, INPUT_SIZE, NUM_HEADS, HEAD_DIM
    xp = (x.reshape(B, S, 1) * params["inp_w"].reshape(1, 1, C)
          + params["inp_b"].reshape(1, 1, C))
    h = (xp.reshape(B, C, S) + position_encoding()[None]).transpose(0, 2, 1)
    for l in range(L):
        qkv = h @ params["qkv_w"][l].T + params["qkv_b"][l]
        q, k, v = qkv[..., :C], qkv[..., C:2 * C], qkv[..., 2 * C:]

        def split(t):
            return t.reshape(B, S, H, hd).transpose(0, 2, 1, 3)

        qh, kh, vh = split(q), split(k), split(v)
        sc = jnp.einsum("bhqd,bhkd->bhqk", qh, kh) / math.sqrt(hd)
        attn = jax.nn.softmax(sc, axis=-1)
        o = jnp.einsum("bhqk,bhkd->bhqd", attn, vh).transpose(0, 2, 1, 3)
        o = o.reshape(B, S, C) @ params["out_w"][l].T + params["out_b"][l]
        h = _layer_norm_ref(h + o, params["ln1_g"][l], params["ln1_b"][l])
        f = (jax.nn.relu(h @ params["w1"][l].T + params["b1"][l])
             @ params["w2"][l].T + params["b2"][l])
        h = _layer_norm_ref(h + f, params["ln2_g"][l], params["ln2_b"][l])
    flat = h.reshape(B, S * C)
    z = flat @ params["fc1_w"].T + params["fc1_b"]
    z = jnp.where(z > 0, z, NEG_SLOPE * z)
    return z @ params["fc2_w"].T + params["fc2_b"]


if __name__ == "__main__":
    key = jax.random.PRNGKey(0)
    pkey, xkey = jax.random.split(key)
    params = make_params(pkey)

    B = 2
    x = jax.random.normal(xkey, (B, INPUT_SIZE), jnp.float32)

    out = xpformer2_forward(x, params)
    out = jax.block_until_ready(out)

    ref = reference_forward(x, params)
    err = float(jnp.max(jnp.abs(out - ref)))
    if not jnp.allclose(out, ref, atol=1e-2, rtol=1e-2):
        raise AssertionError(f"kernel/reference mismatch, max abs err = {err}")
    print("KERNEL_OK")
</pallas_src>

<mosaic_0001>
module attributes {stable_mosaic.version = 11 : i64} {
  func.func @xpformer2_kernel(%arg0: i32, %arg1: memref<1x16x8xf32, #tpu.memory_space<vmem>>, %arg2: memref<128x16xf32, #tpu.memory_space<vmem>>, %arg3: memref<128x1xf32, #tpu.memory_space<vmem>>, %arg4: memref<2x384x128xf32, #tpu.memory_space<vmem>>, %arg5: memref<2x384x1xf32, #tpu.memory_space<vmem>>, %arg6: memref<2x128x128xf32, #tpu.memory_space<vmem>>, %arg7: memref<2x128x1xf32, #tpu.memory_space<vmem>>, %arg8: memref<2x128x1xf32, #tpu.memory_space<vmem>>, %arg9: memref<2x128x1xf32, #tpu.memory_space<vmem>>, %arg10: memref<2x512x128xf32, #tpu.memory_space<vmem>>, %arg11: memref<2x512x1xf32, #tpu.memory_space<vmem>>, %arg12: memref<2x128x512xf32, #tpu.memory_space<vmem>>, %arg13: memref<2x128x1xf32, #tpu.memory_space<vmem>>, %arg14: memref<2x128x1xf32, #tpu.memory_space<vmem>>, %arg15: memref<2x128x1xf32, #tpu.memory_space<vmem>>, %arg16: memref<16x128xf32, #tpu.memory_space<vmem>>, %arg17: memref<16x1xf32, #tpu.memory_space<vmem>>, %arg18: memref<8x16xf32, #tpu.memory_space<vmem>>, %arg19: memref<8x1xf32, #tpu.memory_space<vmem>>, %arg20: memref<1x8x8xf32, #tpu.memory_space<vmem>>) attributes {dimension_semantics = [#tpu.dimension_semantics<parallel>], iteration_bounds = array<i64: 1>, scalar_prefetch = 0 : i64, scratch_operands = 0 : i64, tpu.core_type = #tpu.core_type<tc>, window_params = [{transform_indices = @transform_0, window_bounds = array<i64: 1, 16, 8>}, {pipeline_mode = #tpu.pipeline_mode<synchronous>, transform_indices = @transform_1, window_bounds = array<i64: 128, 16>}, {pipeline_mode = #tpu.pipeline_mode<synchronous>, transform_indices = @transform_2, window_bounds = array<i64: 128, 1>}, {pipeline_mode = #tpu.pipeline_mode<synchronous>, transform_indices = @transform_3, window_bounds = array<i64: 2, 384, 128>}, {pipeline_mode = #tpu.pipeline_mode<synchronous>, transform_indices = @transform_4, window_bounds = array<i64: 2, 384, 1>}, {pipeline_mode = #tpu.pipeline_mode<synchronous>, transform_indices = @transform_5, window_bounds = array<i64: 2, 128, 128>}, {pipeline_mode = #tpu.pipeline_mode<synchronous>, transform_indices = @transform_6, window_bounds = array<i64: 2, 128, 1>}, {pipeline_mode = #tpu.pipeline_mode<synchronous>, transform_indices = @transform_7, window_bounds = array<i64: 2, 128, 1>}, {pipeline_mode = #tpu.pipeline_mode<synchronous>, transform_indices = @transform_8, window_bounds = array<i64: 2, 128, 1>}, {pipeline_mode = #tpu.pipeline_mode<synchronous>, transform_indices = @transform_9, window_bounds = array<i64: 2, 512, 128>}, {pipeline_mode = #tpu.pipeline_mode<synchronous>, transform_indices = @transform_10, window_bounds = array<i64: 2, 512, 1>}, {pipeline_mode = #tpu.pipeline_mode<synchronous>, transform_indices = @transform_11, window_bounds = array<i64: 2, 128, 512>}, {pipeline_mode = #tpu.pipeline_mode<synchronous>, transform_indices = @transform_12, window_bounds = array<i64: 2, 128, 1>}, {pipeline_mode = #tpu.pipeline_mode<synchronous>, transform_indices = @transform_13, window_bounds = array<i64: 2, 128, 1>}, {pipeline_mode = #tpu.pipeline_mode<synchronous>, transform_indices = @transform_14, window_bounds = array<i64: 2, 128, 1>}, {pipeline_mode = #tpu.pipeline_mode<synchronous>, transform_indices = @transform_15, window_bounds = array<i64: 16, 128>}, {pipeline_mode = #tpu.pipeline_mode<synchronous>, transform_indices = @transform_16, window_bounds = array<i64: 16, 1>}, {pipeline_mode = #tpu.pipeline_mode<synchronous>, transform_indices = @transform_17, window_bounds = array<i64: 8, 16>}, {pipeline_mode = #tpu.pipeline_mode<synchronous>, transform_indices = @transform_18, window_bounds = array<i64: 8, 1>}, {transform_indices = @transform_19, window_bounds = array<i64: 1, 8, 8>}]} {
    %c0 = arith.constant 0 : index
    %c0_0 = arith.constant 0 : index
    %c0_1 = arith.constant 0 : index
    %0 = vector.load %arg1[%c0, %c0_0, %c0_1] : memref<1x16x8xf32, #tpu.memory_space<vmem>>, vector<1x16x8xf32>
    %1 = vector.shape_cast %0 : vector<1x16x8xf32> to vector<16x8xf32>
    %c0_2 = arith.constant 0 : index
    %c0_3 = arith.constant 0 : index
    %2 = vector.load %arg2[%c0_2, %c0_3] : memref<128x16xf32, #tpu.memory_space<vmem>>, vector<128x16xf32>
    %cst = arith.constant dense<0.000000e+00> : vector<128x8xf32>
    %3 = tpu.matmul %2, %1, %cst {dimension_numbers = #tpu.dot_dimension_numbers<[1], [0], [0], [1], [0, 0, 1, 1], [], []>} : vector<128x16xf32>, vector<16x8xf32>, vector<128x8xf32> -> vector<128x8xf32>
    %c0_4 = arith.constant 0 : index
    %c0_5 = arith.constant 0 : index
    %4 = vector.load %arg3[%c0_4, %c0_5] : memref<128x1xf32, #tpu.memory_space<vmem>>, vector<128x1xf32>
    %5 = vector.broadcast %4 : vector<128x1xf32> to vector<128x8xf32>
    %6 = arith.addf %3, %5 : vector<128x8xf32>
    %c0_6 = arith.constant 0 : index
    %c0_7 = arith.constant 0 : index
    %c0_8 = arith.constant 0 : index
    %7 = vector.load %arg4[%c0_6, %c0_7, %c0_8] : memref<2x384x128xf32, #tpu.memory_space<vmem>>, vector<1x384x128xf32>
    %8 = vector.shape_cast %7 : vector<1x384x128xf32> to vector<384x128xf32>
    %cst_9 = arith.constant dense<0.000000e+00> : vector<384x8xf32>
    %9 = tpu.matmul %8, %6, %cst_9 {dimension_numbers = #tpu.dot_dimension_numbers<[1], [0], [0], [1], [0, 0, 1, 1], [], []>} : vector<384x128xf32>, vector<128x8xf32>, vector<384x8xf32> -> vector<384x8xf32>
    %c0_10 = arith.constant 0 : index
    %c0_11 = arith.constant 0 : index
    %c0_12 = arith.constant 0 : index
    %10 = vector.load %arg5[%c0_10, %c0_11, %c0_12] : memref<2x384x1xf32, #tpu.memory_space<vmem>>, vector<1x384x1xf32>
    %11 = vector.shape_cast %10 : vector<1x384x1xf32> to vector<384x1xf32>
    %12 = vector.broadcast %11 : vector<384x1xf32> to vector<384x8xf32>
    %13 = arith.addf %9, %12 : vector<384x8xf32>
    %14 = vector.extract_strided_slice %13 {offsets = [0, 0], sizes = [16, 8], strides = [1, 1]} : vector<384x8xf32> to vector<16x8xf32>
    %15 = vector.shape_cast %14 : vector<16x8xf32> to vector<16x1x8xf32>
    %16 = vector.extract_strided_slice %13 {offsets = [128, 0], sizes = [16, 8], strides = [1, 1]} : vector<384x8xf32> to vector<16x8xf32>
    %17 = vector.shape_cast %16 : vector<16x8xf32> to vector<1x16x8xf32>
    %18 = vector.broadcast %15 : vector<16x1x8xf32> to vector<16x16x8xf32>
    %19 = vector.broadcast %17 : vector<1x16x8xf32> to vector<16x16x8xf32>
    %20 = arith.mulf %18, %19 : vector<16x16x8xf32>
    %21 = vector.extract_strided_slice %13 {offsets = [16, 0], sizes = [16, 8], strides = [1, 1]} : vector<384x8xf32> to vector<16x8xf32>
    %22 = vector.shape_cast %21 : vector<16x8xf32> to vector<16x1x8xf32>
    %23 = vector.extract_strided_slice %13 {offsets = [144, 0], sizes = [16, 8], strides = [1, 1]} : vector<384x8xf32> to vector<16x8xf32>
    %24 = vector.shape_cast %23 : vector<16x8xf32> to vector<1x16x8xf32>
    %25 = vector.broadcast %22 : vector<16x1x8xf32> to vector<16x16x8xf32>
    %26 = vector.broadcast %24 : vector<1x16x8xf32> to vector<16x16x8xf32>
    %27 = arith.mulf %25, %26 : vector<16x16x8xf32>
    %28 = arith.addf %20, %27 : vector<16x16x8xf32>
    %29 = vector.extract_strided_slice %13 {offsets = [32, 0], sizes = [16, 8], strides = [1, 1]} : vector<384x8xf32> to vector<16x8xf32>
    %30 = vector.shape_cast %29 : vector<16x8xf32> to vector<16x1x8xf32>
    %31 = vector.extract_strided_slice %13 {offsets = [160, 0], sizes = [16, 8], strides = [1, 1]} : vector<384x8xf32> to vector<16x8xf32>
    %32 = vector.shape_cast %31 : vector<16x8xf32> to vector<1x16x8xf32>
    %33 = vector.broadcast %30 : vector<16x1x8xf32> to vector<16x16x8xf32>
    %34 = vector.broadcast %32 : vector<1x16x8xf32> to vector<16x16x8xf32>
    %35 = arith.mulf %33, %34 : vector<16x16x8xf32>
    %36 = arith.addf %28, %35 : vector<16x16x8xf32>
    %37 = vector.extract_strided_slice %13 {offsets = [48, 0], sizes = [16, 8], strides = [1, 1]} : vector<384x8xf32> to vector<16x8xf32>
    %38 = vector.shape_cast %37 : vector<16x8xf32> to vector<16x1x8xf32>
    %39 = vector.extract_strided_slice %13 {offsets = [176, 0], sizes = [16, 8], strides = [1, 1]} : vector<384x8xf32> to vector<16x8xf32>
    %40 = vector.shape_cast %39 : vector<16x8xf32> to vector<1x16x8xf32>
    %41 = vector.broadcast %38 : vector<16x1x8xf32> to vector<16x16x8xf32>
    %42 = vector.broadcast %40 : vector<1x16x8xf32> to vector<16x16x8xf32>
    %43 = arith.mulf %41, %42 : vector<16x16x8xf32>
    %44 = arith.addf %36, %43 : vector<16x16x8xf32>
    %cst_13 = arith.constant dense<0xFF800000> : vector<16x8xf32>
    %45 = vector.multi_reduction <maximumf>, %44, %cst_13 [1] : vector<16x16x8xf32> to vector<16x8xf32>
    %46 = vector.shape_cast %45 : vector<16x8xf32> to vector<16x1x8xf32>
    %47 = vector.broadcast %46 : vector<16x1x8xf32> to vector<16x16x8xf32>
    %48 = arith.subf %44, %47 : vector<16x16x8xf32>
    %49 = math.exp %48 : vector<16x16x8xf32>
    %cst_14 = arith.constant dense<0.000000e+00> : vector<16x8xf32>
    %50 = vector.multi_reduction <add>, %49, %cst_14 [1] : vector<16x16x8xf32> to vector<16x8xf32>
    %51 = vector.shape_cast %50 : vector<16x8xf32> to vector<16x1x8xf32>
    %52 = tpu.reciprocal %51 {approx = true} : vector<16x1x8xf32> -> vector<16x1x8xf32>
    %53 = vector.broadcast %52 : vector<16x1x8xf32> to vector<16x16x8xf32>
    %54 = arith.mulf %49, %53 : vector<16x16x8xf32>
    %55 = vector.extract_strided_slice %13 {offsets = [256, 0], sizes = [16, 8], strides = [1, 1]} : vector<384x8xf32> to vector<16x8xf32>
    %56 = vector.shape_cast %55 : vector<16x8xf32> to vector<1x16x8xf32>
    %57 = vector.broadcast %56 : vector<1x16x8xf32> to vector<16x16x8xf32>
    %58 = arith.mulf %54, %57 : vector<16x16x8xf32>
    %cst_15 = arith.constant dense<0.000000e+00> : vector<16x8xf32>
    %59 = vector.multi_reduction <add>, %58, %cst_15 [1] : vector<16x16x8xf32> to vector<16x8xf32>
    %60 = vector.extract_strided_slice %13 {offsets = [272, 0], sizes = [16, 8], strides = [1, 1]} : vector<384x8xf32> to vector<16x8xf32>
    %61 = vector.shape_cast %60 : vector<16x8xf32> to vector<1x16x8xf32>
    %62 = vector.broadcast %61 : vector<1x16x8xf32> to vector<16x16x8xf32>
    %63 = arith.mulf %54, %62 : vector<16x16x8xf32>
    %cst_16 = arith.constant dense<0.000000e+00> : vector<16x8xf32>
    %64 = vector.multi_reduction <add>, %63, %cst_16 [1] : vector<16x16x8xf32> to vector<16x8xf32>
    %65 = vector.extract_strided_slice %13 {offsets = [288, 0], sizes = [16, 8], strides = [1, 1]} : vector<384x8xf32> to vector<16x8xf32>
    %66 = vector.shape_cast %65 : vector<16x8xf32> to vector<1x16x8xf32>
    %67 = vector.broadcast %66 : vector<1x16x8xf32> to vector<16x16x8xf32>
    %68 = arith.mulf %54, %67 : vector<16x16x8xf32>
    %cst_17 = arith.constant dense<0.000000e+00> : vector<16x8xf32>
    %69 = vector.multi_reduction <add>, %68, %cst_17 [1] : vector<16x16x8xf32> to vector<16x8xf32>
    %70 = vector.extract_strided_slice %13 {offsets = [304, 0], sizes = [16, 8], strides = [1, 1]} : vector<384x8xf32> to vector<16x8xf32>
    %71 = vector.shape_cast %70 : vector<16x8xf32> to vector<1x16x8xf32>
    %72 = vector.broadcast %71 : vector<1x16x8xf32> to vector<16x16x8xf32>
    %73 = arith.mulf %54, %72 : vector<16x16x8xf32>
    %cst_18 = arith.constant dense<0.000000e+00> : vector<16x8xf32>
    %74 = vector.multi_reduction <add>, %73, %cst_18 [1] : vector<16x16x8xf32> to vector<16x8xf32>
    %75 = vector.extract_strided_slice %13 {offsets = [64, 0], sizes = [16, 8], strides = [1, 1]} : vector<384x8xf32> to vector<16x8xf32>
    %76 = vector.shape_cast %75 : vector<16x8xf32> to vector<16x1x8xf32>
    %77 = vector.extract_strided_slice %13 {offsets = [192, 0], sizes = [16, 8], strides = [1, 1]} : vector<384x8xf32> to vector<16x8xf32>
    %78 = vector.shape_cast %77 : vector<16x8xf32> to vector<1x16x8xf32>
    %79 = vector.broadcast %76 : vector<16x1x8xf32> to vector<16x16x8xf32>
    %80 = vector.broadcast %78 : vector<1x16x8xf32> to vector<16x16x8xf32>
    %81 = arith.mulf %79, %80 : vector<16x16x8xf32>
    %82 = vector.extract_strided_slice %13 {offsets = [80, 0], sizes = [16, 8], strides = [1, 1]} : vector<384x8xf32> to vector<16x8xf32>
    %83 = vector.shape_cast %82 : vector<16x8xf32> to vector<16x1x8xf32>
    %84 = vector.extract_strided_slice %13 {offsets = [208, 0], sizes = [16, 8], strides = [1, 1]} : vector<384x8xf32> to vector<16x8xf32>
    %85 = vector.shape_cast %84 : vector<16x8xf32> to vector<1x16x8xf32>
    %86 = vector.broadcast %83 : vector<16x1x8xf32> to vector<16x16x8xf32>
    %87 = vector.broadcast %85 : vector<1x16x8xf32> to vector<16x16x8xf32>
    %88 = arith.mulf %86, %87 : vector<16x16x8xf32>
    %89 = arith.addf %81, %88 : vector<16x16x8xf32>
    %90 = vector.extract_strided_slice %13 {offsets = [96, 0], sizes = [16, 8], strides = [1, 1]} : vector<384x8xf32> to vector<16x8xf32>
    %91 = vector.shape_cast %90 : vector<16x8xf32> to vector<16x1x8xf32>
    %92 = vector.extract_strided_slice %13 {offsets = [224, 0], sizes = [16, 8], strides = [1, 1]} : vector<384x8xf32> to vector<16x8xf32>
    %93 = vector.shape_cast %92 : vector<16x8xf32> to vector<1x16x8xf32>
    %94 = vector.broadcast %91 : vector<16x1x8xf32> to vector<16x16x8xf32>
    %95 = vector.broadcast %93 : vector<1x16x8xf32> to vector<16x16x8xf32>
    %96 = arith.mulf %94, %95 : vector<16x16x8xf32>
    %97 = arith.addf %89, %96 : vector<16x16x8xf32>
    %98 = vector.extract_strided_slice %13 {offsets = [112, 0], sizes = [16, 8], strides = [1, 1]} : vector<384x8xf32> to vector<16x8xf32>
    %99 = vector.shape_cast %98 : vector<16x8xf32> to vector<16x1x8xf32>
    %100 = vector.extract_strided_slice %13 {offsets = [240, 0], sizes = [16, 8], strides = [1, 1]} : vector<384x8xf32> to vector<16x8xf32>
    %101 = vector.shape_cast %100 : vector<16x8xf32> to vector<1x16x8xf32>
    %102 = vector.broadcast %99 : vector<16x1x8xf32> to vector<16x16x8xf32>
    %103 = vector.broadcast %101 : vector<1x16x8xf32> to vector<16x16x8xf32>
    %104 = arith.mulf %102, %103 : vector<16x16x8xf32>
    %105 = arith.addf %97, %104 : vector<16x16x8xf32>
    %cst_19 = arith.constant dense<0xFF800000> : vector<16x8xf32>
    %106 = vector.multi_reduction <maximumf>, %105, %cst_19 [1] : vector<16x16x8xf32> to vector<16x8xf32>
    %107 = vector.shape_cast %106 : vector<16x8xf32> to vector<16x1x8xf32>
    %108 = vector.broadcast %107 : vector<16x1x8xf32> to vector<16x16x8xf32>
    %109 = arith.subf %105, %108 : vector<16x16x8xf32>
    %110 = math.exp %109 : vector<16x16x8xf32>
    %cst_20 = arith.constant dense<0.000000e+00> : vector<16x8xf32>
    %111 = vector.multi_reduction <add>, %110, %cst_20 [1] : vector<16x16x8xf32> to vector<16x8xf32>
    %112 = vector.shape_cast %111 : vector<16x8xf32> to vector<16x1x8xf32>
    %113 = tpu.reciprocal %112 {approx = true} : vector<16x1x8xf32> -> vector<16x1x8xf32>
    %114 = vector.broadcast %113 : vector<16x1x8xf32> to vector<16x16x8xf32>
    %115 = arith.mulf %110, %114 : vector<16x16x8xf32>
    %116 = vector.extract_strided_slice %13 {offsets = [320, 0], sizes = [16, 8], strides = [1, 1]} : vector<384x8xf32> to vector<16x8xf32>
    %117 = vector.shape_cast %116 : vector<16x8xf32> to vector<1x16x8xf32>
    %118 = vector.broadcast %117 : vector<1x16x8xf32> to vector<16x16x8xf32>
    %119 = arith.mulf %115, %118 : vector<16x16x8xf32>
    %cst_21 = arith.constant dense<0.000000e+00> : vector<16x8xf32>
    %120 = vector.multi_reduction <add>, %119, %cst_21 [1] : vector<16x16x8xf32> to vector<16x8xf32>
    %121 = vector.extract_strided_slice %13 {offsets = [336, 0], sizes = [16, 8], strides = [1, 1]} : vector<384x8xf32> to vector<16x8xf32>
    %122 = vector.shape_cast %121 : vector<16x8xf32> to vector<1x16x8xf32>
    %123 = vector.broadcast %122 : vector<1x16x8xf32> to vector<16x16x8xf32>
    %124 = arith.mulf %115, %123 : vector<16x16x8xf32>
    %cst_22 = arith.constant dense<0.000000e+00> : vector<16x8xf32>
    %125 = vector.multi_reduction <add>, %124, %cst_22 [1] : vector<16x16x8xf32> to vector<16x8xf32>
    %126 = vector.extract_strided_slice %13 {offsets = [352, 0], sizes = [16, 8], strides = [1, 1]} : vector<384x8xf32> to vector<16x8xf32>
    %127 = vector.shape_cast %126 : vector<16x8xf32> to vector<1x16x8xf32>
    %128 = vector.broadcast %127 : vector<1x16x8xf32> to vector<16x16x8xf32>
    %129 = arith.mulf %115, %128 : vector<16x16x8xf32>
    %cst_23 = arith.constant dense<0.000000e+00> : vector<16x8xf32>
    %130 = vector.multi_reduction <add>, %129, %cst_23 [1] : vector<16x16x8xf32> to vector<16x8xf32>
    %131 = vector.extract_strided_slice %13 {offsets = [368, 0], sizes = [16, 8], strides = [1, 1]} : vector<384x8xf32> to vector<16x8xf32>
    %132 = vector.shape_cast %131 : vector<16x8xf32> to vector<1x16x8xf32>
    %133 = vector.broadcast %132 : vector<1x16x8xf32> to vector<16x16x8xf32>
    %134 = arith.mulf %115, %133 : vector<16x16x8xf32>
    %cst_24 = arith.constant dense<0.000000e+00> : vector<16x8xf32>
    %135 = vector.multi_reduction <add>, %134, %cst_24 [1] : vector<16x16x8xf32> to vector<16x8xf32>
    %136 = tpu.concatenate %59, %64, %69, %74, %120, %125, %130, %135 in 0 : vector<16x8xf32>, vector<16x8xf32>, vector<16x8xf32>, vector<16x8xf32>, vector<16x8xf32>, vector<16x8xf32>, vector<16x8xf32>, vector<16x8xf32> -> vector<128x8xf32>
    %c0_25 = arith.constant 0 : index
    %c0_26 = arith.constant 0 : index
    %c0_27 = arith.constant 0 : index
    %137 = vector.load %arg6[%c0_25, %c0_26, %c0_27] : memref<2x128x128xf32, #tpu.memory_space<vmem>>, vector<1x128x128xf32>
    %138 = vector.shape_cast %137 : vector<1x128x128xf32> to vector<128x128xf32>
    %cst_28 = arith.constant dense<0.000000e+00> : vector<128x8xf32>
    %139 = tpu.matmul %138, %136, %cst_28 {dimension_numbers = #tpu.dot_dimension_numbers<[1], [0], [0], [1], [0, 0, 1, 1], [], []>} : vector<128x128xf32>, vector<128x8xf32>, vector<128x8xf32> -> vector<128x8xf32>
    %c0_29 = arith.constant 0 : index
    %c0_30 = arith.constant 0 : index
    %c0_31 = arith.constant 0 : index
    %140 = vector.load %arg7[%c0_29, %c0_30, %c0_31] : memref<2x128x1xf32, #tpu.memory_space<vmem>>, vector<1x128x1xf32>
    %141 = vector.shape_cast %140 : vector<1x128x1xf32> to vector<128x1xf32>
    %142 = vector.broadcast %141 : vector<128x1xf32> to vector<128x8xf32>
    %143 = arith.addf %139, %142 : vector<128x8xf32>
    %144 = arith.addf %6, %143 : vector<128x8xf32>
    %c0_32 = arith.constant 0 : index
    %c0_33 = arith.constant 0 : index
    %c0_34 = arith.constant 0 : index
    %145 = vector.load %arg8[%c0_32, %c0_33, %c0_34] : memref<2x128x1xf32, #tpu.memory_space<vmem>>, vector<1x128x1xf32>
    %146 = vector.shape_cast %145 : vector<1x128x1xf32> to vector<128x1xf32>
    %c0_35 = arith.constant 0 : index
    %c0_36 = arith.constant 0 : index
    %c0_37 = arith.constant 0 : index
    %147 = vector.load %arg9[%c0_35, %c0_36, %c0_37] : memref<2x128x1xf32, #tpu.memory_space<vmem>>, vector<1x128x1xf32>
    %148 = vector.shape_cast %147 : vector<1x128x1xf32> to vector<128x1xf32>
    %149 = vector.shape_cast %144 : vector<128x8xf32> to vector<8x16x8xf32>
    %cst_38 = arith.constant dense<0.000000e+00> : vector<16x8xf32>
    %150 = vector.multi_reduction <add>, %149, %cst_38 [0] : vector<8x16x8xf32> to vector<16x8xf32>
    %151 = vector.shape_cast %150 : vector<16x8xf32> to vector<1x16x8xf32>
    %cst_39 = arith.constant 8.000000e+00 : f32
    %152 = vector.broadcast %cst_39 : f32 to vector<1x16x8xf32>
    %153 = arith.divf %151, %152 : vector<1x16x8xf32>
    %154 = vector.broadcast %153 : vector<1x16x8xf32> to vector<8x16x8xf32>
    %155 = arith.subf %149, %154 : vector<8x16x8xf32>
    %156 = arith.mulf %155, %155 : vector<8x16x8xf32>
    %cst_40 = arith.constant dense<0.000000e+00> : vector<16x8xf32>
    %157 = vector.multi_reduction <add>, %156, %cst_40 [0] : vector<8x16x8xf32> to vector<16x8xf32>
    %158 = vector.shape_cast %157 : vector<16x8xf32> to vector<1x16x8xf32>
    %cst_41 = arith.constant 8.000000e+00 : f32
    %159 = vector.broadcast %cst_41 : f32 to vector<1x16x8xf32>
    %160 = arith.divf %158, %159 : vector<1x16x8xf32>
    %161 = vector.broadcast %153 : vector<1x16x8xf32> to vector<8x16x8xf32>
    %162 = arith.subf %149, %161 : vector<8x16x8xf32>
    %cst_42 = arith.constant 9.99999974E-6 : f32
    %163 = vector.broadcast %cst_42 : f32 to vector<1x16x8xf32>
    %164 = arith.addf %160, %163 : vector<1x16x8xf32>
    %165 = math.rsqrt %164 : vector<1x16x8xf32>
    %166 = vector.broadcast %165 : vector<1x16x8xf32> to vector<8x16x8xf32>
    %167 = arith.mulf %162, %166 : vector<8x16x8xf32>
    %168 = vector.shape_cast %167 : vector<8x16x8xf32> to vector<128x8xf32>
    %169 = vector.broadcast %146 : vector<128x1xf32> to vector<128x8xf32>
    %170 = arith.mulf %168, %169 : vector<128x8xf32>
    %171 = vector.broadcast %148 : vector<128x1xf32> to vector<128x8xf32>
    %172 = arith.addf %170, %171 : vector<128x8xf32>
    %c0_43 = arith.constant 0 : index
    %c0_44 = arith.constant 0 : index
    %c0_45 = arith.constant 0 : index
    %173 = vector.load %arg10[%c0_43, %c0_44, %c0_45] : memref<2x512x128xf32, #tpu.memory_space<vmem>>, vector<1x512x128xf32>
    %174 = vector.shape_cast %173 : vector<1x512x128xf32> to vector<512x128xf32>
    %cst_46 = arith.constant dense<0.000000e+00> : vector<512x8xf32>
    %175 = tpu.matmul %174, %172, %cst_46 {dimension_numbers = #tpu.dot_dimension_numbers<[1], [0], [0], [1], [0, 0, 1, 1], [], []>} : vector<512x128xf32>, vector<128x8xf32>, vector<512x8xf32> -> vector<512x8xf32>
    %c0_47 = arith.constant 0 : index
    %c0_48 = arith.constant 0 : index
    %c0_49 = arith.constant 0 : index
    %176 = vector.load %arg11[%c0_47, %c0_48, %c0_49] : memref<2x512x1xf32, #tpu.memory_space<vmem>>, vector<1x512x1xf32>
    %177 = vector.shape_cast %176 : vector<1x512x1xf32> to vector<512x1xf32>
    %178 = vector.broadcast %177 : vector<512x1xf32> to vector<512x8xf32>
    %179 = arith.addf %175, %178 : vector<512x8xf32>
    %cst_50 = arith.constant 0.000000e+00 : f32
    %180 = vector.broadcast %cst_50 : f32 to vector<512x8xf32>
    %181 = arith.maximumf %179, %180 : vector<512x8xf32>
    %c0_51 = arith.constant 0 : index
    %c0_52 = arith.constant 0 : index
    %c0_53 = arith.constant 0 : index
    %182 = vector.load %arg12[%c0_51, %c0_52, %c0_53] : memref<2x128x512xf32, #tpu.memory_space<vmem>>, vector<1x128x512xf32>
    %183 = vector.shape_cast %182 : vector<1x128x512xf32> to vector<128x512xf32>
    %cst_54 = arith.constant dense<0.000000e+00> : vector<128x8xf32>
    %184 = tpu.matmul %183, %181, %cst_54 {dimension_numbers = #tpu.dot_dimension_numbers<[1], [0], [0], [1], [0, 0, 1, 1], [], []>} : vector<128x512xf32>, vector<512x8xf32>, vector<128x8xf32> -> vector<128x8xf32>
    %c0_55 = arith.constant 0 : index
    %c0_56 = arith.constant 0 : index
    %c0_57 = arith.constant 0 : index
    %185 = vector.load %arg13[%c0_55, %c0_56, %c0_57] : memref<2x128x1xf32, #tpu.memory_space<vmem>>, vector<1x128x1xf32>
    %186 = vector.shape_cast %185 : vector<1x128x1xf32> to vector<128x1xf32>
    %187 = vector.broadcast %186 : vector<128x1xf32> to vector<128x8xf32>
    %188 = arith.addf %184, %187 : vector<128x8xf32>
    %189 = arith.addf %172, %188 : vector<128x8xf32>
    %c0_58 = arith.constant 0 : index
    %c0_59 = arith.constant 0 : index
    %c0_60 = arith.constant 0 : index
    %190 = vector.load %arg14[%c0_58, %c0_59, %c0_60] : memref<2x128x1xf32, #tpu.memory_space<vmem>>, vector<1x128x1xf32>
    %191 = vector.shape_cast %190 : vector<1x128x1xf32> to vector<128x1xf32>
    %c0_61 = arith.constant 0 : index
    %c0_62 = arith.constant 0 : index
    %c0_63 = arith.constant 0 : index
    %192 = vector.load %arg15[%c0_61, %c0_62, %c0_63] : memref<2x128x1xf32, #tpu.memory_space<vmem>>, vector<1x128x1xf32>
    %193 = vector.shape_cast %192 : vector<1x128x1xf32> to vector<128x1xf32>
    %194 = vector.shape_cast %189 : vector<128x8xf32> to vector<8x16x8xf32>
    %cst_64 = arith.constant dense<0.000000e+00> : vector<16x8xf32>
    %195 = vector.multi_reduction <add>, %194, %cst_64 [0] : vector<8x16x8xf32> to vector<16x8xf32>
    %196 = vector.shape_cast %195 : vector<16x8xf32> to vector<1x16x8xf32>
    %cst_65 = arith.constant 8.000000e+00 : f32
    %197 = vector.broadcast %cst_65 : f32 to vector<1x16x8xf32>
    %198 = arith.divf %196, %197 : vector<1x16x8xf32>
    %199 = vector.broadcast %198 : vector<1x16x8xf32> to vector<8x16x8xf32>
    %200 = arith.subf %194, %199 : vector<8x16x8xf32>
    %201 = arith.mulf %200, %200 : vector<8x16x8xf32>
    %cst_66 = arith.constant dense<0.000000e+00> : vector<16x8xf32>
    %202 = vector.multi_reduction <add>, %201, %cst_66 [0] : vector<8x16x8xf32> to vector<16x8xf32>
    %203 = vector.shape_cast %202 : vector<16x8xf32> to vector<1x16x8xf32>
    %cst_67 = arith.constant 8.000000e+00 : f32
    %204 = vector.broadcast %cst_67 : f32 to vector<1x16x8xf32>
    %205 = arith.divf %203, %204 : vector<1x16x8xf32>
    %206 = vector.broadcast %198 : vector<1x16x8xf32> to vector<8x16x8xf32>
    %207 = arith.subf %194, %206 : vector<8x16x8xf32>
    %cst_68 = arith.constant 9.99999974E-6 : f32
    %208 = vector.broadcast %cst_68 : f32 to vector<1x16x8xf32>
    %209 = arith.addf %205, %208 : vector<1x16x8xf32>
    %210 = math.rsqrt %209 : vector<1x16x8xf32>
    %211 = vector.broadcast %210 : vector<1x16x8xf32> to vector<8x16x8xf32>
    %212 = arith.mulf %207, %211 : vector<8x16x8xf32>
    %213 = vector.shape_cast %212 : vector<8x16x8xf32> to vector<128x8xf32>
    %214 = vector.broadcast %191 : vector<128x1xf32> to vector<128x8xf32>
    %215 = arith.mulf %213, %214 : vector<128x8xf32>
    %216 = vector.broadcast %193 : vector<128x1xf32> to vector<128x8xf32>
    %217 = arith.addf %215, %216 : vector<128x8xf32>
    %c1 = arith.constant 1 : index
    %c0_69 = arith.constant 0 : index
    %c0_70 = arith.constant 0 : index
    %218 = vector.load %arg4[%c1, %c0_69, %c0_70] : memref<2x384x128xf32, #tpu.memory_space<vmem>>, vector<1x384x128xf32>
    %219 = vector.shape_cast %218 : vector<1x384x128xf32> to vector<384x128xf32>
    %cst_71 = arith.constant dense<0.000000e+00> : vector<384x8xf32>
    %220 = tpu.matmul %219, %217, %cst_71 {dimension_numbers = #tpu.dot_dimension_numbers<[1], [0], [0], [1], [0, 0, 1, 1], [], []>} : vector<384x128xf32>, vector<128x8xf32>, vector<384x8xf32> -> vector<384x8xf32>
    %c1_72 = arith.constant 1 : index
    %c0_73 = arith.constant 0 : index
    %c0_74 = arith.constant 0 : index
    %221 = vector.load %arg5[%c1_72, %c0_73, %c0_74] : memref<2x384x1xf32, #tpu.memory_space<vmem>>, vector<1x384x1xf32>
    %222 = vector.shape_cast %221 : vector<1x384x1xf32> to vector<384x1xf32>
    %223 = vector.broadcast %222 : vector<384x1xf32> to vector<384x8xf32>
    %224 = arith.addf %220, %223 : vector<384x8xf32>
    %225 = vector.extract_strided_slice %224 {offsets = [0, 0], sizes = [16, 8], strides = [1, 1]} : vector<384x8xf32> to vector<16x8xf32>
    %226 = vector.shape_cast %225 : vector<16x8xf32> to vector<16x1x8xf32>
    %227 = vector.extract_strided_slice %224 {offsets = [128, 0], sizes = [16, 8], strides = [1, 1]} : vector<384x8xf32> to vector<16x8xf32>
    %228 = vector.shape_cast %227 : vector<16x8xf32> to vector<1x16x8xf32>
    %229 = vector.broadcast %226 : vector<16x1x8xf32> to vector<16x16x8xf32>
    %230 = vector.broadcast %228 : vector<1x16x8xf32> to vector<16x16x8xf32>
    %231 = arith.mulf %229, %230 : vector<16x16x8xf32>
    %232 = vector.extract_strided_slice %224 {offsets = [16, 0], sizes = [16, 8], strides = [1, 1]} : vector<384x8xf32> to vector<16x8xf32>
    %233 = vector.shape_cast %232 : vector<16x8xf32> to vector<16x1x8xf32>
    %234 = vector.extract_strided_slice %224 {offsets = [144, 0], sizes = [16, 8], strides = [1, 1]} : vector<384x8xf32> to vector<16x8xf32>
    %235 = vector.shape_cast %234 : vector<16x8xf32> to vector<1x16x8xf32>
    %236 = vector.broadcast %233 : vector<16x1x8xf32> to vector<16x16x8xf32>
    %237 = vector.broadcast %235 : vector<1x16x8xf32> to vector<16x16x8xf32>
    %238 = arith.mulf %236, %237 : vector<16x16x8xf32>
    %239 = arith.addf %231, %238 : vector<16x16x8xf32>
    %240 = vector.extract_strided_slice %224 {offsets = [32, 0], sizes = [16, 8], strides = [1, 1]} : vector<384x8xf32> to vector<16x8xf32>
    %241 = vector.shape_cast %240 : vector<16x8xf32> to vector<16x1x8xf32>
    %242 = vector.extract_strided_slice %224 {offsets = [160, 0], sizes = [16, 8], strides = [1, 1]} : vector<384x8xf32> to vector<16x8xf32>
    %243 = vector.shape_cast %242 : vector<16x8xf32> to vector<1x16x8xf32>
    %244 = vector.broadcast %241 : vector<16x1x8xf32> to vector<16x16x8xf32>
    %245 = vector.broadcast %243 : vector<1x16x8xf32> to vector<16x16x8xf32>
    %246 = arith.mulf %244, %245 : vector<16x16x8xf32>
    %247 = arith.addf %239, %246 : vector<16x16x8xf32>
    %248 = vector.extract_strided_slice %224 {offsets = [48, 0], sizes = [16, 8], strides = [1, 1]} : vector<384x8xf32> to vector<16x8xf32>
    %249 = vector.shape_cast %248 : vector<16x8xf32> to vector<16x1x8xf32>
    %250 = vector.extract_strided_slice %224 {offsets = [176, 0], sizes = [16, 8], strides = [1, 1]} : vector<384x8xf32> to vector<16x8xf32>
    %251 = vector.shape_cast %250 : vector<16x8xf32> to vector<1x16x8xf32>
    %252 = vector.broadcast %249 : vector<16x1x8xf32> to vector<16x16x8xf32>
    %253 = vector.broadcast %251 : vector<1x16x8xf32> to vector<16x16x8xf32>
    %254 = arith.mulf %252, %253 : vector<16x16x8xf32>
    %255 = arith.addf %247, %254 : vector<16x16x8xf32>
    %cst_75 = arith.constant dense<0xFF800000> : vector<16x8xf32>
    %256 = vector.multi_reduction <maximumf>, %255, %cst_75 [1] : vector<16x16x8xf32> to vector<16x8xf32>
    %257 = vector.shape_cast %256 : vector<16x8xf32> to vector<16x1x8xf32>
    %258 = vector.broadcast %257 : vector<16x1x8xf32> to vector<16x16x8xf32>
    %259 = arith.subf %255, %258 : vector<16x16x8xf32>
    %260 = math.exp %259 : vector<16x16x8xf32>
    %cst_76 = arith.constant dense<0.000000e+00> : vector<16x8xf32>
    %261 = vector.multi_reduction <add>, %260, %cst_76 [1] : vector<16x16x8xf32> to vector<16x8xf32>
    %262 = vector.shape_cast %261 : vector<16x8xf32> to vector<16x1x8xf32>
    %263 = tpu.reciprocal %262 {approx = true} : vector<16x1x8xf32> -> vector<16x1x8xf32>
    %264 = vector.broadcast %263 : vector<16x1x8xf32> to vector<16x16x8xf32>
    %265 = arith.mulf %260, %264 : vector<16x16x8xf32>
    %266 = vector.extract_strided_slice %224 {offsets = [256, 0], sizes = [16, 8], strides = [1, 1]} : vector<384x8xf32> to vector<16x8xf32>
    %267 = vector.shape_cast %266 : vector<16x8xf32> to vector<1x16x8xf32>
    %268 = vector.broadcast %267 : vector<1x16x8xf32> to vector<16x16x8xf32>
    %269 = arith.mulf %265, %268 : vector<16x16x8xf32>
    %cst_77 = arith.constant dense<0.000000e+00> : vector<16x8xf32>
    %270 = vector.multi_reduction <add>, %269, %cst_77 [1] : vector<16x16x8xf32> to vector<16x8xf32>
    %271 = vector.extract_strided_slice %224 {offsets = [272, 0], sizes = [16, 8], strides = [1, 1]} : vector<384x8xf32> to vector<16x8xf32>
    %272 = vector.shape_cast %271 : vector<16x8xf32> to vector<1x16x8xf32>
    %273 = vector.broadcast %272 : vector<1x16x8xf32> to vector<16x16x8xf32>
    %274 = arith.mulf %265, %273 : vector<16x16x8xf32>
    %cst_78 = arith.constant dense<0.000000e+00> : vector<16x8xf32>
    %275 = vector.multi_reduction <add>, %274, %cst_78 [1] : vector<16x16x8xf32> to vector<16x8xf32>
    %276 = vector.extract_strided_slice %224 {offsets = [288, 0], sizes = [16, 8], strides = [1, 1]} : vector<384x8xf32> to vector<16x8xf32>
    %277 = vector.shape_cast %276 : vector<16x8xf32> to vector<1x16x8xf32>
    %278 = vector.broadcast %277 : vector<1x16x8xf32> to vector<16x16x8xf32>
    %279 = arith.mulf %265, %278 : vector<16x16x8xf32>
    %cst_79 = arith.constant dense<0.000000e+00> : vector<16x8xf32>
    %280 = vector.multi_reduction <add>, %279, %cst_79 [1] : vector<16x16x8xf32> to vector<16x8xf32>
    %281 = vector.extract_strided_slice %224 {offsets = [304, 0], sizes = [16, 8], strides = [1, 1]} : vector<384x8xf32> to vector<16x8xf32>
    %282 = vector.shape_cast %281 : vector<16x8xf32> to vector<1x16x8xf32>
    %283 = vector.broadcast %282 : vector<1x16x8xf32> to vector<16x16x8xf32>
    %284 = arith.mulf %265, %283 : vector<16x16x8xf32>
    %cst_80 = arith.constant dense<0.000000e+00> : vector<16x8xf32>
    %285 = vector.multi_reduction <add>, %284, %cst_80 [1] : vector<16x16x8xf32> to vector<16x8xf32>
    %286 = vector.extract_strided_slice %224 {offsets = [64, 0], sizes = [16, 8], strides = [1, 1]} : vector<384x8xf32> to vector<16x8xf32>
    %287 = vector.shape_cast %286 : vector<16x8xf32> to vector<16x1x8xf32>
    %288 = vector.extract_strided_slice %224 {offsets = [192, 0], sizes = [16, 8], strides = [1, 1]} : vector<384x8xf32> to vector<16x8xf32>
    %289 = vector.shape_cast %288 : vector<16x8xf32> to vector<1x16x8xf32>
    %290 = vector.broadcast %287 : vector<16x1x8xf32> to vector<16x16x8xf32>
    %291 = vector.broadcast %289 : vector<1x16x8xf32> to vector<16x16x8xf32>
    %292 = arith.mulf %290, %291 : vector<16x16x8xf32>
    %293 = vector.extract_strided_slice %224 {offsets = [80, 0], sizes = [16, 8], strides = [1, 1]} : vector<384x8xf32> to vector<16x8xf32>
    %294 = vector.shape_cast %293 : vector<16x8xf32> to vector<16x1x8xf32>
    %295 = vector.extract_strided_slice %224 {offsets = [208, 0], sizes = [16, 8], strides = [1, 1]} : vector<384x8xf32> to vector<16x8xf32>
    %296 = vector.shape_cast %295 : vector<16x8xf32> to vector<1x16x8xf32>
    %297 = vector.broadcast %294 : vector<16x1x8xf32> to vector<16x16x8xf32>
    %298 = vector.broadcast %296 : vector<1x16x8xf32> to vector<16x16x8xf32>
    %299 = arith.mulf %297, %298 : vector<16x16x8xf32>
    %300 = arith.addf %292, %299 : vector<16x16x8xf32>
    %301 = vector.extract_strided_slice %224 {offsets = [96, 0], sizes = [16, 8], strides = [1, 1]} : vector<384x8xf32> to vector<16x8xf32>
    %302 = vector.shape_cast %301 : vector<16x8xf32> to vector<16x1x8xf32>
    %303 = vector.extract_strided_slice %224 {offsets = [224, 0], sizes = [16, 8], strides = [1, 1]} : vector<384x8xf32> to vector<16x8xf32>
    %304 = vector.shape_cast %303 : vector<16x8xf32> to vector<1x16x8xf32>
    %305 = vector.broadcast %302 : vector<16x1x8xf32> to vector<16x16x8xf32>
    %306 = vector.broadcast %304 : vector<1x16x8xf32> to vector<16x16x8xf32>
    %307 = arith.mulf %305, %306 : vector<16x16x8xf32>
    %308 = arith.addf %300, %307 : vector<16x16x8xf32>
    %309 = vector.extract_strided_slice %224 {offsets = [112, 0], sizes = [16, 8], strides = [1, 1]} : vector<384x8xf32> to vector<16x8xf32>
    %310 = vector.shape_cast %309 : vector<16x8xf32> to vector<16x1x8xf32>
    %311 = vector.extract_strided_slice %224 {offsets = [240, 0], sizes = [16, 8], strides = [1, 1]} : vector<384x8xf32> to vector<16x8xf32>
    %312 = vector.shape_cast %311 : vector<16x8xf32> to vector<1x16x8xf32>
    %313 = vector.broadcast %310 : vector<16x1x8xf32> to vector<16x16x8xf32>
    %314 = vector.broadcast %312 : vector<1x16x8xf32> to vector<16x16x8xf32>
    %315 = arith.mulf %313, %314 : vector<16x16x8xf32>
    %316 = arith.addf %308, %315 : vector<16x16x8xf32>
    %cst_81 = arith.constant dense<0xFF800000> : vector<16x8xf32>
    %317 = vector.multi_reduction <maximumf>, %316, %cst_81 [1] : vector<16x16x8xf32> to vector<16x8xf32>
    %318 = vector.shape_cast %317 : vector<16x8xf32> to vector<16x1x8xf32>
    %319 = vector.broadcast %318 : vector<16x1x8xf32> to vector<16x16x8xf32>
    %320 = arith.subf %316, %319 : vector<16x16x8xf32>
    %321 = math.exp %320 : vector<16x16x8xf32>
    %cst_82 = arith.constant dense<0.000000e+00> : vector<16x8xf32>
    %322 = vector.multi_reduction <add>, %321, %cst_82 [1] : vector<16x16x8xf32> to vector<16x8xf32>
    %323 = vector.shape_cast %322 : vector<16x8xf32> to vector<16x1x8xf32>
    %324 = tpu.reciprocal %323 {approx = true} : vector<16x1x8xf32> -> vector<16x1x8xf32>
    %325 = vector.broadcast %324 : vector<16x1x8xf32> to vector<16x16x8xf32>
    %326 = arith.mulf %321, %325 : vector<16x16x8xf32>
    %327 = vector.extract_strided_slice %224 {offsets = [320, 0], sizes = [16, 8], strides = [1, 1]} : vector<384x8xf32> to vector<16x8xf32>
    %328 = vector.shape_cast %327 : vector<16x8xf32> to vector<1x16x8xf32>
    %329 = vector.broadcast %328 : vector<1x16x8xf32> to vector<16x16x8xf32>
    %330 = arith.mulf %326, %329 : vector<16x16x8xf32>
    %cst_83 = arith.constant dense<0.000000e+00> : vector<16x8xf32>
    %331 = vector.multi_reduction <add>, %330, %cst_83 [1] : vector<16x16x8xf32> to vector<16x8xf32>
    %332 = vector.extract_strided_slice %224 {offsets = [336, 0], sizes = [16, 8], strides = [1, 1]} : vector<384x8xf32> to vector<16x8xf32>
    %333 = vector.shape_cast %332 : vector<16x8xf32> to vector<1x16x8xf32>
    %334 = vector.broadcast %333 : vector<1x16x8xf32> to vector<16x16x8xf32>
    %335 = arith.mulf %326, %334 : vector<16x16x8xf32>
    %cst_84 = arith.constant dense<0.000000e+00> : vector<16x8xf32>
    %336 = vector.multi_reduction <add>, %335, %cst_84 [1] : vector<16x16x8xf32> to vector<16x8xf32>
    %337 = vector.extract_strided_slice %224 {offsets = [352, 0], sizes = [16, 8], strides = [1, 1]} : vector<384x8xf32> to vector<16x8xf32>
    %338 = vector.shape_cast %337 : vector<16x8xf32> to vector<1x16x8xf32>
    %339 = vector.broadcast %338 : vector<1x16x8xf32> to vector<16x16x8xf32>
    %340 = arith.mulf %326, %339 : vector<16x16x8xf32>
    %cst_85 = arith.constant dense<0.000000e+00> : vector<16x8xf32>
    %341 = vector.multi_reduction <add>, %340, %cst_85 [1] : vector<16x16x8xf32> to vector<16x8xf32>
    %342 = vector.extract_strided_slice %224 {offsets = [368, 0], sizes = [16, 8], strides = [1, 1]} : vector<384x8xf32> to vector<16x8xf32>
    %343 = vector.shape_cast %342 : vector<16x8xf32> to vector<1x16x8xf32>
    %344 = vector.broadcast %343 : vector<1x16x8xf32> to vector<16x16x8xf32>
    %345 = arith.mulf %326, %344 : vector<16x16x8xf32>
    %cst_86 = arith.constant dense<0.000000e+00> : vector<16x8xf32>
    %346 = vector.multi_reduction <add>, %345, %cst_86 [1] : vector<16x16x8xf32> to vector<16x8xf32>
    %347 = tpu.concatenate %270, %275, %280, %285, %331, %336, %341, %346 in 0 : vector<16x8xf32>, vector<16x8xf32>, vector<16x8xf32>, vector<16x8xf32>, vector<16x8xf32>, vector<16x8xf32>, vector<16x8xf32>, vector<16x8xf32> -> vector<128x8xf32>
    %c1_87 = arith.constant 1 : index
    %c0_88 = arith.constant 0 : index
    %c0_89 = arith.constant 0 : index
    %348 = vector.load %arg6[%c1_87, %c0_88, %c0_89] : memref<2x128x128xf32, #tpu.memory_space<vmem>>, vector<1x128x128xf32>
    %349 = vector.shape_cast %348 : vector<1x128x128xf32> to vector<128x128xf32>
    %cst_90 = arith.constant dense<0.000000e+00> : vector<128x8xf32>
    %350 = tpu.matmul %349, %347, %cst_90 {dimension_numbers = #tpu.dot_dimension_numbers<[1], [0], [0], [1], [0, 0, 1, 1], [], []>} : vector<128x128xf32>, vector<128x8xf32>, vector<128x8xf32> -> vector<128x8xf32>
    %c1_91 = arith.constant 1 : index
    %c0_92 = arith.constant 0 : index
    %c0_93 = arith.constant 0 : index
    %351 = vector.load %arg7[%c1_91, %c0_92, %c0_93] : memref<2x128x1xf32, #tpu.memory_space<vmem>>, vector<1x128x1xf32>
    %352 = vector.shape_cast %351 : vector<1x128x1xf32> to vector<128x1xf32>
    %353 = vector.broadcast %352 : vector<128x1xf32> to vector<128x8xf32>
    %354 = arith.addf %350, %353 : vector<128x8xf32>
    %355 = arith.addf %217, %354 : vector<128x8xf32>
    %c1_94 = arith.constant 1 : index
    %c0_95 = arith.constant 0 : index
    %c0_96 = arith.constant 0 : index
    %356 = vector.load %arg8[%c1_94, %c0_95, %c0_96] : memref<2x128x1xf32, #tpu.memory_space<vmem>>, vector<1x128x1xf32>
    %357 = vector.shape_cast %356 : vector<1x128x1xf32> to vector<128x1xf32>
    %c1_97 = arith.constant 1 : index
    %c0_98 = arith.constant 0 : index
    %c0_99 = arith.constant 0 : index
    %358 = vector.load %arg9[%c1_97, %c0_98, %c0_99] : memref<2x128x1xf32, #tpu.memory_space<vmem>>, vector<1x128x1xf32>
    %359 = vector.shape_cast %358 : vector<1x128x1xf32> to vector<128x1xf32>
    %360 = vector.shape_cast %355 : vector<128x8xf32> to vector<8x16x8xf32>
    %cst_100 = arith.constant dense<0.000000e+00> : vector<16x8xf32>
    %361 = vector.multi_reduction <add>, %360, %cst_100 [0] : vector<8x16x8xf32> to vector<16x8xf32>
    %362 = vector.shape_cast %361 : vector<16x8xf32> to vector<1x16x8xf32>
    %cst_101 = arith.constant 8.000000e+00 : f32
    %363 = vector.broadcast %cst_101 : f32 to vector<1x16x8xf32>
    %364 = arith.divf %362, %363 : vector<1x16x8xf32>
    %365 = vector.broadcast %364 : vector<1x16x8xf32> to vector<8x16x8xf32>
    %366 = arith.subf %360, %365 : vector<8x16x8xf32>
    %367 = arith.mulf %366, %366 : vector<8x16x8xf32>
    %cst_102 = arith.constant dense<0.000000e+00> : vector<16x8xf32>
    %368 = vector.multi_reduction <add>, %367, %cst_102 [0] : vector<8x16x8xf32> to vector<16x8xf32>
    %369 = vector.shape_cast %368 : vector<16x8xf32> to vector<1x16x8xf32>
    %cst_103 = arith.constant 8.000000e+00 : f32
    %370 = vector.broadcast %cst_103 : f32 to vector<1x16x8xf32>
    %371 = arith.divf %369, %370 : vector<1x16x8xf32>
    %372 = vector.broadcast %364 : vector<1x16x8xf32> to vector<8x16x8xf32>
    %373 = arith.subf %360, %372 : vector<8x16x8xf32>
    %cst_104 = arith.constant 9.99999974E-6 : f32
    %374 = vector.broadcast %cst_104 : f32 to vector<1x16x8xf32>
    %375 = arith.addf %371, %374 : vector<1x16x8xf32>
    %376 = math.rsqrt %375 : vector<1x16x8xf32>
    %377 = vector.broadcast %376 : vector<1x16x8xf32> to vector<8x16x8xf32>
    %378 = arith.mulf %373, %377 : vector<8x16x8xf32>
    %379 = vector.shape_cast %378 : vector<8x16x8xf32> to vector<128x8xf32>
    %380 = vector.broadcast %357 : vector<128x1xf32> to vector<128x8xf32>
    %381 = arith.mulf %379, %380 : vector<128x8xf32>
    %382 = vector.broadcast %359 : vector<128x1xf32> to vector<128x8xf32>
    %383 = arith.addf %381, %382 : vector<128x8xf32>
    %c1_105 = arith.constant 1 : index
    %c0_106 = arith.constant 0 : index
    %c0_107 = arith.constant 0 : index
    %384 = vector.load %arg10[%c1_105, %c0_106, %c0_107] : memref<2x512x128xf32, #tpu.memory_space<vmem>>, vector<1x512x128xf32>
    %385 = vector.shape_cast %384 : vector<1x512x128xf32> to vector<512x128xf32>
    %cst_108 = arith.constant dense<0.000000e+00> : vector<512x8xf32>
    %386 = tpu.matmul %385, %383, %cst_108 {dimension_numbers = #tpu.dot_dimension_numbers<[1], [0], [0], [1], [0, 0, 1, 1], [], []>} : vector<512x128xf32>, vector<128x8xf32>, vector<512x8xf32> -> vector<512x8xf32>
    %c1_109 = arith.constant 1 : index
    %c0_110 = arith.constant 0 : index
    %c0_111 = arith.constant 0 : index
    %387 = vector.load %arg11[%c1_109, %c0_110, %c0_111] : memref<2x512x1xf32, #tpu.memory_space<vmem>>, vector<1x512x1xf32>
    %388 = vector.shape_cast %387 : vector<1x512x1xf32> to vector<512x1xf32>
    %389 = vector.broadcast %388 : vector<512x1xf32> to vector<512x8xf32>
    %390 = arith.addf %386, %389 : vector<512x8xf32>
    %cst_112 = arith.constant 0.000000e+00 : f32
    %391 = vector.broadcast %cst_112 : f32 to vector<512x8xf32>
    %392 = arith.maximumf %390, %391 : vector<512x8xf32>
    %c1_113 = arith.constant 1 : index
    %c0_114 = arith.constant 0 : index
    %c0_115 = arith.constant 0 : index
    %393 = vector.load %arg12[%c1_113, %c0_114, %c0_115] : memref<2x128x512xf32, #tpu.memory_space<vmem>>, vector<1x128x512xf32>
    %394 = vector.shape_cast %393 : vector<1x128x512xf32> to vector<128x512xf32>
    %cst_116 = arith.constant dense<0.000000e+00> : vector<128x8xf32>
    %395 = tpu.matmul %394, %392, %cst_116 {dimension_numbers = #tpu.dot_dimension_numbers<[1], [0], [0], [1], [0, 0, 1, 1], [], []>} : vector<128x512xf32>, vector<512x8xf32>, vector<128x8xf32> -> vector<128x8xf32>
    %c1_117 = arith.constant 1 : index
    %c0_118 = arith.constant 0 : index
    %c0_119 = arith.constant 0 : index
    %396 = vector.load %arg13[%c1_117, %c0_118, %c0_119] : memref<2x128x1xf32, #tpu.memory_space<vmem>>, vector<1x128x1xf32>
    %397 = vector.shape_cast %396 : vector<1x128x1xf32> to vector<128x1xf32>
    %398 = vector.broadcast %397 : vector<128x1xf32> to vector<128x8xf32>
    %399 = arith.addf %395, %398 : vector<128x8xf32>
    %400 = arith.addf %383, %399 : vector<128x8xf32>
    %c1_120 = arith.constant 1 : index
    %c0_121 = arith.constant 0 : index
    %c0_122 = arith.constant 0 : index
    %401 = vector.load %arg14[%c1_120, %c0_121, %c0_122] : memref<2x128x1xf32, #tpu.memory_space<vmem>>, vector<1x128x1xf32>
    %402 = vector.shape_cast %401 : vector<1x128x1xf32> to vector<128x1xf32>
    %c1_123 = arith.constant 1 : index
    %c0_124 = arith.constant 0 : index
    %c0_125 = arith.constant 0 : index
    %403 = vector.load %arg15[%c1_123, %c0_124, %c0_125] : memref<2x128x1xf32, #tpu.memory_space<vmem>>, vector<1x128x1xf32>
    %404 = vector.shape_cast %403 : vector<1x128x1xf32> to vector<128x1xf32>
    %405 = vector.shape_cast %400 : vector<128x8xf32> to vector<8x16x8xf32>
    %cst_126 = arith.constant dense<0.000000e+00> : vector<16x8xf32>
    %406 = vector.multi_reduction <add>, %405, %cst_126 [0] : vector<8x16x8xf32> to vector<16x8xf32>
    %407 = vector.shape_cast %406 : vector<16x8xf32> to vector<1x16x8xf32>
    %cst_127 = arith.constant 8.000000e+00 : f32
    %408 = vector.broadcast %cst_127 : f32 to vector<1x16x8xf32>
    %409 = arith.divf %407, %408 : vector<1x16x8xf32>
    %410 = vector.broadcast %409 : vector<1x16x8xf32> to vector<8x16x8xf32>
    %411 = arith.subf %405, %410 : vector<8x16x8xf32>
    %412 = arith.mulf %411, %411 : vector<8x16x8xf32>
    %cst_128 = arith.constant dense<0.000000e+00> : vector<16x8xf32>
    %413 = vector.multi_reduction <add>, %412, %cst_128 [0] : vector<8x16x8xf32> to vector<16x8xf32>
    %414 = vector.shape_cast %413 : vector<16x8xf32> to vector<1x16x8xf32>
    %cst_129 = arith.constant 8.000000e+00 : f32
    %415 = vector.broadcast %cst_129 : f32 to vector<1x16x8xf32>
    %416 = arith.divf %414, %415 : vector<1x16x8xf32>
    %417 = vector.broadcast %409 : vector<1x16x8xf32> to vector<8x16x8xf32>
    %418 = arith.subf %405, %417 : vector<8x16x8xf32>
    %cst_130 = arith.constant 9.99999974E-6 : f32
    %419 = vector.broadcast %cst_130 : f32 to vector<1x16x8xf32>
    %420 = arith.addf %416, %419 : vector<1x16x8xf32>
    %421 = math.rsqrt %420 : vector<1x16x8xf32>
    %422 = vector.broadcast %421 : vector<1x16x8xf32> to vector<8x16x8xf32>
    %423 = arith.mulf %418, %422 : vector<8x16x8xf32>
    %424 = vector.shape_cast %423 : vector<8x16x8xf32> to vector<128x8xf32>
    %425 = vector.broadcast %402 : vector<128x1xf32> to vector<128x8xf32>
    %426 = arith.mulf %424, %425 : vector<128x8xf32>
    %427 = vector.broadcast %404 : vector<128x1xf32> to vector<128x8xf32>
    %428 = arith.addf %426, %427 : vector<128x8xf32>
    %c0_131 = arith.constant 0 : index
    %c0_132 = arith.constant 0 : index
    %429 = vector.load %arg16[%c0_131, %c0_132] : memref<16x128xf32, #tpu.memory_space<vmem>>, vector<16x128xf32>
    %cst_133 = arith.constant dense<0.000000e+00> : vector<16x8xf32>
    %430 = tpu.matmul %429, %428, %cst_133 {dimension_numbers = #tpu.dot_dimension_numbers<[1], [0], [0], [1], [0, 0, 1, 1], [], []>} : vector<16x128xf32>, vector<128x8xf32>, vector<16x8xf32> -> vector<16x8xf32>
    %c0_134 = arith.constant 0 : index
    %c0_135 = arith.constant 0 : index
    %431 = vector.load %arg17[%c0_134, %c0_135] : memref<16x1xf32, #tpu.memory_space<vmem>>, vector<16x1xf32>
    %432 = vector.broadcast %431 : vector<16x1xf32> to vector<16x8xf32>
    %433 = arith.addf %430, %432 : vector<16x8xf32>
    %cst_136 = arith.constant 0.000000e+00 : f32
    %434 = vector.broadcast %cst_136 : f32 to vector<16x8xf32>
    %435 = arith.cmpf ogt, %433, %434 : vector<16x8xf32>
    %cst_137 = arith.constant 0.00999999977 : f32
    %436 = vector.broadcast %cst_137 : f32 to vector<16x8xf32>
    %437 = arith.mulf %436, %433 : vector<16x8xf32>
    %438 = arith.select %435, %433, %437 : vector<16x8xi1>, vector<16x8xf32>
    %c0_138 = arith.constant 0 : index
    %c0_139 = arith.constant 0 : index
    %439 = vector.load %arg18[%c0_138, %c0_139] : memref<8x16xf32, #tpu.memory_space<vmem>>, vector<8x16xf32>
    %cst_140 = arith.constant dense<0.000000e+00> : vector<8x8xf32>
    %440 = tpu.matmul %439, %438, %cst_140 {dimension_numbers = #tpu.dot_dimension_numbers<[1], [0], [0], [1], [0, 0, 1, 1], [], []>} : vector<8x16xf32>, vector<16x8xf32>, vector<8x8xf32> -> vector<8x8xf32>
    %c0_141 = arith.constant 0 : index
    %c0_142 = arith.constant 0 : index
    %441 = vector.load %arg19[%c0_141, %c0_142] : memref<8x1xf32, #tpu.memory_space<vmem>>, vector<8x1xf32>
    %442 = vector.broadcast %441 : vector<8x1xf32> to vector<8x8xf32>
    %443 = arith.addf %440, %442 : vector<8x8xf32>
    %c0_143 = arith.constant 0 : index
    %c0_144 = arith.constant 0 : index
    %c0_145 = arith.constant 0 : index
    %444 = vector.load %arg20[%c0_143, %c0_144, %c0_145] : memref<1x8x8xf32, #tpu.memory_space<vmem>>, vector<1x8x8xf32>
    %445 = vector.shape_cast %444 : vector<1x8x8xf32> to vector<8x8xf32>
    %446 = vector.shape_cast %443 : vector<8x8xf32> to vector<1x8x8xf32>
    tpu.vector_store %arg20[%c0_143, %c0_144, %c0_145], %446 {strides = array<i32>} : memref<1x8x8xf32, #tpu.memory_space<vmem>>, vector<1x8x8xf32>,
    return
  }
  func.func @transform_0(%arg0: i32) -> (i32, i32, i32) {
    %c0_i32 = arith.constant 0 : i32
    %c0_i32_0 = arith.constant 0 : i32
    %c0_i32_1 = arith.constant 0 : i32
    return %arg0, %c0_i32, %c0_i32_0 : i32, i32, i32
  }
  func.func @transform_1(%arg0: i32) -> (i32, i32) {
    %c0_i32 = arith.constant 0 : i32
    %c0_i32_0 = arith.constant 0 : i32
    %c0_i32_1 = arith.constant 0 : i32
    return %c0_i32, %c0_i32_0 : i32, i32
  }
  func.func @transform_2(%arg0: i32) -> (i32, i32) {
    %c0_i32 = arith.constant 0 : i32
    %c0_i32_0 = arith.constant 0 : i32
    %c0_i32_1 = arith.constant 0 : i32
    return %c0_i32, %c0_i32_0 : i32, i32
  }
  func.func @transform_3(%arg0: i32) -> (i32, i32, i32) {
    %c0_i32 = arith.constant 0 : i32
    %c0_i32_0 = arith.constant 0 : i32
    %c0_i32_1 = arith.constant 0 : i32
    %c0_i32_2 = arith.constant 0 : i32
    return %c0_i32, %c0_i32_0, %c0_i32_1 : i32, i32, i32
  }
  func.func @transform_4(%arg0: i32) -> (i32, i32, i32) {
    %c0_i32 = arith.constant 0 : i32
    %c0_i32_0 = arith.constant 0 : i32
    %c0_i32_1 = arith.constant 0 : i32
    %c0_i32_2 = arith.constant 0 : i32
    return %c0_i32, %c0_i32_0, %c0_i32_1 : i32, i32, i32
  }
  func.func @transform_5(%arg0: i32) -> (i32, i32, i32) {
    %c0_i32 = arith.constant 0 : i32
    %c0_i32_0 = arith.constant 0 : i32
    %c0_i32_1 = arith.constant 0 : i32
    %c0_i32_2 = arith.constant 0 : i32
    return %c0_i32, %c0_i32_0, %c0_i32_1 : i32, i32, i32
  }
  func.func @transform_6(%arg0: i32) -> (i32, i32, i32) {
    %c0_i32 = arith.constant 0 : i32
    %c0_i32_0 = arith.constant 0 : i32
    %c0_i32_1 = arith.constant 0 : i32
    %c0_i32_2 = arith.constant 0 : i32
    return %c0_i32, %c0_i32_0, %c0_i32_1 : i32, i32, i32
  }
  func.func @transform_7(%arg0: i32) -> (i32, i32, i32) {
    %c0_i32 = arith.constant 0 : i32
    %c0_i32_0 = arith.constant 0 : i32
    %c0_i32_1 = arith.constant 0 : i32
    %c0_i32_2 = arith.constant 0 : i32
    return %c0_i32, %c0_i32_0, %c0_i32_1 : i32, i32, i32
  }
  func.func @transform_8(%arg0: i32) -> (i32, i32, i32) {
    %c0_i32 = arith.constant 0 : i32
    %c0_i32_0 = arith.constant 0 : i32
    %c0_i32_1 = arith.constant 0 : i32
    %c0_i32_2 = arith.constant 0 : i32
    return %c0_i32, %c0_i32_0, %c0_i32_1 : i32, i32, i32
  }
  func.func @transform_9(%arg0: i32) -> (i32, i32, i32) {
    %c0_i32 = arith.constant 0 : i32
    %c0_i32_0 = arith.constant 0 : i32
    %c0_i32_1 = arith.constant 0 : i32
    %c0_i32_2 = arith.constant 0 : i32
    return %c0_i32, %c0_i32_0, %c0_i32_1 : i32, i32, i32
  }
  func.func @transform_10(%arg0: i32) -> (i32, i32, i32) {
    %c0_i32 = arith.constant 0 : i32
    %c0_i32_0 = arith.constant 0 : i32
    %c0_i32_1 = arith.constant 0 : i32
    %c0_i32_2 = arith.constant 0 : i32
    return %c0_i32, %c0_i32_0, %c0_i32_1 : i32, i32, i32
  }
  func.func @transform_11(%arg0: i32) -> (i32, i32, i32) {
    %c0_i32 = arith.constant 0 : i32
    %c0_i32_0 = arith.constant 0 : i32
    %c0_i32_1 = arith.constant 0 : i32
    %c0_i32_2 = arith.constant 0 : i32
    return %c0_i32, %c0_i32_0, %c0_i32_1 : i32, i32, i32
  }
  func.func @transform_12(%arg0: i32) -> (i32, i32, i32) {
    %c0_i32 = arith.constant 0 : i32
    %c0_i32_0 = arith.constant 0 : i32
    %c0_i32_1 = arith.constant 0 : i32
    %c0_i32_2 = arith.constant 0 : i32
    return %c0_i32, %c0_i32_0, %c0_i32_1 : i32, i32, i32
  }
  func.func @transform_13(%arg0: i32) -> (i32, i32, i32) {
    %c0_i32 = arith.constant 0 : i32
    %c0_i32_0 = arith.constant 0 : i32
    %c0_i32_1 = arith.constant 0 : i32
    %c0_i32_2 = arith.constant 0 : i32
    return %c0_i32, %c0_i32_0, %c0_i32_1 : i32, i32, i32
  }
  func.func @transform_14(%arg0: i32) -> (i32, i32, i32) {
    %c0_i32 = arith.constant 0 : i32
    %c0_i32_0 = arith.constant 0 : i32
    %c0_i32_1 = arith.constant 0 : i32
    %c0_i32_2 = arith.constant 0 : i32
    return %c0_i32, %c0_i32_0, %c0_i32_1 : i32, i32, i32
  }
  func.func @transform_15(%arg0: i32) -> (i32, i32) {
    %c0_i32 = arith.constant 0 : i32
    %c0_i32_0 = arith.constant 0 : i32
    %c0_i32_1 = arith.constant 0 : i32
    return %c0_i32, %c0_i32_0 : i32, i32
  }
  func.func @transform_16(%arg0: i32) -> (i32, i32) {
    %c0_i32 = arith.constant 0 : i32
    %c0_i32_0 = arith.constant 0 : i32
    %c0_i32_1 = arith.constant 0 : i32
    return %c0_i32, %c0_i32_0 : i32, i32
  }
  func.func @transform_17(%arg0: i32) -> (i32, i32) {
    %c0_i32 = arith.constant 0 : i32
    %c0_i32_0 = arith.constant 0 : i32
    %c0_i32_1 = arith.constant 0 : i32
    return %c0_i32, %c0_i32_0 : i32, i32
  }
  func.func @transform_18(%arg0: i32) -> (i32, i32) {
    %c0_i32 = arith.constant 0 : i32
    %c0_i32_0 = arith.constant 0 : i32
    %c0_i32_1 = arith.constant 0 : i32
    return %c0_i32, %c0_i32_0 : i32, i32
  }
  func.func @transform_19(%arg0: i32) -> (i32, i32, i32) {
    %c0_i32 = arith.constant 0 : i32
    %c0_i32_0 = arith.constant 0 : i32
    %c0_i32_1 = arith.constant 0 : i32
    return %arg0, %c0_i32, %c0_i32_0 : i32, i32, i32
  }
}

</mosaic_0001>

<llo_original>
// kernel: tpu_custom_call.1
$region0: #{tpu_custom_call.1}
  #allocation0 [shape = 'u32[]', space=smem, size = 0x4, offset = 0x4, fixed_abs, tag = 'smem constant byte address 0x4 - core index']
  #allocation1 [shape = 'u32[72,128]{1,0:T(1,128)}', space=vmem, size = 0x9000, scoped, tag = 'internal scratch']
  %s0 = inlined_call_operand.vmem [shape: f32[1,16,8], index: 0, kind: input, shape index: {}]
  %s1 = inlined_call_operand.vmem [shape: f32[128,16], index: 1, kind: input, shape index: {}]
  %s2 = inlined_call_operand.vmem [shape: f32[128,1], index: 2, kind: input, shape index: {}]
  %s3 = inlined_call_operand.vmem [shape: f32[2,384,128], index: 3, kind: input, shape index: {}]
  %s4 = inlined_call_operand.vmem [shape: f32[2,384,1], index: 4, kind: input, shape index: {}]
  %s5 = inlined_call_operand.vmem [shape: f32[2,128,128], index: 5, kind: input, shape index: {}]
  %s6 = inlined_call_operand.vmem [shape: f32[2,128,1], index: 6, kind: input, shape index: {}]
  %s7 = inlined_call_operand.vmem [shape: f32[2,128,1], index: 7, kind: input, shape index: {}]
  %s8 = inlined_call_operand.vmem [shape: f32[2,128,1], index: 8, kind: input, shape index: {}]
  %s9 = inlined_call_operand.vmem [shape: f32[2,512,128], index: 9, kind: input, shape index: {}]
  %s10 = inlined_call_operand.vmem [shape: f32[2,512,1], index: 10, kind: input, shape index: {}]
  %s11 = inlined_call_operand.hbm [shape: f32[2,128,512], index: 11, kind: input, shape index: {}]
  %s12 = inlined_call_operand.vmem [shape: f32[2,128,1], index: 12, kind: input, shape index: {}]
  %s13 = inlined_call_operand.vmem [shape: f32[2,128,1], index: 13, kind: input, shape index: {}]
  %s14 = inlined_call_operand.vmem [shape: f32[2,128,1], index: 14, kind: input, shape index: {}]
  %s15 = inlined_call_operand.vmem [shape: f32[16,128], index: 15, kind: input, shape index: {}]
  %s16 = inlined_call_operand.vmem [shape: f32[16,1], index: 16, kind: input, shape index: {}]
  %s17 = inlined_call_operand.vmem [shape: f32[8,16], index: 17, kind: input, shape index: {}]
  %s18 = inlined_call_operand.vmem [shape: f32[8,1], index: 18, kind: input, shape index: {}]
  %s19 = inlined_call_operand.hbm [shape: f32[1,8,8], index: 19, kind: output, shape index: {}]
  %s20 = sld [smem:[#allocation0]]
  $region90: #{tpu_custom_call.1} parent=0
    _
  %s22 = ssub.s32 1, %s20
  %s23 = scalar_select 0, %s22, %s20
  $region1: #{tpu_custom_call.1} parent=0
    #allocation2 [shape = 'u8[524288]{0}', space=vmem, size = 0x80000, scoped, tag = 'input window, operand 11, single buffered']
    #allocation3 [shape = 's32[1]{0}', space=sflag, size = 0x4, scoped, tag = 'scoped memory for tpu_custom_call.1']
    #allocation4 [shape = 's32[1]{0}', space=sflag, size = 0x4, scoped, tag = 'scoped memory for tpu_custom_call.1']
    #allocation5 [shape = 'u8[4096]{0}', space=vmem, size = 0x1000, scoped, tag = 'output window, operand 0, single buffered']
    %24 = vsyncpa [#allocation3], 0
    %25 = vsyncpa [#allocation4], 0
    // Predicated region
    $region2: #{tpu_custom_call.1} parent=1 // pred_check
      _
    $region3: #{tpu_custom_call.1} parent=1 // pred_check_branch
      %27 = sbr.rel (0) target = $region5
    $region4: #{tpu_custom_call.1} parent=1 // pred_region
      _
    $region5: #{tpu_custom_call.1} parent=1 // pred_fallthru
      _
    // Predicated region
    $region6: #{tpu_custom_call.1} parent=1 // pred_check
      _
    $region7: #{tpu_custom_call.1} parent=1 // pred_check_branch
      %29 = sbr.rel (0) target = $region9
    $region8: #{tpu_custom_call.1} parent=1 // pred_region
      _
    $region9: #{tpu_custom_call.1} parent=1 // pred_fallthru
      _
    // Predicated region
    $region10: #{tpu_custom_call.1} parent=1 // pred_check
      _
    $region11: #{tpu_custom_call.1} parent=1 // pred_check_branch
      %31 = sbr.rel (0) target = $region13
    $region12: #{tpu_custom_call.1} parent=1 // pred_region
      _
    $region13: #{tpu_custom_call.1} parent=1 // pred_fallthru
      _
    // Predicated region
    $region14: #{tpu_custom_call.1} parent=1 // pred_check
      _
    $region15: #{tpu_custom_call.1} parent=1 // pred_check_branch
      %33 = sbr.rel (0) target = $region17
    $region16: #{tpu_custom_call.1} parent=1 // pred_region
      _
    $region17: #{tpu_custom_call.1} parent=1 // pred_fallthru
      _
    // Predicated region
    $region18: #{tpu_custom_call.1} parent=1 // pred_check
      _
    $region19: #{tpu_custom_call.1} parent=1 // pred_check_branch
      %35 = sbr.rel (0) target = $region21
    $region20: #{tpu_custom_call.1} parent=1 // pred_region
      _
    $region21: #{tpu_custom_call.1} parent=1 // pred_fallthru
      _
    // Predicated region
    $region22: #{tpu_custom_call.1} parent=1 // pred_check
      _
    $region23: #{tpu_custom_call.1} parent=1 // pred_check_branch
      %37 = sbr.rel (0) target = $region25
    $region24: #{tpu_custom_call.1} parent=1 // pred_region
      _
    $region25: #{tpu_custom_call.1} parent=1 // pred_fallthru
      _
    // Predicated region
    $region26: #{tpu_custom_call.1} parent=1 // pred_check
      _
    $region27: #{tpu_custom_call.1} parent=1 // pred_check_branch
      %39 = sbr.rel (0) target = $region29
    $region28: #{tpu_custom_call.1} parent=1 // pred_region
      _
    $region29: #{tpu_custom_call.1} parent=1 // pred_fallthru
      _
    // Predicated region
    $region30: #{tpu_custom_call.1} parent=1 // pred_check
      _
    $region31: #{tpu_custom_call.1} parent=1 // pred_check_branch
      %41 = sbr.rel (0) target = $region33
    $region32: #{tpu_custom_call.1} parent=1 // pred_region
      _
    $region33: #{tpu_custom_call.1} parent=1 // pred_fallthru
      _
    // Predicated region
    $region34: #{tpu_custom_call.1} parent=1 // pred_check
      _
    $region35: #{tpu_custom_call.1} parent=1 // pred_check_branch
      %43 = sbr.rel (0) target = $region37
    $region36: #{tpu_custom_call.1} parent=1 // pred_region
      _
    $region37: #{tpu_custom_call.1} parent=1 // pred_fallthru
      _
    // Predicated region
    $region38: #{tpu_custom_call.1} parent=1 // pred_check
      _
    $region39: #{tpu_custom_call.1} parent=1 // pred_check_branch
      %45 = sbr.rel (0) target = $region41
    $region40: #{tpu_custom_call.1} parent=1 // pred_region
      _
    $region41: #{tpu_custom_call.1} parent=1 // pred_fallthru
      _
    // Predicated region
    $region42: #{tpu_custom_call.1} parent=1 // pred_check
      _
    $region43: #{tpu_custom_call.1} parent=1 // pred_check_branch
      %47 = sbr.rel (0) target = $region45
    $region44: #{tpu_custom_call.1} parent=1 // pred_region
      _
    $region45: #{tpu_custom_call.1} parent=1 // pred_fallthru
      _
    // Predicated region
    $region46: #{tpu_custom_call.1} parent=1 // pred_check
      _
    $region47: #{tpu_custom_call.1} parent=1 // pred_check_branch
      %49 = sbr.rel (0) target = $region49
    $region48: #{tpu_custom_call.1} parent=1 // pred_region
      %51 = vsyncadd [#allocation3], 0
      %s52 = sshll.u32 %s11, 4
      %s53 = int_to_ptr.hbm [resolvable:$true] %s52
      %s54 = sshll.u32 [#allocation2], 4
      %s55 = int_to_ptr.vmem [resolvable:$true] %s54
      %60 = dma.hbm_to_vmem [thread:$0]  %s53, 16384, %s55, [#allocation3], 512, 512, 32
    $region49: #{tpu_custom_call.1} parent=1 // pred_fallthru
      _
    // Predicated region
    $region50: #{tpu_custom_call.1} parent=1 // pred_check
      _
    $region51: #{tpu_custom_call.1} parent=1 // pred_check_branch
      %62 = sbr.rel (0) target = $region53
    $region52: #{tpu_custom_call.1} parent=1 // pred_region
      _
    $region53: #{tpu_custom_call.1} parent=1 // pred_fallthru
      _
    // Predicated region
    $region54: #{tpu_custom_call.1} parent=1 // pred_check
      _
    $region55: #{tpu_custom_call.1} parent=1 // pred_check_branch
      %64 = sbr.rel (0) target = $region57
    $region56: #{tpu_custom_call.1} parent=1 // pred_region
      _
    $region57: #{tpu_custom_call.1} parent=1 // pred_fallthru
      _
    // Predicated region
    $region58: #{tpu_custom_call.1} parent=1 // pred_check
      _
    $region59: #{tpu_custom_call.1} parent=1 // pred_check_branch
      %66 = sbr.rel (0) target = $region61
    $region60: #{tpu_custom_call.1} parent=1 // pred_region
      _
    $region61: #{tpu_custom_call.1} parent=1 // pred_fallthru
      _
    // Predicated region
    $region62: #{tpu_custom_call.1} parent=1 // pred_check
      _
    $region63: #{tpu_custom_call.1} parent=1 // pred_check_branch
      %68 = sbr.rel (0) target = $region65
    $region64: #{tpu_custom_call.1} parent=1 // pred_region
      _
    $region65: #{tpu_custom_call.1} parent=1 // pred_fallthru
      _
    // Predicated region
    $region66: #{tpu_custom_call.1} parent=1 // pred_check
      _
    $region67: #{tpu_custom_call.1} parent=1 // pred_check_branch
      %70 = sbr.rel (0) target = $region69
    $region68: #{tpu_custom_call.1} parent=1 // pred_region
      _
    $region69: #{tpu_custom_call.1} parent=1 // pred_fallthru
      _
    // Predicated region
    $region70: #{tpu_custom_call.1} parent=1 // pred_check
      _
    $region71: #{tpu_custom_call.1} parent=1 // pred_check_branch
      %72 = sbr.rel (0) target = $region73
    $region72: #{tpu_custom_call.1} parent=1 // pred_region
      _
    $region73: #{tpu_custom_call.1} parent=1 // pred_fallthru
      _
    // Predicated region
    $region74: #{tpu_custom_call.1} parent=1 // pred_check
      _
    $region75: #{tpu_custom_call.1} parent=1 // pred_check_branch
      %74 = sbr.rel (0) target = $region77
    $region76: #{tpu_custom_call.1} parent=1 // pred_region
      _
    $region77: #{tpu_custom_call.1} parent=1 // pred_fallthru
      _
    // Predicated region
    $region78: #{tpu_custom_call.1} parent=1 // pred_check
      _
    $region79: #{tpu_custom_call.1} parent=1 // pred_check_branch
      %76 = sbr.rel (0) target = $region81
    $region80: #{tpu_custom_call.1} parent=1 // pred_region
      %78 = dma.done [#allocation3], 16384
    $region81: #{tpu_custom_call.1} parent=1 // pred_fallthru
      _
    %v79 = vld [vmem:[%s0] sm:$0xff]
    %v80 = vld [vmem:[%s0 + $0x8] sm:$0xff]
    %v81 = vld [vmem:[%s1] sm:$0xff]
    %v82 = vld [vmem:[%s1 + $0x8] sm:$0xff]
    %v83 = vld [vmem:[%s1 + $0x10] sm:$0xff]
    %v84 = vld [vmem:[%s1 + $0x18] sm:$0xff]
    %v85 = vld [vmem:[%s1 + $0x20] sm:$0xff]
    %v86 = vld [vmem:[%s1 + $0x28] sm:$0xff]
    %v87 = vld [vmem:[%s1 + $0x30] sm:$0xff]
    %v88 = vld [vmem:[%s1 + $0x38] sm:$0xff]
    %v89 = vld [vmem:[%s1 + $0x40] sm:$0xff]
    %v90 = vld [vmem:[%s1 + $0x48] sm:$0xff]
    %v91 = vld [vmem:[%s1 + $0x50] sm:$0xff]
    %v92 = vld [vmem:[%s1 + $0x58] sm:$0xff]
    %v93 = vld [vmem:[%s1 + $0x60] sm:$0xff]
    %v94 = vld [vmem:[%s1 + $0x68] sm:$0xff]
    %v95 = vld [vmem:[%s1 + $0x70] sm:$0xff]
    %v96 = vld [vmem:[%s1 + $0x78] sm:$0xff]
    %v97 = vld [vmem:[%s2] sm:$0xff]
    %v98 = vld [vmem:[%s2 + $0x8] sm:$0xff]
    %v99 = vld [vmem:[%s2 + $0x10] sm:$0xff]
    %v100 = vld [vmem:[%s2 + $0x18] sm:$0xff]
    %v101 = vld [vmem:[%s2 + $0x20] sm:$0xff]
    %v102 = vld [vmem:[%s2 + $0x28] sm:$0xff]
    %v103 = vld [vmem:[%s2 + $0x30] sm:$0xff]
    %v104 = vld [vmem:[%s2 + $0x38] sm:$0xff]
    %v105 = vld [vmem:[%s2 + $0x40] sm:$0xff]
    %v106 = vld [vmem:[%s2 + $0x48] sm:$0xff]
    %v107 = vld [vmem:[%s2 + $0x50] sm:$0xff]
    %v108 = vld [vmem:[%s2 + $0x58] sm:$0xff]
    %v109 = vld [vmem:[%s2 + $0x60] sm:$0xff]
    %v110 = vld [vmem:[%s2 + $0x68] sm:$0xff]
    %v111 = vld [vmem:[%s2 + $0x70] sm:$0xff]
    %v112 = vld [vmem:[%s2 + $0x78] sm:$0xff]
    %114 = vset.pattern.permute.xlu0 0
    %115 = vperm.xlu0 %114, %v97
    %v116 = vpop.permute.xlu0 %115
    %119 = vset.pattern.permute.xlu0 0
    %120 = vperm.xlu0 %119, %v98
    %v121 = vpop.permute.xlu0 %120
    %124 = vset.pattern.permute.xlu0 0
    %125 = vperm.xlu0 %124, %v99
    %v126 = vpop.permute.xlu0 %125
    %129 = vset.pattern.permute.xlu0 0
    %130 = vperm.xlu0 %129, %v100
    %v131 = vpop.permute.xlu0 %130
    %134 = vset.pattern.permute.xlu0 0
    %135 = vperm.xlu0 %134, %v101
    %v136 = vpop.permute.xlu0 %135
    %139 = vset.pattern.permute.xlu0 0
    %140 = vperm.xlu0 %139, %v102
    %v141 = vpop.permute.xlu0 %140
    %144 = vset.pattern.permute.xlu0 0
    %145 = vperm.xlu0 %144, %v103
    %v146 = vpop.permute.xlu0 %145
    %149 = vset.pattern.permute.xlu0 0
    %150 = vperm.xlu0 %149, %v104
    %v151 = vpop.permute.xlu0 %150
    %154 = vset.pattern.permute.xlu0 0
    %155 = vperm.xlu0 %154, %v105
    %v156 = vpop.permute.xlu0 %155
    %159 = vset.pattern.permute.xlu0 0
    %160 = vperm.xlu0 %159, %v106
    %v161 = vpop.permute.xlu0 %160
    %164 = vset.pattern.permute.xlu0 0
    %165 = vperm.xlu0 %164, %v107
    %v166 = vpop.permute.xlu0 %165
    %169 = vset.pattern.permute.xlu0 0
    %170 = vperm.xlu0 %169, %v108
    %v171 = vpop.permute.xlu0 %170
    %174 = vset.pattern.permute.xlu0 0
    %175 = vperm.xlu0 %174, %v109
    %v176 = vpop.permute.xlu0 %175
    %179 = vset.pattern.permute.xlu0 0
    %180 = vperm.xlu0 %179, %v110
    %v181 = vpop.permute.xlu0 %180
    %184 = vset.pattern.permute.xlu0 0
    %185 = vperm.xlu0 %184, %v111
    %v186 = vpop.permute.xlu0 %185
    %189 = vset.pattern.permute.xlu0 0
    %190 = vperm.xlu0 %189, %v112
    %v191 = vpop.permute.xlu0 %190
    %vm193 = vcmask 130048
    %v195 = vsel %vm193, %v81, 0
    %v198 = vsel %vm193, %v82, 0
    %v201 = vsel %vm193, %v83, 0
    %v204 = vsel %vm193, %v84, 0
    %v207 = vsel %vm193, %v85, 0
    %v210 = vsel %vm193, %v86, 0
    %v213 = vsel %vm193, %v87, 0
    %v216 = vsel %vm193, %v88, 0
    %v219 = vsel %vm193, %v89, 0
    %v222 = vsel %vm193, %v90, 0
    %v225 = vsel %vm193, %v91, 0
    %v228 = vsel %vm193, %v92, 0
    %v231 = vsel %vm193, %v93, 0
    %v234 = vsel %vm193, %v94, 0
    %v237 = vsel %vm193, %v95, 0
    %v240 = vsel %vm193, %v96, 0
    %242 = vmatpush.msra.mxu0 0.0
    %243 = vmatpush.msra.mxu0 0.0
    %244 = vmatpush.msra.mxu0 0.0
    %245 = vmatpush.msra.mxu0 0.0
    %246 = vmatpush.msra.mxu0 0.0
    %247 = vmatpush.msra.mxu0 0.0
    %248 = vmatpush.msra.mxu0 0.0
    %249 = vmatpush.msra.mxu0 0.0
    %250 = vmatpush.msra.mxu0 0.0
    %251 = vmatpush.msra.mxu0 0.0
    %252 = vmatpush.msra.mxu0 0.0
    %253 = vmatpush.msra.mxu0 0.0
    %254 = vmatpush.msra.mxu0 0.0
    %255 = vmatpush.msra.mxu0 0.0
    %256 = vmatpush.msra.mxu0 %v80
    %257 = vmatpush.msra.mxu0 %v79
    %258 = vmatmul.f32.gmra.mxu0 %v195
    %v259 = vpop.f32.mrf.mxu0
    %v260 = vadd.f32 %v116, %v259
    %261 = vmatmul.f32.gmra.mxu0 %v198
    %v262 = vpop.f32.mrf.mxu0
    %v263 = vadd.f32 %v121, %v262
    %264 = vmatmul.f32.gmra.mxu0 %v201
    %v265 = vpop.f32.mrf.mxu0
    %v266 = vadd.f32 %v126, %v265
    %267 = vmatmul.f32.gmra.mxu0 %v204
    %v268 = vpop.f32.mrf.mxu0
    %v269 = vadd.f32 %v131, %v268
    %270 = vmatmul.f32.gmra.mxu0 %v207
    %v271 = vpop.f32.mrf.mxu0
    %v272 = vadd.f32 %v136, %v271
    %273 = vmatmul.f32.gmra.mxu0 %v210
    %v274 = vpop.f32.mrf.mxu0
    %v275 = vadd.f32 %v141, %v274
    %276 = vmatmul.f32.gmra.mxu0 %v213
    %v277 = vpop.f32.mrf.mxu0
    %v278 = vadd.f32 %v146, %v277
    %279 = vmatmul.f32.gmra.mxu0 %v216
    %v280 = vpop.f32.mrf.mxu0
    %v281 = vadd.f32 %v151, %v280
    %282 = vmatmul.f32.gmra.mxu0 %v219
    %v283 = vpop.f32.mrf.mxu0
    %v284 = vadd.f32 %v156, %v283
    %285 = vmatmul.f32.gmra.mxu0 %v222
    %v286 = vpop.f32.mrf.mxu0
    %v287 = vadd.f32 %v161, %v286
    %288 = vmatmul.f32.gmra.mxu0 %v225
    %v289 = vpop.f32.mrf.mxu0
    %v290 = vadd.f32 %v166, %v289
    %291 = vmatmul.f32.gmra.mxu0 %v228
    %v292 = vpop.f32.mrf.mxu0
    %v293 = vadd.f32 %v171, %v292
    %294 = vmatmul.f32.gmra.mxu0 %v231
    %v295 = vpop.f32.mrf.mxu0
    %v296 = vadd.f32 %v176, %v295
    %297 = vmatmul.f32.gmra.mxu0 %v234
    %v298 = vpop.f32.mrf.mxu0
    %v299 = vadd.f32 %v181, %v298
    %300 = vmatmul.f32.gmra.mxu0 %v237
    %v301 = vpop.f32.mrf.mxu0
    %v302 = vadd.f32 %v186, %v301
    %303 = vmatmul.f32.gmra.mxu0 %v240
    %v304 = vpop.f32.mrf.mxu0
    %v305 = vadd.f32 %v191, %v304
    %306 = vdwg.mxu0
    %v307 = vld [vmem:[%s3] sm:$0xff]
    %v308 = vld [vmem:[%s3 + $0x8] sm:$0xff]
    %v309 = vld [vmem:[%s3 + $0x10] sm:$0xff]
    %v310 = vld [vmem:[%s3 + $0x18] sm:$0xff]
    %v311 = vld [vmem:[%s3 + $0x20] sm:$0xff]
    %v312 = vld [vmem:[%s3 + $0x28] sm:$0xff]
    %v313 = vld [vmem:[%s3 + $0x30] sm:$0xff]
    %v314 = vld [vmem:[%s3 + $0x38] sm:$0xff]
    %v315 = vld [vmem:[%s3 + $0x40] sm:$0xff]
    %v316 = vld [vmem:[%s3 + $0x48] sm:$0xff]
    %v317 = vld [vmem:[%s3 + $0x50] sm:$0xff]
    %v318 = vld [vmem:[%s3 + $0x58] sm:$0xff]
    %v319 = vld [vmem:[%s3 + $0x60] sm:$0xff]
    %v320 = vld [vmem:[%s3 + $0x68] sm:$0xff]
    %v321 = vld [vmem:[%s3 + $0x70] sm:$0xff]
    %v322 = vld [vmem:[%s3 + $0x78] sm:$0xff]
    %v323 = vld [vmem:[%s3 + $0x80] sm:$0xff]
    %v324 = vld [vmem:[%s3 + $0x88] sm:$0xff]
    %v325 = vld [vmem:[%s3 + $0x90] sm:$0xff]
    %v326 = vld [vmem:[%s3 + $0x98] sm:$0xff]
    %v327 = vld [vmem:[%s3 + $0xa0] sm:$0xff]
    %v328 = vld [vmem:[%s3 + $0xa8] sm:$0xff]
    %v329 = vld [vmem:[%s3 + $0xb0] sm:$0xff]
    %v330 = vld [vmem:[%s3 + $0xb8] sm:$0xff]
    %v331 = vld [vmem:[%s3 + $0xc0] sm:$0xff]
    %v332 = vld [vmem:[%s3 + $0xc8] sm:$0xff]
    %v333 = vld [vmem:[%s3 + $0xd0] sm:$0xff]
    %v334 = vld [vmem:[%s3 + $0xd8] sm:$0xff]
    %v335 = vld [vmem:[%s3 + $0xe0] sm:$0xff]
    %v336 = vld [vmem:[%s3 + $0xe8] sm:$0xff]
    %v337 = vld [vmem:[%s3 + $0xf0] sm:$0xff]
    %v338 = vld [vmem:[%s3 + $0xf8] sm:$0xff]
    %v339 = vld [vmem:[%s3 + $0x100] sm:$0xff]
    %v340 = vld [vmem:[%s3 + $0x108] sm:$0xff]
    %v341 = vld [vmem:[%s3 + $0x110] sm:$0xff]
    %v342 = vld [vmem:[%s3 + $0x118] sm:$0xff]
    %v343 = vld [vmem:[%s3 + $0x120] sm:$0xff]
    %v344 = vld [vmem:[%s3 + $0x128] sm:$0xff]
    %v345 = vld [vmem:[%s3 + $0x130] sm:$0xff]
    %v346 = vld [vmem:[%s3 + $0x138] sm:$0xff]
    %v347 = vld [vmem:[%s3 + $0x140] sm:$0xff]
    %v348 = vld [vmem:[%s3 + $0x148] sm:$0xff]
    %v349 = vld [vmem:[%s3 + $0x150] sm:$0xff]
    %v350 = vld [vmem:[%s3 + $0x158] sm:$0xff]
    %v351 = vld [vmem:[%s3 + $0x160] sm:$0xff]
    %v352 = vld [vmem:[%s3 + $0x168] sm:$0xff]
    %v353 = vld [vmem:[%s3 + $0x170] sm:$0xff]
    %v354 = vld [vmem:[%s3 + $0x178] sm:$0xff]
    %v355 = vld [vmem:[%s4] sm:$0xff]
    %v356 = vld [vmem:[%s4 + $0x8] sm:$0xff]
    %v357 = vld [vmem:[%s4 + $0x10] sm:$0xff]
    %v358 = vld [vmem:[%s4 + $0x18] sm:$0xff]
    %v359 = vld [vmem:[%s4 + $0x20] sm:$0xff]
    %v360 = vld [vmem:[%s4 + $0x28] sm:$0xff]
    %v361 = vld [vmem:[%s4 + $0x30] sm:$0xff]
    %v362 = vld [vmem:[%s4 + $0x38] sm:$0xff]
    %v363 = vld [vmem:[%s4 + $0x40] sm:$0xff]
    %v364 = vld [vmem:[%s4 + $0x48] sm:$0xff]
    %v365 = vld [vmem:[%s4 + $0x50] sm:$0xff]
    %v366 = vld [vmem:[%s4 + $0x58] sm:$0xff]
    %v367 = vld [vmem:[%s4 + $0x60] sm:$0xff]
    %v368 = vld [vmem:[%s4 + $0x68] sm:$0xff]
    %v369 = vld [vmem:[%s4 + $0x70] sm:$0xff]
    %v370 = vld [vmem:[%s4 + $0x78] sm:$0xff]
    %v371 = vld [vmem:[%s4 + $0x80] sm:$0xff]
    %v372 = vld [vmem:[%s4 + $0x88] sm:$0xff]
    %v373 = vld [vmem:[%s4 + $0x90] sm:$0xff]
    %v374 = vld [vmem:[%s4 + $0x98] sm:$0xff]
    %v375 = vld [vmem:[%s4 + $0xa0] sm:$0xff]
    %v376 = vld [vmem:[%s4 + $0xa8] sm:$0xff]
    %v377 = vld [vmem:[%s4 + $0xb0] sm:$0xff]
    %v378 = vld [vmem:[%s4 + $0xb8] sm:$0xff]
    %v379 = vld [vmem:[%s4 + $0xc0] sm:$0xff]
    %v380 = vld [vmem:[%s4 + $0xc8] sm:$0xff]
    %v381 = vld [vmem:[%s4 + $0xd0] sm:$0xff]
    %v382 = vld [vmem:[%s4 + $0xd8] sm:$0xff]
    %v383 = vld [vmem:[%s4 + $0xe0] sm:$0xff]
    %v384 = vld [vmem:[%s4 + $0xe8] sm:$0xff]
    %v385 = vld [vmem:[%s4 + $0xf0] sm:$0xff]
    %v386 = vld [vmem:[%s4 + $0xf8] sm:$0xff]
    %v387 = vld [vmem:[%s4 + $0x100] sm:$0xff]
    %v388 = vld [vmem:[%s4 + $0x108] sm:$0xff]
    %v389 = vld [vmem:[%s4 + $0x110] sm:$0xff]
    %v390 = vld [vmem:[%s4 + $0x118] sm:$0xff]
    %v391 = vld [vmem:[%s4 + $0x120] sm:$0xff]
    %v392 = vld [vmem:[%s4 + $0x128] sm:$0xff]
    %v393 = vld [vmem:[%s4 + $0x130] sm:$0xff]
    %v394 = vld [vmem:[%s4 + $0x138] sm:$0xff]
    %v395 = vld [vmem:[%s4 + $0x140] sm:$0xff]
    %v396 = vld [vmem:[%s4 + $0x148] sm:$0xff]
    %v397 = vld [vmem:[%s4 + $0x150] sm:$0xff]
    %v398 = vld [vmem:[%s4 + $0x158] sm:$0xff]
    %v399 = vld [vmem:[%s4 + $0x160] sm:$0xff]
    %v400 = vld [vmem:[%s4 + $0x168] sm:$0xff]
    %v401 = vld [vmem:[%s4 + $0x170] sm:$0xff]
    %v402 = vld [vmem:[%s4 + $0x178] sm:$0xff]
    %404 = vset.pattern.permute.xlu0 0
    %405 = vperm.xlu0 %404, %v355
    %v406 = vpop.permute.xlu0 %405
    %409 = vset.pattern.permute.xlu0 0
    %410 = vperm.xlu0 %409, %v356
    %v411 = vpop.permute.xlu0 %410
    %414 = vset.pattern.permute.xlu0 0
    %415 = vperm.xlu0 %414, %v357
    %v416 = vpop.permute.xlu0 %415
    %419 = vset.pattern.permute.xlu0 0
    %420 = vperm.xlu0 %419, %v358
    %v421 = vpop.permute.xlu0 %420
    %424 = vset.pattern.permute.xlu0 0
    %425 = vperm.xlu0 %424, %v359
    %v426 = vpop.permute.xlu0 %425
    %429 = vset.pattern.permute.xlu0 0
    %430 = vperm.xlu0 %429, %v360
    %v431 = vpop.permute.xlu0 %430
    %434 = vset.pattern.permute.xlu0 0
    %435 = vperm.xlu0 %434, %v361
    %v436 = vpop.permute.xlu0 %435
    %439 = vset.pattern.permute.xlu0 0
    %440 = vperm.xlu0 %439, %v362
    %v441 = vpop.permute.xlu0 %440
    %444 = vset.pattern.permute.xlu0 0
    %445 = vperm.xlu0 %444, %v363
    %v446 = vpop.permute.xlu0 %445
    %449 = vset.pattern.permute.xlu0 0
    %450 = vperm.xlu0 %449, %v364
    %v451 = vpop.permute.xlu0 %450
    %454 = vset.pattern.permute.xlu0 0
    %455 = vperm.xlu0 %454, %v365
    %v456 = vpop.permute.xlu0 %455
    %459 = vset.pattern.permute.xlu0 0
    %460 = vperm.xlu0 %459, %v366
    %v461 = vpop.permute.xlu0 %460
    %464 = vset.pattern.permute.xlu0 0
    %465 = vperm.xlu0 %464, %v367
    %v466 = vpop.permute.xlu0 %465
    %469 = vset.pattern.permute.xlu0 0
    %470 = vperm.xlu0 %469, %v368
    %v471 = vpop.permute.xlu0 %470
    %474 = vset.pattern.permute.xlu0 0
    %475 = vperm.xlu0 %474, %v369
    %v476 = vpop.permute.xlu0 %475
    %479 = vset.pattern.permute.xlu0 0
    %480 = vperm.xlu0 %479, %v370
    %v481 = vpop.permute.xlu0 %480
    %484 = vset.pattern.permute.xlu0 0
    %485 = vperm.xlu0 %484, %v371
    %v486 = vpop.permute.xlu0 %485
    %489 = vset.pattern.permute.xlu0 0
    %490 = vperm.xlu0 %489, %v372
    %v491 = vpop.permute.xlu0 %490
    %494 = vset.pattern.permute.xlu0 0
    %495 = vperm.xlu0 %494, %v373
    %v496 = vpop.permute.xlu0 %495
    %499 = vset.pattern.permute.xlu0 0
    %500 = vperm.xlu0 %499, %v374
    %v501 = vpop.permute.xlu0 %500
    %504 = vset.pattern.permute.xlu0 0
    %505 = vperm.xlu0 %504, %v375
    %v506 = vpop.permute.xlu0 %505
    %509 = vset.pattern.permute.xlu0 0
    %510 = vperm.xlu0 %509, %v376
    %v511 = vpop.permute.xlu0 %510
    %514 = vset.pattern.permute.xlu0 0
    %515 = vperm.xlu0 %514, %v377
    %v516 = vpop.permute.xlu0 %515
    %519 = vset.pattern.permute.xlu0 0
    %520 = vperm.xlu0 %519, %v378
    %v521 = vpop.permute.xlu0 %520
    %524 = vset.pattern.permute.xlu0 0
    %525 = vperm.xlu0 %524, %v379
    %v526 = vpop.permute.xlu0 %525
    %529 = vset.pattern.permute.xlu0 0
    %530 = vperm.xlu0 %529, %v380
    %v531 = vpop.permute.xlu0 %530
    %534 = vset.pattern.permute.xlu0 0
    %535 = vperm.xlu0 %534, %v381
    %v536 = vpop.permute.xlu0 %535
    %539 = vset.pattern.permute.xlu0 0
    %540 = vperm.xlu0 %539, %v382
    %v541 = vpop.permute.xlu0 %540
    %544 = vset.pattern.permute.xlu0 0
    %545 = vperm.xlu0 %544, %v383
    %v546 = vpop.permute.xlu0 %545
    %549 = vset.pattern.permute.xlu0 0
    %550 = vperm.xlu0 %549, %v384
    %v551 = vpop.permute.xlu0 %550
    %554 = vset.pattern.permute.xlu0 0
    %555 = vperm.xlu0 %554, %v385
    %v556 = vpop.permute.xlu0 %555
    %559 = vset.pattern.permute.xlu0 0
    %560 = vperm.xlu0 %559, %v386
    %v561 = vpop.permute.xlu0 %560
    %564 = vset.pattern.permute.xlu0 0
    %565 = vperm.xlu0 %564, %v387
    %v566 = vpop.permute.xlu0 %565
    %569 = vset.pattern.permute.xlu0 0
    %570 = vperm.xlu0 %569, %v388
    %v571 = vpop.permute.xlu0 %570
    %574 = vset.pattern.permute.xlu0 0
    %575 = vperm.xlu0 %574, %v389
    %v576 = vpop.permute.xlu0 %575
    %579 = vset.pattern.permute.xlu0 0
    %580 = vperm.xlu0 %579, %v390
    %v581 = vpop.permute.xlu0 %580
    %584 = vset.pattern.permute.xlu0 0
    %585 = vperm.xlu0 %584, %v391
    %v586 = vpop.permute.xlu0 %585
    %589 = vset.pattern.permute.xlu0 0
    %590 = vperm.xlu0 %589, %v392
    %v591 = vpop.permute.xlu0 %590
    %594 = vset.pattern.permute.xlu0 0
    %595 = vperm.xlu0 %594, %v393
    %v596 = vpop.permute.xlu0 %595
    %599 = vset.pattern.permute.xlu0 0
    %600 = vperm.xlu0 %599, %v394
    %v601 = vpop.permute.xlu0 %600
    %604 = vset.pattern.permute.xlu0 0
    %605 = vperm.xlu0 %604, %v395
    %v606 = vpop.permute.xlu0 %605
    %609 = vset.pattern.permute.xlu0 0
    %610 = vperm.xlu0 %609, %v396
    %v611 = vpop.permute.xlu0 %610
    %614 = vset.pattern.permute.xlu0 0
    %615 = vperm.xlu0 %614, %v397
    %v616 = vpop.permute.xlu0 %615
    %619 = vset.pattern.permute.xlu0 0
    %620 = vperm.xlu0 %619, %v398
    %v621 = vpop.permute.xlu0 %620
    %624 = vset.pattern.permute.xlu0 0
    %625 = vperm.xlu0 %624, %v399
    %v626 = vpop.permute.xlu0 %625
    %629 = vset.pattern.permute.xlu0 0
    %630 = vperm.xlu0 %629, %v400
    %v631 = vpop.permute.xlu0 %630
    %634 = vset.pattern.permute.xlu0 0
    %635 = vperm.xlu0 %634, %v401
    %v636 = vpop.permute.xlu0 %635
    %639 = vset.pattern.permute.xlu0 0
    %640 = vperm.xlu0 %639, %v402
    %v641 = vpop.permute.xlu0 %640
    %643 = vmatpush.msra.mxu0 %v305
    %644 = vmatpush.msra.mxu0 %v302
    %645 = vmatpush.msra.mxu0 %v299
    %646 = vmatpush.msra.mxu0 %v296
    %647 = vmatpush.msra.mxu0 %v293
    %648 = vmatpush.msra.mxu0 %v290
    %649 = vmatpush.msra.mxu0 %v287
    %650 = vmatpush.msra.mxu0 %v284
    %651 = vmatpush.msra.mxu0 %v281
    %652 = vmatpush.msra.mxu0 %v278
    %653 = vmatpush.msra.mxu0 %v275
    %654 = vmatpush.msra.mxu0 %v272
    %655 = vmatpush.msra.mxu0 %v269
    %656 = vmatpush.msra.mxu0 %v266
    %657 = vmatpush.msra.mxu0 %v263
    %658 = vmatpush.msra.mxu0 %v260
    %659 = vmatmul.f32.gmra.mxu0 %v307
    %v660 = vpop.f32.mrf.mxu0
    %v661 = vadd.f32 %v406, %v660
    %662 = vmatmul.f32.gmra.mxu0 %v308
    %v663 = vpop.f32.mrf.mxu0
    %v664 = vadd.f32 %v411, %v663
    %665 = vmatmul.f32.gmra.mxu0 %v309
    %v666 = vpop.f32.mrf.mxu0
    %v667 = vadd.f32 %v416, %v666
    %668 = vmatmul.f32.gmra.mxu0 %v310
    %v669 = vpop.f32.mrf.mxu0
    %v670 = vadd.f32 %v421, %v669
    %671 = vmatmul.f32.gmra.mxu0 %v311
    %v672 = vpop.f32.mrf.mxu0
    %v673 = vadd.f32 %v426, %v672
    %674 = vmatmul.f32.gmra.mxu0 %v312
    %v675 = vpop.f32.mrf.mxu0
    %v676 = vadd.f32 %v431, %v675
    %677 = vmatmul.f32.gmra.mxu0 %v313
    %v678 = vpop.f32.mrf.mxu0
    %v679 = vadd.f32 %v436, %v678
    %680 = vmatmul.f32.gmra.mxu0 %v314
    %v681 = vpop.f32.mrf.mxu0
    %v682 = vadd.f32 %v441, %v681
    %683 = vmatmul.f32.gmra.mxu0 %v315
    %v684 = vpop.f32.mrf.mxu0
    %v685 = vadd.f32 %v446, %v684
    %686 = vmatmul.f32.gmra.mxu0 %v316
    %v687 = vpop.f32.mrf.mxu0
    %v688 = vadd.f32 %v451, %v687
    %689 = vmatmul.f32.gmra.mxu0 %v317
    %v690 = vpop.f32.mrf.mxu0
    %v691 = vadd.f32 %v456, %v690
    %692 = vmatmul.f32.gmra.mxu0 %v318
    %v693 = vpop.f32.mrf.mxu0
    %v694 = vadd.f32 %v461, %v693
    %695 = vmatmul.f32.gmra.mxu0 %v319
    %v696 = vpop.f32.mrf.mxu0
    %v697 = vadd.f32 %v466, %v696
    %698 = vmatmul.f32.gmra.mxu0 %v320
    %v699 = vpop.f32.mrf.mxu0
    %v700 = vadd.f32 %v471, %v699
    %701 = vmatmul.f32.gmra.mxu0 %v321
    %v702 = vpop.f32.mrf.mxu0
    %v703 = vadd.f32 %v476, %v702
    %704 = vmatmul.f32.gmra.mxu0 %v322
    %v705 = vpop.f32.mrf.mxu0
    %v706 = vadd.f32 %v481, %v705
    %707 = vmatmul.f32.gmra.mxu0 %v323
    %v708 = vpop.f32.mrf.mxu0
    %v709 = vadd.f32 %v486, %v708
    %710 = vmatmul.f32.gmra.mxu0 %v324
    %v711 = vpop.f32.mrf.mxu0
    %v712 = vadd.f32 %v491, %v711
    %713 = vmatmul.f32.gmra.mxu0 %v325
    %v714 = vpop.f32.mrf.mxu0
    %v715 = vadd.f32 %v496, %v714
    %716 = vmatmul.f32.gmra.mxu0 %v326
    %v717 = vpop.f32.mrf.mxu0
    %v718 = vadd.f32 %v501, %v717
    %719 = vmatmul.f32.gmra.mxu0 %v327
    %v720 = vpop.f32.mrf.mxu0
    %v721 = vadd.f32 %v506, %v720
    %722 = vmatmul.f32.gmra.mxu0 %v328
    %v723 = vpop.f32.mrf.mxu0
    %v724 = vadd.f32 %v511, %v723
    %725 = vmatmul.f32.gmra.mxu0 %v329
    %v726 = vpop.f32.mrf.mxu0
    %v727 = vadd.f32 %v516, %v726
    %728 = vmatmul.f32.gmra.mxu0 %v330
    %v729 = vpop.f32.mrf.mxu0
    %v730 = vadd.f32 %v521, %v729
    %731 = vmatmul.f32.gmra.mxu0 %v331
    %v732 = vpop.f32.mrf.mxu0
    %v733 = vadd.f32 %v526, %v732
    %734 = vmatmul.f32.gmra.mxu0 %v332
    %v735 = vpop.f32.mrf.mxu0
    %v736 = vadd.f32 %v531, %v735
    %737 = vmatmul.f32.gmra.mxu0 %v333
    %v738 = vpop.f32.mrf.mxu0
    %v739 = vadd.f32 %v536, %v738
    %740 = vmatmul.f32.gmra.mxu0 %v334
    %v741 = vpop.f32.mrf.mxu0
    %v742 = vadd.f32 %v541, %v741
    %743 = vmatmul.f32.gmra.mxu0 %v335
    %v744 = vpop.f32.mrf.mxu0
    %v745 = vadd.f32 %v546, %v744
    %746 = vmatmul.f32.gmra.mxu0 %v336
    %v747 = vpop.f32.mrf.mxu0
    %v748 = vadd.f32 %v551, %v747
    %749 = vmatmul.f32.gmra.mxu0 %v337
    %v750 = vpop.f32.mrf.mxu0
    %v751 = vadd.f32 %v556, %v750
    %752 = vmatmul.f32.gmra.mxu0 %v338
    %v753 = vpop.f32.mrf.mxu0
    %v754 = vadd.f32 %v561, %v753
    %755 = vmatmul.f32.gmra.mxu0 %v339
    %v756 = vpop.f32.mrf.mxu0
    %v757 = vadd.f32 %v566, %v756
    %758 = vmatmul.f32.gmra.mxu0 %v340
    %v759 = vpop.f32.mrf.mxu0
    %v760 = vadd.f32 %v571, %v759
    %761 = vmatmul.f32.gmra.mxu0 %v341
    %v762 = vpop.f32.mrf.mxu0
    %v763 = vadd.f32 %v576, %v762
    %764 = vmatmul.f32.gmra.mxu0 %v342
    %v765 = vpop.f32.mrf.mxu0
    %v766 = vadd.f32 %v581, %v765
    %767 = vmatmul.f32.gmra.mxu0 %v343
    %v768 = vpop.f32.mrf.mxu0
    %v769 = vadd.f32 %v586, %v768
    %770 = vmatmul.f32.gmra.mxu0 %v344
    %v771 = vpop.f32.mrf.mxu0
    %v772 = vadd.f32 %v591, %v771
    %773 = vmatmul.f32.gmra.mxu0 %v345
    %v774 = vpop.f32.mrf.mxu0
    %v775 = vadd.f32 %v596, %v774
    %776 = vmatmul.f32.gmra.mxu0 %v346
    %v777 = vpop.f32.mrf.mxu0
    %v778 = vadd.f32 %v601, %v777
    %779 = vmatmul.f32.gmra.mxu0 %v347
    %v780 = vpop.f32.mrf.mxu0
    %v781 = vadd.f32 %v606, %v780
    %782 = vmatmul.f32.gmra.mxu0 %v348
    %v783 = vpop.f32.mrf.mxu0
    %v784 = vadd.f32 %v611, %v783
    %785 = vmatmul.f32.gmra.mxu0 %v349
    %v786 = vpop.f32.mrf.mxu0
    %v787 = vadd.f32 %v616, %v786
    %788 = vmatmul.f32.gmra.mxu0 %v350
    %v789 = vpop.f32.mrf.mxu0
    %v790 = vadd.f32 %v621, %v789
    %791 = vmatmul.f32.gmra.mxu0 %v351
    %v792 = vpop.f32.mrf.mxu0
    %v793 = vadd.f32 %v626, %v792
    %794 = vmatmul.f32.gmra.mxu0 %v352
    %v795 = vpop.f32.mrf.mxu0
    %v796 = vadd.f32 %v631, %v795
    %797 = vmatmul.f32.gmra.mxu0 %v353
    %v798 = vpop.f32.mrf.mxu0
    %v799 = vadd.f32 %v636, %v798
    %800 = vmatmul.f32.gmra.mxu0 %v354
    %v801 = vpop.f32.mrf.mxu0
    %v802 = vadd.f32 %v641, %v801
    %803 = vdwg.mxu0
    %v806 = vrot.slane %v661, 1
    %v807 = vrot.slane %v661, 2
    %v808 = vrot.slane %v661, 3
    %v809 = vrot.slane %v661, 4
    %v810 = vrot.slane %v661, 5
    %v811 = vrot.slane %v661, 6
    %v812 = vrot.slane %v661, 7
    %v813 = vrot.slane %v664, 1
    %v814 = vrot.slane %v664, 2
    %v815 = vrot.slane %v664, 3
    %v816 = vrot.slane %v664, 4
    %v817 = vrot.slane %v664, 5
    %v818 = vrot.slane %v664, 6
    %v819 = vrot.slane %v664, 7
    %v820 = vperm.slane %v661, 0
    %v821 = vperm.slane %v806, 0
    %v822 = vperm.slane %v807, 0
    %v823 = vperm.slane %v808, 0
    %v824 = vperm.slane %v809, 0
    %v825 = vperm.slane %v810, 0
    %v826 = vperm.slane %v811, 0
    %v827 = vperm.slane %v812, 0
    %v828 = vperm.slane %v664, 0
    %v829 = vperm.slane %v813, 0
    %v830 = vperm.slane %v814, 0
    %v831 = vperm.slane %v815, 0
    %v832 = vperm.slane %v816, 0
    %v833 = vperm.slane %v817, 0
    %v834 = vperm.slane %v818, 0
    %v835 = vperm.slane %v819, 0
    %v852 = vmul.f32 %v820, %v709
    %v853 = vmul.f32 %v820, %v712
    %v854 = vmul.f32 %v821, %v709
    %v855 = vmul.f32 %v821, %v712
    %v856 = vmul.f32 %v822, %v709
    %v857 = vmul.f32 %v822, %v712
    %v858 = vmul.f32 %v823, %v709
    %v859 = vmul.f32 %v823, %v712
    %v860 = vmul.f32 %v824, %v709
    %v861 = vmul.f32 %v824, %v712
    %v862 = vmul.f32 %v825, %v709
    %v863 = vmul.f32 %v825, %v712
    %v864 = vmul.f32 %v826, %v709
    %v865 = vmul.f32 %v826, %v712
    %v866 = vmul.f32 %v827, %v709
    %v867 = vmul.f32 %v827, %v712
    %v868 = vmul.f32 %v828, %v709
    %v869 = vmul.f32 %v828, %v712
    %v870 = vmul.f32 %v829, %v709
    %v871 = vmul.f32 %v829, %v712
    %v872 = vmul.f32 %v830, %v709
    %v873 = vmul.f32 %v830, %v712
    %v874 = vmul.f32 %v831, %v709
    %v875 = vmul.f32 %v831, %v712
    %v876 = vmul.f32 %v832, %v709
    %v877 = vmul.f32 %v832, %v712
    %v878 = vmul.f32 %v833, %v709
    %v879 = vmul.f32 %v833, %v712
    %v880 = vmul.f32 %v834, %v709
    %v881 = vmul.f32 %v834, %v712
    %v882 = vmul.f32 %v835, %v709
    %v883 = vmul.f32 %v835, %v712
    %v886 = vrot.slane %v667, 1
    %v887 = vrot.slane %v667, 2
    %v888 = vrot.slane %v667, 3
    %v889 = vrot.slane %v667, 4
    %v890 = vrot.slane %v667, 5
    %v891 = vrot.slane %v667, 6
    %v892 = vrot.slane %v667, 7
    %v893 = vrot.slane %v670, 1
    %v894 = vrot.slane %v670, 2
    %v895 = vrot.slane %v670, 3
    %v896 = vrot.slane %v670, 4
    %v897 = vrot.slane %v670, 5
    %v898 = vrot.slane %v670, 6
    %v899 = vrot.slane %v670, 7
    %v900 = vperm.slane %v667, 0
    %v901 = vperm.slane %v886, 0
    %v902 = vperm.slane %v887, 0
    %v903 = vperm.slane %v888, 0
    %v904 = vperm.slane %v889, 0
    %v905 = vperm.slane %v890, 0
    %v906 = vperm.slane %v891, 0
    %v907 = vperm.slane %v892, 0
    %v908 = vperm.slane %v670, 0
    %v909 = vperm.slane %v893, 0
    %v910 = vperm.slane %v894, 0
    %v911 = vperm.slane %v895, 0
    %v912 = vperm.slane %v896, 0
    %v913 = vperm.slane %v897, 0
    %v914 = vperm.slane %v898, 0
    %v915 = vperm.slane %v899, 0
    %v932 = vmul.f32 %v900, %v715
    %v933 = vmul.f32 %v900, %v718
    %v934 = vmul.f32 %v901, %v715
    %v935 = vmul.f32 %v901, %v718
    %v936 = vmul.f32 %v902, %v715
    %v937 = vmul.f32 %v902, %v718
    %v938 = vmul.f32 %v903, %v715
    %v939 = vmul.f32 %v903, %v718
    %v940 = vmul.f32 %v904, %v715
    %v941 = vmul.f32 %v904, %v718
    %v942 = vmul.f32 %v905, %v715
    %v943 = vmul.f32 %v905, %v718
    %v944 = vmul.f32 %v906, %v715
    %v945 = vmul.f32 %v906, %v718
    %v946 = vmul.f32 %v907, %v715
    %v947 = vmul.f32 %v907, %v718
    %v948 = vmul.f32 %v908, %v715
    %v949 = vmul.f32 %v908, %v718
    %v950 = vmul.f32 %v909, %v715
    %v951 = vmul.f32 %v909, %v718
    %v952 = vmul.f32 %v910, %v715
    %v953 = vmul.f32 %v910, %v718
    %v954 = vmul.f32 %v911, %v715
    %v955 = vmul.f32 %v911, %v718
    %v956 = vmul.f32 %v912, %v715
    %v957 = vmul.f32 %v912, %v718
    %v958 = vmul.f32 %v913, %v715
    %v959 = vmul.f32 %v913, %v718
    %v960 = vmul.f32 %v914, %v715
    %v961 = vmul.f32 %v914, %v718
    %v962 = vmul.f32 %v915, %v715
    %v963 = vmul.f32 %v915, %v718
    %v964 = vadd.f32 %v852, %v932
    %v965 = vadd.f32 %v853, %v933
    %v966 = vadd.f32 %v854, %v934
    %v967 = vadd.f32 %v855, %v935
    %v968 = vadd.f32 %v856, %v936
    %v969 = vadd.f32 %v857, %v937
    %v970 = vadd.f32 %v858, %v938
    %v971 = vadd.f32 %v859, %v939
    %v972 = vadd.f32 %v860, %v940
    %v973 = vadd.f32 %v861, %v941
    %v974 = vadd.f32 %v862, %v942
    %v975 = vadd.f32 %v863, %v943
    %v976 = vadd.f32 %v864, %v944
    %v977 = vadd.f32 %v865, %v945
    %v978 = vadd.f32 %v866, %v946
    %v979 = vadd.f32 %v867, %v947
    %v980 = vadd.f32 %v868, %v948
    %v981 = vadd.f32 %v869, %v949
    %v982 = vadd.f32 %v870, %v950
    %v983 = vadd.f32 %v871, %v951
    %v984 = vadd.f32 %v872, %v952
    %v985 = vadd.f32 %v873, %v953
    %v986 = vadd.f32 %v874, %v954
    %v987 = vadd.f32 %v875, %v955
    %v988 = vadd.f32 %v876, %v956
    %v989 = vadd.f32 %v877, %v957
    %v990 = vadd.f32 %v878, %v958
    %v991 = vadd.f32 %v879, %v959
    %v992 = vadd.f32 %v880, %v960
    %v993 = vadd.f32 %v881, %v961
    %v994 = vadd.f32 %v882, %v962
    %v995 = vadd.f32 %v883, %v963
    %v998 = vrot.slane %v673, 1
    %v999 = vrot.slane %v673, 2
    %v1000 = vrot.slane %v673, 3
    %v1001 = vrot.slane %v673, 4
    %v1002 = vrot.slane %v673, 5
    %v1003 = vrot.slane %v673, 6
    %v1004 = vrot.slane %v673, 7
    %v1005 = vrot.slane %v676, 1
    %v1006 = vrot.slane %v676, 2
    %v1007 = vrot.slane %v676, 3
    %v1008 = vrot.slane %v676, 4
    %v1009 = vrot.slane %v676, 5
    %v1010 = vrot.slane %v676, 6
    %v1011 = vrot.slane %v676, 7
    %v1012 = vperm.slane %v673, 0
    %v1013 = vperm.slane %v998, 0
    %v1014 = vperm.slane %v999, 0
    %v1015 = vperm.slane %v1000, 0
    %v1016 = vperm.slane %v1001, 0
    %v1017 = vperm.slane %v1002, 0
    %v1018 = vperm.slane %v1003, 0
    %v1019 = vperm.slane %v1004, 0
    %v1020 = vperm.slane %v676, 0
    %v1021 = vperm.slane %v1005, 0
    %v1022 = vperm.slane %v1006, 0
    %v1023 = vperm.slane %v1007, 0
    %v1024 = vperm.slane %v1008, 0
    %v1025 = vperm.slane %v1009, 0
    %v1026 = vperm.slane %v1010, 0
    %v1027 = vperm.slane %v1011, 0
    %v1044 = vmul.f32 %v1012, %v721
    %v1045 = vmul.f32 %v1012, %v724
    %v1046 = vmul.f32 %v1013, %v721
    %v1047 = vmul.f32 %v1013, %v724
    %v1048 = vmul.f32 %v1014, %v721
    %v1049 = vmul.f32 %v1014, %v724
    %v1050 = vmul.f32 %v1015, %v721
    %v1051 = vmul.f32 %v1015, %v724
    %v1052 = vmul.f32 %v1016, %v721
    %v1053 = vmul.f32 %v1016, %v724
    %v1054 = vmul.f32 %v1017, %v721
    %v1055 = vmul.f32 %v1017, %v724
    %v1056 = vmul.f32 %v1018, %v721
    %v1057 = vmul.f32 %v1018, %v724
    %v1058 = vmul.f32 %v1019, %v721
    %v1059 = vmul.f32 %v1019, %v724
    %v1060 = vmul.f32 %v1020, %v721
    %v1061 = vmul.f32 %v1020, %v724
    %v1062 = vmul.f32 %v1021, %v721
    %v1063 = vmul.f32 %v1021, %v724
    %v1064 = vmul.f32 %v1022, %v721
    %v1065 = vmul.f32 %v1022, %v724
    %v1066 = vmul.f32 %v1023, %v721
    %v1067 = vmul.f32 %v1023, %v724
    %v1068 = vmul.f32 %v1024, %v721
    %v1069 = vmul.f32 %v1024, %v724
    %v1070 = vmul.f32 %v1025, %v721
    %v1071 = vmul.f32 %v1025, %v724
    %v1072 = vmul.f32 %v1026, %v721
    %v1073 = vmul.f32 %v1026, %v724
    %v1074 = vmul.f32 %v1027, %v721
    %v1075 = vmul.f32 %v1027, %v724
    %v1076 = vadd.f32 %v964, %v1044
    %v1077 = vadd.f32 %v965, %v1045
    %v1078 = vadd.f32 %v966, %v1046
    %v1079 = vadd.f32 %v967, %v1047
    %v1080 = vadd.f32 %v968, %v1048
    %v1081 = vadd.f32 %v969, %v1049
    %v1082 = vadd.f32 %v970, %v1050
    %v1083 = vadd.f32 %v971, %v1051
    %v1084 = vadd.f32 %v972, %v1052
    %v1085 = vadd.f32 %v973, %v1053
    %v1086 = vadd.f32 %v974, %v1054
    %v1087 = vadd.f32 %v975, %v1055
    %v1088 = vadd.f32 %v976, %v1056
    %v1089 = vadd.f32 %v977, %v1057
    %v1090 = vadd.f32 %v978, %v1058
    %v1091 = vadd.f32 %v979, %v1059
    %v1092 = vadd.f32 %v980, %v1060
    %v1093 = vadd.f32 %v981, %v1061
    %v1094 = vadd.f32 %v982, %v1062
    %v1095 = vadd.f32 %v983, %v1063
    %v1096 = vadd.f32 %v984, %v1064
    %v1097 = vadd.f32 %v985, %v1065
    %v1098 = vadd.f32 %v986, %v1066
    %v1099 = vadd.f32 %v987, %v1067
    %v1100 = vadd.f32 %v988, %v1068
    %v1101 = vadd.f32 %v989, %v1069
    %v1102 = vadd.f32 %v990, %v1070
    %v1103 = vadd.f32 %v991, %v1071
    %v1104 = vadd.f32 %v992, %v1072
    %v1105 = vadd.f32 %v993, %v1073
    %v1106 = vadd.f32 %v994, %v1074
    %v1107 = vadd.f32 %v995, %v1075
    %v1110 = vrot.slane %v679, 1
    %v1111 = vrot.slane %v679, 2
    %v1112 = vrot.slane %v679, 3
    %v1113 = vrot.slane %v679, 4
    %v1114 = vrot.slane %v679, 5
    %v1115 = vrot.slane %v679, 6
    %v1116 = vrot.slane %v679, 7
    %v1117 = vrot.slane %v682, 1
    %v1118 = vrot.slane %v682, 2
    %v1119 = vrot.slane %v682, 3
    %v1120 = vrot.slane %v682, 4
    %v1121 = vrot.slane %v682, 5
    %v1122 = vrot.slane %v682, 6
    %v1123 = vrot.slane %v682, 7
    %v1124 = vperm.slane %v679, 0
    %v1125 = vperm.slane %v1110, 0
    %v1126 = vperm.slane %v1111, 0
    %v1127 = vperm.slane %v1112, 0
    %v1128 = vperm.slane %v1113, 0
    %v1129 = vperm.slane %v1114, 0
    %v1130 = vperm.slane %v1115, 0
    %v1131 = vperm.slane %v1116, 0
    %v1132 = vperm.slane %v682, 0
    %v1133 = vperm.slane %v1117, 0
    %v1134 = vperm.slane %v1118, 0
    %v1135 = vperm.slane %v1119, 0
    %v1136 = vperm.slane %v1120, 0
    %v1137 = vperm.slane %v1121, 0
    %v1138 = vperm.slane %v1122, 0
    %v1139 = vperm.slane %v1123, 0
    %v1156 = vmul.f32 %v1124, %v727
    %v1157 = vmul.f32 %v1124, %v730
    %v1158 = vmul.f32 %v1125, %v727
    %v1159 = vmul.f32 %v1125, %v730
    %v1160 = vmul.f32 %v1126, %v727
    %v1161 = vmul.f32 %v1126, %v730
    %v1162 = vmul.f32 %v1127, %v727
    %v1163 = vmul.f32 %v1127, %v730
    %v1164 = vmul.f32 %v1128, %v727
    %v1165 = vmul.f32 %v1128, %v730
    %v1166 = vmul.f32 %v1129, %v727
    %v1167 = vmul.f32 %v1129, %v730
    %v1168 = vmul.f32 %v1130, %v727
    %v1169 = vmul.f32 %v1130, %v730
    %v1170 = vmul.f32 %v1131, %v727
    %v1171 = vmul.f32 %v1131, %v730
    %v1172 = vmul.f32 %v1132, %v727
    %v1173 = vmul.f32 %v1132, %v730
    %v1174 = vmul.f32 %v1133, %v727
    %v1175 = vmul.f32 %v1133, %v730
    %v1176 = vmul.f32 %v1134, %v727
    %v1177 = vmul.f32 %v1134, %v730
    %v1178 = vmul.f32 %v1135, %v727
    %v1179 = vmul.f32 %v1135, %v730
    %v1180 = vmul.f32 %v1136, %v727
    %v1181 = vmul.f32 %v1136, %v730
    %v1182 = vmul.f32 %v1137, %v727
    %v1183 = vmul.f32 %v1137, %v730
    %v1184 = vmul.f32 %v1138, %v727
    %v1185 = vmul.f32 %v1138, %v730
    %v1186 = vmul.f32 %v1139, %v727
    %v1187 = vmul.f32 %v1139, %v730
    %v1188 = vadd.f32 %v1076, %v1156
    %v1189 = vadd.f32 %v1077, %v1157
    %v1190 = vadd.f32 %v1078, %v1158
    %v1191 = vadd.f32 %v1079, %v1159
    %v1192 = vadd.f32 %v1080, %v1160
    %v1193 = vadd.f32 %v1081, %v1161
    %v1194 = vadd.f32 %v1082, %v1162
    %v1195 = vadd.f32 %v1083, %v1163
    %v1196 = vadd.f32 %v1084, %v1164
    %v1197 = vadd.f32 %v1085, %v1165
    %v1198 = vadd.f32 %v1086, %v1166
    %v1199 = vadd.f32 %v1087, %v1167
    %v1200 = vadd.f32 %v1088, %v1168
    %v1201 = vadd.f32 %v1089, %v1169
    %v1202 = vadd.f32 %v1090, %v1170
    %v1203 = vadd.f32 %v1091, %v1171
    %v1204 = vadd.f32 %v1092, %v1172
    %v1205 = vadd.f32 %v1093, %v1173
    %v1206 = vadd.f32 %v1094, %v1174
    %v1207 = vadd.f32 %v1095, %v1175
    %v1208 = vadd.f32 %v1096, %v1176
    %v1209 = vadd.f32 %v1097, %v1177
    %v1210 = vadd.f32 %v1098, %v1178
    %v1211 = vadd.f32 %v1099, %v1179
    %v1212 = vadd.f32 %v1100, %v1180
    %v1213 = vadd.f32 %v1101, %v1181
    %v1214 = vadd.f32 %v1102, %v1182
    %v1215 = vadd.f32 %v1103, %v1183
    %v1216 = vadd.f32 %v1104, %v1184
    %v1217 = vadd.f32 %v1105, %v1185
    %v1218 = vadd.f32 %v1106, %v1186
    %v1219 = vadd.f32 %v1107, %v1187
    %vm1220 = vcmask 64512
    %v1221 = vsel %vm1220, %v1188, -inf
    %v1222 = vsel %vm1220, %v1189, -inf
    %v1223 = vmax.f32 %v1221, %v1222
    %v1224 = vrot.slane %v1223, 4
    %v1225 = vmax.f32 %v1223, %v1224
    %v1226 = vrot.slane %v1225, 2
    %v1227 = vmax.f32 %v1225, %v1226
    %v1228 = vrot.slane %v1227, 1
    %v1229 = vmax.f32 %v1227, %v1228
    %v1230 = vsel %vm1220, %v1190, -inf
    %v1231 = vsel %vm1220, %v1191, -inf
    %v1232 = vmax.f32 %v1230, %v1231
    %v1233 = vrot.slane %v1232, 4
    %v1234 = vmax.f32 %v1232, %v1233
    %v1235 = vrot.slane %v1234, 2
    %v1236 = vmax.f32 %v1234, %v1235
    %v1237 = vrot.slane %v1236, 1
    %v1238 = vmax.f32 %v1236, %v1237
    %v1239 = vsel %vm1220, %v1192, -inf
    %v1240 = vsel %vm1220, %v1193, -inf
    %v1241 = vmax.f32 %v1239, %v1240
    %v1242 = vrot.slane %v1241, 4
    %v1243 = vmax.f32 %v1241, %v1242
    %v1244 = vrot.slane %v1243, 2
    %v1245 = vmax.f32 %v1243, %v1244
    %v1246 = vrot.slane %v1245, 1
    %v1247 = vmax.f32 %v1245, %v1246
    %v1248 = vsel %vm1220, %v1194, -inf
    %v1249 = vsel %vm1220, %v1195, -inf
    %v1250 = vmax.f32 %v1248, %v1249
    %v1251 = vrot.slane %v1250, 4
    %v1252 = vmax.f32 %v1250, %v1251
    %v1253 = vrot.slane %v1252, 2
    %v1254 = vmax.f32 %v1252, %v1253
    %v1255 = vrot.slane %v1254, 1
    %v1256 = vmax.f32 %v1254, %v1255
    %v1257 = vsel %vm1220, %v1196, -inf
    %v1258 = vsel %vm1220, %v1197, -inf
    %v1259 = vmax.f32 %v1257, %v1258
    %v1260 = vrot.slane %v1259, 4
    %v1261 = vmax.f32 %v1259, %v1260
    %v1262 = vrot.slane %v1261, 2
    %v1263 = vmax.f32 %v1261, %v1262
    %v1264 = vrot.slane %v1263, 1
    %v1265 = vmax.f32 %v1263, %v1264
    %v1266 = vsel %vm1220, %v1198, -inf
    %v1267 = vsel %vm1220, %v1199, -inf
    %v1268 = vmax.f32 %v1266, %v1267
    %v1269 = vrot.slane %v1268, 4
    %v1270 = vmax.f32 %v1268, %v1269
    %v1271 = vrot.slane %v1270, 2
    %v1272 = vmax.f32 %v1270, %v1271
    %v1273 = vrot.slane %v1272, 1
    %v1274 = vmax.f32 %v1272, %v1273
    %v1275 = vsel %vm1220, %v1200, -inf
    %v1276 = vsel %vm1220, %v1201, -inf
    %v1277 = vmax.f32 %v1275, %v1276
    %v1278 = vrot.slane %v1277, 4
    %v1279 = vmax.f32 %v1277, %v1278
    %v1280 = vrot.slane %v1279, 2
    %v1281 = vmax.f32 %v1279, %v1280
    %v1282 = vrot.slane %v1281, 1
    %v1283 = vmax.f32 %v1281, %v1282
    %v1284 = vsel %vm1220, %v1202, -inf
    %v1285 = vsel %vm1220, %v1203, -inf
    %v1286 = vmax.f32 %v1284, %v1285
    %v1287 = vrot.slane %v1286, 4
    %v1288 = vmax.f32 %v1286, %v1287
    %v1289 = vrot.slane %v1288, 2
    %v1290 = vmax.f32 %v1288, %v1289
    %v1291 = vrot.slane %v1290, 1
    %v1292 = vmax.f32 %v1290, %v1291
    %v1293 = vsel %vm1220, %v1204, -inf
    %v1294 = vsel %vm1220, %v1205, -inf
    %v1295 = vmax.f32 %v1293, %v1294
    %v1296 = vrot.slane %v1295, 4
    %v1297 = vmax.f32 %v1295, %v1296
    %v1298 = vrot.slane %v1297, 2
    %v1299 = vmax.f32 %v1297, %v1298
    %v1300 = vrot.slane %v1299, 1
    %v1301 = vmax.f32 %v1299, %v1300
    %v1302 = vsel %vm1220, %v1206, -inf
    %v1303 = vsel %vm1220, %v1207, -inf
    %v1304 = vmax.f32 %v1302, %v1303
    %v1305 = vrot.slane %v1304, 4
    %v1306 = vmax.f32 %v1304, %v1305
    %v1307 = vrot.slane %v1306, 2
    %v1308 = vmax.f32 %v1306, %v1307
    %v1309 = vrot.slane %v1308, 1
    %v1310 = vmax.f32 %v1308, %v1309
    %v1311 = vsel %vm1220, %v1208, -inf
    %v1312 = vsel %vm1220, %v1209, -inf
    %v1313 = vmax.f32 %v1311, %v1312
    %v1314 = vrot.slane %v1313, 4
    %v1315 = vmax.f32 %v1313, %v1314
    %v1316 = vrot.slane %v1315, 2
    %v1317 = vmax.f32 %v1315, %v1316
    %v1318 = vrot.slane %v1317, 1
    %v1319 = vmax.f32 %v1317, %v1318
    %v1320 = vsel %vm1220, %v1210, -inf
    %v1321 = vsel %vm1220, %v1211, -inf
    %v1322 = vmax.f32 %v1320, %v1321
    %v1323 = vrot.slane %v1322, 4
    %v1324 = vmax.f32 %v1322, %v1323
    %v1325 = vrot.slane %v1324, 2
    %v1326 = vmax.f32 %v1324, %v1325
    %v1327 = vrot.slane %v1326, 1
    %v1328 = vmax.f32 %v1326, %v1327
    %v1329 = vsel %vm1220, %v1212, -inf
    %v1330 = vsel %vm1220, %v1213, -inf
    %v1331 = vmax.f32 %v1329, %v1330
    %v1332 = vrot.slane %v1331, 4
    %v1333 = vmax.f32 %v1331, %v1332
    %v1334 = vrot.slane %v1333, 2
    %v1335 = vmax.f32 %v1333, %v1334
    %v1336 = vrot.slane %v1335, 1
    %v1337 = vmax.f32 %v1335, %v1336
    %v1338 = vsel %vm1220, %v1214, -inf
    %v1339 = vsel %vm1220, %v1215, -inf
    %v1340 = vmax.f32 %v1338, %v1339
    %v1341 = vrot.slane %v1340, 4
    %v1342 = vmax.f32 %v1340, %v1341
    %v1343 = vrot.slane %v1342, 2
    %v1344 = vmax.f32 %v1342, %v1343
    %v1345 = vrot.slane %v1344, 1
    %v1346 = vmax.f32 %v1344, %v1345
    %v1347 = vsel %vm1220, %v1216, -inf
    %v1348 = vsel %vm1220, %v1217, -inf
    %v1349 = vmax.f32 %v1347, %v1348
    %v1350 = vrot.slane %v1349, 4
    %v1351 = vmax.f32 %v1349, %v1350
    %v1352 = vrot.slane %v1351, 2
    %v1353 = vmax.f32 %v1351, %v1352
    %v1354 = vrot.slane %v1353, 1
    %v1355 = vmax.f32 %v1353, %v1354
    %v1356 = vsel %vm1220, %v1218, -inf
    %v1357 = vsel %vm1220, %v1219, -inf
    %v1358 = vmax.f32 %v1356, %v1357
    %v1359 = vrot.slane %v1358, 4
    %v1360 = vmax.f32 %v1358, %v1359
    %v1361 = vrot.slane %v1360, 2
    %v1362 = vmax.f32 %v1360, %v1361
    %v1363 = vrot.slane %v1362, 1
    %v1364 = vmax.f32 %v1362, %v1363
    %v1365 = vsub.f32 %v1188, %v1229
    %v1366 = vsub.f32 %v1189, %v1229
    %v1367 = vsub.f32 %v1190, %v1238
    %v1368 = vsub.f32 %v1191, %v1238
    %v1369 = vsub.f32 %v1192, %v1247
    %v1370 = vsub.f32 %v1193, %v1247
    %v1371 = vsub.f32 %v1194, %v1256
    %v1372 = vsub.f32 %v1195, %v1256
    %v1373 = vsub.f32 %v1196, %v1265
    %v1374 = vsub.f32 %v1197, %v1265
    %v1375 = vsub.f32 %v1198, %v1274
    %v1376 = vsub.f32 %v1199, %v1274
    %v1377 = vsub.f32 %v1200, %v1283
    %v1378 = vsub.f32 %v1201, %v1283
    %v1379 = vsub.f32 %v1202, %v1292
    %v1380 = vsub.f32 %v1203, %v1292
    %v1381 = vsub.f32 %v1204, %v1301
    %v1382 = vsub.f32 %v1205, %v1301
    %v1383 = vsub.f32 %v1206, %v1310
    %v1384 = vsub.f32 %v1207, %v1310
    %v1385 = vsub.f32 %v1208, %v1319
    %v1386 = vsub.f32 %v1209, %v1319
    %v1387 = vsub.f32 %v1210, %v1328
    %v1388 = vsub.f32 %v1211, %v1328
    %v1389 = vsub.f32 %v1212, %v1337
    %v1390 = vsub.f32 %v1213, %v1337
    %v1391 = vsub.f32 %v1214, %v1346
    %v1392 = vsub.f32 %v1215, %v1346
    %v1393 = vsub.f32 %v1216, %v1355
    %v1394 = vsub.f32 %v1217, %v1355
    %v1395 = vsub.f32 %v1218, %v1364
    %v1396 = vsub.f32 %v1219, %v1364
    %v1397 = vmul.f32 %v1365, 1.442695
    %v1398 = vpow.pop %v1397
    %v1399 = vmul.f32 %v1366, 1.442695
    %v1400 = vpow.pop %v1399
    %v1401 = vmul.f32 %v1367, 1.442695
    %v1402 = vpow.pop %v1401
    %v1403 = vmul.f32 %v1368, 1.442695
    %v1404 = vpow.pop %v1403
    %v1405 = vmul.f32 %v1369, 1.442695
    %v1406 = vpow.pop %v1405
    %v1407 = vmul.f32 %v1370, 1.442695
    %v1408 = vpow.pop %v1407
    %v1409 = vmul.f32 %v1371, 1.442695
    %v1410 = vpow.pop %v1409
    %v1411 = vmul.f32 %v1372, 1.442695
    %v1412 = vpow.pop %v1411
    %v1413 = vmul.f32 %v1373, 1.442695
    %v1414 = vpow.pop %v1413
    %v1415 = vmul.f32 %v1374, 1.442695
    %v1416 = vpow.pop %v1415
    %v1417 = vmul.f32 %v1375, 1.442695
    %v1418 = vpow.pop %v1417
    %v1419 = vmul.f32 %v1376, 1.442695
    %v1420 = vpow.pop %v1419
    %v1421 = vmul.f32 %v1377, 1.442695
    %v1422 = vpow.pop %v1421
    %v1423 = vmul.f32 %v1378, 1.442695
    %v1424 = vpow.pop %v1423
    %v1425 = vmul.f32 %v1379, 1.442695
    %v1426 = vpow.pop %v1425
    %v1427 = vmul.f32 %v1380, 1.442695
    %v1428 = vpow.pop %v1427
    %v1429 = vmul.f32 %v1381, 1.442695
    %v1430 = vpow.pop %v1429
    %v1431 = vmul.f32 %v1382, 1.442695
    %v1432 = vpow.pop %v1431
    %v1433 = vmul.f32 %v1383, 1.442695
    %v1434 = vpow.pop %v1433
    %v1435 = vmul.f32 %v1384, 1.442695
    %v1436 = vpow.pop %v1435
    %v1437 = vmul.f32 %v1385, 1.442695
    %v1438 = vpow.pop %v1437
    %v1439 = vmul.f32 %v1386, 1.442695
    %v1440 = vpow.pop %v1439
    %v1441 = vmul.f32 %v1387, 1.442695
    %v1442 = vpow.pop %v1441
    %v1443 = vmul.f32 %v1388, 1.442695
    %v1444 = vpow.pop %v1443
    %v1445 = vmul.f32 %v1389, 1.442695
    %v1446 = vpow.pop %v1445
    %v1447 = vmul.f32 %v1390, 1.442695
    %v1448 = vpow.pop %v1447
    %v1449 = vmul.f32 %v1391, 1.442695
    %v1450 = vpow.pop %v1449
    %v1451 = vmul.f32 %v1392, 1.442695
    %v1452 = vpow.pop %v1451
    %v1453 = vmul.f32 %v1393, 1.442695
    %v1454 = vpow.pop %v1453
    %v1455 = vmul.f32 %v1394, 1.442695
    %v1456 = vpow.pop %v1455
    %v1457 = vmul.f32 %v1395, 1.442695
    %v1458 = vpow.pop %v1457
    %v1459 = vmul.f32 %v1396, 1.442695
    %v1460 = vpow.pop %v1459
    %v1461 = vsel %vm1220, %v1398, 0.0
    %v1462 = vsel %vm1220, %v1400, 0.0
    %v1463 = vadd.f32 %v1461, %v1462
    %v1464 = vrot.slane %v1463, 4
    %v1465 = vadd.f32 %v1463, %v1464
    %v1466 = vrot.slane %v1465, 2
    %v1467 = vadd.f32 %v1465, %v1466
    %v1468 = vrot.slane %v1467, 1
    %v1469 = vadd.f32 %v1467, %v1468
    %v1470 = vsel %vm1220, %v1402, 0.0
    %v1471 = vsel %vm1220, %v1404, 0.0
    %v1472 = vadd.f32 %v1470, %v1471
    %v1473 = vrot.slane %v1472, 4
    %v1474 = vadd.f32 %v1472, %v1473
    %v1475 = vrot.slane %v1474, 2
    %v1476 = vadd.f32 %v1474, %v1475
    %v1477 = vrot.slane %v1476, 1
    %v1478 = vadd.f32 %v1476, %v1477
    %v1479 = vsel %vm1220, %v1406, 0.0
    %v1480 = vsel %vm1220, %v1408, 0.0
    %v1481 = vadd.f32 %v1479, %v1480
    %v1482 = vrot.slane %v1481, 4
    %v1483 = vadd.f32 %v1481, %v1482
    %v1484 = vrot.slane %v1483, 2
    %v1485 = vadd.f32 %v1483, %v1484
    %v1486 = vrot.slane %v1485, 1
    %v1487 = vadd.f32 %v1485, %v1486
    %v1488 = vsel %vm1220, %v1410, 0.0
    %v1489 = vsel %vm1220, %v1412, 0.0
    %v1490 = vadd.f32 %v1488, %v1489
    %v1491 = vrot.slane %v1490, 4
    %v1492 = vadd.f32 %v1490, %v1491
    %v1493 = vrot.slane %v1492, 2
    %v1494 = vadd.f32 %v1492, %v1493
    %v1495 = vrot.slane %v1494, 1
    %v1496 = vadd.f32 %v1494, %v1495
    %v1497 = vsel %vm1220, %v1414, 0.0
    %v1498 = vsel %vm1220, %v1416, 0.0
    %v1499 = vadd.f32 %v1497, %v1498
    %v1500 = vrot.slane %v1499, 4
    %v1501 = vadd.f32 %v1499, %v1500
    %v1502 = vrot.slane %v1501, 2
    %v1503 = vadd.f32 %v1501, %v1502
    %v1504 = vrot.slane %v1503, 1
    %v1505 = vadd.f32 %v1503, %v1504
    %v1506 = vsel %vm1220, %v1418, 0.0
    %v1507 = vsel %vm1220, %v1420, 0.0
    %v1508 = vadd.f32 %v1506, %v1507
    %v1509 = vrot.slane %v1508, 4
    %v1510 = vadd.f32 %v1508, %v1509
    %v1511 = vrot.slane %v1510, 2
    %v1512 = vadd.f32 %v1510, %v1511
    %v1513 = vrot.slane %v1512, 1
    %v1514 = vadd.f32 %v1512, %v1513
    %v1515 = vsel %vm1220, %v1422, 0.0
    %v1516 = vsel %vm1220, %v1424, 0.0
    %v1517 = vadd.f32 %v1515, %v1516
    %v1518 = vrot.slane %v1517, 4
    %v1519 = vadd.f32 %v1517, %v1518
    %v1520 = vrot.slane %v1519, 2
    %v1521 = vadd.f32 %v1519, %v1520
    %v1522 = vrot.slane %v1521, 1
    %v1523 = vadd.f32 %v1521, %v1522
    %v1524 = vsel %vm1220, %v1426, 0.0
    %v1525 = vsel %vm1220, %v1428, 0.0
    %v1526 = vadd.f32 %v1524, %v1525
    %v1527 = vrot.slane %v1526, 4
    %v1528 = vadd.f32 %v1526, %v1527
    %v1529 = vrot.slane %v1528, 2
    %v1530 = vadd.f32 %v1528, %v1529
    %v1531 = vrot.slane %v1530, 1
    %v1532 = vadd.f32 %v1530, %v1531
    %v1533 = vsel %vm1220, %v1430, 0.0
    %v1534 = vsel %vm1220, %v1432, 0.0
    %v1535 = vadd.f32 %v1533, %v1534
    %v1536 = vrot.slane %v1535, 4
    %v1537 = vadd.f32 %v1535, %v1536
    %v1538 = vrot.slane %v1537, 2
    %v1539 = vadd.f32 %v1537, %v1538
    %v1540 = vrot.slane %v1539, 1
    %v1541 = vadd.f32 %v1539, %v1540
    %v1542 = vsel %vm1220, %v1434, 0.0
    %v1543 = vsel %vm1220, %v1436, 0.0
    %v1544 = vadd.f32 %v1542, %v1543
    %v1545 = vrot.slane %v1544, 4
    %v1546 = vadd.f32 %v1544, %v1545
    %v1547 = vrot.slane %v1546, 2
    %v1548 = vadd.f32 %v1546, %v1547
    %v1549 = vrot.slane %v1548, 1
    %v1550 = vadd.f32 %v1548, %v1549
    %v1551 = vsel %vm1220, %v1438, 0.0
    %v1552 = vsel %vm1220, %v1440, 0.0
    %v1553 = vadd.f32 %v1551, %v1552
    %v1554 = vrot.slane %v1553, 4
    %v1555 = vadd.f32 %v1553, %v1554
    %v1556 = vrot.slane %v1555, 2
    %v1557 = vadd.f32 %v1555, %v1556
    %v1558 = vrot.slane %v1557, 1
    %v1559 = vadd.f32 %v1557, %v1558
    %v1560 = vsel %vm1220, %v1442, 0.0
    %v1561 = vsel %vm1220, %v1444, 0.0
    %v1562 = vadd.f32 %v1560, %v1561
    %v1563 = vrot.slane %v1562, 4
    %v1564 = vadd.f32 %v1562, %v1563
    %v1565 = vrot.slane %v1564, 2
    %v1566 = vadd.f32 %v1564, %v1565
    %v1567 = vrot.slane %v1566, 1
    %v1568 = vadd.f32 %v1566, %v1567
    %v1569 = vsel %vm1220, %v1446, 0.0
    %v1570 = vsel %vm1220, %v1448, 0.0
    %v1571 = vadd.f32 %v1569, %v1570
    %v1572 = vrot.slane %v1571, 4
    %v1573 = vadd.f32 %v1571, %v1572
    %v1574 = vrot.slane %v1573, 2
    %v1575 = vadd.f32 %v1573, %v1574
    %v1576 = vrot.slane %v1575, 1
    %v1577 = vadd.f32 %v1575, %v1576
    %v1578 = vsel %vm1220, %v1450, 0.0
    %v1579 = vsel %vm1220, %v1452, 0.0
    %v1580 = vadd.f32 %v1578, %v1579
    %v1581 = vrot.slane %v1580, 4
    %v1582 = vadd.f32 %v1580, %v1581
    %v1583 = vrot.slane %v1582, 2
    %v1584 = vadd.f32 %v1582, %v1583
    %v1585 = vrot.slane %v1584, 1
    %v1586 = vadd.f32 %v1584, %v1585
    %v1587 = vsel %vm1220, %v1454, 0.0
    %v1588 = vsel %vm1220, %v1456, 0.0
    %v1589 = vadd.f32 %v1587, %v1588
    %v1590 = vrot.slane %v1589, 4
    %v1591 = vadd.f32 %v1589, %v1590
    %v1592 = vrot.slane %v1591, 2
    %v1593 = vadd.f32 %v1591, %v1592
    %v1594 = vrot.slane %v1593, 1
    %v1595 = vadd.f32 %v1593, %v1594
    %v1596 = vsel %vm1220, %v1458, 0.0
    %v1597 = vsel %vm1220, %v1460, 0.0
    %v1598 = vadd.f32 %v1596, %v1597
    %v1599 = vrot.slane %v1598, 4
    %v1600 = vadd.f32 %v1598, %v1599
    %v1601 = vrot.slane %v1600, 2
    %v1602 = vadd.f32 %v1600, %v1601
    %v1603 = vrot.slane %v1602, 1
    %v1604 = vadd.f32 %v1602, %v1603
    %v1605 = vrcp.pop %v1469
    %v1606 = vrcp.pop %v1478
    %v1607 = vrcp.pop %v1487
    %v1608 = vrcp.pop %v1496
    %v1609 = vrcp.pop %v1505
    %v1610 = vrcp.pop %v1514
    %v1611 = vrcp.pop %v1523
    %v1612 = vrcp.pop %v1532
    %v1613 = vrcp.pop %v1541
    %v1614 = vrcp.pop %v1550
    %v1615 = vrcp.pop %v1559
    %v1616 = vrcp.pop %v1568
    %v1617 = vrcp.pop %v1577
    %v1618 = vrcp.pop %v1586
    %v1619 = vrcp.pop %v1595
    %v1620 = vrcp.pop %v1604
    %v1621 = vmul.f32 %v1398, %v1605
    %v1622 = vmul.f32 %v1400, %v1605
    %v1623 = vmul.f32 %v1402, %v1606
    %v1624 = vmul.f32 %v1404, %v1606
    %v1625 = vmul.f32 %v1406, %v1607
    %v1626 = vmul.f32 %v1408, %v1607
    %v1627 = vmul.f32 %v1410, %v1608
    %v1628 = vmul.f32 %v1412, %v1608
    %v1629 = vmul.f32 %v1414, %v1609
    %v1630 = vmul.f32 %v1416, %v1609
    %v1631 = vmul.f32 %v1418, %v1610
    %v1632 = vmul.f32 %v1420, %v1610
    %v1633 = vmul.f32 %v1422, %v1611
    %v1634 = vmul.f32 %v1424, %v1611
    %v1635 = vmul.f32 %v1426, %v1612
    %v1636 = vmul.f32 %v1428, %v1612
    %v1637 = vmul.f32 %v1430, %v1613
    %v1638 = vmul.f32 %v1432, %v1613
    %v1639 = vmul.f32 %v1434, %v1614
    %v1640 = vmul.f32 %v1436, %v1614
    %v1641 = vmul.f32 %v1438, %v1615
    %v1642 = vmul.f32 %v1440, %v1615
    %v1643 = vmul.f32 %v1442, %v1616
    %v1644 = vmul.f32 %v1444, %v1616
    %v1645 = vmul.f32 %v1446, %v1617
    %v1646 = vmul.f32 %v1448, %v1617
    %v1647 = vmul.f32 %v1450, %v1618
    %v1648 = vmul.f32 %v1452, %v1618
    %v1649 = vmul.f32 %v1454, %v1619
    %v1650 = vmul.f32 %v1456, %v1619
    %v1651 = vmul.f32 %v1458, %v1620
    %v1652 = vmul.f32 %v1460, %v1620
    %v1653 = vmul.f32 %v1621, %v757
    %v1654 = vmul.f32 %v1622, %v760
    %v1655 = vmul.f32 %v1623, %v757
    %v1656 = vmul.f32 %v1624, %v760
    %v1657 = vmul.f32 %v1625, %v757
    %v1658 = vmul.f32 %v1626, %v760
    %v1659 = vmul.f32 %v1627, %v757
    %v1660 = vmul.f32 %v1628, %v760
    %v1661 = vmul.f32 %v1629, %v757
    %v1662 = vmul.f32 %v1630, %v760
    %v1663 = vmul.f32 %v1631, %v757
    %v1664 = vmul.f32 %v1632, %v760
    %v1665 = vmul.f32 %v1633, %v757
    %v1666 = vmul.f32 %v1634, %v760
    %v1667 = vmul.f32 %v1635, %v757
    %v1668 = vmul.f32 %v1636, %v760
    %v1669 = vmul.f32 %v1637, %v757
    %v1670 = vmul.f32 %v1638, %v760
    %v1671 = vmul.f32 %v1639, %v757
    %v1672 = vmul.f32 %v1640, %v760
    %v1673 = vmul.f32 %v1641, %v757
    %v1674 = vmul.f32 %v1642, %v760
    %v1675 = vmul.f32 %v1643, %v757
    %v1676 = vmul.f32 %v1644, %v760
    %v1677 = vmul.f32 %v1645, %v757
    %v1678 = vmul.f32 %v1646, %v760
    %v1679 = vmul.f32 %v1647, %v757
    %v1680 = vmul.f32 %v1648, %v760
    %v1681 = vmul.f32 %v1649, %v757
    %v1682 = vmul.f32 %v1650, %v760
    %v1683 = vmul.f32 %v1651, %v757
    %v1684 = vmul.f32 %v1652, %v760
    %v1685 = vsel %vm1220, %v1653, 0.0
    %v1686 = vsel %vm1220, %v1654, 0.0
    %v1687 = vadd.f32 %v1685, %v1686
    %v1688 = vrot.slane %v1687, 4
    %v1689 = vadd.f32 %v1687, %v1688
    %v1690 = vrot.slane %v1689, 2
    %v1691 = vadd.f32 %v1689, %v1690
    %v1692 = vrot.slane %v1691, 1
    %v1693 = vadd.f32 %v1691, %v1692
    %v1694 = vsel %vm1220, %v1655, 0.0
    %v1695 = vsel %vm1220, %v1656, 0.0
    %v1696 = vadd.f32 %v1694, %v1695
    %v1697 = vrot.slane %v1696, 4
    %v1698 = vadd.f32 %v1696, %v1697
    %v1699 = vrot.slane %v1698, 2
    %v1700 = vadd.f32 %v1698, %v1699
    %v1701 = vrot.slane %v1700, 1
    %v1702 = vadd.f32 %v1700, %v1701
    %v1703 = vsel %vm1220, %v1657, 0.0
    %v1704 = vsel %vm1220, %v1658, 0.0
    %v1705 = vadd.f32 %v1703, %v1704
    %v1706 = vrot.slane %v1705, 4
    %v1707 = vadd.f32 %v1705, %v1706
    %v1708 = vrot.slane %v1707, 2
    %v1709 = vadd.f32 %v1707, %v1708
    %v1710 = vrot.slane %v1709, 1
    %v1711 = vadd.f32 %v1709, %v1710
    %v1712 = vsel %vm1220, %v1659, 0.0
    %v1713 = vsel %vm1220, %v1660, 0.0
    %v1714 = vadd.f32 %v1712, %v1713
    %v1715 = vrot.slane %v1714, 4
    %v1716 = vadd.f32 %v1714, %v1715
    %v1717 = vrot.slane %v1716, 2
    %v1718 = vadd.f32 %v1716, %v1717
    %v1719 = vrot.slane %v1718, 1
    %v1720 = vadd.f32 %v1718, %v1719
    %v1721 = vsel %vm1220, %v1661, 0.0
    %v1722 = vsel %vm1220, %v1662, 0.0
    %v1723 = vadd.f32 %v1721, %v1722
    %v1724 = vrot.slane %v1723, 4
    %v1725 = vadd.f32 %v1723, %v1724
    %v1726 = vrot.slane %v1725, 2
    %v1727 = vadd.f32 %v1725, %v1726
    %v1728 = vrot.slane %v1727, 1
    %v1729 = vadd.f32 %v1727, %v1728
    %v1730 = vsel %vm1220, %v1663, 0.0
    %v1731 = vsel %vm1220, %v1664, 0.0
    %v1732 = vadd.f32 %v1730, %v1731
    %v1733 = vrot.slane %v1732, 4
    %v1734 = vadd.f32 %v1732, %v1733
    %v1735 = vrot.slane %v1734, 2
    %v1736 = vadd.f32 %v1734, %v1735
    %v1737 = vrot.slane %v1736, 1
    %v1738 = vadd.f32 %v1736, %v1737
    %v1739 = vsel %vm1220, %v1665, 0.0
    %v1740 = vsel %vm1220, %v1666, 0.0
    %v1741 = vadd.f32 %v1739, %v1740
    %v1742 = vrot.slane %v1741, 4
    %v1743 = vadd.f32 %v1741, %v1742
    %v1744 = vrot.slane %v1743, 2
    %v1745 = vadd.f32 %v1743, %v1744
    %v1746 = vrot.slane %v1745, 1
    %v1747 = vadd.f32 %v1745, %v1746
    %v1748 = vsel %vm1220, %v1667, 0.0
    %v1749 = vsel %vm1220, %v1668, 0.0
    %v1750 = vadd.f32 %v1748, %v1749
    %v1751 = vrot.slane %v1750, 4
    %v1752 = vadd.f32 %v1750, %v1751
    %v1753 = vrot.slane %v1752, 2
    %v1754 = vadd.f32 %v1752, %v1753
    %v1755 = vrot.slane %v1754, 1
    %v1756 = vadd.f32 %v1754, %v1755
    %v1757 = vsel %vm1220, %v1669, 0.0
    %v1758 = vsel %vm1220, %v1670, 0.0
    %v1759 = vadd.f32 %v1757, %v1758
    %v1760 = vrot.slane %v1759, 4
    %v1761 = vadd.f32 %v1759, %v1760
    %v1762 = vrot.slane %v1761, 2
    %v1763 = vadd.f32 %v1761, %v1762
    %v1764 = vrot.slane %v1763, 1
    %v1765 = vadd.f32 %v1763, %v1764
    %v1766 = vsel %vm1220, %v1671, 0.0
    %v1767 = vsel %vm1220, %v1672, 0.0
    %v1768 = vadd.f32 %v1766, %v1767
    %v1769 = vrot.slane %v1768, 4
    %v1770 = vadd.f32 %v1768, %v1769
    %v1771 = vrot.slane %v1770, 2
    %v1772 = vadd.f32 %v1770, %v1771
    %v1773 = vrot.slane %v1772, 1
    %v1774 = vadd.f32 %v1772, %v1773
    %v1775 = vsel %vm1220, %v1673, 0.0
    %v1776 = vsel %vm1220, %v1674, 0.0
    %v1777 = vadd.f32 %v1775, %v1776
    %v1778 = vrot.slane %v1777, 4
    %v1779 = vadd.f32 %v1777, %v1778
    %v1780 = vrot.slane %v1779, 2
    %v1781 = vadd.f32 %v1779, %v1780
    %v1782 = vrot.slane %v1781, 1
    %v1783 = vadd.f32 %v1781, %v1782
    %v1784 = vsel %vm1220, %v1675, 0.0
    %v1785 = vsel %vm1220, %v1676, 0.0
    %v1786 = vadd.f32 %v1784, %v1785
    %v1787 = vrot.slane %v1786, 4
    %v1788 = vadd.f32 %v1786, %v1787
    %v1789 = vrot.slane %v1788, 2
    %v1790 = vadd.f32 %v1788, %v1789
    %v1791 = vrot.slane %v1790, 1
    %v1792 = vadd.f32 %v1790, %v1791
    %v1793 = vsel %vm1220, %v1677, 0.0
    %v1794 = vsel %vm1220, %v1678, 0.0
    %v1795 = vadd.f32 %v1793, %v1794
    %v1796 = vrot.slane %v1795, 4
    %v1797 = vadd.f32 %v1795, %v1796
    %v1798 = vrot.slane %v1797, 2
    %v1799 = vadd.f32 %v1797, %v1798
    %v1800 = vrot.slane %v1799, 1
    %v1801 = vadd.f32 %v1799, %v1800
    %v1802 = vsel %vm1220, %v1679, 0.0
    %v1803 = vsel %vm1220, %v1680, 0.0
    %v1804 = vadd.f32 %v1802, %v1803
    %v1805 = vrot.slane %v1804, 4
    %v1806 = vadd.f32 %v1804, %v1805
    %v1807 = vrot.slane %v1806, 2
    %v1808 = vadd.f32 %v1806, %v1807
    %v1809 = vrot.slane %v1808, 1
    %v1810 = vadd.f32 %v1808, %v1809
    %v1811 = vsel %vm1220, %v1681, 0.0
    %v1812 = vsel %vm1220, %v1682, 0.0
    %v1813 = vadd.f32 %v1811, %v1812
    %v1814 = vrot.slane %v1813, 4
    %v1815 = vadd.f32 %v1813, %v1814
    %v1816 = vrot.slane %v1815, 2
    %v1817 = vadd.f32 %v1815, %v1816
    %v1818 = vrot.slane %v1817, 1
    %v1819 = vadd.f32 %v1817, %v1818
    %v1820 = vsel %vm1220, %v1683, 0.0
    %v1821 = vsel %vm1220, %v1684, 0.0
    %v1822 = vadd.f32 %v1820, %v1821
    %v1823 = vrot.slane %v1822, 4
    %v1824 = vadd.f32 %v1822, %v1823
    %v1825 = vrot.slane %v1824, 2
    %v1826 = vadd.f32 %v1824, %v1825
    %v1827 = vrot.slane %v1826, 1
    %v1828 = vadd.f32 %v1826, %v1827
    %v1829 = vmul.f32 %v1621, %v763
    %v1830 = vmul.f32 %v1622, %v766
    %v1831 = vmul.f32 %v1623, %v763
    %v1832 = vmul.f32 %v1624, %v766
    %v1833 = vmul.f32 %v1625, %v763
    %v1834 = vmul.f32 %v1626, %v766
    %v1835 = vmul.f32 %v1627, %v763
    %v1836 = vmul.f32 %v1628, %v766
    %v1837 = vmul.f32 %v1629, %v763
    %v1838 = vmul.f32 %v1630, %v766
    %v1839 = vmul.f32 %v1631, %v763
    %v1840 = vmul.f32 %v1632, %v766
    %v1841 = vmul.f32 %v1633, %v763
    %v1842 = vmul.f32 %v1634, %v766
    %v1843 = vmul.f32 %v1635, %v763
    %v1844 = vmul.f32 %v1636, %v766
    %v1845 = vmul.f32 %v1637, %v763
    %v1846 = vmul.f32 %v1638, %v766
    %v1847 = vmul.f32 %v1639, %v763
    %v1848 = vmul.f32 %v1640, %v766
    %v1849 = vmul.f32 %v1641, %v763
    %v1850 = vmul.f32 %v1642, %v766
    %v1851 = vmul.f32 %v1643, %v763
    %v1852 = vmul.f32 %v1644, %v766
    %v1853 = vmul.f32 %v1645, %v763
    %v1854 = vmul.f32 %v1646, %v766
    %v1855 = vmul.f32 %v1647, %v763
    %v1856 = vmul.f32 %v1648, %v766
    %v1857 = vmul.f32 %v1649, %v763
    %v1858 = vmul.f32 %v1650, %v766
    %v1859 = vmul.f32 %v1651, %v763
    %v1860 = vmul.f32 %v1652, %v766
    %v1861 = vsel %vm1220, %v1829, 0.0
    %v1862 = vsel %vm1220, %v1830, 0.0
    %v1863 = vadd.f32 %v1861, %v1862
    %v1864 = vrot.slane %v1863, 4
    %v1865 = vadd.f32 %v1863, %v1864
    %v1866 = vrot.slane %v1865, 2
    %v1867 = vadd.f32 %v1865, %v1866
    %v1868 = vrot.slane %v1867, 1
    %v1869 = vadd.f32 %v1867, %v1868
    %v1870 = vsel %vm1220, %v1831, 0.0
    %v1871 = vsel %vm1220, %v1832, 0.0
    %v1872 = vadd.f32 %v1870, %v1871
    %v1873 = vrot.slane %v1872, 4
    %v1874 = vadd.f32 %v1872, %v1873
    %v1875 = vrot.slane %v1874, 2
    %v1876 = vadd.f32 %v1874, %v1875
    %v1877 = vrot.slane %v1876, 1
    %v1878 = vadd.f32 %v1876, %v1877
    %v1879 = vsel %vm1220, %v1833, 0.0
    %v1880 = vsel %vm1220, %v1834, 0.0
    %v1881 = vadd.f32 %v1879, %v1880
    %v1882 = vrot.slane %v1881, 4
    %v1883 = vadd.f32 %v1881, %v1882
    %v1884 = vrot.slane %v1883, 2
    %v1885 = vadd.f32 %v1883, %v1884
    %v1886 = vrot.slane %v1885, 1
    %v1887 = vadd.f32 %v1885, %v1886
    %v1888 = vsel %vm1220, %v1835, 0.0
    %v1889 = vsel %vm1220, %v1836, 0.0
    %v1890 = vadd.f32 %v1888, %v1889
    %v1891 = vrot.slane %v1890, 4
    %v1892 = vadd.f32 %v1890, %v1891
    %v1893 = vrot.slane %v1892, 2
    %v1894 = vadd.f32 %v1892, %v1893
    %v1895 = vrot.slane %v1894, 1
    %v1896 = vadd.f32 %v1894, %v1895
    %v1897 = vsel %vm1220, %v1837, 0.0
    %v1898 = vsel %vm1220, %v1838, 0.0
    %v1899 = vadd.f32 %v1897, %v1898
    %v1900 = vrot.slane %v1899, 4
    %v1901 = vadd.f32 %v1899, %v1900
    %v1902 = vrot.slane %v1901, 2
    %v1903 = vadd.f32 %v1901, %v1902
    %v1904 = vrot.slane %v1903, 1
    %v1905 = vadd.f32 %v1903, %v1904
    %v1906 = vsel %vm1220, %v1839, 0.0
    %v1907 = vsel %vm1220, %v1840, 0.0
    %v1908 = vadd.f32 %v1906, %v1907
    %v1909 = vrot.slane %v1908, 4
    %v1910 = vadd.f32 %v1908, %v1909
    %v1911 = vrot.slane %v1910, 2
    %v1912 = vadd.f32 %v1910, %v1911
    %v1913 = vrot.slane %v1912, 1
    %v1914 = vadd.f32 %v1912, %v1913
    %v1915 = vsel %vm1220, %v1841, 0.0
    %v1916 = vsel %vm1220, %v1842, 0.0
    %v1917 = vadd.f32 %v1915, %v1916
    %v1918 = vrot.slane %v1917, 4
    %v1919 = vadd.f32 %v1917, %v1918
    %v1920 = vrot.slane %v1919, 2
    %v1921 = vadd.f32 %v1919, %v1920
    %v1922 = vrot.slane %v1921, 1
    %v1923 = vadd.f32 %v1921, %v1922
    %v1924 = vsel %vm1220, %v1843, 0.0
    %v1925 = vsel %vm1220, %v1844, 0.0
    %v1926 = vadd.f32 %v1924, %v1925
    %v1927 = vrot.slane %v1926, 4
    %v1928 = vadd.f32 %v1926, %v1927
    %v1929 = vrot.slane %v1928, 2
    %v1930 = vadd.f32 %v1928, %v1929
    %v1931 = vrot.slane %v1930, 1
    %v1932 = vadd.f32 %v1930, %v1931
    %v1933 = vsel %vm1220, %v1845, 0.0
    %v1934 = vsel %vm1220, %v1846, 0.0
    %v1935 = vadd.f32 %v1933, %v1934
    %v1936 = vrot.slane %v1935, 4
    %v1937 = vadd.f32 %v1935, %v1936
    %v1938 = vrot.slane %v1937, 2
    %v1939 = vadd.f32 %v1937, %v1938
    %v1940 = vrot.slane %v1939, 1
    %v1941 = vadd.f32 %v1939, %v1940
    %v1942 = vsel %vm1220, %v1847, 0.0
    %v1943 = vsel %vm1220, %v1848, 0.0
    %v1944 = vadd.f32 %v1942, %v1943
    %v1945 = vrot.slane %v1944, 4
    %v1946 = vadd.f32 %v1944, %v1945
    %v1947 = vrot.slane %v1946, 2
    %v1948 = vadd.f32 %v1946, %v1947
    %v1949 = vrot.slane %v1948, 1
    %v1950 = vadd.f32 %v1948, %v1949
    %v1951 = vsel %vm1220, %v1849, 0.0
    %v1952 = vsel %vm1220, %v1850, 0.0
    %v1953 = vadd.f32 %v1951, %v1952
    %v1954 = vrot.slane %v1953, 4
    %v1955 = vadd.f32 %v1953, %v1954
    %v1956 = vrot.slane %v1955, 2
    %v1957 = vadd.f32 %v1955, %v1956
    %v1958 = vrot.slane %v1957, 1
    %v1959 = vadd.f32 %v1957, %v1958
    %v1960 = vsel %vm1220, %v1851, 0.0
    %v1961 = vsel %vm1220, %v1852, 0.0
    %v1962 = vadd.f32 %v1960, %v1961
    %v1963 = vrot.slane %v1962, 4
    %v1964 = vadd.f32 %v1962, %v1963
    %v1965 = vrot.slane %v1964, 2
    %v1966 = vadd.f32 %v1964, %v1965
    %v1967 = vrot.slane %v1966, 1
    %v1968 = vadd.f32 %v1966, %v1967
    %v1969 = vsel %vm1220, %v1853, 0.0
    %v1970 = vsel %vm1220, %v1854, 0.0
    %v1971 = vadd.f32 %v1969, %v1970
    %v1972 = vrot.slane %v1971, 4
    %v1973 = vadd.f32 %v1971, %v1972
    %v1974 = vrot.slane %v1973, 2
    %v1975 = vadd.f32 %v1973, %v1974
    %v1976 = vrot.slane %v1975, 1
    %v1977 = vadd.f32 %v1975, %v1976
    %v1978 = vsel %vm1220, %v1855, 0.0
    %v1979 = vsel %vm1220, %v1856, 0.0
    %v1980 = vadd.f32 %v1978, %v1979
    %v1981 = vrot.slane %v1980, 4
    %v1982 = vadd.f32 %v1980, %v1981
    %v1983 = vrot.slane %v1982, 2
    %v1984 = vadd.f32 %v1982, %v1983
    %v1985 = vrot.slane %v1984, 1
    %v1986 = vadd.f32 %v1984, %v1985
    %v1987 = vsel %vm1220, %v1857, 0.0
    %v1988 = vsel %vm1220, %v1858, 0.0
    %v1989 = vadd.f32 %v1987, %v1988
    %v1990 = vrot.slane %v1989, 4
    %v1991 = vadd.f32 %v1989, %v1990
    %v1992 = vrot.slane %v1991, 2
    %v1993 = vadd.f32 %v1991, %v1992
    %v1994 = vrot.slane %v1993, 1
    %v1995 = vadd.f32 %v1993, %v1994
    %v1996 = vsel %vm1220, %v1859, 0.0
    %v1997 = vsel %vm1220, %v1860, 0.0
    %v1998 = vadd.f32 %v1996, %v1997
    %v1999 = vrot.slane %v1998, 4
    %v2000 = vadd.f32 %v1998, %v1999
    %v2001 = vrot.slane %v2000, 2
    %v2002 = vadd.f32 %v2000, %v2001
    %v2003 = vrot.slane %v2002, 1
    %v2004 = vadd.f32 %v2002, %v2003
    %v2005 = vmul.f32 %v1621, %v769
    %v2006 = vmul.f32 %v1622, %v772
    %v2007 = vmul.f32 %v1623, %v769
    %v2008 = vmul.f32 %v1624, %v772
    %v2009 = vmul.f32 %v1625, %v769
    %v2010 = vmul.f32 %v1626, %v772
    %v2011 = vmul.f32 %v1627, %v769
    %v2012 = vmul.f32 %v1628, %v772
    %v2013 = vmul.f32 %v1629, %v769
    %v2014 = vmul.f32 %v1630, %v772
    %v2015 = vmul.f32 %v1631, %v769
    %v2016 = vmul.f32 %v1632, %v772
    %v2017 = vmul.f32 %v1633, %v769
    %v2018 = vmul.f32 %v1634, %v772
    %v2019 = vmul.f32 %v1635, %v769
    %v2020 = vmul.f32 %v1636, %v772
    %v2021 = vmul.f32 %v1637, %v769
    %v2022 = vmul.f32 %v1638, %v772
    %v2023 = vmul.f32 %v1639, %v769
    %v2024 = vmul.f32 %v1640, %v772
    %v2025 = vmul.f32 %v1641, %v769
    %v2026 = vmul.f32 %v1642, %v772
    %v2027 = vmul.f32 %v1643, %v769
    %v2028 = vmul.f32 %v1644, %v772
    %v2029 = vmul.f32 %v1645, %v769
    %v2030 = vmul.f32 %v1646, %v772
    %v2031 = vmul.f32 %v1647, %v769
    %v2032 = vmul.f32 %v1648, %v772
    %v2033 = vmul.f32 %v1649, %v769
    %v2034 = vmul.f32 %v1650, %v772
    %v2035 = vmul.f32 %v1651, %v769
    %v2036 = vmul.f32 %v1652, %v772
    %v2037 = vsel %vm1220, %v2005, 0.0
    %v2038 = vsel %vm1220, %v2006, 0.0
    %v2039 = vadd.f32 %v2037, %v2038
    %v2040 = vrot.slane %v2039, 4
    %v2041 = vadd.f32 %v2039, %v2040
    %v2042 = vrot.slane %v2041, 2
    %v2043 = vadd.f32 %v2041, %v2042
    %v2044 = vrot.slane %v2043, 1
    %v2045 = vadd.f32 %v2043, %v2044
    %v2046 = vsel %vm1220, %v2007, 0.0
    %v2047 = vsel %vm1220, %v2008, 0.0
    %v2048 = vadd.f32 %v2046, %v2047
    %v2049 = vrot.slane %v2048, 4
    %v2050 = vadd.f32 %v2048, %v2049
    %v2051 = vrot.slane %v2050, 2
    %v2052 = vadd.f32 %v2050, %v2051
    %v2053 = vrot.slane %v2052, 1
    %v2054 = vadd.f32 %v2052, %v2053
    %v2055 = vsel %vm1220, %v2009, 0.0
    %v2056 = vsel %vm1220, %v2010, 0.0
    %v2057 = vadd.f32 %v2055, %v2056
    %v2058 = vrot.slane %v2057, 4
    %v2059 = vadd.f32 %v2057, %v2058
    %v2060 = vrot.slane %v2059, 2
    %v2061 = vadd.f32 %v2059, %v2060
    %v2062 = vrot.slane %v2061, 1
    %v2063 = vadd.f32 %v2061, %v2062
    %v2064 = vsel %vm1220, %v2011, 0.0
    %v2065 = vsel %vm1220, %v2012, 0.0
    %v2066 = vadd.f32 %v2064, %v2065
    %v2067 = vrot.slane %v2066, 4
    %v2068 = vadd.f32 %v2066, %v2067
    %v2069 = vrot.slane %v2068, 2
    %v2070 = vadd.f32 %v2068, %v2069
    %v2071 = vrot.slane %v2070, 1
    %v2072 = vadd.f32 %v2070, %v2071
    %v2073 = vsel %vm1220, %v2013, 0.0
    %v2074 = vsel %vm1220, %v2014, 0.0
    %v2075 = vadd.f32 %v2073, %v2074
    %v2076 = vrot.slane %v2075, 4
    %v2077 = vadd.f32 %v2075, %v2076
    %v2078 = vrot.slane %v2077, 2
    %v2079 = vadd.f32 %v2077, %v2078
    %v2080 = vrot.slane %v2079, 1
    %v2081 = vadd.f32 %v2079, %v2080
    %v2082 = vsel %vm1220, %v2015, 0.0
    %v2083 = vsel %vm1220, %v2016, 0.0
    %v2084 = vadd.f32 %v2082, %v2083
    %v2085 = vrot.slane %v2084, 4
    %v2086 = vadd.f32 %v2084, %v2085
    %v2087 = vrot.slane %v2086, 2
    %v2088 = vadd.f32 %v2086, %v2087
    %v2089 = vrot.slane %v2088, 1
    %v2090 = vadd.f32 %v2088, %v2089
    %v2091 = vsel %vm1220, %v2017, 0.0
    %v2092 = vsel %vm1220, %v2018, 0.0
    %v2093 = vadd.f32 %v2091, %v2092
    %v2094 = vrot.slane %v2093, 4
    %v2095 = vadd.f32 %v2093, %v2094
    %v2096 = vrot.slane %v2095, 2
    %v2097 = vadd.f32 %v2095, %v2096
    %v2098 = vrot.slane %v2097, 1
    %v2099 = vadd.f32 %v2097, %v2098
    %v2100 = vsel %vm1220, %v2019, 0.0
    %v2101 = vsel %vm1220, %v2020, 0.0
    %v2102 = vadd.f32 %v2100, %v2101
    %v2103 = vrot.slane %v2102, 4
    %v2104 = vadd.f32 %v2102, %v2103
    %v2105 = vrot.slane %v2104, 2
    %v2106 = vadd.f32 %v2104, %v2105
    %v2107 = vrot.slane %v2106, 1
    %v2108 = vadd.f32 %v2106, %v2107
    %v2109 = vsel %vm1220, %v2021, 0.0
    %v2110 = vsel %vm1220, %v2022, 0.0
    %v2111 = vadd.f32 %v2109, %v2110
    %v2112 = vrot.slane %v2111, 4
    %v2113 = vadd.f32 %v2111, %v2112
    %v2114 = vrot.slane %v2113, 2
    %v2115 = vadd.f32 %v2113, %v2114
    %v2116 = vrot.slane %v2115, 1
    %v2117 = vadd.f32 %v2115, %v2116
    %v2118 = vsel %vm1220, %v2023, 0.0
    %v2119 = vsel %vm1220, %v2024, 0.0
    %v2120 = vadd.f32 %v2118, %v2119
    %v2121 = vrot.slane %v2120, 4
    %v2122 = vadd.f32 %v2120, %v2121
    %v2123 = vrot.slane %v2122, 2
    %v2124 = vadd.f32 %v2122, %v2123
    %v2125 = vrot.slane %v2124, 1
    %v2126 = vadd.f32 %v2124, %v2125
    %v2127 = vsel %vm1220, %v2025, 0.0
    %v2128 = vsel %vm1220, %v2026, 0.0
    %v2129 = vadd.f32 %v2127, %v2128
    %v2130 = vrot.slane %v2129, 4
    %v2131 = vadd.f32 %v2129, %v2130
    %v2132 = vrot.slane %v2131, 2
    %v2133 = vadd.f32 %v2131, %v2132
    %v2134 = vrot.slane %v2133, 1
    %v2135 = vadd.f32 %v2133, %v2134
    %v2136 = vsel %vm1220, %v2027, 0.0
    %v2137 = vsel %vm1220, %v2028, 0.0
    %v2138 = vadd.f32 %v2136, %v2137
    %v2139 = vrot.slane %v2138, 4
    %v2140 = vadd.f32 %v2138, %v2139
    %v2141 = vrot.slane %v2140, 2
    %v2142 = vadd.f32 %v2140, %v2141
    %v2143 = vrot.slane %v2142, 1
    %v2144 = vadd.f32 %v2142, %v2143
    %v2145 = vsel %vm1220, %v2029, 0.0
    %v2146 = vsel %vm1220, %v2030, 0.0
    %v2147 = vadd.f32 %v2145, %v2146
    %v2148 = vrot.slane %v2147, 4
    %v2149 = vadd.f32 %v2147, %v2148
    %v2150 = vrot.slane %v2149, 2
    %v2151 = vadd.f32 %v2149, %v2150
    %v2152 = vrot.slane %v2151, 1
    %v2153 = vadd.f32 %v2151, %v2152
    %v2154 = vsel %vm1220, %v2031, 0.0
    %v2155 = vsel %vm1220, %v2032, 0.0
    %v2156 = vadd.f32 %v2154, %v2155
    %v2157 = vrot.slane %v2156, 4
    %v2158 = vadd.f32 %v2156, %v2157
    %v2159 = vrot.slane %v2158, 2
    %v2160 = vadd.f32 %v2158, %v2159
    %v2161 = vrot.slane %v2160, 1
    %v2162 = vadd.f32 %v2160, %v2161
    %v2163 = vsel %vm1220, %v2033, 0.0
    %v2164 = vsel %vm1220, %v2034, 0.0
    %v2165 = vadd.f32 %v2163, %v2164
    %v2166 = vrot.slane %v2165, 4
    %v2167 = vadd.f32 %v2165, %v2166
    %v2168 = vrot.slane %v2167, 2
    %v2169 = vadd.f32 %v2167, %v2168
    %v2170 = vrot.slane %v2169, 1
    %v2171 = vadd.f32 %v2169, %v2170
    %v2172 = vsel %vm1220, %v2035, 0.0
    %v2173 = vsel %vm1220, %v2036, 0.0
    %v2174 = vadd.f32 %v2172, %v2173
    %v2175 = vrot.slane %v2174, 4
    %v2176 = vadd.f32 %v2174, %v2175
    %v2177 = vrot.slane %v2176, 2
    %v2178 = vadd.f32 %v2176, %v2177
    %v2179 = vrot.slane %v2178, 1
    %v2180 = vadd.f32 %v2178, %v2179
    %v2181 = vmul.f32 %v1621, %v775
    %v2182 = vmul.f32 %v1622, %v778
    %v2183 = vmul.f32 %v1623, %v775
    %v2184 = vmul.f32 %v1624, %v778
    %v2185 = vmul.f32 %v1625, %v775
    %v2186 = vmul.f32 %v1626, %v778
    %v2187 = vmul.f32 %v1627, %v775
    %v2188 = vmul.f32 %v1628, %v778
    %v2189 = vmul.f32 %v1629, %v775
    %v2190 = vmul.f32 %v1630, %v778
    %v2191 = vmul.f32 %v1631, %v775
    %v2192 = vmul.f32 %v1632, %v778
    %v2193 = vmul.f32 %v1633, %v775
    %v2194 = vmul.f32 %v1634, %v778
    %v2195 = vmul.f32 %v1635, %v775
    %v2196 = vmul.f32 %v1636, %v778
    %v2197 = vmul.f32 %v1637, %v775
    %v2198 = vmul.f32 %v1638, %v778
    %v2199 = vmul.f32 %v1639, %v775
    %v2200 = vmul.f32 %v1640, %v778
    %v2201 = vmul.f32 %v1641, %v775
    %v2202 = vmul.f32 %v1642, %v778
    %v2203 = vmul.f32 %v1643, %v775
    %v2204 = vmul.f32 %v1644, %v778
    %v2205 = vmul.f32 %v1645, %v775
    %v2206 = vmul.f32 %v1646, %v778
    %v2207 = vmul.f32 %v1647, %v775
    %v2208 = vmul.f32 %v1648, %v778
    %v2209 = vmul.f32 %v1649, %v775
    %v2210 = vmul.f32 %v1650, %v778
    %v2211 = vmul.f32 %v1651, %v775
    %v2212 = vmul.f32 %v1652, %v778
    %v2213 = vsel %vm1220, %v2181, 0.0
    %v2214 = vsel %vm1220, %v2182, 0.0
    %v2215 = vadd.f32 %v2213, %v2214
    %v2216 = vrot.slane %v2215, 4
    %v2217 = vadd.f32 %v2215, %v2216
    %v2218 = vrot.slane %v2217, 2
    %v2219 = vadd.f32 %v2217, %v2218
    %v2220 = vrot.slane %v2219, 1
    %v2221 = vadd.f32 %v2219, %v2220
    %v2222 = vsel %vm1220, %v2183, 0.0
    %v2223 = vsel %vm1220, %v2184, 0.0
    %v2224 = vadd.f32 %v2222, %v2223
    %v2225 = vrot.slane %v2224, 4
    %v2226 = vadd.f32 %v2224, %v2225
    %v2227 = vrot.slane %v2226, 2
    %v2228 = vadd.f32 %v2226, %v2227
    %v2229 = vrot.slane %v2228, 1
    %v2230 = vadd.f32 %v2228, %v2229
    %v2231 = vsel %vm1220, %v2185, 0.0
    %v2232 = vsel %vm1220, %v2186, 0.0
    %v2233 = vadd.f32 %v2231, %v2232
    %v2234 = vrot.slane %v2233, 4
    %v2235 = vadd.f32 %v2233, %v2234
    %v2236 = vrot.slane %v2235, 2
    %v2237 = vadd.f32 %v2235, %v2236
    %v2238 = vrot.slane %v2237, 1
    %v2239 = vadd.f32 %v2237, %v2238
    %v2240 = vsel %vm1220, %v2187, 0.0
    %v2241 = vsel %vm1220, %v2188, 0.0
    %v2242 = vadd.f32 %v2240, %v2241
    %v2243 = vrot.slane %v2242, 4
    %v2244 = vadd.f32 %v2242, %v2243
    %v2245 = vrot.slane %v2244, 2
    %v2246 = vadd.f32 %v2244, %v2245
    %v2247 = vrot.slane %v2246, 1
    %v2248 = vadd.f32 %v2246, %v2247
    %v2249 = vsel %vm1220, %v2189, 0.0
    %v2250 = vsel %vm1220, %v2190, 0.0
    %v2251 = vadd.f32 %v2249, %v2250
    %v2252 = vrot.slane %v2251, 4
    %v2253 = vadd.f32 %v2251, %v2252
    %v2254 = vrot.slane %v2253, 2
    %v2255 = vadd.f32 %v2253, %v2254
    %v2256 = vrot.slane %v2255, 1
    %v2257 = vadd.f32 %v2255, %v2256
    %v2258 = vsel %vm1220, %v2191, 0.0
    %v2259 = vsel %vm1220, %v2192, 0.0
    %v2260 = vadd.f32 %v2258, %v2259
    %v2261 = vrot.slane %v2260, 4
    %v2262 = vadd.f32 %v2260, %v2261
    %v2263 = vrot.slane %v2262, 2
    %v2264 = vadd.f32 %v2262, %v2263
    %v2265 = vrot.slane %v2264, 1
    %v2266 = vadd.f32 %v2264, %v2265
    %v2267 = vsel %vm1220, %v2193, 0.0
    %v2268 = vsel %vm1220, %v2194, 0.0
    %v2269 = vadd.f32 %v2267, %v2268
    %v2270 = vrot.slane %v2269, 4
    %v2271 = vadd.f32 %v2269, %v2270
    %v2272 = vrot.slane %v2271, 2
    %v2273 = vadd.f32 %v2271, %v2272
    %v2274 = vrot.slane %v2273, 1
    %v2275 = vadd.f32 %v2273, %v2274
    %v2276 = vsel %vm1220, %v2195, 0.0
    %v2277 = vsel %vm1220, %v2196, 0.0
    %v2278 = vadd.f32 %v2276, %v2277
    %v2279 = vrot.slane %v2278, 4
    %v2280 = vadd.f32 %v2278, %v2279
    %v2281 = vrot.slane %v2280, 2
    %v2282 = vadd.f32 %v2280, %v2281
    %v2283 = vrot.slane %v2282, 1
    %v2284 = vadd.f32 %v2282, %v2283
    %v2285 = vsel %vm1220, %v2197, 0.0
    %v2286 = vsel %vm1220, %v2198, 0.0
    %v2287 = vadd.f32 %v2285, %v2286
    %v2288 = vrot.slane %v2287, 4
    %v2289 = vadd.f32 %v2287, %v2288
    %v2290 = vrot.slane %v2289, 2
    %v2291 = vadd.f32 %v2289, %v2290
    %v2292 = vrot.slane %v2291, 1
    %v2293 = vadd.f32 %v2291, %v2292
    %v2294 = vsel %vm1220, %v2199, 0.0
    %v2295 = vsel %vm1220, %v2200, 0.0
    %v2296 = vadd.f32 %v2294, %v2295
    %v2297 = vrot.slane %v2296, 4
    %v2298 = vadd.f32 %v2296, %v2297
    %v2299 = vrot.slane %v2298, 2
    %v2300 = vadd.f32 %v2298, %v2299
    %v2301 = vrot.slane %v2300, 1
    %v2302 = vadd.f32 %v2300, %v2301
    %v2303 = vsel %vm1220, %v2201, 0.0
    %v2304 = vsel %vm1220, %v2202, 0.0
    %v2305 = vadd.f32 %v2303, %v2304
    %v2306 = vrot.slane %v2305, 4
    %v2307 = vadd.f32 %v2305, %v2306
    %v2308 = vrot.slane %v2307, 2
    %v2309 = vadd.f32 %v2307, %v2308
    %v2310 = vrot.slane %v2309, 1
    %v2311 = vadd.f32 %v2309, %v2310
    %v2312 = vsel %vm1220, %v2203, 0.0
    %v2313 = vsel %vm1220, %v2204, 0.0
    %v2314 = vadd.f32 %v2312, %v2313
    %v2315 = vrot.slane %v2314, 4
    %v2316 = vadd.f32 %v2314, %v2315
    %v2317 = vrot.slane %v2316, 2
    %v2318 = vadd.f32 %v2316, %v2317
    %v2319 = vrot.slane %v2318, 1
    %v2320 = vadd.f32 %v2318, %v2319
    %v2321 = vsel %vm1220, %v2205, 0.0
    %v2322 = vsel %vm1220, %v2206, 0.0
    %v2323 = vadd.f32 %v2321, %v2322
    %v2324 = vrot.slane %v2323, 4
    %v2325 = vadd.f32 %v2323, %v2324
    %v2326 = vrot.slane %v2325, 2
    %v2327 = vadd.f32 %v2325, %v2326
    %v2328 = vrot.slane %v2327, 1
    %v2329 = vadd.f32 %v2327, %v2328
    %v2330 = vsel %vm1220, %v2207, 0.0
    %v2331 = vsel %vm1220, %v2208, 0.0
    %v2332 = vadd.f32 %v2330, %v2331
    %v2333 = vrot.slane %v2332, 4
    %v2334 = vadd.f32 %v2332, %v2333
    %v2335 = vrot.slane %v2334, 2
    %v2336 = vadd.f32 %v2334, %v2335
    %v2337 = vrot.slane %v2336, 1
    %v2338 = vadd.f32 %v2336, %v2337
    %v2339 = vsel %vm1220, %v2209, 0.0
    %v2340 = vsel %vm1220, %v2210, 0.0
    %v2341 = vadd.f32 %v2339, %v2340
    %v2342 = vrot.slane %v2341, 4
    %v2343 = vadd.f32 %v2341, %v2342
    %v2344 = vrot.slane %v2343, 2
    %v2345 = vadd.f32 %v2343, %v2344
    %v2346 = vrot.slane %v2345, 1
    %v2347 = vadd.f32 %v2345, %v2346
    %v2348 = vsel %vm1220, %v2211, 0.0
    %v2349 = vsel %vm1220, %v2212, 0.0
    %v2350 = vadd.f32 %v2348, %v2349
    %v2351 = vrot.slane %v2350, 4
    %v2352 = vadd.f32 %v2350, %v2351
    %v2353 = vrot.slane %v2352, 2
    %v2354 = vadd.f32 %v2352, %v2353
    %v2355 = vrot.slane %v2354, 1
    %v2356 = vadd.f32 %v2354, %v2355
    %v2359 = vrot.slane %v685, 1
    %v2360 = vrot.slane %v685, 2
    %v2361 = vrot.slane %v685, 3
    %v2362 = vrot.slane %v685, 4
    %v2363 = vrot.slane %v685, 5
    %v2364 = vrot.slane %v685, 6
    %v2365 = vrot.slane %v685, 7
    %v2366 = vrot.slane %v688, 1
    %v2367 = vrot.slane %v688, 2
    %v2368 = vrot.slane %v688, 3
    %v2369 = vrot.slane %v688, 4
    %v2370 = vrot.slane %v688, 5
    %v2371 = vrot.slane %v688, 6
    %v2372 = vrot.slane %v688, 7
    %v2373 = vperm.slane %v685, 0
    %v2374 = vperm.slane %v2359, 0
    %v2375 = vperm.slane %v2360, 0
    %v2376 = vperm.slane %v2361, 0
    %v2377 = vperm.slane %v2362, 0
    %v2378 = vperm.slane %v2363, 0
    %v2379 = vperm.slane %v2364, 0
    %v2380 = vperm.slane %v2365, 0
    %v2381 = vperm.slane %v688, 0
    %v2382 = vperm.slane %v2366, 0
    %v2383 = vperm.slane %v2367, 0
    %v2384 = vperm.slane %v2368, 0
    %v2385 = vperm.slane %v2369, 0
    %v2386 = vperm.slane %v2370, 0
    %v2387 = vperm.slane %v2371, 0
    %v2388 = vperm.slane %v2372, 0
    %v2405 = vmul.f32 %v2373, %v733
    %v2406 = vmul.f32 %v2373, %v736
    %v2407 = vmul.f32 %v2374, %v733
    %v2408 = vmul.f32 %v2374, %v736
    %v2409 = vmul.f32 %v2375, %v733
    %v2410 = vmul.f32 %v2375, %v736
    %v2411 = vmul.f32 %v2376, %v733
    %v2412 = vmul.f32 %v2376, %v736
    %v2413 = vmul.f32 %v2377, %v733
    %v2414 = vmul.f32 %v2377, %v736
    %v2415 = vmul.f32 %v2378, %v733
    %v2416 = vmul.f32 %v2378, %v736
    %v2417 = vmul.f32 %v2379, %v733
    %v2418 = vmul.f32 %v2379, %v736
    %v2419 = vmul.f32 %v2380, %v733
    %v2420 = vmul.f32 %v2380, %v736
    %v2421 = vmul.f32 %v2381, %v733
    %v2422 = vmul.f32 %v2381, %v736
    %v2423 = vmul.f32 %v2382, %v733
    %v2424 = vmul.f32 %v2382, %v736
    %v2425 = vmul.f32 %v2383, %v733
    %v2426 = vmul.f32 %v2383, %v736
    %v2427 = vmul.f32 %v2384, %v733
    %v2428 = vmul.f32 %v2384, %v736
    %v2429 = vmul.f32 %v2385, %v733
    %v2430 = vmul.f32 %v2385, %v736
    %v2431 = vmul.f32 %v2386, %v733
    %v2432 = vmul.f32 %v2386, %v736
    %v2433 = vmul.f32 %v2387, %v733
    %v2434 = vmul.f32 %v2387, %v736
    %v2435 = vmul.f32 %v2388, %v733
    %v2436 = vmul.f32 %v2388, %v736
    %v2439 = vrot.slane %v691, 1
    %v2440 = vrot.slane %v691, 2
    %v2441 = vrot.slane %v691, 3
    %v2442 = vrot.slane %v691, 4
    %v2443 = vrot.slane %v691, 5
    %v2444 = vrot.slane %v691, 6
    %v2445 = vrot.slane %v691, 7
    %v2446 = vrot.slane %v694, 1
    %v2447 = vrot.slane %v694, 2
    %v2448 = vrot.slane %v694, 3
    %v2449 = vrot.slane %v694, 4
    %v2450 = vrot.slane %v694, 5
    %v2451 = vrot.slane %v694, 6
    %v2452 = vrot.slane %v694, 7
    %v2453 = vperm.slane %v691, 0
    %v2454 = vperm.slane %v2439, 0
    %v2455 = vperm.slane %v2440, 0
    %v2456 = vperm.slane %v2441, 0
    %v2457 = vperm.slane %v2442, 0
    %v2458 = vperm.slane %v2443, 0
    %v2459 = vperm.slane %v2444, 0
    %v2460 = vperm.slane %v2445, 0
    %v2461 = vperm.slane %v694, 0
    %v2462 = vperm.slane %v2446, 0
    %v2463 = vperm.slane %v2447, 0
    %v2464 = vperm.slane %v2448, 0
    %v2465 = vperm.slane %v2449, 0
    %v2466 = vperm.slane %v2450, 0
    %v2467 = vperm.slane %v2451, 0
    %v2468 = vperm.slane %v2452, 0
    %v2485 = vmul.f32 %v2453, %v739
    %v2486 = vmul.f32 %v2453, %v742
    %v2487 = vmul.f32 %v2454, %v739
    %v2488 = vmul.f32 %v2454, %v742
    %v2489 = vmul.f32 %v2455, %v739
    %v2490 = vmul.f32 %v2455, %v742
    %v2491 = vmul.f32 %v2456, %v739
    %v2492 = vmul.f32 %v2456, %v742
    %v2493 = vmul.f32 %v2457, %v739
    %v2494 = vmul.f32 %v2457, %v742
    %v2495 = vmul.f32 %v2458, %v739
    %v2496 = vmul.f32 %v2458, %v742
    %v2497 = vmul.f32 %v2459, %v739
    %v2498 = vmul.f32 %v2459, %v742
    %v2499 = vmul.f32 %v2460, %v739
    %v2500 = vmul.f32 %v2460, %v742
    %v2501 = vmul.f32 %v2461, %v739
    %v2502 = vmul.f32 %v2461, %v742
    %v2503 = vmul.f32 %v2462, %v739
    %v2504 = vmul.f32 %v2462, %v742
    %v2505 = vmul.f32 %v2463, %v739
    %v2506 = vmul.f32 %v2463, %v742
    %v2507 = vmul.f32 %v2464, %v739
    %v2508 = vmul.f32 %v2464, %v742
    %v2509 = vmul.f32 %v2465, %v739
    %v2510 = vmul.f32 %v2465, %v742
    %v2511 = vmul.f32 %v2466, %v739
    %v2512 = vmul.f32 %v2466, %v742
    %v2513 = vmul.f32 %v2467, %v739
    %v2514 = vmul.f32 %v2467, %v742
    %v2515 = vmul.f32 %v2468, %v739
    %v2516 = vmul.f32 %v2468, %v742
    %v2517 = vadd.f32 %v2405, %v2485
    %v2518 = vadd.f32 %v2406, %v2486
    %v2519 = vadd.f32 %v2407, %v2487
    %v2520 = vadd.f32 %v2408, %v2488
    %v2521 = vadd.f32 %v2409, %v2489
    %v2522 = vadd.f32 %v2410, %v2490
    %v2523 = vadd.f32 %v2411, %v2491
    %v2524 = vadd.f32 %v2412, %v2492
    %v2525 = vadd.f32 %v2413, %v2493
    %v2526 = vadd.f32 %v2414, %v2494
    %v2527 = vadd.f32 %v2415, %v2495
    %v2528 = vadd.f32 %v2416, %v2496
    %v2529 = vadd.f32 %v2417, %v2497
    %v2530 = vadd.f32 %v2418, %v2498
    %v2531 = vadd.f32 %v2419, %v2499
    %v2532 = vadd.f32 %v2420, %v2500
    %v2533 = vadd.f32 %v2421, %v2501
    %v2534 = vadd.f32 %v2422, %v2502
    %v2535 = vadd.f32 %v2423, %v2503
    %v2536 = vadd.f32 %v2424, %v2504
    %v2537 = vadd.f32 %v2425, %v2505
    %v2538 = vadd.f32 %v2426, %v2506
    %v2539 = vadd.f32 %v2427, %v2507
    %v2540 = vadd.f32 %v2428, %v2508
    %v2541 = vadd.f32 %v2429, %v2509
    %v2542 = vadd.f32 %v2430, %v2510
    %v2543 = vadd.f32 %v2431, %v2511
    %v2544 = vadd.f32 %v2432, %v2512
    %v2545 = vadd.f32 %v2433, %v2513
    %v2546 = vadd.f32 %v2434, %v2514
    %v2547 = vadd.f32 %v2435, %v2515
    %v2548 = vadd.f32 %v2436, %v2516
    %v2551 = vrot.slane %v697, 1
    %v2552 = vrot.slane %v697, 2
    %v2553 = vrot.slane %v697, 3
    %v2554 = vrot.slane %v697, 4
    %v2555 = vrot.slane %v697, 5
    %v2556 = vrot.slane %v697, 6
    %v2557 = vrot.slane %v697, 7
    %v2558 = vrot.slane %v700, 1
    %v2559 = vrot.slane %v700, 2
    %v2560 = vrot.slane %v700, 3
    %v2561 = vrot.slane %v700, 4
    %v2562 = vrot.slane %v700, 5
    %v2563 = vrot.slane %v700, 6
    %v2564 = vrot.slane %v700, 7
    %v2565 = vperm.slane %v697, 0
    %v2566 = vperm.slane %v2551, 0
    %v2567 = vperm.slane %v2552, 0
    %v2568 = vperm.slane %v2553, 0
    %v2569 = vperm.slane %v2554, 0
    %v2570 = vperm.slane %v2555, 0
    %v2571 = vperm.slane %v2556, 0
    %v2572 = vperm.slane %v2557, 0
    %v2573 = vperm.slane %v700, 0
    %v2574 = vperm.slane %v2558, 0
    %v2575 = vperm.slane %v2559, 0
    %v2576 = vperm.slane %v2560, 0
    %v2577 = vperm.slane %v2561, 0
    %v2578 = vperm.slane %v2562, 0
    %v2579 = vperm.slane %v2563, 0
    %v2580 = vperm.slane %v2564, 0
    %v2597 = vmul.f32 %v2565, %v745
    %v2598 = vmul.f32 %v2565, %v748
    %v2599 = vmul.f32 %v2566, %v745
    %v2600 = vmul.f32 %v2566, %v748
    %v2601 = vmul.f32 %v2567, %v745
    %v2602 = vmul.f32 %v2567, %v748
    %v2603 = vmul.f32 %v2568, %v745
    %v2604 = vmul.f32 %v2568, %v748
    %v2605 = vmul.f32 %v2569, %v745
    %v2606 = vmul.f32 %v2569, %v748
    %v2607 = vmul.f32 %v2570, %v745
    %v2608 = vmul.f32 %v2570, %v748
    %v2609 = vmul.f32 %v2571, %v745
    %v2610 = vmul.f32 %v2571, %v748
    %v2611 = vmul.f32 %v2572, %v745
    %v2612 = vmul.f32 %v2572, %v748
    %v2613 = vmul.f32 %v2573, %v745
    %v2614 = vmul.f32 %v2573, %v748
    %v2615 = vmul.f32 %v2574, %v745
    %v2616 = vmul.f32 %v2574, %v748
    %v2617 = vmul.f32 %v2575, %v745
    %v2618 = vmul.f32 %v2575, %v748
    %v2619 = vmul.f32 %v2576, %v745
    %v2620 = vmul.f32 %v2576, %v748
    %v2621 = vmul.f32 %v2577, %v745
    %v2622 = vmul.f32 %v2577, %v748
    %v2623 = vmul.f32 %v2578, %v745
    %v2624 = vmul.f32 %v2578, %v748
    %v2625 = vmul.f32 %v2579, %v745
    %v2626 = vmul.f32 %v2579, %v748
    %v2627 = vmul.f32 %v2580, %v745
    %v2628 = vmul.f32 %v2580, %v748
    %v2629 = vadd.f32 %v2517, %v2597
    %v2630 = vadd.f32 %v2518, %v2598
    %v2631 = vadd.f32 %v2519, %v2599
    %v2632 = vadd.f32 %v2520, %v2600
    %v2633 = vadd.f32 %v2521, %v2601
    %v2634 = vadd.f32 %v2522, %v2602
    %v2635 = vadd.f32 %v2523, %v2603
    %v2636 = vadd.f32 %v2524, %v2604
    %v2637 = vadd.f32 %v2525, %v2605
    %v2638 = vadd.f32 %v2526, %v2606
    %v2639 = vadd.f32 %v2527, %v2607
    %v2640 = vadd.f32 %v2528, %v2608
    %v2641 = vadd.f32 %v2529, %v2609
    %v2642 = vadd.f32 %v2530, %v2610
    %v2643 = vadd.f32 %v2531, %v2611
    %v2644 = vadd.f32 %v2532, %v2612
    %v2645 = vadd.f32 %v2533, %v2613
    %v2646 = vadd.f32 %v2534, %v2614
    %v2647 = vadd.f32 %v2535, %v2615
    %v2648 = vadd.f32 %v2536, %v2616
    %v2649 = vadd.f32 %v2537, %v2617
    %v2650 = vadd.f32 %v2538, %v2618
    %v2651 = vadd.f32 %v2539, %v2619
    %v2652 = vadd.f32 %v2540, %v2620
    %v2653 = vadd.f32 %v2541, %v2621
    %v2654 = vadd.f32 %v2542, %v2622
    %v2655 = vadd.f32 %v2543, %v2623
    %v2656 = vadd.f32 %v2544, %v2624
    %v2657 = vadd.f32 %v2545, %v2625
    %v2658 = vadd.f32 %v2546, %v2626
    %v2659 = vadd.f32 %v2547, %v2627
    %v2660 = vadd.f32 %v2548, %v2628
    %v2663 = vrot.slane %v703, 1
    %v2664 = vrot.slane %v703, 2
    %v2665 = vrot.slane %v703, 3
    %v2666 = vrot.slane %v703, 4
    %v2667 = vrot.slane %v703, 5
    %v2668 = vrot.slane %v703, 6
    %v2669 = vrot.slane %v703, 7
    %v2670 = vrot.slane %v706, 1
    %v2671 = vrot.slane %v706, 2
    %v2672 = vrot.slane %v706, 3
    %v2673 = vrot.slane %v706, 4
    %v2674 = vrot.slane %v706, 5
    %v2675 = vrot.slane %v706, 6
    %v2676 = vrot.slane %v706, 7
    %v2677 = vperm.slane %v703, 0
    %v2678 = vperm.slane %v2663, 0
    %v2679 = vperm.slane %v2664, 0
    %v2680 = vperm.slane %v2665, 0
    %v2681 = vperm.slane %v2666, 0
    %v2682 = vperm.slane %v2667, 0
    %v2683 = vperm.slane %v2668, 0
    %v2684 = vperm.slane %v2669, 0
    %v2685 = vperm.slane %v706, 0
    %v2686 = vperm.slane %v2670, 0
    %v2687 = vperm.slane %v2671, 0
    %v2688 = vperm.slane %v2672, 0
    %v2689 = vperm.slane %v2673, 0
    %v2690 = vperm.slane %v2674, 0
    %v2691 = vperm.slane %v2675, 0
    %v2692 = vperm.slane %v2676, 0
    %v2709 = vmul.f32 %v2677, %v751
    %v2710 = vmul.f32 %v2677, %v754
    %v2711 = vmul.f32 %v2678, %v751
    %v2712 = vmul.f32 %v2678, %v754
    %v2713 = vmul.f32 %v2679, %v751
    %v2714 = vmul.f32 %v2679, %v754
    %v2715 = vmul.f32 %v2680, %v751
    %v2716 = vmul.f32 %v2680, %v754
    %v2717 = vmul.f32 %v2681, %v751
    %v2718 = vmul.f32 %v2681, %v754
    %v2719 = vmul.f32 %v2682, %v751
    %v2720 = vmul.f32 %v2682, %v754
    %v2721 = vmul.f32 %v2683, %v751
    %v2722 = vmul.f32 %v2683, %v754
    %v2723 = vmul.f32 %v2684, %v751
    %v2724 = vmul.f32 %v2684, %v754
    %v2725 = vmul.f32 %v2685, %v751
    %v2726 = vmul.f32 %v2685, %v754
    %v2727 = vmul.f32 %v2686, %v751
    %v2728 = vmul.f32 %v2686, %v754
    %v2729 = vmul.f32 %v2687, %v751
    %v2730 = vmul.f32 %v2687, %v754
    %v2731 = vmul.f32 %v2688, %v751
    %v2732 = vmul.f32 %v2688, %v754
    %v2733 = vmul.f32 %v2689, %v751
    %v2734 = vmul.f32 %v2689, %v754
    %v2735 = vmul.f32 %v2690, %v751
    %v2736 = vmul.f32 %v2690, %v754
    %v2737 = vmul.f32 %v2691, %v751
    %v2738 = vmul.f32 %v2691, %v754
    %v2739 = vmul.f32 %v2692, %v751
    %v2740 = vmul.f32 %v2692, %v754
    %v2741 = vadd.f32 %v2629, %v2709
    %v2742 = vadd.f32 %v2630, %v2710
    %v2743 = vadd.f32 %v2631, %v2711
    %v2744 = vadd.f32 %v2632, %v2712
    %v2745 = vadd.f32 %v2633, %v2713
    %v2746 = vadd.f32 %v2634, %v2714
    %v2747 = vadd.f32 %v2635, %v2715
    %v2748 = vadd.f32 %v2636, %v2716
    %v2749 = vadd.f32 %v2637, %v2717
    %v2750 = vadd.f32 %v2638, %v2718
    %v2751 = vadd.f32 %v2639, %v2719
    %v2752 = vadd.f32 %v2640, %v2720
    %v2753 = vadd.f32 %v2641, %v2721
    %v2754 = vadd.f32 %v2642, %v2722
    %v2755 = vadd.f32 %v2643, %v2723
    %v2756 = vadd.f32 %v2644, %v2724
    %v2757 = vadd.f32 %v2645, %v2725
    %v2758 = vadd.f32 %v2646, %v2726
    %v2759 = vadd.f32 %v2647, %v2727
    %v2760 = vadd.f32 %v2648, %v2728
    %v2761 = vadd.f32 %v2649, %v2729
    %v2762 = vadd.f32 %v2650, %v2730
    %v2763 = vadd.f32 %v2651, %v2731
    %v2764 = vadd.f32 %v2652, %v2732
    %v2765 = vadd.f32 %v2653, %v2733
    %v2766 = vadd.f32 %v2654, %v2734
    %v2767 = vadd.f32 %v2655, %v2735
    %v2768 = vadd.f32 %v2656, %v2736
    %v2769 = vadd.f32 %v2657, %v2737
    %v2770 = vadd.f32 %v2658, %v2738
    %v2771 = vadd.f32 %v2659, %v2739
    %v2772 = vadd.f32 %v2660, %v2740
    %v2773 = vsel %vm1220, %v2741, -inf
    %v2774 = vsel %vm1220, %v2742, -inf
    %v2775 = vmax.f32 %v2773, %v2774
    %v2776 = vrot.slane %v2775, 4
    %v2777 = vmax.f32 %v2775, %v2776
    %v2778 = vrot.slane %v2777, 2
    %v2779 = vmax.f32 %v2777, %v2778
    %v2780 = vrot.slane %v2779, 1
    %v2781 = vmax.f32 %v2779, %v2780
    %v2782 = vsel %vm1220, %v2743, -inf
    %v2783 = vsel %vm1220, %v2744, -inf
    %v2784 = vmax.f32 %v2782, %v2783
    %v2785 = vrot.slane %v2784, 4
    %v2786 = vmax.f32 %v2784, %v2785
    %v2787 = vrot.slane %v2786, 2
    %v2788 = vmax.f32 %v2786, %v2787
    %v2789 = vrot.slane %v2788, 1
    %v2790 = vmax.f32 %v2788, %v2789
    %v2791 = vsel %vm1220, %v2745, -inf
    %v2792 = vsel %vm1220, %v2746, -inf
    %v2793 = vmax.f32 %v2791, %v2792
    %v2794 = vrot.slane %v2793, 4
    %v2795 = vmax.f32 %v2793, %v2794
    %v2796 = vrot.slane %v2795, 2
    %v2797 = vmax.f32 %v2795, %v2796
    %v2798 = vrot.slane %v2797, 1
    %v2799 = vmax.f32 %v2797, %v2798
    %v2800 = vsel %vm1220, %v2747, -inf
    %v2801 = vsel %vm1220, %v2748, -inf
    %v2802 = vmax.f32 %v2800, %v2801
    %v2803 = vrot.slane %v2802, 4
    %v2804 = vmax.f32 %v2802, %v2803
    %v2805 = vrot.slane %v2804, 2
    %v2806 = vmax.f32 %v2804, %v2805
    %v2807 = vrot.slane %v2806, 1
    %v2808 = vmax.f32 %v2806, %v2807
    %v2809 = vsel %vm1220, %v2749, -inf
    %v2810 = vsel %vm1220, %v2750, -inf
    %v2811 = vmax.f32 %v2809, %v2810
    %v2812 = vrot.slane %v2811, 4
    %v2813 = vmax.f32 %v2811, %v2812
    %v2814 = vrot.slane %v2813, 2
    %v2815 = vmax.f32 %v2813, %v2814
    %v2816 = vrot.slane %v2815, 1
    %v2817 = vmax.f32 %v2815, %v2816
    %v2818 = vsel %vm1220, %v2751, -inf
    %v2819 = vsel %vm1220, %v2752, -inf
    %v2820 = vmax.f32 %v2818, %v2819
    %v2821 = vrot.slane %v2820, 4
    %v2822 = vmax.f32 %v2820, %v2821
    %v2823 = vrot.slane %v2822, 2
    %v2824 = vmax.f32 %v2822, %v2823
    %v2825 = vrot.slane %v2824, 1
    %v2826 = vmax.f32 %v2824, %v2825
    %v2827 = vsel %vm1220, %v2753, -inf
    %v2828 = vsel %vm1220, %v2754, -inf
    %v2829 = vmax.f32 %v2827, %v2828
    %v2830 = vrot.slane %v2829, 4
    %v2831 = vmax.f32 %v2829, %v2830
    %v2832 = vrot.slane %v2831, 2
    %v2833 = vmax.f32 %v2831, %v2832
    %v2834 = vrot.slane %v2833, 1
    %v2835 = vmax.f32 %v2833, %v2834
    %v2836 = vsel %vm1220, %v2755, -inf
    %v2837 = vsel %vm1220, %v2756, -inf
    %v2838 = vmax.f32 %v2836, %v2837
    %v2839 = vrot.slane %v2838, 4
    %v2840 = vmax.f32 %v2838, %v2839
    %v2841 = vrot.slane %v2840, 2
    %v2842 = vmax.f32 %v2840, %v2841
    %v2843 = vrot.slane %v2842, 1
    %v2844 = vmax.f32 %v2842, %v2843
    %v2845 = vsel %vm1220, %v2757, -inf
    %v2846 = vsel %vm1220, %v2758, -inf
    %v2847 = vmax.f32 %v2845, %v2846
    %v2848 = vrot.slane %v2847, 4
    %v2849 = vmax.f32 %v2847, %v2848
    %v2850 = vrot.slane %v2849, 2
    %v2851 = vmax.f32 %v2849, %v2850
    %v2852 = vrot.slane %v2851, 1
    %v2853 = vmax.f32 %v2851, %v2852
    %v2854 = vsel %vm1220, %v2759, -inf
    %v2855 = vsel %vm1220, %v2760, -inf
    %v2856 = vmax.f32 %v2854, %v2855
    %v2857 = vrot.slane %v2856, 4
    %v2858 = vmax.f32 %v2856, %v2857
    %v2859 = vrot.slane %v2858, 2
    %v2860 = vmax.f32 %v2858, %v2859
    %v2861 = vrot.slane %v2860, 1
    %v2862 = vmax.f32 %v2860, %v2861
    %v2863 = vsel %vm1220, %v2761, -inf
    %v2864 = vsel %vm1220, %v2762, -inf
    %v2865 = vmax.f32 %v2863, %v2864
    %v2866 = vrot.slane %v2865, 4
    %v2867 = vmax.f32 %v2865, %v2866
    %v2868 = vrot.slane %v2867, 2
    %v2869 = vmax.f32 %v2867, %v2868
    %v2870 = vrot.slane %v2869, 1
    %v2871 = vmax.f32 %v2869, %v2870
    %v2872 = vsel %vm1220, %v2763, -inf
    %v2873 = vsel %vm1220, %v2764, -inf
    %v2874 = vmax.f32 %v2872, %v2873
    %v2875 = vrot.slane %v2874, 4
    %v2876 = vmax.f32 %v2874, %v2875
    %v2877 = vrot.slane %v2876, 2
    %v2878 = vmax.f32 %v2876, %v2877
    %v2879 = vrot.slane %v2878, 1
    %v2880 = vmax.f32 %v2878, %v2879
    %v2881 = vsel %vm1220, %v2765, -inf
    %v2882 = vsel %vm1220, %v2766, -inf
    %v2883 = vmax.f32 %v2881, %v2882
    %v2884 = vrot.slane %v2883, 4
    %v2885 = vmax.f32 %v2883, %v2884
    %v2886 = vrot.slane %v2885, 2
    %v2887 = vmax.f32 %v2885, %v2886
    %v2888 = vrot.slane %v2887, 1
    %v2889 = vmax.f32 %v2887, %v2888
    %v2890 = vsel %vm1220, %v2767, -inf
    %v2891 = vsel %vm1220, %v2768, -inf
    %v2892 = vmax.f32 %v2890, %v2891
    %v2893 = vrot.slane %v2892, 4
    %v2894 = vmax.f32 %v2892, %v2893
    %v2895 = vrot.slane %v2894, 2
    %v2896 = vmax.f32 %v2894, %v2895
    %v2897 = vrot.slane %v2896, 1
    %v2898 = vmax.f32 %v2896, %v2897
    %v2899 = vsel %vm1220, %v2769, -inf
    %v2900 = vsel %vm1220, %v2770, -inf
    %v2901 = vmax.f32 %v2899, %v2900
    %v2902 = vrot.slane %v2901, 4
    %v2903 = vmax.f32 %v2901, %v2902
    %v2904 = vrot.slane %v2903, 2
    %v2905 = vmax.f32 %v2903, %v2904
    %v2906 = vrot.slane %v2905, 1
    %v2907 = vmax.f32 %v2905, %v2906
    %v2908 = vsel %vm1220, %v2771, -inf
    %v2909 = vsel %vm1220, %v2772, -inf
    %v2910 = vmax.f32 %v2908, %v2909
    %v2911 = vrot.slane %v2910, 4
    %v2912 = vmax.f32 %v2910, %v2911
    %v2913 = vrot.slane %v2912, 2
    %v2914 = vmax.f32 %v2912, %v2913
    %v2915 = vrot.slane %v2914, 1
    %v2916 = vmax.f32 %v2914, %v2915
    %v2917 = vsub.f32 %v2741, %v2781
    %v2918 = vsub.f32 %v2742, %v2781
    %v2919 = vsub.f32 %v2743, %v2790
    %v2920 = vsub.f32 %v2744, %v2790
    %v2921 = vsub.f32 %v2745, %v2799
    %v2922 = vsub.f32 %v2746, %v2799
    %v2923 = vsub.f32 %v2747, %v2808
    %v2924 = vsub.f32 %v2748, %v2808
    %v2925 = vsub.f32 %v2749, %v2817
    %v2926 = vsub.f32 %v2750, %v2817
    %v2927 = vsub.f32 %v2751, %v2826
    %v2928 = vsub.f32 %v2752, %v2826
    %v2929 = vsub.f32 %v2753, %v2835
    %v2930 = vsub.f32 %v2754, %v2835
    %v2931 = vsub.f32 %v2755, %v2844
    %v2932 = vsub.f32 %v2756, %v2844
    %v2933 = vsub.f32 %v2757, %v2853
    %v2934 = vsub.f32 %v2758, %v2853
    %v2935 = vsub.f32 %v2759, %v2862
    %v2936 = vsub.f32 %v2760, %v2862
    %v2937 = vsub.f32 %v2761, %v2871
    %v2938 = vsub.f32 %v2762, %v2871
    %v2939 = vsub.f32 %v2763, %v2880
    %v2940 = vsub.f32 %v2764, %v2880
    %v2941 = vsub.f32 %v2765, %v2889
    %v2942 = vsub.f32 %v2766, %v2889
    %v2943 = vsub.f32 %v2767, %v2898
    %v2944 = vsub.f32 %v2768, %v2898
    %v2945 = vsub.f32 %v2769, %v2907
    %v2946 = vsub.f32 %v2770, %v2907
    %v2947 = vsub.f32 %v2771, %v2916
    %v2948 = vsub.f32 %v2772, %v2916
    %v2949 = vmul.f32 %v2917, 1.442695
    %v2950 = vpow.pop %v2949
    %v2951 = vmul.f32 %v2918, 1.442695
    %v2952 = vpow.pop %v2951
    %v2953 = vmul.f32 %v2919, 1.442695
    %v2954 = vpow.pop %v2953
    %v2955 = vmul.f32 %v2920, 1.442695
    %v2956 = vpow.pop %v2955
    %v2957 = vmul.f32 %v2921, 1.442695
    %v2958 = vpow.pop %v2957
    %v2959 = vmul.f32 %v2922, 1.442695
    %v2960 = vpow.pop %v2959
    %v2961 = vmul.f32 %v2923, 1.442695
    %v2962 = vpow.pop %v2961
    %v2963 = vmul.f32 %v2924, 1.442695
    %v2964 = vpow.pop %v2963
    %v2965 = vmul.f32 %v2925, 1.442695
    %v2966 = vpow.pop %v2965
    %v2967 = vmul.f32 %v2926, 1.442695
    %v2968 = vpow.pop %v2967
    %v2969 = vmul.f32 %v2927, 1.442695
    %v2970 = vpow.pop %v2969
    %v2971 = vmul.f32 %v2928, 1.442695
    %v2972 = vpow.pop %v2971
    %v2973 = vmul.f32 %v2929, 1.442695
    %v2974 = vpow.pop %v2973
    %v2975 = vmul.f32 %v2930, 1.442695
    %v2976 = vpow.pop %v2975
    %v2977 = vmul.f32 %v2931, 1.442695
    %v2978 = vpow.pop %v2977
    %v2979 = vmul.f32 %v2932, 1.442695
    %v2980 = vpow.pop %v2979
    %v2981 = vmul.f32 %v2933, 1.442695
    %v2982 = vpow.pop %v2981
    %v2983 = vmul.f32 %v2934, 1.442695
    %v2984 = vpow.pop %v2983
    %v2985 = vmul.f32 %v2935, 1.442695
    %v2986 = vpow.pop %v2985
    %v2987 = vmul.f32 %v2936, 1.442695
    %v2988 = vpow.pop %v2987
    %v2989 = vmul.f32 %v2937, 1.442695
    %v2990 = vpow.pop %v2989
    %v2991 = vmul.f32 %v2938, 1.442695
    %v2992 = vpow.pop %v2991
    %v2993 = vmul.f32 %v2939, 1.442695
    %v2994 = vpow.pop %v2993
    %v2995 = vmul.f32 %v2940, 1.442695
    %v2996 = vpow.pop %v2995
    %v2997 = vmul.f32 %v2941, 1.442695
    %v2998 = vpow.pop %v2997
    %v2999 = vmul.f32 %v2942, 1.442695
    %v3000 = vpow.pop %v2999
    %v3001 = vmul.f32 %v2943, 1.442695
    %v3002 = vpow.pop %v3001
    %v3003 = vmul.f32 %v2944, 1.442695
    %v3004 = vpow.pop %v3003
    %v3005 = vmul.f32 %v2945, 1.442695
    %v3006 = vpow.pop %v3005
    %v3007 = vmul.f32 %v2946, 1.442695
    %v3008 = vpow.pop %v3007
    %v3009 = vmul.f32 %v2947, 1.442695
    %v3010 = vpow.pop %v3009
    %v3011 = vmul.f32 %v2948, 1.442695
    %v3012 = vpow.pop %v3011
    %v3013 = vsel %vm1220, %v2950, 0.0
    %v3014 = vsel %vm1220, %v2952, 0.0
    %v3015 = vadd.f32 %v3013, %v3014
    %v3016 = vrot.slane %v3015, 4
    %v3017 = vadd.f32 %v3015, %v3016
    %v3018 = vrot.slane %v3017, 2
    %v3019 = vadd.f32 %v3017, %v3018
    %v3020 = vrot.slane %v3019, 1
    %v3021 = vadd.f32 %v3019, %v3020
    %v3022 = vsel %vm1220, %v2954, 0.0
    %v3023 = vsel %vm1220, %v2956, 0.0
    %v3024 = vadd.f32 %v3022, %v3023
    %v3025 = vrot.slane %v3024, 4
    %v3026 = vadd.f32 %v3024, %v3025
    %v3027 = vrot.slane %v3026, 2
    %v3028 = vadd.f32 %v3026, %v3027
    %v3029 = vrot.slane %v3028, 1
    %v3030 = vadd.f32 %v3028, %v3029
    %v3031 = vsel %vm1220, %v2958, 0.0
    %v3032 = vsel %vm1220, %v2960, 0.0
    %v3033 = vadd.f32 %v3031, %v3032
    %v3034 = vrot.slane %v3033, 4
    %v3035 = vadd.f32 %v3033, %v3034
    %v3036 = vrot.slane %v3035, 2
    %v3037 = vadd.f32 %v3035, %v3036
    %v3038 = vrot.slane %v3037, 1
    %v3039 = vadd.f32 %v3037, %v3038
    %v3040 = vsel %vm1220, %v2962, 0.0
    %v3041 = vsel %vm1220, %v2964, 0.0
    %v3042 = vadd.f32 %v3040, %v3041
    %v3043 = vrot.slane %v3042, 4
    %v3044 = vadd.f32 %v3042, %v3043
    %v3045 = vrot.slane %v3044, 2
    %v3046 = vadd.f32 %v3044, %v3045
    %v3047 = vrot.slane %v3046, 1
    %v3048 = vadd.f32 %v3046, %v3047
    %v3049 = vsel %vm1220, %v2966, 0.0
    %v3050 = vsel %vm1220, %v2968, 0.0
    %v3051 = vadd.f32 %v3049, %v3050
    %v3052 = vrot.slane %v3051, 4
    %v3053 = vadd.f32 %v3051, %v3052
    %v3054 = vrot.slane %v3053, 2
    %v3055 = vadd.f32 %v3053, %v3054
    %v3056 = vrot.slane %v3055, 1
    %v3057 = vadd.f32 %v3055, %v3056
    %v3058 = vsel %vm1220, %v2970, 0.0
    %v3059 = vsel %vm1220, %v2972, 0.0
    %v3060 = vadd.f32 %v3058, %v3059
    %v3061 = vrot.slane %v3060, 4
    %v3062 = vadd.f32 %v3060, %v3061
    %v3063 = vrot.slane %v3062, 2
    %v3064 = vadd.f32 %v3062, %v3063
    %v3065 = vrot.slane %v3064, 1
    %v3066 = vadd.f32 %v3064, %v3065
    %v3067 = vsel %vm1220, %v2974, 0.0
    %v3068 = vsel %vm1220, %v2976, 0.0
    %v3069 = vadd.f32 %v3067, %v3068
    %v3070 = vrot.slane %v3069, 4
    %v3071 = vadd.f32 %v3069, %v3070
    %v3072 = vrot.slane %v3071, 2
    %v3073 = vadd.f32 %v3071, %v3072
    %v3074 = vrot.slane %v3073, 1
    %v3075 = vadd.f32 %v3073, %v3074
    %v3076 = vsel %vm1220, %v2978, 0.0
    %v3077 = vsel %vm1220, %v2980, 0.0
    %v3078 = vadd.f32 %v3076, %v3077
    %v3079 = vrot.slane %v3078, 4
    %v3080 = vadd.f32 %v3078, %v3079
    %v3081 = vrot.slane %v3080, 2
    %v3082 = vadd.f32 %v3080, %v3081
    %v3083 = vrot.slane %v3082, 1
    %v3084 = vadd.f32 %v3082, %v3083
    %v3085 = vsel %vm1220, %v2982, 0.0
    %v3086 = vsel %vm1220, %v2984, 0.0
    %v3087 = vadd.f32 %v3085, %v3086
    %v3088 = vrot.slane %v3087, 4
    %v3089 = vadd.f32 %v3087, %v3088
    %v3090 = vrot.slane %v3089, 2
    %v3091 = vadd.f32 %v3089, %v3090
    %v3092 = vrot.slane %v3091, 1
    %v3093 = vadd.f32 %v3091, %v3092
    %v3094 = vsel %vm1220, %v2986, 0.0
    %v3095 = vsel %vm1220, %v2988, 0.0
    %v3096 = vadd.f32 %v3094, %v3095
    %v3097 = vrot.slane %v3096, 4
    %v3098 = vadd.f32 %v3096, %v3097
    %v3099 = vrot.slane %v3098, 2
    %v3100 = vadd.f32 %v3098, %v3099
    %v3101 = vrot.slane %v3100, 1
    %v3102 = vadd.f32 %v3100, %v3101
    %v3103 = vsel %vm1220, %v2990, 0.0
    %v3104 = vsel %vm1220, %v2992, 0.0
    %v3105 = vadd.f32 %v3103, %v3104
    %v3106 = vrot.slane %v3105, 4
    %v3107 = vadd.f32 %v3105, %v3106
    %v3108 = vrot.slane %v3107, 2
    %v3109 = vadd.f32 %v3107, %v3108
    %v3110 = vrot.slane %v3109, 1
    %v3111 = vadd.f32 %v3109, %v3110
    %v3112 = vsel %vm1220, %v2994, 0.0
    %v3113 = vsel %vm1220, %v2996, 0.0
    %v3114 = vadd.f32 %v3112, %v3113
    %v3115 = vrot.slane %v3114, 4
    %v3116 = vadd.f32 %v3114, %v3115
    %v3117 = vrot.slane %v3116, 2
    %v3118 = vadd.f32 %v3116, %v3117
    %v3119 = vrot.slane %v3118, 1
    %v3120 = vadd.f32 %v3118, %v3119
    %v3121 = vsel %vm1220, %v2998, 0.0
    %v3122 = vsel %vm1220, %v3000, 0.0
    %v3123 = vadd.f32 %v3121, %v3122
    %v3124 = vrot.slane %v3123, 4
    %v3125 = vadd.f32 %v3123, %v3124
    %v3126 = vrot.slane %v3125, 2
    %v3127 = vadd.f32 %v3125, %v3126
    %v3128 = vrot.slane %v3127, 1
    %v3129 = vadd.f32 %v3127, %v3128
    %v3130 = vsel %vm1220, %v3002, 0.0
    %v3131 = vsel %vm1220, %v3004, 0.0
    %v3132 = vadd.f32 %v3130, %v3131
    %v3133 = vrot.slane %v3132, 4
    %v3134 = vadd.f32 %v3132, %v3133
    %v3135 = vrot.slane %v3134, 2
    %v3136 = vadd.f32 %v3134, %v3135
    %v3137 = vrot.slane %v3136, 1
    %v3138 = vadd.f32 %v3136, %v3137
    %v3139 = vsel %vm1220, %v3006, 0.0
    %v3140 = vsel %vm1220, %v3008, 0.0
    %v3141 = vadd.f32 %v3139, %v3140
    %v3142 = vrot.slane %v3141, 4
    %v3143 = vadd.f32 %v3141, %v3142
    %v3144 = vrot.slane %v3143, 2
    %v3145 = vadd.f32 %v3143, %v3144
    %v3146 = vrot.slane %v3145, 1
    %v3147 = vadd.f32 %v3145, %v3146
    %v3148 = vsel %vm1220, %v3010, 0.0
    %v3149 = vsel %vm1220, %v3012, 0.0
    %v3150 = vadd.f32 %v3148, %v3149
    %v3151 = vrot.slane %v3150, 4
    %v3152 = vadd.f32 %v3150, %v3151
    %v3153 = vrot.slane %v3152, 2
    %v3154 = vadd.f32 %v3152, %v3153
    %v3155 = vrot.slane %v3154, 1
    %v3156 = vadd.f32 %v3154, %v3155
    %v3157 = vrcp.pop %v3021
    %v3158 = vrcp.pop %v3030
    %v3159 = vrcp.pop %v3039
    %v3160 = vrcp.pop %v3048
    %v3161 = vrcp.pop %v3057
    %v3162 = vrcp.pop %v3066
    %v3163 = vrcp.pop %v3075
    %v3164 = vrcp.pop %v3084
    %v3165 = vrcp.pop %v3093
    %v3166 = vrcp.pop %v3102
    %v3167 = vrcp.pop %v3111
    %v3168 = vrcp.pop %v3120
    %v3169 = vrcp.pop %v3129
    %v3170 = vrcp.pop %v3138
    %v3171 = vrcp.pop %v3147
    %v3172 = vrcp.pop %v3156
    %v3173 = vmul.f32 %v2950, %v3157
    %v3174 = vmul.f32 %v2952, %v3157
    %v3175 = vmul.f32 %v2954, %v3158
    %v3176 = vmul.f32 %v2956, %v3158
    %v3177 = vmul.f32 %v2958, %v3159
    %v3178 = vmul.f32 %v2960, %v3159
    %v3179 = vmul.f32 %v2962, %v3160
    %v3180 = vmul.f32 %v2964, %v3160
    %v3181 = vmul.f32 %v2966, %v3161
    %v3182 = vmul.f32 %v2968, %v3161
    %v3183 = vmul.f32 %v2970, %v3162
    %v3184 = vmul.f32 %v2972, %v3162
    %v3185 = vmul.f32 %v2974, %v3163
    %v3186 = vmul.f32 %v2976, %v3163
    %v3187 = vmul.f32 %v2978, %v3164
    %v3188 = vmul.f32 %v2980, %v3164
    %v3189 = vmul.f32 %v2982, %v3165
    %v3190 = vmul.f32 %v2984, %v3165
    %v3191 = vmul.f32 %v2986, %v3166
    %v3192 = vmul.f32 %v2988, %v3166
    %v3193 = vmul.f32 %v2990, %v3167
    %v3194 = vmul.f32 %v2992, %v3167
    %v3195 = vmul.f32 %v2994, %v3168
    %v3196 = vmul.f32 %v2996, %v3168
    %v3197 = vmul.f32 %v2998, %v3169
    %v3198 = vmul.f32 %v3000, %v3169
    %v3199 = vmul.f32 %v3002, %v3170
    %v3200 = vmul.f32 %v3004, %v3170
    %v3201 = vmul.f32 %v3006, %v3171
    %v3202 = vmul.f32 %v3008, %v3171
    %v3203 = vmul.f32 %v3010, %v3172
    %v3204 = vmul.f32 %v3012, %v3172
    %v3205 = vmul.f32 %v3173, %v781
    %v3206 = vmul.f32 %v3174, %v784
    %v3207 = vmul.f32 %v3175, %v781
    %v3208 = vmul.f32 %v3176, %v784
    %v3209 = vmul.f32 %v3177, %v781
    %v3210 = vmul.f32 %v3178, %v784
    %v3211 = vmul.f32 %v3179, %v781
    %v3212 = vmul.f32 %v3180, %v784
    %v3213 = vmul.f32 %v3181, %v781
    %v3214 = vmul.f32 %v3182, %v784
    %v3215 = vmul.f32 %v3183, %v781
    %v3216 = vmul.f32 %v3184, %v784
    %v3217 = vmul.f32 %v3185, %v781
    %v3218 = vmul.f32 %v3186, %v784
    %v3219 = vmul.f32 %v3187, %v781
    %v3220 = vmul.f32 %v3188, %v784
    %v3221 = vmul.f32 %v3189, %v781
    %v3222 = vmul.f32 %v3190, %v784
    %v3223 = vmul.f32 %v3191, %v781
    %v3224 = vmul.f32 %v3192, %v784
    %v3225 = vmul.f32 %v3193, %v781
    %v3226 = vmul.f32 %v3194, %v784
    %v3227 = vmul.f32 %v3195, %v781
    %v3228 = vmul.f32 %v3196, %v784
    %v3229 = vmul.f32 %v3197, %v781
    %v3230 = vmul.f32 %v3198, %v784
    %v3231 = vmul.f32 %v3199, %v781
    %v3232 = vmul.f32 %v3200, %v784
    %v3233 = vmul.f32 %v3201, %v781
    %v3234 = vmul.f32 %v3202, %v784
    %v3235 = vmul.f32 %v3203, %v781
    %v3236 = vmul.f32 %v3204, %v784
    %v3237 = vsel %vm1220, %v3205, 0.0
    %v3238 = vsel %vm1220, %v3206, 0.0
    %v3239 = vadd.f32 %v3237, %v3238
    %v3240 = vrot.slane %v3239, 4
    %v3241 = vadd.f32 %v3239, %v3240
    %v3242 = vrot.slane %v3241, 2
    %v3243 = vadd.f32 %v3241, %v3242
    %v3244 = vrot.slane %v3243, 1
    %v3245 = vadd.f32 %v3243, %v3244
    %v3246 = vsel %vm1220, %v3207, 0.0
    %v3247 = vsel %vm1220, %v3208, 0.0
    %v3248 = vadd.f32 %v3246, %v3247
    %v3249 = vrot.slane %v3248, 4
    %v3250 = vadd.f32 %v3248, %v3249
    %v3251 = vrot.slane %v3250, 2
    %v3252 = vadd.f32 %v3250, %v3251
    %v3253 = vrot.slane %v3252, 1
    %v3254 = vadd.f32 %v3252, %v3253
    %v3255 = vsel %vm1220, %v3209, 0.0
    %v3256 = vsel %vm1220, %v3210, 0.0
    %v3257 = vadd.f32 %v3255, %v3256
    %v3258 = vrot.slane %v3257, 4
    %v3259 = vadd.f32 %v3257, %v3258
    %v3260 = vrot.slane %v3259, 2
    %v3261 = vadd.f32 %v3259, %v3260
    %v3262 = vrot.slane %v3261, 1
    %v3263 = vadd.f32 %v3261, %v3262
    %v3264 = vsel %vm1220, %v3211, 0.0
    %v3265 = vsel %vm1220, %v3212, 0.0
    %v3266 = vadd.f32 %v3264, %v3265
    %v3267 = vrot.slane %v3266, 4
    %v3268 = vadd.f32 %v3266, %v3267
    %v3269 = vrot.slane %v3268, 2
    %v3270 = vadd.f32 %v3268, %v3269
    %v3271 = vrot.slane %v3270, 1
    %v3272 = vadd.f32 %v3270, %v3271
    %v3273 = vsel %vm1220, %v3213, 0.0
    %v3274 = vsel %vm1220, %v3214, 0.0
    %v3275 = vadd.f32 %v3273, %v3274
    %v3276 = vrot.slane %v3275, 4
    %v3277 = vadd.f32 %v3275, %v3276
    %v3278 = vrot.slane %v3277, 2
    %v3279 = vadd.f32 %v3277, %v3278
    %v3280 = vrot.slane %v3279, 1
    %v3281 = vadd.f32 %v3279, %v3280
    %v3282 = vsel %vm1220, %v3215, 0.0
    %v3283 = vsel %vm1220, %v3216, 0.0
    %v3284 = vadd.f32 %v3282, %v3283
    %v3285 = vrot.slane %v3284, 4
    %v3286 = vadd.f32 %v3284, %v3285
    %v3287 = vrot.slane %v3286, 2
    %v3288 = vadd.f32 %v3286, %v3287
    %v3289 = vrot.slane %v3288, 1
    %v3290 = vadd.f32 %v3288, %v3289
    %v3291 = vsel %vm1220, %v3217, 0.0
    %v3292 = vsel %vm1220, %v3218, 0.0
    %v3293 = vadd.f32 %v3291, %v3292
    %v3294 = vrot.slane %v3293, 4
    %v3295 = vadd.f32 %v3293, %v3294
    %v3296 = vrot.slane %v3295, 2
    %v3297 = vadd.f32 %v3295, %v3296
    %v3298 = vrot.slane %v3297, 1
    %v3299 = vadd.f32 %v3297, %v3298
    %v3300 = vsel %vm1220, %v3219, 0.0
    %v3301 = vsel %vm1220, %v3220, 0.0
    %v3302 = vadd.f32 %v3300, %v3301
    %v3303 = vrot.slane %v3302, 4
    %v3304 = vadd.f32 %v3302, %v3303
    %v3305 = vrot.slane %v3304, 2
    %v3306 = vadd.f32 %v3304, %v3305
    %v3307 = vrot.slane %v3306, 1
    %v3308 = vadd.f32 %v3306, %v3307
    %v3309 = vsel %vm1220, %v3221, 0.0
    %v3310 = vsel %vm1220, %v3222, 0.0
    %v3311 = vadd.f32 %v3309, %v3310
    %v3312 = vrot.slane %v3311, 4
    %v3313 = vadd.f32 %v3311, %v3312
    %v3314 = vrot.slane %v3313, 2
    %v3315 = vadd.f32 %v3313, %v3314
    %v3316 = vrot.slane %v3315, 1
    %v3317 = vadd.f32 %v3315, %v3316
    %v3318 = vsel %vm1220, %v3223, 0.0
    %v3319 = vsel %vm1220, %v3224, 0.0
    %v3320 = vadd.f32 %v3318, %v3319
    %v3321 = vrot.slane %v3320, 4
    %v3322 = vadd.f32 %v3320, %v3321
    %v3323 = vrot.slane %v3322, 2
    %v3324 = vadd.f32 %v3322, %v3323
    %v3325 = vrot.slane %v3324, 1
    %v3326 = vadd.f32 %v3324, %v3325
    %v3327 = vsel %vm1220, %v3225, 0.0
    %v3328 = vsel %vm1220, %v3226, 0.0
    %v3329 = vadd.f32 %v3327, %v3328
    %v3330 = vrot.slane %v3329, 4
    %v3331 = vadd.f32 %v3329, %v3330
    %v3332 = vrot.slane %v3331, 2
    %v3333 = vadd.f32 %v3331, %v3332
    %v3334 = vrot.slane %v3333, 1
    %v3335 = vadd.f32 %v3333, %v3334
    %v3336 = vsel %vm1220, %v3227, 0.0
    %v3337 = vsel %vm1220, %v3228, 0.0
    %v3338 = vadd.f32 %v3336, %v3337
    %v3339 = vrot.slane %v3338, 4
    %v3340 = vadd.f32 %v3338, %v3339
    %v3341 = vrot.slane %v3340, 2
    %v3342 = vadd.f32 %v3340, %v3341
    %v3343 = vrot.slane %v3342, 1
    %v3344 = vadd.f32 %v3342, %v3343
    %v3345 = vsel %vm1220, %v3229, 0.0
    %v3346 = vsel %vm1220, %v3230, 0.0
    %v3347 = vadd.f32 %v3345, %v3346
    %v3348 = vrot.slane %v3347, 4
    %v3349 = vadd.f32 %v3347, %v3348
    %v3350 = vrot.slane %v3349, 2
    %v3351 = vadd.f32 %v3349, %v3350
    %v3352 = vrot.slane %v3351, 1
    %v3353 = vadd.f32 %v3351, %v3352
    %v3354 = vsel %vm1220, %v3231, 0.0
    %v3355 = vsel %vm1220, %v3232, 0.0
    %v3356 = vadd.f32 %v3354, %v3355
    %v3357 = vrot.slane %v3356, 4
    %v3358 = vadd.f32 %v3356, %v3357
    %v3359 = vrot.slane %v3358, 2
    %v3360 = vadd.f32 %v3358, %v3359
    %v3361 = vrot.slane %v3360, 1
    %v3362 = vadd.f32 %v3360, %v3361
    %v3363 = vsel %vm1220, %v3233, 0.0
    %v3364 = vsel %vm1220, %v3234, 0.0
    %v3365 = vadd.f32 %v3363, %v3364
    %v3366 = vrot.slane %v3365, 4
    %v3367 = vadd.f32 %v3365, %v3366
    %v3368 = vrot.slane %v3367, 2
    %v3369 = vadd.f32 %v3367, %v3368
    %v3370 = vrot.slane %v3369, 1
    %v3371 = vadd.f32 %v3369, %v3370
    %v3372 = vsel %vm1220, %v3235, 0.0
    %v3373 = vsel %vm1220, %v3236, 0.0
    %v3374 = vadd.f32 %v3372, %v3373
    %v3375 = vrot.slane %v3374, 4
    %v3376 = vadd.f32 %v3374, %v3375
    %v3377 = vrot.slane %v3376, 2
    %v3378 = vadd.f32 %v3376, %v3377
    %v3379 = vrot.slane %v3378, 1
    %v3380 = vadd.f32 %v3378, %v3379
    %v3381 = vmul.f32 %v3173, %v787
    %v3382 = vmul.f32 %v3174, %v790
    %v3383 = vmul.f32 %v3175, %v787
    %v3384 = vmul.f32 %v3176, %v790
    %v3385 = vmul.f32 %v3177, %v787
    %v3386 = vmul.f32 %v3178, %v790
    %v3387 = vmul.f32 %v3179, %v787
    %v3388 = vmul.f32 %v3180, %v790
    %v3389 = vmul.f32 %v3181, %v787
    %v3390 = vmul.f32 %v3182, %v790
    %v3391 = vmul.f32 %v3183, %v787
    %v3392 = vmul.f32 %v3184, %v790
    %v3393 = vmul.f32 %v3185, %v787
    %v3394 = vmul.f32 %v3186, %v790
    %v3395 = vmul.f32 %v3187, %v787
    %v3396 = vmul.f32 %v3188, %v790
    %v3397 = vmul.f32 %v3189, %v787
    %v3398 = vmul.f32 %v3190, %v790
    %v3399 = vmul.f32 %v3191, %v787
    %v3400 = vmul.f32 %v3192, %v790
    %v3401 = vmul.f32 %v3193, %v787
    %v3402 = vmul.f32 %v3194, %v790
    %v3403 = vmul.f32 %v3195, %v787
    %v3404 = vmul.f32 %v3196, %v790
    %v3405 = vmul.f32 %v3197, %v787
    %v3406 = vmul.f32 %v3198, %v790
    %v3407 = vmul.f32 %v3199, %v787
    %v3408 = vmul.f32 %v3200, %v790
    %v3409 = vmul.f32 %v3201, %v787
    %v3410 = vmul.f32 %v3202, %v790
    %v3411 = vmul.f32 %v3203, %v787
    %v3412 = vmul.f32 %v3204, %v790
    %v3413 = vsel %vm1220, %v3381, 0.0
    %v3414 = vsel %vm1220, %v3382, 0.0
    %v3415 = vadd.f32 %v3413, %v3414
    %v3416 = vrot.slane %v3415, 4
    %v3417 = vadd.f32 %v3415, %v3416
    %v3418 = vrot.slane %v3417, 2
    %v3419 = vadd.f32 %v3417, %v3418
    %v3420 = vrot.slane %v3419, 1
    %v3421 = vadd.f32 %v3419, %v3420
    %v3422 = vsel %vm1220, %v3383, 0.0
    %v3423 = vsel %vm1220, %v3384, 0.0
    %v3424 = vadd.f32 %v3422, %v3423
    %v3425 = vrot.slane %v3424, 4
    %v3426 = vadd.f32 %v3424, %v3425
    %v3427 = vrot.slane %v3426, 2
    %v3428 = vadd.f32 %v3426, %v3427
    %v3429 = vrot.slane %v3428, 1
    %v3430 = vadd.f32 %v3428, %v3429
    %v3431 = vsel %vm1220, %v3385, 0.0
    %v3432 = vsel %vm1220, %v3386, 0.0
    %v3433 = vadd.f32 %v3431, %v3432
    %v3434 = vrot.slane %v3433, 4
    %v3435 = vadd.f32 %v3433, %v3434
    %v3436 = vrot.slane %v3435, 2
    %v3437 = vadd.f32 %v3435, %v3436
    %v3438 = vrot.slane %v3437, 1
    %v3439 = vadd.f32 %v3437, %v3438
    %v3440 = vsel %vm1220, %v3387, 0.0
    %v3441 = vsel %vm1220, %v3388, 0.0
    %v3442 = vadd.f32 %v3440, %v3441
    %v3443 = vrot.slane %v3442, 4
    %v3444 = vadd.f32 %v3442, %v3443
    %v3445 = vrot.slane %v3444, 2
    %v3446 = vadd.f32 %v3444, %v3445
    %v3447 = vrot.slane %v3446, 1
    %v3448 = vadd.f32 %v3446, %v3447
    %v3449 = vsel %vm1220, %v3389, 0.0
    %v3450 = vsel %vm1220, %v3390, 0.0
    %v3451 = vadd.f32 %v3449, %v3450
    %v3452 = vrot.slane %v3451, 4
    %v3453 = vadd.f32 %v3451, %v3452
    %v3454 = vrot.slane %v3453, 2
    %v3455 = vadd.f32 %v3453, %v3454
    %v3456 = vrot.slane %v3455, 1
    %v3457 = vadd.f32 %v3455, %v3456
    %v3458 = vsel %vm1220, %v3391, 0.0
    %v3459 = vsel %vm1220, %v3392, 0.0
    %v3460 = vadd.f32 %v3458, %v3459
    %v3461 = vrot.slane %v3460, 4
    %v3462 = vadd.f32 %v3460, %v3461
    %v3463 = vrot.slane %v3462, 2
    %v3464 = vadd.f32 %v3462, %v3463
    %v3465 = vrot.slane %v3464, 1
    %v3466 = vadd.f32 %v3464, %v3465
    %v3467 = vsel %vm1220, %v3393, 0.0
    %v3468 = vsel %vm1220, %v3394, 0.0
    %v3469 = vadd.f32 %v3467, %v3468
    %v3470 = vrot.slane %v3469, 4
    %v3471 = vadd.f32 %v3469, %v3470
    %v3472 = vrot.slane %v3471, 2
    %v3473 = vadd.f32 %v3471, %v3472
    %v3474 = vrot.slane %v3473, 1
    %v3475 = vadd.f32 %v3473, %v3474
    %v3476 = vsel %vm1220, %v3395, 0.0
    %v3477 = vsel %vm1220, %v3396, 0.0
    %v3478 = vadd.f32 %v3476, %v3477
    %v3479 = vrot.slane %v3478, 4
    %v3480 = vadd.f32 %v3478, %v3479
    %v3481 = vrot.slane %v3480, 2
    %v3482 = vadd.f32 %v3480, %v3481
    %v3483 = vrot.slane %v3482, 1
    %v3484 = vadd.f32 %v3482, %v3483
    %v3485 = vsel %vm1220, %v3397, 0.0
    %v3486 = vsel %vm1220, %v3398, 0.0
    %v3487 = vadd.f32 %v3485, %v3486
    %v3488 = vrot.slane %v3487, 4
    %v3489 = vadd.f32 %v3487, %v3488
    %v3490 = vrot.slane %v3489, 2
    %v3491 = vadd.f32 %v3489, %v3490
    %v3492 = vrot.slane %v3491, 1
    %v3493 = vadd.f32 %v3491, %v3492
    %v3494 = vsel %vm1220, %v3399, 0.0
    %v3495 = vsel %vm1220, %v3400, 0.0
    %v3496 = vadd.f32 %v3494, %v3495
    %v3497 = vrot.slane %v3496, 4
    %v3498 = vadd.f32 %v3496, %v3497
    %v3499 = vrot.slane %v3498, 2
    %v3500 = vadd.f32 %v3498, %v3499
    %v3501 = vrot.slane %v3500, 1
    %v3502 = vadd.f32 %v3500, %v3501
    %v3503 = vsel %vm1220, %v3401, 0.0
    %v3504 = vsel %vm1220, %v3402, 0.0
    %v3505 = vadd.f32 %v3503, %v3504
    %v3506 = vrot.slane %v3505, 4
    %v3507 = vadd.f32 %v3505, %v3506
    %v3508 = vrot.slane %v3507, 2
    %v3509 = vadd.f32 %v3507, %v3508
    %v3510 = vrot.slane %v3509, 1
    %v3511 = vadd.f32 %v3509, %v3510
    %v3512 = vsel %vm1220, %v3403, 0.0
    %v3513 = vsel %vm1220, %v3404, 0.0
    %v3514 = vadd.f32 %v3512, %v3513
    %v3515 = vrot.slane %v3514, 4
    %v3516 = vadd.f32 %v3514, %v3515
    %v3517 = vrot.slane %v3516, 2
    %v3518 = vadd.f32 %v3516, %v3517
    %v3519 = vrot.slane %v3518, 1
    %v3520 = vadd.f32 %v3518, %v3519
    %v3521 = vsel %vm1220, %v3405, 0.0
    %v3522 = vsel %vm1220, %v3406, 0.0
    %v3523 = vadd.f32 %v3521, %v3522
    %v3524 = vrot.slane %v3523, 4
    %v3525 = vadd.f32 %v3523, %v3524
    %v3526 = vrot.slane %v3525, 2
    %v3527 = vadd.f32 %v3525, %v3526
    %v3528 = vrot.slane %v3527, 1
    %v3529 = vadd.f32 %v3527, %v3528
    %v3530 = vsel %vm1220, %v3407, 0.0
    %v3531 = vsel %vm1220, %v3408, 0.0
    %v3532 = vadd.f32 %v3530, %v3531
    %v3533 = vrot.slane %v3532, 4
    %v3534 = vadd.f32 %v3532, %v3533
    %v3535 = vrot.slane %v3534, 2
    %v3536 = vadd.f32 %v3534, %v3535
    %v3537 = vrot.slane %v3536, 1
    %v3538 = vadd.f32 %v3536, %v3537
    %v3539 = vsel %vm1220, %v3409, 0.0
    %v3540 = vsel %vm1220, %v3410, 0.0
    %v3541 = vadd.f32 %v3539, %v3540
    %v3542 = vrot.slane %v3541, 4
    %v3543 = vadd.f32 %v3541, %v3542
    %v3544 = vrot.slane %v3543, 2
    %v3545 = vadd.f32 %v3543, %v3544
    %v3546 = vrot.slane %v3545, 1
    %v3547 = vadd.f32 %v3545, %v3546
    %v3548 = vsel %vm1220, %v3411, 0.0
    %v3549 = vsel %vm1220, %v3412, 0.0
    %v3550 = vadd.f32 %v3548, %v3549
    %v3551 = vrot.slane %v3550, 4
    %v3552 = vadd.f32 %v3550, %v3551
    %v3553 = vrot.slane %v3552, 2
    %v3554 = vadd.f32 %v3552, %v3553
    %v3555 = vrot.slane %v3554, 1
    %v3556 = vadd.f32 %v3554, %v3555
    %v3557 = vmul.f32 %v3173, %v793
    %v3558 = vmul.f32 %v3174, %v796
    %v3559 = vmul.f32 %v3175, %v793
    %v3560 = vmul.f32 %v3176, %v796
    %v3561 = vmul.f32 %v3177, %v793
    %v3562 = vmul.f32 %v3178, %v796
    %v3563 = vmul.f32 %v3179, %v793
    %v3564 = vmul.f32 %v3180, %v796
    %v3565 = vmul.f32 %v3181, %v793
    %v3566 = vmul.f32 %v3182, %v796
    %v3567 = vmul.f32 %v3183, %v793
    %v3568 = vmul.f32 %v3184, %v796
    %v3569 = vmul.f32 %v3185, %v793
    %v3570 = vmul.f32 %v3186, %v796
    %v3571 = vmul.f32 %v3187, %v793
    %v3572 = vmul.f32 %v3188, %v796
    %v3573 = vmul.f32 %v3189, %v793
    %v3574 = vmul.f32 %v3190, %v796
    %v3575 = vmul.f32 %v3191, %v793
    %v3576 = vmul.f32 %v3192, %v796
    %v3577 = vmul.f32 %v3193, %v793
    %v3578 = vmul.f32 %v3194, %v796
    %v3579 = vmul.f32 %v3195, %v793
    %v3580 = vmul.f32 %v3196, %v796
    %v3581 = vmul.f32 %v3197, %v793
    %v3582 = vmul.f32 %v3198, %v796
    %v3583 = vmul.f32 %v3199, %v793
    %v3584 = vmul.f32 %v3200, %v796
    %v3585 = vmul.f32 %v3201, %v793
    %v3586 = vmul.f32 %v3202, %v796
    %v3587 = vmul.f32 %v3203, %v793
    %v3588 = vmul.f32 %v3204, %v796
    %v3589 = vsel %vm1220, %v3557, 0.0
    %v3590 = vsel %vm1220, %v3558, 0.0
    %v3591 = vadd.f32 %v3589, %v3590
    %v3592 = vrot.slane %v3591, 4
    %v3593 = vadd.f32 %v3591, %v3592
    %v3594 = vrot.slane %v3593, 2
    %v3595 = vadd.f32 %v3593, %v3594
    %v3596 = vrot.slane %v3595, 1
    %v3597 = vadd.f32 %v3595, %v3596
    %v3598 = vsel %vm1220, %v3559, 0.0
    %v3599 = vsel %vm1220, %v3560, 0.0
    %v3600 = vadd.f32 %v3598, %v3599
    %v3601 = vrot.slane %v3600, 4
    %v3602 = vadd.f32 %v3600, %v3601
    %v3603 = vrot.slane %v3602, 2
    %v3604 = vadd.f32 %v3602, %v3603
    %v3605 = vrot.slane %v3604, 1
    %v3606 = vadd.f32 %v3604, %v3605
    %v3607 = vsel %vm1220, %v3561, 0.0
    %v3608 = vsel %vm1220, %v3562, 0.0
    %v3609 = vadd.f32 %v3607, %v3608
    %v3610 = vrot.slane %v3609, 4
    %v3611 = vadd.f32 %v3609, %v3610
    %v3612 = vrot.slane %v3611, 2
    %v3613 = vadd.f32 %v3611, %v3612
    %v3614 = vrot.slane %v3613, 1
    %v3615 = vadd.f32 %v3613, %v3614
    %v3616 = vsel %vm1220, %v3563, 0.0
    %v3617 = vsel %vm1220, %v3564, 0.0
    %v3618 = vadd.f32 %v3616, %v3617
    %v3619 = vrot.slane %v3618, 4
    %v3620 = vadd.f32 %v3618, %v3619
    %v3621 = vrot.slane %v3620, 2
    %v3622 = vadd.f32 %v3620, %v3621
    %v3623 = vrot.slane %v3622, 1
    %v3624 = vadd.f32 %v3622, %v3623
    %v3625 = vsel %vm1220, %v3565, 0.0
    %v3626 = vsel %vm1220, %v3566, 0.0
    %v3627 = vadd.f32 %v3625, %v3626
    %v3628 = vrot.slane %v3627, 4
    %v3629 = vadd.f32 %v3627, %v3628
    %v3630 = vrot.slane %v3629, 2
    %v3631 = vadd.f32 %v3629, %v3630
    %v3632 = vrot.slane %v3631, 1
    %v3633 = vadd.f32 %v3631, %v3632
    %v3634 = vsel %vm1220, %v3567, 0.0
    %v3635 = vsel %vm1220, %v3568, 0.0
    %v3636 = vadd.f32 %v3634, %v3635
    %v3637 = vrot.slane %v3636, 4
    %v3638 = vadd.f32 %v3636, %v3637
    %v3639 = vrot.slane %v3638, 2
    %v3640 = vadd.f32 %v3638, %v3639
    %v3641 = vrot.slane %v3640, 1
    %v3642 = vadd.f32 %v3640, %v3641
    %v3643 = vsel %vm1220, %v3569, 0.0
    %v3644 = vsel %vm1220, %v3570, 0.0
    %v3645 = vadd.f32 %v3643, %v3644
    %v3646 = vrot.slane %v3645, 4
    %v3647 = vadd.f32 %v3645, %v3646
    %v3648 = vrot.slane %v3647, 2
    %v3649 = vadd.f32 %v3647, %v3648
    %v3650 = vrot.slane %v3649, 1
    %v3651 = vadd.f32 %v3649, %v3650
    %v3652 = vsel %vm1220, %v3571, 0.0
    %v3653 = vsel %vm1220, %v3572, 0.0
    %v3654 = vadd.f32 %v3652, %v3653
    %v3655 = vrot.slane %v3654, 4
    %v3656 = vadd.f32 %v3654, %v3655
    %v3657 = vrot.slane %v3656, 2
    %v3658 = vadd.f32 %v3656, %v3657
    %v3659 = vrot.slane %v3658, 1
    %v3660 = vadd.f32 %v3658, %v3659
    %v3661 = vsel %vm1220, %v3573, 0.0
    %v3662 = vsel %vm1220, %v3574, 0.0
    %v3663 = vadd.f32 %v3661, %v3662
    %v3664 = vrot.slane %v3663, 4
    %v3665 = vadd.f32 %v3663, %v3664
    %v3666 = vrot.slane %v3665, 2
    %v3667 = vadd.f32 %v3665, %v3666
    %v3668 = vrot.slane %v3667, 1
    %v3669 = vadd.f32 %v3667, %v3668
    %v3670 = vsel %vm1220, %v3575, 0.0
    %v3671 = vsel %vm1220, %v3576, 0.0
    %v3672 = vadd.f32 %v3670, %v3671
    %v3673 = vrot.slane %v3672, 4
    %v3674 = vadd.f32 %v3672, %v3673
    %v3675 = vrot.slane %v3674, 2
    %v3676 = vadd.f32 %v3674, %v3675
    %v3677 = vrot.slane %v3676, 1
    %v3678 = vadd.f32 %v3676, %v3677
    %v3679 = vsel %vm1220, %v3577, 0.0
    %v3680 = vsel %vm1220, %v3578, 0.0
    %v3681 = vadd.f32 %v3679, %v3680
    %v3682 = vrot.slane %v3681, 4
    %v3683 = vadd.f32 %v3681, %v3682
    %v3684 = vrot.slane %v3683, 2
    %v3685 = vadd.f32 %v3683, %v3684
    %v3686 = vrot.slane %v3685, 1
    %v3687 = vadd.f32 %v3685, %v3686
    %v3688 = vsel %vm1220, %v3579, 0.0
    %v3689 = vsel %vm1220, %v3580, 0.0
    %v3690 = vadd.f32 %v3688, %v3689
    %v3691 = vrot.slane %v3690, 4
    %v3692 = vadd.f32 %v3690, %v3691
    %v3693 = vrot.slane %v3692, 2
    %v3694 = vadd.f32 %v3692, %v3693
    %v3695 = vrot.slane %v3694, 1
    %v3696 = vadd.f32 %v3694, %v3695
    %v3697 = vsel %vm1220, %v3581, 0.0
    %v3698 = vsel %vm1220, %v3582, 0.0
    %v3699 = vadd.f32 %v3697, %v3698
    %v3700 = vrot.slane %v3699, 4
    %v3701 = vadd.f32 %v3699, %v3700
    %v3702 = vrot.slane %v3701, 2
    %v3703 = vadd.f32 %v3701, %v3702
    %v3704 = vrot.slane %v3703, 1
    %v3705 = vadd.f32 %v3703, %v3704
    %v3706 = vsel %vm1220, %v3583, 0.0
    %v3707 = vsel %vm1220, %v3584, 0.0
    %v3708 = vadd.f32 %v3706, %v3707
    %v3709 = vrot.slane %v3708, 4
    %v3710 = vadd.f32 %v3708, %v3709
    %v3711 = vrot.slane %v3710, 2
    %v3712 = vadd.f32 %v3710, %v3711
    %v3713 = vrot.slane %v3712, 1
    %v3714 = vadd.f32 %v3712, %v3713
    %v3715 = vsel %vm1220, %v3585, 0.0
    %v3716 = vsel %vm1220, %v3586, 0.0
    %v3717 = vadd.f32 %v3715, %v3716
    %v3718 = vrot.slane %v3717, 4
    %v3719 = vadd.f32 %v3717, %v3718
    %v3720 = vrot.slane %v3719, 2
    %v3721 = vadd.f32 %v3719, %v3720
    %v3722 = vrot.slane %v3721, 1
    %v3723 = vadd.f32 %v3721, %v3722
    %v3724 = vsel %vm1220, %v3587, 0.0
    %v3725 = vsel %vm1220, %v3588, 0.0
    %v3726 = vadd.f32 %v3724, %v3725
    %v3727 = vrot.slane %v3726, 4
    %v3728 = vadd.f32 %v3726, %v3727
    %v3729 = vrot.slane %v3728, 2
    %v3730 = vadd.f32 %v3728, %v3729
    %v3731 = vrot.slane %v3730, 1
    %v3732 = vadd.f32 %v3730, %v3731
    %v3733 = vmul.f32 %v3173, %v799
    %v3734 = vmul.f32 %v3174, %v802
    %v3735 = vmul.f32 %v3175, %v799
    %v3736 = vmul.f32 %v3176, %v802
    %v3737 = vmul.f32 %v3177, %v799
    %v3738 = vmul.f32 %v3178, %v802
    %v3739 = vmul.f32 %v3179, %v799
    %v3740 = vmul.f32 %v3180, %v802
    %v3741 = vmul.f32 %v3181, %v799
    %v3742 = vmul.f32 %v3182, %v802
    %v3743 = vmul.f32 %v3183, %v799
    %v3744 = vmul.f32 %v3184, %v802
    %v3745 = vmul.f32 %v3185, %v799
    %v3746 = vmul.f32 %v3186, %v802
    %v3747 = vmul.f32 %v3187, %v799
    %v3748 = vmul.f32 %v3188, %v802
    %v3749 = vmul.f32 %v3189, %v799
    %v3750 = vmul.f32 %v3190, %v802
    %v3751 = vmul.f32 %v3191, %v799
    %v3752 = vmul.f32 %v3192, %v802
    %v3753 = vmul.f32 %v3193, %v799
    %v3754 = vmul.f32 %v3194, %v802
    %v3755 = vmul.f32 %v3195, %v799
    %v3756 = vmul.f32 %v3196, %v802
    %v3757 = vmul.f32 %v3197, %v799
    %v3758 = vmul.f32 %v3198, %v802
    %v3759 = vmul.f32 %v3199, %v799
    %v3760 = vmul.f32 %v3200, %v802
    %v3761 = vmul.f32 %v3201, %v799
    %v3762 = vmul.f32 %v3202, %v802
    %v3763 = vmul.f32 %v3203, %v799
    %v3764 = vmul.f32 %v3204, %v802
    %v3765 = vsel %vm1220, %v3733, 0.0
    %v3766 = vsel %vm1220, %v3734, 0.0
    %v3767 = vadd.f32 %v3765, %v3766
    %v3768 = vrot.slane %v3767, 4
    %v3769 = vadd.f32 %v3767, %v3768
    %v3770 = vrot.slane %v3769, 2
    %v3771 = vadd.f32 %v3769, %v3770
    %v3772 = vrot.slane %v3771, 1
    %v3773 = vadd.f32 %v3771, %v3772
    %v3774 = vsel %vm1220, %v3735, 0.0
    %v3775 = vsel %vm1220, %v3736, 0.0
    %v3776 = vadd.f32 %v3774, %v3775
    %v3777 = vrot.slane %v3776, 4
    %v3778 = vadd.f32 %v3776, %v3777
    %v3779 = vrot.slane %v3778, 2
    %v3780 = vadd.f32 %v3778, %v3779
    %v3781 = vrot.slane %v3780, 1
    %v3782 = vadd.f32 %v3780, %v3781
    %v3783 = vsel %vm1220, %v3737, 0.0
    %v3784 = vsel %vm1220, %v3738, 0.0
    %v3785 = vadd.f32 %v3783, %v3784
    %v3786 = vrot.slane %v3785, 4
    %v3787 = vadd.f32 %v3785, %v3786
    %v3788 = vrot.slane %v3787, 2
    %v3789 = vadd.f32 %v3787, %v3788
    %v3790 = vrot.slane %v3789, 1
    %v3791 = vadd.f32 %v3789, %v3790
    %v3792 = vsel %vm1220, %v3739, 0.0
    %v3793 = vsel %vm1220, %v3740, 0.0
    %v3794 = vadd.f32 %v3792, %v3793
    %v3795 = vrot.slane %v3794, 4
    %v3796 = vadd.f32 %v3794, %v3795
    %v3797 = vrot.slane %v3796, 2
    %v3798 = vadd.f32 %v3796, %v3797
    %v3799 = vrot.slane %v3798, 1
    %v3800 = vadd.f32 %v3798, %v3799
    %v3801 = vsel %vm1220, %v3741, 0.0
    %v3802 = vsel %vm1220, %v3742, 0.0
    %v3803 = vadd.f32 %v3801, %v3802
    %v3804 = vrot.slane %v3803, 4
    %v3805 = vadd.f32 %v3803, %v3804
    %v3806 = vrot.slane %v3805, 2
    %v3807 = vadd.f32 %v3805, %v3806
    %v3808 = vrot.slane %v3807, 1
    %v3809 = vadd.f32 %v3807, %v3808
    %v3810 = vsel %vm1220, %v3743, 0.0
    %v3811 = vsel %vm1220, %v3744, 0.0
    %v3812 = vadd.f32 %v3810, %v3811
    %v3813 = vrot.slane %v3812, 4
    %v3814 = vadd.f32 %v3812, %v3813
    %v3815 = vrot.slane %v3814, 2
    %v3816 = vadd.f32 %v3814, %v3815
    %v3817 = vrot.slane %v3816, 1
    %v3818 = vadd.f32 %v3816, %v3817
    %v3819 = vsel %vm1220, %v3745, 0.0
    %v3820 = vsel %vm1220, %v3746, 0.0
    %v3821 = vadd.f32 %v3819, %v3820
    %v3822 = vrot.slane %v3821, 4
    %v3823 = vadd.f32 %v3821, %v3822
    %v3824 = vrot.slane %v3823, 2
    %v3825 = vadd.f32 %v3823, %v3824
    %v3826 = vrot.slane %v3825, 1
    %v3827 = vadd.f32 %v3825, %v3826
    %v3828 = vsel %vm1220, %v3747, 0.0
    %v3829 = vsel %vm1220, %v3748, 0.0
    %v3830 = vadd.f32 %v3828, %v3829
    %v3831 = vrot.slane %v3830, 4
    %v3832 = vadd.f32 %v3830, %v3831
    %v3833 = vrot.slane %v3832, 2
    %v3834 = vadd.f32 %v3832, %v3833
    %v3835 = vrot.slane %v3834, 1
    %v3836 = vadd.f32 %v3834, %v3835
    %v3837 = vsel %vm1220, %v3749, 0.0
    %v3838 = vsel %vm1220, %v3750, 0.0
    %v3839 = vadd.f32 %v3837, %v3838
    %v3840 = vrot.slane %v3839, 4
    %v3841 = vadd.f32 %v3839, %v3840
    %v3842 = vrot.slane %v3841, 2
    %v3843 = vadd.f32 %v3841, %v3842
    %v3844 = vrot.slane %v3843, 1
    %v3845 = vadd.f32 %v3843, %v3844
    %v3846 = vsel %vm1220, %v3751, 0.0
    %v3847 = vsel %vm1220, %v3752, 0.0
    %v3848 = vadd.f32 %v3846, %v3847
    %v3849 = vrot.slane %v3848, 4
    %v3850 = vadd.f32 %v3848, %v3849
    %v3851 = vrot.slane %v3850, 2
    %v3852 = vadd.f32 %v3850, %v3851
    %v3853 = vrot.slane %v3852, 1
    %v3854 = vadd.f32 %v3852, %v3853
    %v3855 = vsel %vm1220, %v3753, 0.0
    %v3856 = vsel %vm1220, %v3754, 0.0
    %v3857 = vadd.f32 %v3855, %v3856
    %v3858 = vrot.slane %v3857, 4
    %v3859 = vadd.f32 %v3857, %v3858
    %v3860 = vrot.slane %v3859, 2
    %v3861 = vadd.f32 %v3859, %v3860
    %v3862 = vrot.slane %v3861, 1
    %v3863 = vadd.f32 %v3861, %v3862
    %v3864 = vsel %vm1220, %v3755, 0.0
    %v3865 = vsel %vm1220, %v3756, 0.0
    %v3866 = vadd.f32 %v3864, %v3865
    %v3867 = vrot.slane %v3866, 4
    %v3868 = vadd.f32 %v3866, %v3867
    %v3869 = vrot.slane %v3868, 2
    %v3870 = vadd.f32 %v3868, %v3869
    %v3871 = vrot.slane %v3870, 1
    %v3872 = vadd.f32 %v3870, %v3871
    %v3873 = vsel %vm1220, %v3757, 0.0
    %v3874 = vsel %vm1220, %v3758, 0.0
    %v3875 = vadd.f32 %v3873, %v3874
    %v3876 = vrot.slane %v3875, 4
    %v3877 = vadd.f32 %v3875, %v3876
    %v3878 = vrot.slane %v3877, 2
    %v3879 = vadd.f32 %v3877, %v3878
    %v3880 = vrot.slane %v3879, 1
    %v3881 = vadd.f32 %v3879, %v3880
    %v3882 = vsel %vm1220, %v3759, 0.0
    %v3883 = vsel %vm1220, %v3760, 0.0
    %v3884 = vadd.f32 %v3882, %v3883
    %v3885 = vrot.slane %v3884, 4
    %v3886 = vadd.f32 %v3884, %v3885
    %v3887 = vrot.slane %v3886, 2
    %v3888 = vadd.f32 %v3886, %v3887
    %v3889 = vrot.slane %v3888, 1
    %v3890 = vadd.f32 %v3888, %v3889
    %v3891 = vsel %vm1220, %v3761, 0.0
    %v3892 = vsel %vm1220, %v3762, 0.0
    %v3893 = vadd.f32 %v3891, %v3892
    %v3894 = vrot.slane %v3893, 4
    %v3895 = vadd.f32 %v3893, %v3894
    %v3896 = vrot.slane %v3895, 2
    %v3897 = vadd.f32 %v3895, %v3896
    %v3898 = vrot.slane %v3897, 1
    %v3899 = vadd.f32 %v3897, %v3898
    %v3900 = vsel %vm1220, %v3763, 0.0
    %v3901 = vsel %vm1220, %v3764, 0.0
    %v3902 = vadd.f32 %v3900, %v3901
    %v3903 = vrot.slane %v3902, 4
    %v3904 = vadd.f32 %v3902, %v3903
    %v3905 = vrot.slane %v3904, 2
    %v3906 = vadd.f32 %v3904, %v3905
    %v3907 = vrot.slane %v3906, 1
    %v3908 = vadd.f32 %v3906, %v3907
    %vm3925 = vcmask 1041409
    %v3926 = vsel %vm3925, %v1702, %v1693
    %vm3927 = vcmask 1042434
    %v3928 = vsel %vm3927, %v1711, %v3926
    %vm3929 = vcmask 1043459
    %v3930 = vsel %vm3929, %v1720, %v3928
    %vm3931 = vcmask 1044484
    %v3932 = vsel %vm3931, %v1729, %v3930
    %vm3933 = vcmask 1045509
    %v3934 = vsel %vm3933, %v1738, %v3932
    %vm3935 = vcmask 1046534
    %v3936 = vsel %vm3935, %v1747, %v3934
    %vm3937 = vcmask 1047559
    %v3938 = vsel %vm3937, %v1756, %v3936
    %v3939 = vsel %vm3925, %v1774, %v1765
    %v3940 = vsel %vm3927, %v1783, %v3939
    %v3941 = vsel %vm3929, %v1792, %v3940
    %v3942 = vsel %vm3931, %v1801, %v3941
    %v3943 = vsel %vm3933, %v1810, %v3942
    %v3944 = vsel %vm3935, %v1819, %v3943
    %v3945 = vsel %vm3937, %v1828, %v3944
    %v3964 = vsel %vm3925, %v1878, %v1869
    %v3965 = vsel %vm3927, %v1887, %v3964
    %v3966 = vsel %vm3929, %v1896, %v3965
    %v3967 = vsel %vm3931, %v1905, %v3966
    %v3968 = vsel %vm3933, %v1914, %v3967
    %v3969 = vsel %vm3935, %v1923, %v3968
    %v3970 = vsel %vm3937, %v1932, %v3969
    %v3971 = vsel %vm3925, %v1950, %v1941
    %v3972 = vsel %vm3927, %v1959, %v3971
    %v3973 = vsel %vm3929, %v1968, %v3972
    %v3974 = vsel %vm3931, %v1977, %v3973
    %v3975 = vsel %vm3933, %v1986, %v3974
    %v3976 = vsel %vm3935, %v1995, %v3975
    %v3977 = vsel %vm3937, %v2004, %v3976
    %v3996 = vsel %vm3925, %v2054, %v2045
    %v3997 = vsel %vm3927, %v2063, %v3996
    %v3998 = vsel %vm3929, %v2072, %v3997
    %v3999 = vsel %vm3931, %v2081, %v3998
    %v4000 = vsel %vm3933, %v2090, %v3999
    %v4001 = vsel %vm3935, %v2099, %v4000
    %v4002 = vsel %vm3937, %v2108, %v4001
    %v4003 = vsel %vm3925, %v2126, %v2117
    %v4004 = vsel %vm3927, %v2135, %v4003
    %v4005 = vsel %vm3929, %v2144, %v4004
    %v4006 = vsel %vm3931, %v2153, %v4005
    %v4007 = vsel %vm3933, %v2162, %v4006
    %v4008 = vsel %vm3935, %v2171, %v4007
    %v4009 = vsel %vm3937, %v2180, %v4008
    %v4028 = vsel %vm3925, %v2230, %v2221
    %v4029 = vsel %vm3927, %v2239, %v4028
    %v4030 = vsel %vm3929, %v2248, %v4029
    %v4031 = vsel %vm3931, %v2257, %v4030
    %v4032 = vsel %vm3933, %v2266, %v4031
    %v4033 = vsel %vm3935, %v2275, %v4032
    %v4034 = vsel %vm3937, %v2284, %v4033
    %v4035 = vsel %vm3925, %v2302, %v2293
    %v4036 = vsel %vm3927, %v2311, %v4035
    %v4037 = vsel %vm3929, %v2320, %v4036
    %v4038 = vsel %vm3931, %v2329, %v4037
    %v4039 = vsel %vm3933, %v2338, %v4038
    %v4040 = vsel %vm3935, %v2347, %v4039
    %v4041 = vsel %vm3937, %v2356, %v4040
    %v4060 = vsel %vm3925, %v3254, %v3245
    %v4061 = vsel %vm3927, %v3263, %v4060
    %v4062 = vsel %vm3929, %v3272, %v4061
    %v4063 = vsel %vm3931, %v3281, %v4062
    %v4064 = vsel %vm3933, %v3290, %v4063
    %v4065 = vsel %vm3935, %v3299, %v4064
    %v4066 = vsel %vm3937, %v3308, %v4065
    %v4067 = vsel %vm3925, %v3326, %v3317
    %v4068 = vsel %vm3927, %v3335, %v4067
    %v4069 = vsel %vm3929, %v3344, %v4068
    %v4070 = vsel %vm3931, %v3353, %v4069
    %v4071 = vsel %vm3933, %v3362, %v4070
    %v4072 = vsel %vm3935, %v3371, %v4071
    %v4073 = vsel %vm3937, %v3380, %v4072
    %v4092 = vsel %vm3925, %v3430, %v3421
    %v4093 = vsel %vm3927, %v3439, %v4092
    %v4094 = vsel %vm3929, %v3448, %v4093
    %v4095 = vsel %vm3931, %v3457, %v4094
    %v4096 = vsel %vm3933, %v3466, %v4095
    %v4097 = vsel %vm3935, %v3475, %v4096
    %v4098 = vsel %vm3937, %v3484, %v4097
    %v4099 = vsel %vm3925, %v3502, %v3493
    %v4100 = vsel %vm3927, %v3511, %v4099
    %v4101 = vsel %vm3929, %v3520, %v4100
    %v4102 = vsel %vm3931, %v3529, %v4101
    %v4103 = vsel %vm3933, %v3538, %v4102
    %v4104 = vsel %vm3935, %v3547, %v4103
    %v4105 = vsel %vm3937, %v3556, %v4104
    %v4124 = vsel %vm3925, %v3606, %v3597
    %v4125 = vsel %vm3927, %v3615, %v4124
    %v4126 = vsel %vm3929, %v3624, %v4125
    %v4127 = vsel %vm3931, %v3633, %v4126
    %v4128 = vsel %vm3933, %v3642, %v4127
    %v4129 = vsel %vm3935, %v3651, %v4128
    %v4130 = vsel %vm3937, %v3660, %v4129
    %v4131 = vsel %vm3925, %v3678, %v3669
    %v4132 = vsel %vm3927, %v3687, %v4131
    %v4133 = vsel %vm3929, %v3696, %v4132
    %v4134 = vsel %vm3931, %v3705, %v4133
    %v4135 = vsel %vm3933, %v3714, %v4134
    %v4136 = vsel %vm3935, %v3723, %v4135
    %v4137 = vsel %vm3937, %v3732, %v4136
    %v4156 = vsel %vm3925, %v3782, %v3773
    %v4157 = vsel %vm3927, %v3791, %v4156
    %v4158 = vsel %vm3929, %v3800, %v4157
    %v4159 = vsel %vm3931, %v3809, %v4158
    %v4160 = vsel %vm3933, %v3818, %v4159
    %v4161 = vsel %vm3935, %v3827, %v4160
    %v4162 = vsel %vm3937, %v3836, %v4161
    %v4163 = vsel %vm3925, %v3854, %v3845
    %v4164 = vsel %vm3927, %v3863, %v4163
    %v4165 = vsel %vm3929, %v3872, %v4164
    %v4166 = vsel %vm3931, %v3881, %v4165
    %v4167 = vsel %vm3933, %v3890, %v4166
    %v4168 = vsel %vm3935, %v3899, %v4167
    %v4169 = vsel %vm3937, %v3908, %v4168
    %v4172 = vld [vmem:[%s5] sm:$0xff]
    %v4173 = vld [vmem:[%s5 + $0x8] sm:$0xff]
    %v4174 = vld [vmem:[%s5 + $0x10] sm:$0xff]
    %v4175 = vld [vmem:[%s5 + $0x18] sm:$0xff]
    %v4176 = vld [vmem:[%s5 + $0x20] sm:$0xff]
    %v4177 = vld [vmem:[%s5 + $0x28] sm:$0xff]
    %v4178 = vld [vmem:[%s5 + $0x30] sm:$0xff]
    %v4179 = vld [vmem:[%s5 + $0x38] sm:$0xff]
    %v4180 = vld [vmem:[%s5 + $0x40] sm:$0xff]
    %v4181 = vld [vmem:[%s5 + $0x48] sm:$0xff]
    %v4182 = vld [vmem:[%s5 + $0x50] sm:$0xff]
    %v4183 = vld [vmem:[%s5 + $0x58] sm:$0xff]
    %v4184 = vld [vmem:[%s5 + $0x60] sm:$0xff]
    %v4185 = vld [vmem:[%s5 + $0x68] sm:$0xff]
    %v4186 = vld [vmem:[%s5 + $0x70] sm:$0xff]
    %v4187 = vld [vmem:[%s5 + $0x78] sm:$0xff]
    %v4188 = vld [vmem:[%s6] sm:$0xff]
    %v4189 = vld [vmem:[%s6 + $0x8] sm:$0xff]
    %v4190 = vld [vmem:[%s6 + $0x10] sm:$0xff]
    %v4191 = vld [vmem:[%s6 + $0x18] sm:$0xff]
    %v4192 = vld [vmem:[%s6 + $0x20] sm:$0xff]
    %v4193 = vld [vmem:[%s6 + $0x28] sm:$0xff]
    %v4194 = vld [vmem:[%s6 + $0x30] sm:$0xff]
    %v4195 = vld [vmem:[%s6 + $0x38] sm:$0xff]
    %v4196 = vld [vmem:[%s6 + $0x40] sm:$0xff]
    %v4197 = vld [vmem:[%s6 + $0x48] sm:$0xff]
    %v4198 = vld [vmem:[%s6 + $0x50] sm:$0xff]
    %v4199 = vld [vmem:[%s6 + $0x58] sm:$0xff]
    %v4200 = vld [vmem:[%s6 + $0x60] sm:$0xff]
    %v4201 = vld [vmem:[%s6 + $0x68] sm:$0xff]
    %v4202 = vld [vmem:[%s6 + $0x70] sm:$0xff]
    %v4203 = vld [vmem:[%s6 + $0x78] sm:$0xff]
    %4205 = vset.pattern.permute.xlu0 0
    %4206 = vperm.xlu0 %4205, %v4188
    %v4207 = vpop.permute.xlu0 %4206
    %4210 = vset.pattern.permute.xlu0 0
    %4211 = vperm.xlu0 %4210, %v4189
    %v4212 = vpop.permute.xlu0 %4211
    %4215 = vset.pattern.permute.xlu0 0
    %4216 = vperm.xlu0 %4215, %v4190
    %v4217 = vpop.permute.xlu0 %4216
    %4220 = vset.pattern.permute.xlu0 0
    %4221 = vperm.xlu0 %4220, %v4191
    %v4222 = vpop.permute.xlu0 %4221
    %4225 = vset.pattern.permute.xlu0 0
    %4226 = vperm.xlu0 %4225, %v4192
    %v4227 = vpop.permute.xlu0 %4226
    %4230 = vset.pattern.permute.xlu0 0
    %4231 = vperm.xlu0 %4230, %v4193
    %v4232 = vpop.permute.xlu0 %4231
    %4235 = vset.pattern.permute.xlu0 0
    %4236 = vperm.xlu0 %4235, %v4194
    %v4237 = vpop.permute.xlu0 %4236
    %4240 = vset.pattern.permute.xlu0 0
    %4241 = vperm.xlu0 %4240, %v4195
    %v4242 = vpop.permute.xlu0 %4241
    %4245 = vset.pattern.permute.xlu0 0
    %4246 = vperm.xlu0 %4245, %v4196
    %v4247 = vpop.permute.xlu0 %4246
    %4250 = vset.pattern.permute.xlu0 0
    %4251 = vperm.xlu0 %4250, %v4197
    %v4252 = vpop.permute.xlu0 %4251
    %4255 = vset.pattern.permute.xlu0 0
    %4256 = vperm.xlu0 %4255, %v4198
    %v4257 = vpop.permute.xlu0 %4256
    %4260 = vset.pattern.permute.xlu0 0
    %4261 = vperm.xlu0 %4260, %v4199
    %v4262 = vpop.permute.xlu0 %4261
    %4265 = vset.pattern.permute.xlu0 0
    %4266 = vperm.xlu0 %4265, %v4200
    %v4267 = vpop.permute.xlu0 %4266
    %4270 = vset.pattern.permute.xlu0 0
    %4271 = vperm.xlu0 %4270, %v4201
    %v4272 = vpop.permute.xlu0 %4271
    %4275 = vset.pattern.permute.xlu0 0
    %4276 = vperm.xlu0 %4275, %v4202
    %v4277 = vpop.permute.xlu0 %4276
    %4280 = vset.pattern.permute.xlu0 0
    %4281 = vperm.xlu0 %4280, %v4203
    %v4282 = vpop.permute.xlu0 %4281
    %4284 = vmatpush.msra.mxu0 %v4169
    %4285 = vmatpush.msra.mxu0 %v4162
    %4286 = vmatpush.msra.mxu0 %v4137
    %4287 = vmatpush.msra.mxu0 %v4130
    %4288 = vmatpush.msra.mxu0 %v4105
    %4289 = vmatpush.msra.mxu0 %v4098
    %4290 = vmatpush.msra.mxu0 %v4073
    %4291 = vmatpush.msra.mxu0 %v4066
    %4292 = vmatpush.msra.mxu0 %v4041
    %4293 = vmatpush.msra.mxu0 %v4034
    %4294 = vmatpush.msra.mxu0 %v4009
    %4295 = vmatpush.msra.mxu0 %v4002
    %4296 = vmatpush.msra.mxu0 %v3977
    %4297 = vmatpush.msra.mxu0 %v3970
    %4298 = vmatpush.msra.mxu0 %v3945
    %4299 = vmatpush.msra.mxu0 %v3938
    %4300 = vmatmul.f32.gmra.mxu0 %v4172
    %v4301 = vpop.f32.mrf.mxu0
    %v4302 = vadd.f32 %v4207, %v4301
    %4303 = vmatmul.f32.gmra.mxu0 %v4173
    %v4304 = vpop.f32.mrf.mxu0
    %v4305 = vadd.f32 %v4212, %v4304
    %4306 = vmatmul.f32.gmra.mxu0 %v4174
    %v4307 = vpop.f32.mrf.mxu0
    %v4308 = vadd.f32 %v4217, %v4307
    %4309 = vmatmul.f32.gmra.mxu0 %v4175
    %v4310 = vpop.f32.mrf.mxu0
    %v4311 = vadd.f32 %v4222, %v4310
    %4312 = vmatmul.f32.gmra.mxu0 %v4176
    %v4313 = vpop.f32.mrf.mxu0
    %v4314 = vadd.f32 %v4227, %v4313
    %4315 = vmatmul.f32.gmra.mxu0 %v4177
    %v4316 = vpop.f32.mrf.mxu0
    %v4317 = vadd.f32 %v4232, %v4316
    %4318 = vmatmul.f32.gmra.mxu0 %v4178
    %v4319 = vpop.f32.mrf.mxu0
    %v4320 = vadd.f32 %v4237, %v4319
    %4321 = vmatmul.f32.gmra.mxu0 %v4179
    %v4322 = vpop.f32.mrf.mxu0
    %v4323 = vadd.f32 %v4242, %v4322
    %4324 = vmatmul.f32.gmra.mxu0 %v4180
    %v4325 = vpop.f32.mrf.mxu0
    %v4326 = vadd.f32 %v4247, %v4325
    %4327 = vmatmul.f32.gmra.mxu0 %v4181
    %v4328 = vpop.f32.mrf.mxu0
    %v4329 = vadd.f32 %v4252, %v4328
    %4330 = vmatmul.f32.gmra.mxu0 %v4182
    %v4331 = vpop.f32.mrf.mxu0
    %v4332 = vadd.f32 %v4257, %v4331
    %4333 = vmatmul.f32.gmra.mxu0 %v4183
    %v4334 = vpop.f32.mrf.mxu0
    %v4335 = vadd.f32 %v4262, %v4334
    %4336 = vmatmul.f32.gmra.mxu0 %v4184
    %v4337 = vpop.f32.mrf.mxu0
    %v4338 = vadd.f32 %v4267, %v4337
    %4339 = vmatmul.f32.gmra.mxu0 %v4185
    %v4340 = vpop.f32.mrf.mxu0
    %v4341 = vadd.f32 %v4272, %v4340
    %4342 = vmatmul.f32.gmra.mxu0 %v4186
    %v4343 = vpop.f32.mrf.mxu0
    %v4344 = vadd.f32 %v4277, %v4343
    %4345 = vmatmul.f32.gmra.mxu0 %v4187
    %v4346 = vpop.f32.mrf.mxu0
    %v4347 = vadd.f32 %v4282, %v4346
    %4348 = vdwg.mxu0
    %v4349 = vadd.f32 %v260, %v4302
    %v4350 = vadd.f32 %v263, %v4305
    %v4351 = vadd.f32 %v266, %v4308
    %v4352 = vadd.f32 %v269, %v4311
    %v4353 = vadd.f32 %v272, %v4314
    %v4354 = vadd.f32 %v275, %v4317
    %v4355 = vadd.f32 %v278, %v4320
    %v4356 = vadd.f32 %v281, %v4323
    %v4357 = vadd.f32 %v284, %v4326
    %v4358 = vadd.f32 %v287, %v4329
    %v4359 = vadd.f32 %v290, %v4332
    %v4360 = vadd.f32 %v293, %v4335
    %v4361 = vadd.f32 %v296, %v4338
    %v4362 = vadd.f32 %v299, %v4341
    %v4363 = vadd.f32 %v302, %v4344
    %v4364 = vadd.f32 %v305, %v4347
    %v4365 = vld [vmem:[%s7] sm:$0xff]
    %v4366 = vld [vmem:[%s7 + $0x8] sm:$0xff]
    %v4367 = vld [vmem:[%s7 + $0x10] sm:$0xff]
    %v4368 = vld [vmem:[%s7 + $0x18] sm:$0xff]
    %v4369 = vld [vmem:[%s7 + $0x20] sm:$0xff]
    %v4370 = vld [vmem:[%s7 + $0x28] sm:$0xff]
    %v4371 = vld [vmem:[%s7 + $0x30] sm:$0xff]
    %v4372 = vld [vmem:[%s7 + $0x38] sm:$0xff]
    %v4373 = vld [vmem:[%s7 + $0x40] sm:$0xff]
    %v4374 = vld [vmem:[%s7 + $0x48] sm:$0xff]
    %v4375 = vld [vmem:[%s7 + $0x50] sm:$0xff]
    %v4376 = vld [vmem:[%s7 + $0x58] sm:$0xff]
    %v4377 = vld [vmem:[%s7 + $0x60] sm:$0xff]
    %v4378 = vld [vmem:[%s7 + $0x68] sm:$0xff]
    %v4379 = vld [vmem:[%s7 + $0x70] sm:$0xff]
    %v4380 = vld [vmem:[%s7 + $0x78] sm:$0xff]
    %v4381 = vld [vmem:[%s8] sm:$0xff]
    %v4382 = vld [vmem:[%s8 + $0x8] sm:$0xff]
    %v4383 = vld [vmem:[%s8 + $0x10] sm:$0xff]
    %v4384 = vld [vmem:[%s8 + $0x18] sm:$0xff]
    %v4385 = vld [vmem:[%s8 + $0x20] sm:$0xff]
    %v4386 = vld [vmem:[%s8 + $0x28] sm:$0xff]
    %v4387 = vld [vmem:[%s8 + $0x30] sm:$0xff]
    %v4388 = vld [vmem:[%s8 + $0x38] sm:$0xff]
    %v4389 = vld [vmem:[%s8 + $0x40] sm:$0xff]
    %v4390 = vld [vmem:[%s8 + $0x48] sm:$0xff]
    %v4391 = vld [vmem:[%s8 + $0x50] sm:$0xff]
    %v4392 = vld [vmem:[%s8 + $0x58] sm:$0xff]
    %v4393 = vld [vmem:[%s8 + $0x60] sm:$0xff]
    %v4394 = vld [vmem:[%s8 + $0x68] sm:$0xff]
    %v4395 = vld [vmem:[%s8 + $0x70] sm:$0xff]
    %v4396 = vld [vmem:[%s8 + $0x78] sm:$0xff]
    %v4397 = vsel %vm1220, %v4349, 0.0
    %v4398 = vsel %vm1220, %v4351, 0.0
    %v4399 = vadd.f32 %v4397, %v4398
    %v4400 = vsel %vm1220, %v4353, 0.0
    %v4401 = vadd.f32 %v4399, %v4400
    %v4402 = vsel %vm1220, %v4355, 0.0
    %v4403 = vadd.f32 %v4401, %v4402
    %v4404 = vsel %vm1220, %v4357, 0.0
    %v4405 = vadd.f32 %v4403, %v4404
    %v4406 = vsel %vm1220, %v4359, 0.0
    %v4407 = vadd.f32 %v4405, %v4406
    %v4408 = vsel %vm1220, %v4361, 0.0
    %v4409 = vadd.f32 %v4407, %v4408
    %v4410 = vsel %vm1220, %v4363, 0.0
    %v4411 = vadd.f32 %v4409, %v4410
    %v4412 = vsel %vm1220, %v4350, 0.0
    %v4413 = vsel %vm1220, %v4352, 0.0
    %v4414 = vadd.f32 %v4412, %v4413
    %v4415 = vsel %vm1220, %v4354, 0.0
    %v4416 = vadd.f32 %v4414, %v4415
    %v4417 = vsel %vm1220, %v4356, 0.0
    %v4418 = vadd.f32 %v4416, %v4417
    %v4419 = vsel %vm1220, %v4358, 0.0
    %v4420 = vadd.f32 %v4418, %v4419
    %v4421 = vsel %vm1220, %v4360, 0.0
    %v4422 = vadd.f32 %v4420, %v4421
    %v4423 = vsel %vm1220, %v4362, 0.0
    %v4424 = vadd.f32 %v4422, %v4423
    %v4425 = vsel %vm1220, %v4364, 0.0
    %v4426 = vadd.f32 %v4424, %v4425
    %v4427 = vrcp.pop 8.0
    %v4428 = vmul.f32 8.0, %v4427
    %v4429 = vsub.f32 1.0, %v4428
    %v4430 = vmul.f32 %v4427, %v4429
    %v4431 = vadd.f32 %v4427, %v4430
    %vm4432 = vweird.f32 %v4427
    %v4433 = vsel %vm4432, %v4427, %v4431
    %v4434 = vmul.f32 %v4411, %v4433
    %v4435 = vmul.f32 %v4426, %v4433
    %v4436 = vsub.f32 %v4349, %v4434
    %v4437 = vsub.f32 %v4350, %v4435
    %v4438 = vsub.f32 %v4351, %v4434
    %v4439 = vsub.f32 %v4352, %v4435
    %v4440 = vsub.f32 %v4353, %v4434
    %v4441 = vsub.f32 %v4354, %v4435
    %v4442 = vsub.f32 %v4355, %v4434
    %v4443 = vsub.f32 %v4356, %v4435
    %v4444 = vsub.f32 %v4357, %v4434
    %v4445 = vsub.f32 %v4358, %v4435
    %v4446 = vsub.f32 %v4359, %v4434
    %v4447 = vsub.f32 %v4360, %v4435
    %v4448 = vsub.f32 %v4361, %v4434
    %v4449 = vsub.f32 %v4362, %v4435
    %v4450 = vsub.f32 %v4363, %v4434
    %v4451 = vsub.f32 %v4364, %v4435
    %v4452 = vmul.f32 %v4436, %v4436
    %v4453 = vmul.f32 %v4437, %v4437
    %v4454 = vmul.f32 %v4438, %v4438
    %v4455 = vmul.f32 %v4439, %v4439
    %v4456 = vmul.f32 %v4440, %v4440
    %v4457 = vmul.f32 %v4441, %v4441
    %v4458 = vmul.f32 %v4442, %v4442
    %v4459 = vmul.f32 %v4443, %v4443
    %v4460 = vmul.f32 %v4444, %v4444
    %v4461 = vmul.f32 %v4445, %v4445
    %v4462 = vmul.f32 %v4446, %v4446
    %v4463 = vmul.f32 %v4447, %v4447
    %v4464 = vmul.f32 %v4448, %v4448
    %v4465 = vmul.f32 %v4449, %v4449
    %v4466 = vmul.f32 %v4450, %v4450
    %v4467 = vmul.f32 %v4451, %v4451
    %v4468 = vsel %vm1220, %v4452, 0.0
    %v4469 = vsel %vm1220, %v4454, 0.0
    %v4470 = vadd.f32 %v4468, %v4469
    %v4471 = vsel %vm1220, %v4456, 0.0
    %v4472 = vadd.f32 %v4470, %v4471
    %v4473 = vsel %vm1220, %v4458, 0.0
    %v4474 = vadd.f32 %v4472, %v4473
    %v4475 = vsel %vm1220, %v4460, 0.0
    %v4476 = vadd.f32 %v4474, %v4475
    %v4477 = vsel %vm1220, %v4462, 0.0
    %v4478 = vadd.f32 %v4476, %v4477
    %v4479 = vsel %vm1220, %v4464, 0.0
    %v4480 = vadd.f32 %v4478, %v4479
    %v4481 = vsel %vm1220, %v4466, 0.0
    %v4482 = vadd.f32 %v4480, %v4481
    %v4483 = vsel %vm1220, %v4453, 0.0
    %v4484 = vsel %vm1220, %v4455, 0.0
    %v4485 = vadd.f32 %v4483, %v4484
    %v4486 = vsel %vm1220, %v4457, 0.0
    %v4487 = vadd.f32 %v4485, %v4486
    %v4488 = vsel %vm1220, %v4459, 0.0
    %v4489 = vadd.f32 %v4487, %v4488
    %v4490 = vsel %vm1220, %v4461, 0.0
    %v4491 = vadd.f32 %v4489, %v4490
    %v4492 = vsel %vm1220, %v4463, 0.0
    %v4493 = vadd.f32 %v4491, %v4492
    %v4494 = vsel %vm1220, %v4465, 0.0
    %v4495 = vadd.f32 %v4493, %v4494
    %v4496 = vsel %vm1220, %v4467, 0.0
    %v4497 = vadd.f32 %v4495, %v4496
    %v4498 = vmul.f32 %v4482, %v4433
    %v4499 = vmul.f32 %v4497, %v4433
    %v4500 = vadd.f32 %v4498, 1e-05
    %v4501 = vadd.f32 %v4499, 1e-05
    %v4502 = vrsqrt.pop %v4500
    %v4503 = vmul.f32 %v4502, %v4500
    %v4504 = vmul.f32 %v4503, %v4502
    %v4505 = vmul.f32 0.5, %v4504
    %v4506 = vsub.f32 1.5, %v4505
    %v4507 = vmul.f32 %v4502, %v4506
    %vm4508 = vweird.f32 %v4500
    %vm4509 = vweird.f32 %v4502
    %vm4510 = vmor %vm4508, %vm4509
    %v4511 = vsel %vm4510, %v4502, %v4507
    %v4512 = vrsqrt.pop %v4501
    %v4513 = vmul.f32 %v4512, %v4501
    %v4514 = vmul.f32 %v4513, %v4512
    %v4515 = vmul.f32 0.5, %v4514
    %v4516 = vsub.f32 1.5, %v4515
    %v4517 = vmul.f32 %v4512, %v4516
    %vm4518 = vweird.f32 %v4501
    %vm4519 = vweird.f32 %v4512
    %vm4520 = vmor %vm4518, %vm4519
    %v4521 = vsel %vm4520, %v4512, %v4517
    %v4522 = vmul.f32 %v4436, %v4511
    %v4523 = vmul.f32 %v4437, %v4521
    %v4524 = vmul.f32 %v4438, %v4511
    %v4525 = vmul.f32 %v4439, %v4521
    %v4526 = vmul.f32 %v4440, %v4511
    %v4527 = vmul.f32 %v4441, %v4521
    %v4528 = vmul.f32 %v4442, %v4511
    %v4529 = vmul.f32 %v4443, %v4521
    %v4530 = vmul.f32 %v4444, %v4511
    %v4531 = vmul.f32 %v4445, %v4521
    %v4532 = vmul.f32 %v4446, %v4511
    %v4533 = vmul.f32 %v4447, %v4521
    %v4534 = vmul.f32 %v4448, %v4511
    %v4535 = vmul.f32 %v4449, %v4521
    %v4536 = vmul.f32 %v4450, %v4511
    %v4537 = vmul.f32 %v4451, %v4521
    %4539 = vset.pattern.permute.xlu0 0
    %4540 = vperm.xlu0 %4539, %v4365
    %v4541 = vpop.permute.xlu0 %4540
    %4544 = vset.pattern.permute.xlu0 0
    %4545 = vperm.xlu0 %4544, %v4366
    %v4546 = vpop.permute.xlu0 %4545
    %4549 = vset.pattern.permute.xlu0 0
    %4550 = vperm.xlu0 %4549, %v4367
    %v4551 = vpop.permute.xlu0 %4550
    %4554 = vset.pattern.permute.xlu0 0
    %4555 = vperm.xlu0 %4554, %v4368
    %v4556 = vpop.permute.xlu0 %4555
    %4559 = vset.pattern.permute.xlu0 0
    %4560 = vperm.xlu0 %4559, %v4369
    %v4561 = vpop.permute.xlu0 %4560
    %4564 = vset.pattern.permute.xlu0 0
    %4565 = vperm.xlu0 %4564, %v4370
    %v4566 = vpop.permute.xlu0 %4565
    %4569 = vset.pattern.permute.xlu0 0
    %4570 = vperm.xlu0 %4569, %v4371
    %v4571 = vpop.permute.xlu0 %4570
    %4574 = vset.pattern.permute.xlu0 0
    %4575 = vperm.xlu0 %4574, %v4372
    %v4576 = vpop.permute.xlu0 %4575
    %4579 = vset.pattern.permute.xlu0 0
    %4580 = vperm.xlu0 %4579, %v4373
    %v4581 = vpop.permute.xlu0 %4580
    %4584 = vset.pattern.permute.xlu0 0
    %4585 = vperm.xlu0 %4584, %v4374
    %v4586 = vpop.permute.xlu0 %4585
    %4589 = vset.pattern.permute.xlu0 0
    %4590 = vperm.xlu0 %4589, %v4375
    %v4591 = vpop.permute.xlu0 %4590
    %4594 = vset.pattern.permute.xlu0 0
    %4595 = vperm.xlu0 %4594, %v4376
    %v4596 = vpop.permute.xlu0 %4595
    %4599 = vset.pattern.permute.xlu0 0
    %4600 = vperm.xlu0 %4599, %v4377
    %v4601 = vpop.permute.xlu0 %4600
    %4604 = vset.pattern.permute.xlu0 0
    %4605 = vperm.xlu0 %4604, %v4378
    %v4606 = vpop.permute.xlu0 %4605
    %4609 = vset.pattern.permute.xlu0 0
    %4610 = vperm.xlu0 %4609, %v4379
    %v4611 = vpop.permute.xlu0 %4610
    %4614 = vset.pattern.permute.xlu0 0
    %4615 = vperm.xlu0 %4614, %v4380
    %v4616 = vpop.permute.xlu0 %4615
    %v4618 = vmul.f32 %v4522, %v4541
    %v4619 = vmul.f32 %v4523, %v4546
    %v4620 = vmul.f32 %v4524, %v4551
    %v4621 = vmul.f32 %v4525, %v4556
    %v4622 = vmul.f32 %v4526, %v4561
    %v4623 = vmul.f32 %v4527, %v4566
    %v4624 = vmul.f32 %v4528, %v4571
    %v4625 = vmul.f32 %v4529, %v4576
    %v4626 = vmul.f32 %v4530, %v4581
    %v4627 = vmul.f32 %v4531, %v4586
    %v4628 = vmul.f32 %v4532, %v4591
    %v4629 = vmul.f32 %v4533, %v4596
    %v4630 = vmul.f32 %v4534, %v4601
    %v4631 = vmul.f32 %v4535, %v4606
    %v4632 = vmul.f32 %v4536, %v4611
    %v4633 = vmul.f32 %v4537, %v4616
    %4635 = vset.pattern.permute.xlu0 0
    %4636 = vperm.xlu0 %4635, %v4381
    %v4637 = vpop.permute.xlu0 %4636
    %4640 = vset.pattern.permute.xlu0 0
    %4641 = vperm.xlu0 %4640, %v4382
    %v4642 = vpop.permute.xlu0 %4641
    %4645 = vset.pattern.permute.xlu0 0
    %4646 = vperm.xlu0 %4645, %v4383
    %v4647 = vpop.permute.xlu0 %4646
    %4650 = vset.pattern.permute.xlu0 0
    %4651 = vperm.xlu0 %4650, %v4384
    %v4652 = vpop.permute.xlu0 %4651
    %4655 = vset.pattern.permute.xlu0 0
    %4656 = vperm.xlu0 %4655, %v4385
    %v4657 = vpop.permute.xlu0 %4656
    %4660 = vset.pattern.permute.xlu0 0
    %4661 = vperm.xlu0 %4660, %v4386
    %v4662 = vpop.permute.xlu0 %4661
    %4665 = vset.pattern.permute.xlu0 0
    %4666 = vperm.xlu0 %4665, %v4387
    %v4667 = vpop.permute.xlu0 %4666
    %4670 = vset.pattern.permute.xlu0 0
    %4671 = vperm.xlu0 %4670, %v4388
    %v4672 = vpop.permute.xlu0 %4671
    %4675 = vset.pattern.permute.xlu0 0
    %4676 = vperm.xlu0 %4675, %v4389
    %v4677 = vpop.permute.xlu0 %4676
    %4680 = vset.pattern.permute.xlu0 0
    %4681 = vperm.xlu0 %4680, %v4390
    %v4682 = vpop.permute.xlu0 %4681
    %4685 = vset.pattern.permute.xlu0 0
    %4686 = vperm.xlu0 %4685, %v4391
    %v4687 = vpop.permute.xlu0 %4686
    %4690 = vset.pattern.permute.xlu0 0
    %4691 = vperm.xlu0 %4690, %v4392
    %v4692 = vpop.permute.xlu0 %4691
    %4695 = vset.pattern.permute.xlu0 0
    %4696 = vperm.xlu0 %4695, %v4393
    %v4697 = vpop.permute.xlu0 %4696
    %4700 = vset.pattern.permute.xlu0 0
    %4701 = vperm.xlu0 %4700, %v4394
    %v4702 = vpop.permute.xlu0 %4701
    %4705 = vset.pattern.permute.xlu0 0
    %4706 = vperm.xlu0 %4705, %v4395
    %v4707 = vpop.permute.xlu0 %4706
    %4710 = vset.pattern.permute.xlu0 0
    %4711 = vperm.xlu0 %4710, %v4396
    %v4712 = vpop.permute.xlu0 %4711
    %v4714 = vadd.f32 %v4618, %v4637
    %v4715 = vadd.f32 %v4619, %v4642
    %v4716 = vadd.f32 %v4620, %v4647
    %v4717 = vadd.f32 %v4621, %v4652
    %v4718 = vadd.f32 %v4622, %v4657
    %v4719 = vadd.f32 %v4623, %v4662
    %v4720 = vadd.f32 %v4624, %v4667
    %v4721 = vadd.f32 %v4625, %v4672
    %v4722 = vadd.f32 %v4626, %v4677
    %v4723 = vadd.f32 %v4627, %v4682
    %v4724 = vadd.f32 %v4628, %v4687
    %v4725 = vadd.f32 %v4629, %v4692
    %v4726 = vadd.f32 %v4630, %v4697
    %v4727 = vadd.f32 %v4631, %v4702
    %v4728 = vadd.f32 %v4632, %v4707
    %v4729 = vadd.f32 %v4633, %v4712
    %v4730 = vld [vmem:[%s9] sm:$0xff]
    %v4731 = vld [vmem:[%s9 + $0x8] sm:$0xff]
    %v4732 = vld [vmem:[%s9 + $0x10] sm:$0xff]
    %v4733 = vld [vmem:[%s9 + $0x18] sm:$0xff]
    %v4734 = vld [vmem:[%s9 + $0x20] sm:$0xff]
    %v4735 = vld [vmem:[%s9 + $0x28] sm:$0xff]
    %v4736 = vld [vmem:[%s9 + $0x30] sm:$0xff]
    %v4737 = vld [vmem:[%s9 + $0x38] sm:$0xff]
    %v4738 = vld [vmem:[%s9 + $0x40] sm:$0xff]
    %v4739 = vld [vmem:[%s9 + $0x48] sm:$0xff]
    %v4740 = vld [vmem:[%s9 + $0x50] sm:$0xff]
    %v4741 = vld [vmem:[%s9 + $0x58] sm:$0xff]
    %v4742 = vld [vmem:[%s9 + $0x60] sm:$0xff]
    %v4743 = vld [vmem:[%s9 + $0x68] sm:$0xff]
    %v4744 = vld [vmem:[%s9 + $0x70] sm:$0xff]
    %v4745 = vld [vmem:[%s9 + $0x78] sm:$0xff]
    %v4746 = vld [vmem:[%s9 + $0x80] sm:$0xff]
    %v4747 = vld [vmem:[%s9 + $0x88] sm:$0xff]
    %v4748 = vld [vmem:[%s9 + $0x90] sm:$0xff]
    %v4749 = vld [vmem:[%s9 + $0x98] sm:$0xff]
    %v4750 = vld [vmem:[%s9 + $0xa0] sm:$0xff]
    %v4751 = vld [vmem:[%s9 + $0xa8] sm:$0xff]
    %v4752 = vld [vmem:[%s9 + $0xb0] sm:$0xff]
    %v4753 = vld [vmem:[%s9 + $0xb8] sm:$0xff]
    %v4754 = vld [vmem:[%s9 + $0xc0] sm:$0xff]
    %v4755 = vld [vmem:[%s9 + $0xc8] sm:$0xff]
    %v4756 = vld [vmem:[%s9 + $0xd0] sm:$0xff]
    %v4757 = vld [vmem:[%s9 + $0xd8] sm:$0xff]
    %v4758 = vld [vmem:[%s9 + $0xe0] sm:$0xff]
    %v4759 = vld [vmem:[%s9 + $0xe8] sm:$0xff]
    %v4760 = vld [vmem:[%s9 + $0xf0] sm:$0xff]
    %v4761 = vld [vmem:[%s9 + $0xf8] sm:$0xff]
    %v4762 = vld [vmem:[%s9 + $0x100] sm:$0xff]
    %v4763 = vld [vmem:[%s9 + $0x108] sm:$0xff]
    %v4764 = vld [vmem:[%s9 + $0x110] sm:$0xff]
    %v4765 = vld [vmem:[%s9 + $0x118] sm:$0xff]
    %v4766 = vld [vmem:[%s9 + $0x120] sm:$0xff]
    %v4767 = vld [vmem:[%s9 + $0x128] sm:$0xff]
    %v4768 = vld [vmem:[%s9 + $0x130] sm:$0xff]
    %v4769 = vld [vmem:[%s9 + $0x138] sm:$0xff]
    %v4770 = vld [vmem:[%s9 + $0x140] sm:$0xff]
    %v4771 = vld [vmem:[%s9 + $0x148] sm:$0xff]
    %v4772 = vld [vmem:[%s9 + $0x150] sm:$0xff]
    %v4773 = vld [vmem:[%s9 + $0x158] sm:$0xff]
    %v4774 = vld [vmem:[%s9 + $0x160] sm:$0xff]
    %v4775 = vld [vmem:[%s9 + $0x168] sm:$0xff]
    %v4776 = vld [vmem:[%s9 + $0x170] sm:$0xff]
    %v4777 = vld [vmem:[%s9 + $0x178] sm:$0xff]
    %v4778 = vld [vmem:[%s9 + $0x180] sm:$0xff]
    %v4779 = vld [vmem:[%s9 + $0x188] sm:$0xff]
    %v4780 = vld [vmem:[%s9 + $0x190] sm:$0xff]
    %v4781 = vld [vmem:[%s9 + $0x198] sm:$0xff]
    %v4782 = vld [vmem:[%s9 + $0x1a0] sm:$0xff]
    %v4783 = vld [vmem:[%s9 + $0x1a8] sm:$0xff]
    %v4784 = vld [vmem:[%s9 + $0x1b0] sm:$0xff]
    %v4785 = vld [vmem:[%s9 + $0x1b8] sm:$0xff]
    %v4786 = vld [vmem:[%s9 + $0x1c0] sm:$0xff]
    %v4787 = vld [vmem:[%s9 + $0x1c8] sm:$0xff]
    %v4788 = vld [vmem:[%s9 + $0x1d0] sm:$0xff]
    %v4789 = vld [vmem:[%s9 + $0x1d8] sm:$0xff]
    %v4790 = vld [vmem:[%s9 + $0x1e0] sm:$0xff]
    %v4791 = vld [vmem:[%s9 + $0x1e8] sm:$0xff]
    %v4792 = vld [vmem:[%s9 + $0x1f0] sm:$0xff]
    %v4793 = vld [vmem:[%s9 + $0x1f8] sm:$0xff]
    %v4794 = vld [vmem:[%s10] sm:$0xff]
    %v4795 = vld [vmem:[%s10 + $0x8] sm:$0xff]
    %v4796 = vld [vmem:[%s10 + $0x10] sm:$0xff]
    %v4797 = vld [vmem:[%s10 + $0x18] sm:$0xff]
    %v4798 = vld [vmem:[%s10 + $0x20] sm:$0xff]
    %v4799 = vld [vmem:[%s10 + $0x28] sm:$0xff]
    %v4800 = vld [vmem:[%s10 + $0x30] sm:$0xff]
    %v4801 = vld [vmem:[%s10 + $0x38] sm:$0xff]
    %v4802 = vld [vmem:[%s10 + $0x40] sm:$0xff]
    %v4803 = vld [vmem:[%s10 + $0x48] sm:$0xff]
    %v4804 = vld [vmem:[%s10 + $0x50] sm:$0xff]
    %v4805 = vld [vmem:[%s10 + $0x58] sm:$0xff]
    %v4806 = vld [vmem:[%s10 + $0x60] sm:$0xff]
    %v4807 = vld [vmem:[%s10 + $0x68] sm:$0xff]
    %v4808 = vld [vmem:[%s10 + $0x70] sm:$0xff]
    %v4809 = vld [vmem:[%s10 + $0x78] sm:$0xff]
    %v4810 = vld [vmem:[%s10 + $0x80] sm:$0xff]
    %v4811 = vld [vmem:[%s10 + $0x88] sm:$0xff]
    %v4812 = vld [vmem:[%s10 + $0x90] sm:$0xff]
    %v4813 = vld [vmem:[%s10 + $0x98] sm:$0xff]
    %v4814 = vld [vmem:[%s10 + $0xa0] sm:$0xff]
    %v4815 = vld [vmem:[%s10 + $0xa8] sm:$0xff]
    %v4816 = vld [vmem:[%s10 + $0xb0] sm:$0xff]
    %v4817 = vld [vmem:[%s10 + $0xb8] sm:$0xff]
    %v4818 = vld [vmem:[%s10 + $0xc0] sm:$0xff]
    %v4819 = vld [vmem:[%s10 + $0xc8] sm:$0xff]
    %v4820 = vld [vmem:[%s10 + $0xd0] sm:$0xff]
    %v4821 = vld [vmem:[%s10 + $0xd8] sm:$0xff]
    %v4822 = vld [vmem:[%s10 + $0xe0] sm:$0xff]
    %v4823 = vld [vmem:[%s10 + $0xe8] sm:$0xff]
    %v4824 = vld [vmem:[%s10 + $0xf0] sm:$0xff]
    %v4825 = vld [vmem:[%s10 + $0xf8] sm:$0xff]
    %v4826 = vld [vmem:[%s10 + $0x100] sm:$0xff]
    %v4827 = vld [vmem:[%s10 + $0x108] sm:$0xff]
    %v4828 = vld [vmem:[%s10 + $0x110] sm:$0xff]
    %v4829 = vld [vmem:[%s10 + $0x118] sm:$0xff]
    %v4830 = vld [vmem:[%s10 + $0x120] sm:$0xff]
    %v4831 = vld [vmem:[%s10 + $0x128] sm:$0xff]
    %v4832 = vld [vmem:[%s10 + $0x130] sm:$0xff]
    %v4833 = vld [vmem:[%s10 + $0x138] sm:$0xff]
    %v4834 = vld [vmem:[%s10 + $0x140] sm:$0xff]
    %v4835 = vld [vmem:[%s10 + $0x148] sm:$0xff]
    %v4836 = vld [vmem:[%s10 + $0x150] sm:$0xff]
    %v4837 = vld [vmem:[%s10 + $0x158] sm:$0xff]
    %v4838 = vld [vmem:[%s10 + $0x160] sm:$0xff]
    %v4839 = vld [vmem:[%s10 + $0x168] sm:$0xff]
    %v4840 = vld [vmem:[%s10 + $0x170] sm:$0xff]
    %v4841 = vld [vmem:[%s10 + $0x178] sm:$0xff]
    %v4842 = vld [vmem:[%s10 + $0x180] sm:$0xff]
    %v4843 = vld [vmem:[%s10 + $0x188] sm:$0xff]
    %v4844 = vld [vmem:[%s10 + $0x190] sm:$0xff]
    %v4845 = vld [vmem:[%s10 + $0x198] sm:$0xff]
    %v4846 = vld [vmem:[%s10 + $0x1a0] sm:$0xff]
    %v4847 = vld [vmem:[%s10 + $0x1a8] sm:$0xff]
    %v4848 = vld [vmem:[%s10 + $0x1b0] sm:$0xff]
    %v4849 = vld [vmem:[%s10 + $0x1b8] sm:$0xff]
    %v4850 = vld [vmem:[%s10 + $0x1c0] sm:$0xff]
    %v4851 = vld [vmem:[%s10 + $0x1c8] sm:$0xff]
    %v4852 = vld [vmem:[%s10 + $0x1d0] sm:$0xff]
    %v4853 = vld [vmem:[%s10 + $0x1d8] sm:$0xff]
    %v4854 = vld [vmem:[%s10 + $0x1e0] sm:$0xff]
    %v4855 = vld [vmem:[%s10 + $0x1e8] sm:$0xff]
    %v4856 = vld [vmem:[%s10 + $0x1f0] sm:$0xff]
    %v4857 = vld [vmem:[%s10 + $0x1f8] sm:$0xff]
    %4859 = vset.pattern.permute.xlu0 0
    %4860 = vperm.xlu0 %4859, %v4794
    %v4861 = vpop.permute.xlu0 %4860
    %4864 = vset.pattern.permute.xlu0 0
    %4865 = vperm.xlu0 %4864, %v4795
    %v4866 = vpop.permute.xlu0 %4865
    %4869 = vset.pattern.permute.xlu0 0
    %4870 = vperm.xlu0 %4869, %v4796
    %v4871 = vpop.permute.xlu0 %4870
    %4874 = vset.pattern.permute.xlu0 0
    %4875 = vperm.xlu0 %4874, %v4797
    %v4876 = vpop.permute.xlu0 %4875
    %4879 = vset.pattern.permute.xlu0 0
    %4880 = vperm.xlu0 %4879, %v4798
    %v4881 = vpop.permute.xlu0 %4880
    %4884 = vset.pattern.permute.xlu0 0
    %4885 = vperm.xlu0 %4884, %v4799
    %v4886 = vpop.permute.xlu0 %4885
    %4889 = vset.pattern.permute.xlu0 0
    %4890 = vperm.xlu0 %4889, %v4800
    %v4891 = vpop.permute.xlu0 %4890
    %4894 = vset.pattern.permute.xlu0 0
    %4895 = vperm.xlu0 %4894, %v4801
    %v4896 = vpop.permute.xlu0 %4895
    %4899 = vset.pattern.permute.xlu0 0
    %4900 = vperm.xlu0 %4899, %v4802
    %v4901 = vpop.permute.xlu0 %4900
    %4904 = vset.pattern.permute.xlu0 0
    %4905 = vperm.xlu0 %4904, %v4803
    %v4906 = vpop.permute.xlu0 %4905
    %4909 = vset.pattern.permute.xlu0 0
    %4910 = vperm.xlu0 %4909, %v4804
    %v4911 = vpop.permute.xlu0 %4910
    %4914 = vset.pattern.permute.xlu0 0
    %4915 = vperm.xlu0 %4914, %v4805
    %v4916 = vpop.permute.xlu0 %4915
    %4919 = vset.pattern.permute.xlu0 0
    %4920 = vperm.xlu0 %4919, %v4806
    %v4921 = vpop.permute.xlu0 %4920
    %4924 = vset.pattern.permute.xlu0 0
    %4925 = vperm.xlu0 %4924, %v4807
    %v4926 = vpop.permute.xlu0 %4925
    %4929 = vset.pattern.permute.xlu0 0
    %4930 = vperm.xlu0 %4929, %v4808
    %v4931 = vpop.permute.xlu0 %4930
    %4934 = vset.pattern.permute.xlu0 0
    %4935 = vperm.xlu0 %4934, %v4809
    %v4936 = vpop.permute.xlu0 %4935
    %4939 = vset.pattern.permute.xlu0 0
    %4940 = vperm.xlu0 %4939, %v4810
    %v4941 = vpop.permute.xlu0 %4940
    %4944 = vset.pattern.permute.xlu0 0
    %4945 = vperm.xlu0 %4944, %v4811
    %v4946 = vpop.permute.xlu0 %4945
    %4949 = vset.pattern.permute.xlu0 0
    %4950 = vperm.xlu0 %4949, %v4812
    %v4951 = vpop.permute.xlu0 %4950
    %4954 = vset.pattern.permute.xlu0 0
    %4955 = vperm.xlu0 %4954, %v4813
    %v4956 = vpop.permute.xlu0 %4955
    %4959 = vset.pattern.permute.xlu0 0
    %4960 = vperm.xlu0 %4959, %v4814
    %v4961 = vpop.permute.xlu0 %4960
    %4964 = vset.pattern.permute.xlu0 0
    %4965 = vperm.xlu0 %4964, %v4815
    %v4966 = vpop.permute.xlu0 %4965
    %4969 = vset.pattern.permute.xlu0 0
    %4970 = vperm.xlu0 %4969, %v4816
    %v4971 = vpop.permute.xlu0 %4970
    %4974 = vset.pattern.permute.xlu0 0
    %4975 = vperm.xlu0 %4974, %v4817
    %v4976 = vpop.permute.xlu0 %4975
    %4979 = vset.pattern.permute.xlu0 0
    %4980 = vperm.xlu0 %4979, %v4818
    %v4981 = vpop.permute.xlu0 %4980
    %4984 = vset.pattern.permute.xlu0 0
    %4985 = vperm.xlu0 %4984, %v4819
    %v4986 = vpop.permute.xlu0 %4985
    %4989 = vset.pattern.permute.xlu0 0
    %4990 = vperm.xlu0 %4989, %v4820
    %v4991 = vpop.permute.xlu0 %4990
    %4994 = vset.pattern.permute.xlu0 0
    %4995 = vperm.xlu0 %4994, %v4821
    %v4996 = vpop.permute.xlu0 %4995
    %4999 = vset.pattern.permute.xlu0 0
    %5000 = vperm.xlu0 %4999, %v4822
    %v5001 = vpop.permute.xlu0 %5000
    %5004 = vset.pattern.permute.xlu0 0
    %5005 = vperm.xlu0 %5004, %v4823
    %v5006 = vpop.permute.xlu0 %5005
    %5009 = vset.pattern.permute.xlu0 0
    %5010 = vperm.xlu0 %5009, %v4824
    %v5011 = vpop.permute.xlu0 %5010
    %5014 = vset.pattern.permute.xlu0 0
    %5015 = vperm.xlu0 %5014, %v4825
    %v5016 = vpop.permute.xlu0 %5015
    %5019 = vset.pattern.permute.xlu0 0
    %5020 = vperm.xlu0 %5019, %v4826
    %v5021 = vpop.permute.xlu0 %5020
    %5024 = vset.pattern.permute.xlu0 0
    %5025 = vperm.xlu0 %5024, %v4827
    %v5026 = vpop.permute.xlu0 %5025
    %5029 = vset.pattern.permute.xlu0 0
    %5030 = vperm.xlu0 %5029, %v4828
    %v5031 = vpop.permute.xlu0 %5030
    %5034 = vset.pattern.permute.xlu0 0
    %5035 = vperm.xlu0 %5034, %v4829
    %v5036 = vpop.permute.xlu0 %5035
    %5039 = vset.pattern.permute.xlu0 0
    %5040 = vperm.xlu0 %5039, %v4830
    %v5041 = vpop.permute.xlu0 %5040
    %5044 = vset.pattern.permute.xlu0 0
    %5045 = vperm.xlu0 %5044, %v4831
    %v5046 = vpop.permute.xlu0 %5045
    %5049 = vset.pattern.permute.xlu0 0
    %5050 = vperm.xlu0 %5049, %v4832
    %v5051 = vpop.permute.xlu0 %5050
    %5054 = vset.pattern.permute.xlu0 0
    %5055 = vperm.xlu0 %5054, %v4833
    %v5056 = vpop.permute.xlu0 %5055
    %5059 = vset.pattern.permute.xlu0 0
    %5060 = vperm.xlu0 %5059, %v4834
    %v5061 = vpop.permute.xlu0 %5060
    %5064 = vset.pattern.permute.xlu0 0
    %5065 = vperm.xlu0 %5064, %v4835
    %v5066 = vpop.permute.xlu0 %5065
    %5069 = vset.pattern.permute.xlu0 0
    %5070 = vperm.xlu0 %5069, %v4836
    %v5071 = vpop.permute.xlu0 %5070
    %5074 = vset.pattern.permute.xlu0 0
    %5075 = vperm.xlu0 %5074, %v4837
    %v5076 = vpop.permute.xlu0 %5075
    %5079 = vset.pattern.permute.xlu0 0
    %5080 = vperm.xlu0 %5079, %v4838
    %v5081 = vpop.permute.xlu0 %5080
    %5084 = vset.pattern.permute.xlu0 0
    %5085 = vperm.xlu0 %5084, %v4839
    %v5086 = vpop.permute.xlu0 %5085
    %5089 = vset.pattern.permute.xlu0 0
    %5090 = vperm.xlu0 %5089, %v4840
    %v5091 = vpop.permute.xlu0 %5090
    %5094 = vset.pattern.permute.xlu0 0
    %5095 = vperm.xlu0 %5094, %v4841
    %v5096 = vpop.permute.xlu0 %5095
    %5099 = vset.pattern.permute.xlu0 0
    %5100 = vperm.xlu0 %5099, %v4842
    %v5101 = vpop.permute.xlu0 %5100
    %5104 = vset.pattern.permute.xlu0 0
    %5105 = vperm.xlu0 %5104, %v4843
    %v5106 = vpop.permute.xlu0 %5105
    %5109 = vset.pattern.permute.xlu0 0
    %5110 = vperm.xlu0 %5109, %v4844
    %v5111 = vpop.permute.xlu0 %5110
    %5114 = vset.pattern.permute.xlu0 0
    %5115 = vperm.xlu0 %5114, %v4845
    %v5116 = vpop.permute.xlu0 %5115
    %5119 = vset.pattern.permute.xlu0 0
    %5120 = vperm.xlu0 %5119, %v4846
    %v5121 = vpop.permute.xlu0 %5120
    %5124 = vset.pattern.permute.xlu0 0
    %5125 = vperm.xlu0 %5124, %v4847
    %v5126 = vpop.permute.xlu0 %5125
    %5129 = vset.pattern.permute.xlu0 0
    %5130 = vperm.xlu0 %5129, %v4848
    %v5131 = vpop.permute.xlu0 %5130
    %5134 = vset.pattern.permute.xlu0 0
    %5135 = vperm.xlu0 %5134, %v4849
    %v5136 = vpop.permute.xlu0 %5135
    %5139 = vset.pattern.permute.xlu0 0
    %5140 = vperm.xlu0 %5139, %v4850
    %v5141 = vpop.permute.xlu0 %5140
    %5144 = vset.pattern.permute.xlu0 0
    %5145 = vperm.xlu0 %5144, %v4851
    %v5146 = vpop.permute.xlu0 %5145
    %5149 = vset.pattern.permute.xlu0 0
    %5150 = vperm.xlu0 %5149, %v4852
    %v5151 = vpop.permute.xlu0 %5150
    %5154 = vset.pattern.permute.xlu0 0
    %5155 = vperm.xlu0 %5154, %v4853
    %v5156 = vpop.permute.xlu0 %5155
    %5159 = vset.pattern.permute.xlu0 0
    %5160 = vperm.xlu0 %5159, %v4854
    %v5161 = vpop.permute.xlu0 %5160
    %5164 = vset.pattern.permute.xlu0 0
    %5165 = vperm.xlu0 %5164, %v4855
    %v5166 = vpop.permute.xlu0 %5165
    %5169 = vset.pattern.permute.xlu0 0
    %5170 = vperm.xlu0 %5169, %v4856
    %v5171 = vpop.permute.xlu0 %5170
    %5174 = vset.pattern.permute.xlu0 0
    %5175 = vperm.xlu0 %5174, %v4857
    %v5176 = vpop.permute.xlu0 %5175
    %5178 = vmatpush.msra.mxu0 %v4729
    %5179 = vmatpush.msra.mxu0 %v4728
    %5180 = vmatpush.msra.mxu0 %v4727
    %5181 = vmatpush.msra.mxu0 %v4726
    %5182 = vmatpush.msra.mxu0 %v4725
    %5183 = vmatpush.msra.mxu0 %v4724
    %5184 = vmatpush.msra.mxu0 %v4723
    %5185 = vmatpush.msra.mxu0 %v4722
    %5186 = vmatpush.msra.mxu0 %v4721
    %5187 = vmatpush.msra.mxu0 %v4720
    %5188 = vmatpush.msra.mxu0 %v4719
    %5189 = vmatpush.msra.mxu0 %v4718
    %5190 = vmatpush.msra.mxu0 %v4717
    %5191 = vmatpush.msra.mxu0 %v4716
    %5192 = vmatpush.msra.mxu0 %v4715
    %5193 = vmatpush.msra.mxu0 %v4714
    %5194 = vmatmul.f32.gmra.mxu0 %v4730
    %v5195 = vpop.f32.mrf.mxu0
    %v5196 = vadd.f32 %v4861, %v5195
    %5197 = vmatmul.f32.gmra.mxu0 %v4731
    %v5198 = vpop.f32.mrf.mxu0
    %v5199 = vadd.f32 %v4866, %v5198
    %5200 = vmatmul.f32.gmra.mxu0 %v4732
    %v5201 = vpop.f32.mrf.mxu0
    %v5202 = vadd.f32 %v4871, %v5201
    %5203 = vmatmul.f32.gmra.mxu0 %v4733
    %v5204 = vpop.f32.mrf.mxu0
    %v5205 = vadd.f32 %v4876, %v5204
    %5206 = vmatmul.f32.gmra.mxu0 %v4734
    %v5207 = vpop.f32.mrf.mxu0
    %v5208 = vadd.f32 %v4881, %v5207
    %5209 = vmatmul.f32.gmra.mxu0 %v4735
    %v5210 = vpop.f32.mrf.mxu0
    %v5211 = vadd.f32 %v4886, %v5210
    %5212 = vmatmul.f32.gmra.mxu0 %v4736
    %v5213 = vpop.f32.mrf.mxu0
    %v5214 = vadd.f32 %v4891, %v5213
    %5215 = vmatmul.f32.gmra.mxu0 %v4737
    %v5216 = vpop.f32.mrf.mxu0
    %v5217 = vadd.f32 %v4896, %v5216
    %5218 = vmatmul.f32.gmra.mxu0 %v4738
    %v5219 = vpop.f32.mrf.mxu0
    %v5220 = vadd.f32 %v4901, %v5219
    %5221 = vmatmul.f32.gmra.mxu0 %v4739
    %v5222 = vpop.f32.mrf.mxu0
    %v5223 = vadd.f32 %v4906, %v5222
    %5224 = vmatmul.f32.gmra.mxu0 %v4740
    %v5225 = vpop.f32.mrf.mxu0
    %v5226 = vadd.f32 %v4911, %v5225
    %5227 = vmatmul.f32.gmra.mxu0 %v4741
    %v5228 = vpop.f32.mrf.mxu0
    %v5229 = vadd.f32 %v4916, %v5228
    %5230 = vmatmul.f32.gmra.mxu0 %v4742
    %v5231 = vpop.f32.mrf.mxu0
    %v5232 = vadd.f32 %v4921, %v5231
    %5233 = vmatmul.f32.gmra.mxu0 %v4743
    %v5234 = vpop.f32.mrf.mxu0
    %v5235 = vadd.f32 %v4926, %v5234
    %5236 = vmatmul.f32.gmra.mxu0 %v4744
    %v5237 = vpop.f32.mrf.mxu0
    %v5238 = vadd.f32 %v4931, %v5237
    %5239 = vmatmul.f32.gmra.mxu0 %v4745
    %v5240 = vpop.f32.mrf.mxu0
    %v5241 = vadd.f32 %v4936, %v5240
    %5242 = vmatmul.f32.gmra.mxu0 %v4746
    %v5243 = vpop.f32.mrf.mxu0
    %v5244 = vadd.f32 %v4941, %v5243
    %5245 = vmatmul.f32.gmra.mxu0 %v4747
    %v5246 = vpop.f32.mrf.mxu0
    %v5247 = vadd.f32 %v4946, %v5246
    %5248 = vmatmul.f32.gmra.mxu0 %v4748
    %v5249 = vpop.f32.mrf.mxu0
    %v5250 = vadd.f32 %v4951, %v5249
    %5251 = vmatmul.f32.gmra.mxu0 %v4749
    %v5252 = vpop.f32.mrf.mxu0
    %v5253 = vadd.f32 %v4956, %v5252
    %5254 = vmatmul.f32.gmra.mxu0 %v4750
    %v5255 = vpop.f32.mrf.mxu0
    %v5256 = vadd.f32 %v4961, %v5255
    %5257 = vmatmul.f32.gmra.mxu0 %v4751
    %v5258 = vpop.f32.mrf.mxu0
    %v5259 = vadd.f32 %v4966, %v5258
    %5260 = vmatmul.f32.gmra.mxu0 %v4752
    %v5261 = vpop.f32.mrf.mxu0
    %v5262 = vadd.f32 %v4971, %v5261
    %5263 = vmatmul.f32.gmra.mxu0 %v4753
    %v5264 = vpop.f32.mrf.mxu0
    %v5265 = vadd.f32 %v4976, %v5264
    %5266 = vmatmul.f32.gmra.mxu0 %v4754
    %v5267 = vpop.f32.mrf.mxu0
    %v5268 = vadd.f32 %v4981, %v5267
    %5269 = vmatmul.f32.gmra.mxu0 %v4755
    %v5270 = vpop.f32.mrf.mxu0
    %v5271 = vadd.f32 %v4986, %v5270
    %5272 = vmatmul.f32.gmra.mxu0 %v4756
    %v5273 = vpop.f32.mrf.mxu0
    %v5274 = vadd.f32 %v4991, %v5273
    %5275 = vmatmul.f32.gmra.mxu0 %v4757
    %v5276 = vpop.f32.mrf.mxu0
    %v5277 = vadd.f32 %v4996, %v5276
    %5278 = vmatmul.f32.gmra.mxu0 %v4758
    %v5279 = vpop.f32.mrf.mxu0
    %v5280 = vadd.f32 %v5001, %v5279
    %5281 = vmatmul.f32.gmra.mxu0 %v4759
    %v5282 = vpop.f32.mrf.mxu0
    %v5283 = vadd.f32 %v5006, %v5282
    %5284 = vmatmul.f32.gmra.mxu0 %v4760
    %v5285 = vpop.f32.mrf.mxu0
    %v5286 = vadd.f32 %v5011, %v5285
    %5287 = vmatmul.f32.gmra.mxu0 %v4761
    %v5288 = vpop.f32.mrf.mxu0
    %v5289 = vadd.f32 %v5016, %v5288
    %5290 = vmatmul.f32.gmra.mxu0 %v4762
    %v5291 = vpop.f32.mrf.mxu0
    %v5292 = vadd.f32 %v5021, %v5291
    %5293 = vmatmul.f32.gmra.mxu0 %v4763
    %v5294 = vpop.f32.mrf.mxu0
    %v5295 = vadd.f32 %v5026, %v5294
    %5296 = vmatmul.f32.gmra.mxu0 %v4764
    %v5297 = vpop.f32.mrf.mxu0
    %v5298 = vadd.f32 %v5031, %v5297
    %5299 = vmatmul.f32.gmra.mxu0 %v4765
    %v5300 = vpop.f32.mrf.mxu0
    %v5301 = vadd.f32 %v5036, %v5300
    %5302 = vmatmul.f32.gmra.mxu0 %v4766
    %v5303 = vpop.f32.mrf.mxu0
    %v5304 = vadd.f32 %v5041, %v5303
    %5305 = vmatmul.f32.gmra.mxu0 %v4767
    %v5306 = vpop.f32.mrf.mxu0
    %v5307 = vadd.f32 %v5046, %v5306
    %5308 = vmatmul.f32.gmra.mxu0 %v4768
    %v5309 = vpop.f32.mrf.mxu0
    %v5310 = vadd.f32 %v5051, %v5309
    %5311 = vmatmul.f32.gmra.mxu0 %v4769
    %v5312 = vpop.f32.mrf.mxu0
    %v5313 = vadd.f32 %v5056, %v5312
    %5314 = vmatmul.f32.gmra.mxu0 %v4770
    %v5315 = vpop.f32.mrf.mxu0
    %v5316 = vadd.f32 %v5061, %v5315
    %5317 = vmatmul.f32.gmra.mxu0 %v4771
    %v5318 = vpop.f32.mrf.mxu0
    %v5319 = vadd.f32 %v5066, %v5318
    %5320 = vmatmul.f32.gmra.mxu0 %v4772
    %v5321 = vpop.f32.mrf.mxu0
    %v5322 = vadd.f32 %v5071, %v5321
    %5323 = vmatmul.f32.gmra.mxu0 %v4773
    %v5324 = vpop.f32.mrf.mxu0
    %v5325 = vadd.f32 %v5076, %v5324
    %5326 = vmatmul.f32.gmra.mxu0 %v4774
    %v5327 = vpop.f32.mrf.mxu0
    %v5328 = vadd.f32 %v5081, %v5327
    %5329 = vmatmul.f32.gmra.mxu0 %v4775
    %v5330 = vpop.f32.mrf.mxu0
    %v5331 = vadd.f32 %v5086, %v5330
    %5332 = vmatmul.f32.gmra.mxu0 %v4776
    %v5333 = vpop.f32.mrf.mxu0
    %v5334 = vadd.f32 %v5091, %v5333
    %5335 = vmatmul.f32.gmra.mxu0 %v4777
    %v5336 = vpop.f32.mrf.mxu0
    %v5337 = vadd.f32 %v5096, %v5336
    %5338 = vmatmul.f32.gmra.mxu0 %v4778
    %v5339 = vpop.f32.mrf.mxu0
    %v5340 = vadd.f32 %v5101, %v5339
    %5341 = vmatmul.f32.gmra.mxu0 %v4779
    %v5342 = vpop.f32.mrf.mxu0
    %v5343 = vadd.f32 %v5106, %v5342
    %5344 = vmatmul.f32.gmra.mxu0 %v4780
    %v5345 = vpop.f32.mrf.mxu0
    %v5346 = vadd.f32 %v5111, %v5345
    %5347 = vmatmul.f32.gmra.mxu0 %v4781
    %v5348 = vpop.f32.mrf.mxu0
    %v5349 = vadd.f32 %v5116, %v5348
    %5350 = vmatmul.f32.gmra.mxu0 %v4782
    %v5351 = vpop.f32.mrf.mxu0
    %v5352 = vadd.f32 %v5121, %v5351
    %5353 = vmatmul.f32.gmra.mxu0 %v4783
    %v5354 = vpop.f32.mrf.mxu0
    %v5355 = vadd.f32 %v5126, %v5354
    %5356 = vmatmul.f32.gmra.mxu0 %v4784
    %v5357 = vpop.f32.mrf.mxu0
    %v5358 = vadd.f32 %v5131, %v5357
    %5359 = vmatmul.f32.gmra.mxu0 %v4785
    %v5360 = vpop.f32.mrf.mxu0
    %v5361 = vadd.f32 %v5136, %v5360
    %5362 = vmatmul.f32.gmra.mxu0 %v4786
    %v5363 = vpop.f32.mrf.mxu0
    %v5364 = vadd.f32 %v5141, %v5363
    %5365 = vmatmul.f32.gmra.mxu0 %v4787
    %v5366 = vpop.f32.mrf.mxu0
    %v5367 = vadd.f32 %v5146, %v5366
    %5368 = vmatmul.f32.gmra.mxu0 %v4788
    %v5369 = vpop.f32.mrf.mxu0
    %v5370 = vadd.f32 %v5151, %v5369
    %5371 = vmatmul.f32.gmra.mxu0 %v4789
    %v5372 = vpop.f32.mrf.mxu0
    %v5373 = vadd.f32 %v5156, %v5372
    %5374 = vmatmul.f32.gmra.mxu0 %v4790
    %v5375 = vpop.f32.mrf.mxu0
    %v5376 = vadd.f32 %v5161, %v5375
    %5377 = vmatmul.f32.gmra.mxu0 %v4791
    %v5378 = vpop.f32.mrf.mxu0
    %v5379 = vadd.f32 %v5166, %v5378
    %5380 = vmatmul.f32.gmra.mxu0 %v4792
    %v5381 = vpop.f32.mrf.mxu0
    %v5382 = vadd.f32 %v5171, %v5381
    %5383 = vmatmul.f32.gmra.mxu0 %v4793
    %v5384 = vpop.f32.mrf.mxu0
    %v5385 = vadd.f32 %v5176, %v5384
    %5386 = vdwg.mxu0
    %v5387 = vmax.f32 %v5196, 0.0
    %v5388 = vmax.f32 %v5199, 0.0
    %v5389 = vmax.f32 %v5202, 0.0
    %v5390 = vmax.f32 %v5205, 0.0
    %v5391 = vmax.f32 %v5208, 0.0
    %v5392 = vmax.f32 %v5211, 0.0
    %v5393 = vmax.f32 %v5214, 0.0
    %v5394 = vmax.f32 %v5217, 0.0
    %v5395 = vmax.f32 %v5220, 0.0
    %v5396 = vmax.f32 %v5223, 0.0
    %v5397 = vmax.f32 %v5226, 0.0
    %v5398 = vmax.f32 %v5229, 0.0
    %v5399 = vmax.f32 %v5232, 0.0
    %v5400 = vmax.f32 %v5235, 0.0
    %v5401 = vmax.f32 %v5238, 0.0
    %v5402 = vmax.f32 %v5241, 0.0
    %v5403 = vmax.f32 %v5244, 0.0
    %v5404 = vmax.f32 %v5247, 0.0
    %v5405 = vmax.f32 %v5250, 0.0
    %v5406 = vmax.f32 %v5253, 0.0
    %v5407 = vmax.f32 %v5256, 0.0
    %v5408 = vmax.f32 %v5259, 0.0
    %v5409 = vmax.f32 %v5262, 0.0
    %v5410 = vmax.f32 %v5265, 0.0
    %v5411 = vmax.f32 %v5268, 0.0
    %v5412 = vmax.f32 %v5271, 0.0
    %v5413 = vmax.f32 %v5274, 0.0
    %v5414 = vmax.f32 %v5277, 0.0
    %v5415 = vmax.f32 %v5280, 0.0
    %v5416 = vmax.f32 %v5283, 0.0
    %v5417 = vmax.f32 %v5286, 0.0
    %v5418 = vmax.f32 %v5289, 0.0
    %v5419 = vmax.f32 %v5292, 0.0
    %v5420 = vmax.f32 %v5295, 0.0
    %v5421 = vmax.f32 %v5298, 0.0
    %v5422 = vmax.f32 %v5301, 0.0
    %v5423 = vmax.f32 %v5304, 0.0
    %v5424 = vmax.f32 %v5307, 0.0
    %v5425 = vmax.f32 %v5310, 0.0
    %v5426 = vmax.f32 %v5313, 0.0
    %v5427 = vmax.f32 %v5316, 0.0
    %v5428 = vmax.f32 %v5319, 0.0
    %v5429 = vmax.f32 %v5322, 0.0
    %v5430 = vmax.f32 %v5325, 0.0
    %v5431 = vmax.f32 %v5328, 0.0
    %v5432 = vmax.f32 %v5331, 0.0
    %v5433 = vmax.f32 %v5334, 0.0
    %v5434 = vmax.f32 %v5337, 0.0
    %v5435 = vmax.f32 %v5340, 0.0
    %v5436 = vmax.f32 %v5343, 0.0
    %v5437 = vmax.f32 %v5346, 0.0
    %v5438 = vmax.f32 %v5349, 0.0
    %v5439 = vmax.f32 %v5352, 0.0
    %v5440 = vmax.f32 %v5355, 0.0
    %v5441 = vmax.f32 %v5358, 0.0
    %v5442 = vmax.f32 %v5361, 0.0
    %v5443 = vmax.f32 %v5364, 0.0
    %v5444 = vmax.f32 %v5367, 0.0
    %v5445 = vmax.f32 %v5370, 0.0
    %v5446 = vmax.f32 %v5373, 0.0
    %v5447 = vmax.f32 %v5376, 0.0
    %v5448 = vmax.f32 %v5379, 0.0
    %v5449 = vmax.f32 %v5382, 0.0
    %v5450 = vmax.f32 %v5385, 0.0
    %v5451 = vld [vmem:[#allocation2] sm:$0xff]
    %v5452 = vld [vmem:[#allocation2 + $0x8] sm:$0xff]
    %v5453 = vld [vmem:[#allocation2 + $0x10] sm:$0xff]
    %v5454 = vld [vmem:[#allocation2 + $0x18] sm:$0xff]
    %v5455 = vld [vmem:[#allocation2 + $0x20] sm:$0xff]
    %v5456 = vld [vmem:[#allocation2 + $0x28] sm:$0xff]
    %v5457 = vld [vmem:[#allocation2 + $0x30] sm:$0xff]
    %v5458 = vld [vmem:[#allocation2 + $0x38] sm:$0xff]
    %v5459 = vld [vmem:[#allocation2 + $0x40] sm:$0xff]
    %v5460 = vld [vmem:[#allocation2 + $0x48] sm:$0xff]
    %v5461 = vld [vmem:[#allocation2 + $0x50] sm:$0xff]
    %v5462 = vld [vmem:[#allocation2 + $0x58] sm:$0xff]
    %v5463 = vld [vmem:[#allocation2 + $0x60] sm:$0xff]
    %v5464 = vld [vmem:[#allocation2 + $0x68] sm:$0xff]
    %v5465 = vld [vmem:[#allocation2 + $0x70] sm:$0xff]
    %v5466 = vld [vmem:[#allocation2 + $0x78] sm:$0xff]
    %v5467 = vld [vmem:[#allocation2 + $0x80] sm:$0xff]
    %v5468 = vld [vmem:[#allocation2 + $0x88] sm:$0xff]
    %v5469 = vld [vmem:[#allocation2 + $0x90] sm:$0xff]
    %v5470 = vld [vmem:[#allocation2 + $0x98] sm:$0xff]
    %v5471 = vld [vmem:[#allocation2 + $0xa0] sm:$0xff]
    %v5472 = vld [vmem:[#allocation2 + $0xa8] sm:$0xff]
    %v5473 = vld [vmem:[#allocation2 + $0xb0] sm:$0xff]
    %v5474 = vld [vmem:[#allocation2 + $0xb8] sm:$0xff]
    %v5475 = vld [vmem:[#allocation2 + $0xc0] sm:$0xff]
    %v5476 = vld [vmem:[#allocation2 + $0xc8] sm:$0xff]
    %v5477 = vld [vmem:[#allocation2 + $0xd0] sm:$0xff]
    %v5478 = vld [vmem:[#allocation2 + $0xd8] sm:$0xff]
    %v5479 = vld [vmem:[#allocation2 + $0xe0] sm:$0xff]
    %v5480 = vld [vmem:[#allocation2 + $0xe8] sm:$0xff]
    %v5481 = vld [vmem:[#allocation2 + $0xf0] sm:$0xff]
    %v5482 = vld [vmem:[#allocation2 + $0xf8] sm:$0xff]
    %v5483 = vld [vmem:[#allocation2 + $0x100] sm:$0xff]
    %v5484 = vld [vmem:[#allocation2 + $0x108] sm:$0xff]
    %v5485 = vld [vmem:[#allocation2 + $0x110] sm:$0xff]
    %v5486 = vld [vmem:[#allocation2 + $0x118] sm:$0xff]
    %v5487 = vld [vmem:[#allocation2 + $0x120] sm:$0xff]
    %v5488 = vld [vmem:[#allocation2 + $0x128] sm:$0xff]
    %v5489 = vld [vmem:[#allocation2 + $0x130] sm:$0xff]
    %v5490 = vld [vmem:[#allocation2 + $0x138] sm:$0xff]
    %v5491 = vld [vmem:[#allocation2 + $0x140] sm:$0xff]
    %v5492 = vld [vmem:[#allocation2 + $0x148] sm:$0xff]
    %v5493 = vld [vmem:[#allocation2 + $0x150] sm:$0xff]
    %v5494 = vld [vmem:[#allocation2 + $0x158] sm:$0xff]
    %v5495 = vld [vmem:[#allocation2 + $0x160] sm:$0xff]
    %v5496 = vld [vmem:[#allocation2 + $0x168] sm:$0xff]
    %v5497 = vld [vmem:[#allocation2 + $0x170] sm:$0xff]
    %v5498 = vld [vmem:[#allocation2 + $0x178] sm:$0xff]
    %v5499 = vld [vmem:[#allocation2 + $0x180] sm:$0xff]
    %v5500 = vld [vmem:[#allocation2 + $0x188] sm:$0xff]
    %v5501 = vld [vmem:[#allocation2 + $0x190] sm:$0xff]
    %v5502 = vld [vmem:[#allocation2 + $0x198] sm:$0xff]
    %v5503 = vld [vmem:[#allocation2 + $0x1a0] sm:$0xff]
    %v5504 = vld [vmem:[#allocation2 + $0x1a8] sm:$0xff]
    %v5505 = vld [vmem:[#allocation2 + $0x1b0] sm:$0xff]
    %v5506 = vld [vmem:[#allocation2 + $0x1b8] sm:$0xff]
    %v5507 = vld [vmem:[#allocation2 + $0x1c0] sm:$0xff]
    %v5508 = vld [vmem:[#allocation2 + $0x1c8] sm:$0xff]
    %v5509 = vld [vmem:[#allocation2 + $0x1d0] sm:$0xff]
    %v5510 = vld [vmem:[#allocation2 + $0x1d8] sm:$0xff]
    %v5511 = vld [vmem:[#allocation2 + $0x1e0] sm:$0xff]
    %v5512 = vld [vmem:[#allocation2 + $0x1e8] sm:$0xff]
    %v5513 = vld [vmem:[#allocation2 + $0x1f0] sm:$0xff]
    %v5514 = vld [vmem:[#allocation2 + $0x1f8] sm:$0xff]
    %v5515 = vld [vmem:[%s12] sm:$0xff]
    %v5516 = vld [vmem:[%s12 + $0x8] sm:$0xff]
    %v5517 = vld [vmem:[%s12 + $0x10] sm:$0xff]
    %v5518 = vld [vmem:[%s12 + $0x18] sm:$0xff]
    %v5519 = vld [vmem:[%s12 + $0x20] sm:$0xff]
    %v5520 = vld [vmem:[%s12 + $0x28] sm:$0xff]
    %v5521 = vld [vmem:[%s12 + $0x30] sm:$0xff]
    %v5522 = vld [vmem:[%s12 + $0x38] sm:$0xff]
    %v5523 = vld [vmem:[%s12 + $0x40] sm:$0xff]
    %v5524 = vld [vmem:[%s12 + $0x48] sm:$0xff]
    %v5525 = vld [vmem:[%s12 + $0x50] sm:$0xff]
    %v5526 = vld [vmem:[%s12 + $0x58] sm:$0xff]
    %v5527 = vld [vmem:[%s12 + $0x60] sm:$0xff]
    %v5528 = vld [vmem:[%s12 + $0x68] sm:$0xff]
    %v5529 = vld [vmem:[%s12 + $0x70] sm:$0xff]
    %v5530 = vld [vmem:[%s12 + $0x78] sm:$0xff]
    %5532 = vset.pattern.permute.xlu0 0
    %5533 = vperm.xlu0 %5532, %v5515
    %v5534 = vpop.permute.xlu0 %5533
    %5537 = vset.pattern.permute.xlu0 0
    %5538 = vperm.xlu0 %5537, %v5516
    %v5539 = vpop.permute.xlu0 %5538
    %5542 = vset.pattern.permute.xlu0 0
    %5543 = vperm.xlu0 %5542, %v5517
    %v5544 = vpop.permute.xlu0 %5543
    %5547 = vset.pattern.permute.xlu0 0
    %5548 = vperm.xlu0 %5547, %v5518
    %v5549 = vpop.permute.xlu0 %5548
    %5552 = vset.pattern.permute.xlu0 0
    %5553 = vperm.xlu0 %5552, %v5519
    %v5554 = vpop.permute.xlu0 %5553
    %5557 = vset.pattern.permute.xlu0 0
    %5558 = vperm.xlu0 %5557, %v5520
    %v5559 = vpop.permute.xlu0 %5558
    %5562 = vset.pattern.permute.xlu0 0
    %5563 = vperm.xlu0 %5562, %v5521
    %v5564 = vpop.permute.xlu0 %5563
    %5567 = vset.pattern.permute.xlu0 0
    %5568 = vperm.xlu0 %5567, %v5522
    %v5569 = vpop.permute.xlu0 %5568
    %5572 = vset.pattern.permute.xlu0 0
    %5573 = vperm.xlu0 %5572, %v5523
    %v5574 = vpop.permute.xlu0 %5573
    %5577 = vset.pattern.permute.xlu0 0
    %5578 = vperm.xlu0 %5577, %v5524
    %v5579 = vpop.permute.xlu0 %5578
    %5582 = vset.pattern.permute.xlu0 0
    %5583 = vperm.xlu0 %5582, %v5525
    %v5584 = vpop.permute.xlu0 %5583
    %5587 = vset.pattern.permute.xlu0 0
    %5588 = vperm.xlu0 %5587, %v5526
    %v5589 = vpop.permute.xlu0 %5588
    %5592 = vset.pattern.permute.xlu0 0
    %5593 = vperm.xlu0 %5592, %v5527
    %v5594 = vpop.permute.xlu0 %5593
    %5597 = vset.pattern.permute.xlu0 0
    %5598 = vperm.xlu0 %5597, %v5528
    %v5599 = vpop.permute.xlu0 %5598
    %5602 = vset.pattern.permute.xlu0 0
    %5603 = vperm.xlu0 %5602, %v5529
    %v5604 = vpop.permute.xlu0 %5603
    %5607 = vset.pattern.permute.xlu0 0
    %5608 = vperm.xlu0 %5607, %v5530
    %v5609 = vpop.permute.xlu0 %5608
    %5611 = vmatpush.msra.mxu0 %v5402
    %5612 = vmatpush.msra.mxu0 %v5401
    %5613 = vmatpush.msra.mxu0 %v5400
    %5614 = vmatpush.msra.mxu0 %v5399
    %5615 = vmatpush.msra.mxu0 %v5398
    %5616 = vmatpush.msra.mxu0 %v5397
    %5617 = vmatpush.msra.mxu0 %v5396
    %5618 = vmatpush.msra.mxu0 %v5395
    %5619 = vmatpush.msra.mxu0 %v5394
    %5620 = vmatpush.msra.mxu0 %v5393
    %5621 = vmatpush.msra.mxu0 %v5392
    %5622 = vmatpush.msra.mxu0 %v5391
    %5623 = vmatpush.msra.mxu0 %v5390
    %5624 = vmatpush.msra.mxu0 %v5389
    %5625 = vmatpush.msra.mxu0 %v5388
    %5626 = vmatpush.msra.mxu0 %v5387
    %5627 = vmatmul.f32.gmra.mxu0 %v5451
    %v5628 = vpop.f32.mrf.mxu0
    %v5629 = vadd.f32 %v5534, %v5628
    %5630 = vmatmul.f32.gmra.mxu0 %v5455
    %v5631 = vpop.f32.mrf.mxu0
    %v5632 = vadd.f32 %v5539, %v5631
    %5633 = vmatmul.f32.gmra.mxu0 %v5459
    %v5634 = vpop.f32.mrf.mxu0
    %v5635 = vadd.f32 %v5544, %v5634
    %5636 = vmatmul.f32.gmra.mxu0 %v5463
    %v5637 = vpop.f32.mrf.mxu0
    %v5638 = vadd.f32 %v5549, %v5637
    %5639 = vmatmul.f32.gmra.mxu0 %v5467
    %v5640 = vpop.f32.mrf.mxu0
    %v5641 = vadd.f32 %v5554, %v5640
    %5642 = vmatmul.f32.gmra.mxu0 %v5471
    %v5643 = vpop.f32.mrf.mxu0
    %v5644 = vadd.f32 %v5559, %v5643
    %5645 = vmatmul.f32.gmra.mxu0 %v5475
    %v5646 = vpop.f32.mrf.mxu0
    %v5647 = vadd.f32 %v5564, %v5646
    %5648 = vmatmul.f32.gmra.mxu0 %v5479
    %v5649 = vpop.f32.mrf.mxu0
    %v5650 = vadd.f32 %v5569, %v5649
    %5651 = vmatmul.f32.gmra.mxu0 %v5483
    %v5652 = vpop.f32.mrf.mxu0
    %v5653 = vadd.f32 %v5574, %v5652
    %5654 = vmatmul.f32.gmra.mxu0 %v5487
    %v5655 = vpop.f32.mrf.mxu0
    %v5656 = vadd.f32 %v5579, %v5655
    %5657 = vmatmul.f32.gmra.mxu0 %v5491
    %v5658 = vpop.f32.mrf.mxu0
    %v5659 = vadd.f32 %v5584, %v5658
    %5660 = vmatmul.f32.gmra.mxu0 %v5495
    %v5661 = vpop.f32.mrf.mxu0
    %v5662 = vadd.f32 %v5589, %v5661
    %5663 = vmatmul.f32.gmra.mxu0 %v5499
    %v5664 = vpop.f32.mrf.mxu0
    %v5665 = vadd.f32 %v5594, %v5664
    %5666 = vmatmul.f32.gmra.mxu0 %v5503
    %v5667 = vpop.f32.mrf.mxu0
    %v5668 = vadd.f32 %v5599, %v5667
    %5669 = vmatmul.f32.gmra.mxu0 %v5507
    %v5670 = vpop.f32.mrf.mxu0
    %v5671 = vadd.f32 %v5604, %v5670
    %5672 = vmatmul.f32.gmra.mxu0 %v5511
    %v5673 = vpop.f32.mrf.mxu0
    %v5674 = vadd.f32 %v5609, %v5673
    %5675 = vdwg.mxu0
    %5676 = vmatpush.msra.mxu0 %v5418
    %5677 = vmatpush.msra.mxu0 %v5417
    %5678 = vmatpush.msra.mxu0 %v5416
    %5679 = vmatpush.msra.mxu0 %v5415
    %5680 = vmatpush.msra.mxu0 %v5414
    %5681 = vmatpush.msra.mxu0 %v5413
    %5682 = vmatpush.msra.mxu0 %v5412
    %5683 = vmatpush.msra.mxu0 %v5411
    %5684 = vmatpush.msra.mxu0 %v5410
    %5685 = vmatpush.msra.mxu0 %v5409
    %5686 = vmatpush.msra.mxu0 %v5408
    %5687 = vmatpush.msra.mxu0 %v5407
    %5688 = vmatpush.msra.mxu0 %v5406
    %5689 = vmatpush.msra.mxu0 %v5405
    %5690 = vmatpush.msra.mxu0 %v5404
    %5691 = vmatpush.msra.mxu0 %v5403
    %5692 = vmatmul.f32.gmra.mxu0 %v5452
    %v5693 = vpop.f32.mrf.mxu0
    %v5694 = vadd.f32 %v5629, %v5693
    %5695 = vmatmul.f32.gmra.mxu0 %v5456
    %v5696 = vpop.f32.mrf.mxu0
    %v5697 = vadd.f32 %v5632, %v5696
    %5698 = vmatmul.f32.gmra.mxu0 %v5460
    %v5699 = vpop.f32.mrf.mxu0
    %v5700 = vadd.f32 %v5635, %v5699
    %5701 = vmatmul.f32.gmra.mxu0 %v5464
    %v5702 = vpop.f32.mrf.mxu0
    %v5703 = vadd.f32 %v5638, %v5702
    %5704 = vmatmul.f32.gmra.mxu0 %v5468
    %v5705 = vpop.f32.mrf.mxu0
    %v5706 = vadd.f32 %v5641, %v5705
    %5707 = vmatmul.f32.gmra.mxu0 %v5472
    %v5708 = vpop.f32.mrf.mxu0
    %v5709 = vadd.f32 %v5644, %v5708
    %5710 = vmatmul.f32.gmra.mxu0 %v5476
    %v5711 = vpop.f32.mrf.mxu0
    %v5712 = vadd.f32 %v5647, %v5711
    %5713 = vmatmul.f32.gmra.mxu0 %v5480
    %v5714 = vpop.f32.mrf.mxu0
    %v5715 = vadd.f32 %v5650, %v5714
    %5716 = vmatmul.f32.gmra.mxu0 %v5484
    %v5717 = vpop.f32.mrf.mxu0
    %v5718 = vadd.f32 %v5653, %v5717
    %5719 = vmatmul.f32.gmra.mxu0 %v5488
    %v5720 = vpop.f32.mrf.mxu0
    %v5721 = vadd.f32 %v5656, %v5720
    %5722 = vmatmul.f32.gmra.mxu0 %v5492
    %v5723 = vpop.f32.mrf.mxu0
    %v5724 = vadd.f32 %v5659, %v5723
    %5725 = vmatmul.f32.gmra.mxu0 %v5496
    %v5726 = vpop.f32.mrf.mxu0
    %v5727 = vadd.f32 %v5662, %v5726
    %5728 = vmatmul.f32.gmra.mxu0 %v5500
    %v5729 = vpop.f32.mrf.mxu0
    %v5730 = vadd.f32 %v5665, %v5729
    %5731 = vmatmul.f32.gmra.mxu0 %v5504
    %v5732 = vpop.f32.mrf.mxu0
    %v5733 = vadd.f32 %v5668, %v5732
    %5734 = vmatmul.f32.gmra.mxu0 %v5508
    %v5735 = vpop.f32.mrf.mxu0
    %v5736 = vadd.f32 %v5671, %v5735
    %5737 = vmatmul.f32.gmra.mxu0 %v5512
    %v5738 = vpop.f32.mrf.mxu0
    %v5739 = vadd.f32 %v5674, %v5738
    %5740 = vdwg.mxu0
    %5741 = vmatpush.msra.mxu0 %v5434
    %5742 = vmatpush.msra.mxu0 %v5433
    %5743 = vmatpush.msra.mxu0 %v5432
    %5744 = vmatpush.msra.mxu0 %v5431
    %5745 = vmatpush.msra.mxu0 %v5430
    %5746 = vmatpush.msra.mxu0 %v5429
    %5747 = vmatpush.msra.mxu0 %v5428
    %5748 = vmatpush.msra.mxu0 %v5427
    %5749 = vmatpush.msra.mxu0 %v5426
    %5750 = vmatpush.msra.mxu0 %v5425
    %5751 = vmatpush.msra.mxu0 %v5424
    %5752 = vmatpush.msra.mxu0 %v5423
    %5753 = vmatpush.msra.mxu0 %v5422
    %5754 = vmatpush.msra.mxu0 %v5421
    %5755 = vmatpush.msra.mxu0 %v5420
    %5756 = vmatpush.msra.mxu0 %v5419
    %5757 = vmatmul.f32.gmra.mxu0 %v5453
    %v5758 = vpop.f32.mrf.mxu0
    %v5759 = vadd.f32 %v5694, %v5758
    %5760 = vmatmul.f32.gmra.mxu0 %v5457
    %v5761 = vpop.f32.mrf.mxu0
    %v5762 = vadd.f32 %v5697, %v5761
    %5763 = vmatmul.f32.gmra.mxu0 %v5461
    %v5764 = vpop.f32.mrf.mxu0
    %v5765 = vadd.f32 %v5700, %v5764
    %5766 = vmatmul.f32.gmra.mxu0 %v5465
    %v5767 = vpop.f32.mrf.mxu0
    %v5768 = vadd.f32 %v5703, %v5767
    %5769 = vmatmul.f32.gmra.mxu0 %v5469
    %v5770 = vpop.f32.mrf.mxu0
    %v5771 = vadd.f32 %v5706, %v5770
    %5772 = vmatmul.f32.gmra.mxu0 %v5473
    %v5773 = vpop.f32.mrf.mxu0
    %v5774 = vadd.f32 %v5709, %v5773
    %5775 = vmatmul.f32.gmra.mxu0 %v5477
    %v5776 = vpop.f32.mrf.mxu0
    %v5777 = vadd.f32 %v5712, %v5776
    %5778 = vmatmul.f32.gmra.mxu0 %v5481
    %v5779 = vpop.f32.mrf.mxu0
    %v5780 = vadd.f32 %v5715, %v5779
    %5781 = vmatmul.f32.gmra.mxu0 %v5485
    %v5782 = vpop.f32.mrf.mxu0
    %v5783 = vadd.f32 %v5718, %v5782
    %5784 = vmatmul.f32.gmra.mxu0 %v5489
    %v5785 = vpop.f32.mrf.mxu0
    %v5786 = vadd.f32 %v5721, %v5785
    %5787 = vmatmul.f32.gmra.mxu0 %v5493
    %v5788 = vpop.f32.mrf.mxu0
    %v5789 = vadd.f32 %v5724, %v5788
    %5790 = vmatmul.f32.gmra.mxu0 %v5497
    %v5791 = vpop.f32.mrf.mxu0
    %v5792 = vadd.f32 %v5727, %v5791
    %5793 = vmatmul.f32.gmra.mxu0 %v5501
    %v5794 = vpop.f32.mrf.mxu0
    %v5795 = vadd.f32 %v5730, %v5794
    %5796 = vmatmul.f32.gmra.mxu0 %v5505
    %v5797 = vpop.f32.mrf.mxu0
    %v5798 = vadd.f32 %v5733, %v5797
    %5799 = vmatmul.f32.gmra.mxu0 %v5509
    %v5800 = vpop.f32.mrf.mxu0
    %v5801 = vadd.f32 %v5736, %v5800
    %5802 = vmatmul.f32.gmra.mxu0 %v5513
    %v5803 = vpop.f32.mrf.mxu0
    %v5804 = vadd.f32 %v5739, %v5803
    %5805 = vdwg.mxu0
    %5806 = vmatpush.msra.mxu0 %v5450
    %5807 = vmatpush.msra.mxu0 %v5449
    %5808 = vmatpush.msra.mxu0 %v5448
    %5809 = vmatpush.msra.mxu0 %v5447
    %5810 = vmatpush.msra.mxu0 %v5446
    %5811 = vmatpush.msra.mxu0 %v5445
    %5812 = vmatpush.msra.mxu0 %v5444
    %5813 = vmatpush.msra.mxu0 %v5443
    %5814 = vmatpush.msra.mxu0 %v5442
    %5815 = vmatpush.msra.mxu0 %v5441
    %5816 = vmatpush.msra.mxu0 %v5440
    %5817 = vmatpush.msra.mxu0 %v5439
    %5818 = vmatpush.msra.mxu0 %v5438
    %5819 = vmatpush.msra.mxu0 %v5437
    %5820 = vmatpush.msra.mxu0 %v5436
    %5821 = vmatpush.msra.mxu0 %v5435
    %5822 = vmatmul.f32.gmra.mxu0 %v5454
    %v5823 = vpop.f32.mrf.mxu0
    %v5824 = vadd.f32 %v5759, %v5823
    %5825 = vmatmul.f32.gmra.mxu0 %v5458
    %v5826 = vpop.f32.mrf.mxu0
    %v5827 = vadd.f32 %v5762, %v5826
    %5828 = vmatmul.f32.gmra.mxu0 %v5462
    %v5829 = vpop.f32.mrf.mxu0
    %v5830 = vadd.f32 %v5765, %v5829
    %5831 = vmatmul.f32.gmra.mxu0 %v5466
    %v5832 = vpop.f32.mrf.mxu0
    %v5833 = vadd.f32 %v5768, %v5832
    %5834 = vmatmul.f32.gmra.mxu0 %v5470
    %v5835 = vpop.f32.mrf.mxu0
    %v5836 = vadd.f32 %v5771, %v5835
    %5837 = vmatmul.f32.gmra.mxu0 %v5474
    %v5838 = vpop.f32.mrf.mxu0
    %v5839 = vadd.f32 %v5774, %v5838
    %5840 = vmatmul.f32.gmra.mxu0 %v5478
    %v5841 = vpop.f32.mrf.mxu0
    %v5842 = vadd.f32 %v5777, %v5841
    %5843 = vmatmul.f32.gmra.mxu0 %v5482
    %v5844 = vpop.f32.mrf.mxu0
    %v5845 = vadd.f32 %v5780, %v5844
    %5846 = vmatmul.f32.gmra.mxu0 %v5486
    %v5847 = vpop.f32.mrf.mxu0
    %v5848 = vadd.f32 %v5783, %v5847
    %5849 = vmatmul.f32.gmra.mxu0 %v5490
    %v5850 = vpop.f32.mrf.mxu0
    %v5851 = vadd.f32 %v5786, %v5850
    %5852 = vmatmul.f32.gmra.mxu0 %v5494
    %v5853 = vpop.f32.mrf.mxu0
    %v5854 = vadd.f32 %v5789, %v5853
    %5855 = vmatmul.f32.gmra.mxu0 %v5498
    %v5856 = vpop.f32.mrf.mxu0
    %v5857 = vadd.f32 %v5792, %v5856
    %5858 = vmatmul.f32.gmra.mxu0 %v5502
    %v5859 = vpop.f32.mrf.mxu0
    %v5860 = vadd.f32 %v5795, %v5859
    %5861 = vmatmul.f32.gmra.mxu0 %v5506
    %v5862 = vpop.f32.mrf.mxu0
    %v5863 = vadd.f32 %v5798, %v5862
    %5864 = vmatmul.f32.gmra.mxu0 %v5510
    %v5865 = vpop.f32.mrf.mxu0
    %v5866 = vadd.f32 %v5801, %v5865
    %5867 = vmatmul.f32.gmra.mxu0 %v5514
    %v5868 = vpop.f32.mrf.mxu0
    %v5869 = vadd.f32 %v5804, %v5868
    %5870 = vdwg.mxu0
    %v5871 = vadd.f32 %v4714, %v5824
    %v5872 = vadd.f32 %v4715, %v5827
    %v5873 = vadd.f32 %v4716, %v5830
    %v5874 = vadd.f32 %v4717, %v5833
    %v5875 = vadd.f32 %v4718, %v5836
    %v5876 = vadd.f32 %v4719, %v5839
    %v5877 = vadd.f32 %v4720, %v5842
    %v5878 = vadd.f32 %v4721, %v5845
    %v5879 = vadd.f32 %v4722, %v5848
    %v5880 = vadd.f32 %v4723, %v5851
    %v5881 = vadd.f32 %v4724, %v5854
    %v5882 = vadd.f32 %v4725, %v5857
    %v5883 = vadd.f32 %v4726, %v5860
    %v5884 = vadd.f32 %v4727, %v5863
    %v5885 = vadd.f32 %v4728, %v5866
    %v5886 = vadd.f32 %v4729, %v5869
    %v5887 = vld [vmem:[%s13] sm:$0xff]
    %v5888 = vld [vmem:[%s13 + $0x8] sm:$0xff]
    %v5889 = vld [vmem:[%s13 + $0x10] sm:$0xff]
    %v5890 = vld [vmem:[%s13 + $0x18] sm:$0xff]
    %v5891 = vld [vmem:[%s13 + $0x20] sm:$0xff]
    %v5892 = vld [vmem:[%s13 + $0x28] sm:$0xff]
    %v5893 = vld [vmem:[%s13 + $0x30] sm:$0xff]
    %v5894 = vld [vmem:[%s13 + $0x38] sm:$0xff]
    %v5895 = vld [vmem:[%s13 + $0x40] sm:$0xff]
    %v5896 = vld [vmem:[%s13 + $0x48] sm:$0xff]
    %v5897 = vld [vmem:[%s13 + $0x50] sm:$0xff]
    %v5898 = vld [vmem:[%s13 + $0x58] sm:$0xff]
    %v5899 = vld [vmem:[%s13 + $0x60] sm:$0xff]
    %v5900 = vld [vmem:[%s13 + $0x68] sm:$0xff]
    %v5901 = vld [vmem:[%s13 + $0x70] sm:$0xff]
    %v5902 = vld [vmem:[%s13 + $0x78] sm:$0xff]
    %v5903 = vld [vmem:[%s14] sm:$0xff]
    %v5904 = vld [vmem:[%s14 + $0x8] sm:$0xff]
    %v5905 = vld [vmem:[%s14 + $0x10] sm:$0xff]
    %v5906 = vld [vmem:[%s14 + $0x18] sm:$0xff]
    %v5907 = vld [vmem:[%s14 + $0x20] sm:$0xff]
    %v5908 = vld [vmem:[%s14 + $0x28] sm:$0xff]
    %v5909 = vld [vmem:[%s14 + $0x30] sm:$0xff]
    %v5910 = vld [vmem:[%s14 + $0x38] sm:$0xff]
    %v5911 = vld [vmem:[%s14 + $0x40] sm:$0xff]
    %v5912 = vld [vmem:[%s14 + $0x48] sm:$0xff]
    %v5913 = vld [vmem:[%s14 + $0x50] sm:$0xff]
    %v5914 = vld [vmem:[%s14 + $0x58] sm:$0xff]
    %v5915 = vld [vmem:[%s14 + $0x60] sm:$0xff]
    %v5916 = vld [vmem:[%s14 + $0x68] sm:$0xff]
    %v5917 = vld [vmem:[%s14 + $0x70] sm:$0xff]
    %v5918 = vld [vmem:[%s14 + $0x78] sm:$0xff]
    %v5919 = vsel %vm1220, %v5871, 0.0
    %v5920 = vsel %vm1220, %v5873, 0.0
    %v5921 = vadd.f32 %v5919, %v5920
    %v5922 = vsel %vm1220, %v5875, 0.0
    %v5923 = vadd.f32 %v5921, %v5922
    %v5924 = vsel %vm1220, %v5877, 0.0
    %v5925 = vadd.f32 %v5923, %v5924
    %v5926 = vsel %vm1220, %v5879, 0.0
    %v5927 = vadd.f32 %v5925, %v5926
    %v5928 = vsel %vm1220, %v5881, 0.0
    %v5929 = vadd.f32 %v5927, %v5928
    %v5930 = vsel %vm1220, %v5883, 0.0
    %v5931 = vadd.f32 %v5929, %v5930
    %v5932 = vsel %vm1220, %v5885, 0.0
    %v5933 = vadd.f32 %v5931, %v5932
    %v5934 = vsel %vm1220, %v5872, 0.0
    %v5935 = vsel %vm1220, %v5874, 0.0
    %v5936 = vadd.f32 %v5934, %v5935
    %v5937 = vsel %vm1220, %v5876, 0.0
    %v5938 = vadd.f32 %v5936, %v5937
    %v5939 = vsel %vm1220, %v5878, 0.0
    %v5940 = vadd.f32 %v5938, %v5939
    %v5941 = vsel %vm1220, %v5880, 0.0
    %v5942 = vadd.f32 %v5940, %v5941
    %v5943 = vsel %vm1220, %v5882, 0.0
    %v5944 = vadd.f32 %v5942, %v5943
    %v5945 = vsel %vm1220, %v5884, 0.0
    %v5946 = vadd.f32 %v5944, %v5945
    %v5947 = vsel %vm1220, %v5886, 0.0
    %v5948 = vadd.f32 %v5946, %v5947
    %v5949 = vmul.f32 %v5933, %v4433
    %v5950 = vmul.f32 %v5948, %v4433
    %v5951 = vsub.f32 %v5871, %v5949
    %v5952 = vsub.f32 %v5872, %v5950
    %v5953 = vsub.f32 %v5873, %v5949
    %v5954 = vsub.f32 %v5874, %v5950
    %v5955 = vsub.f32 %v5875, %v5949
    %v5956 = vsub.f32 %v5876, %v5950
    %v5957 = vsub.f32 %v5877, %v5949
    %v5958 = vsub.f32 %v5878, %v5950
    %v5959 = vsub.f32 %v5879, %v5949
    %v5960 = vsub.f32 %v5880, %v5950
    %v5961 = vsub.f32 %v5881, %v5949
    %v5962 = vsub.f32 %v5882, %v5950
    %v5963 = vsub.f32 %v5883, %v5949
    %v5964 = vsub.f32 %v5884, %v5950
    %v5965 = vsub.f32 %v5885, %v5949
    %v5966 = vsub.f32 %v5886, %v5950
    %v5967 = vmul.f32 %v5951, %v5951
    %v5968 = vmul.f32 %v5952, %v5952
    %v5969 = vmul.f32 %v5953, %v5953
    %v5970 = vmul.f32 %v5954, %v5954
    %v5971 = vmul.f32 %v5955, %v5955
    %v5972 = vmul.f32 %v5956, %v5956
    %v5973 = vmul.f32 %v5957, %v5957
    %v5974 = vmul.f32 %v5958, %v5958
    %v5975 = vmul.f32 %v5959, %v5959
    %v5976 = vmul.f32 %v5960, %v5960
    %v5977 = vmul.f32 %v5961, %v5961
    %v5978 = vmul.f32 %v5962, %v5962
    %v5979 = vmul.f32 %v5963, %v5963
    %v5980 = vmul.f32 %v5964, %v5964
    %v5981 = vmul.f32 %v5965, %v5965
    %v5982 = vmul.f32 %v5966, %v5966
    %v5983 = vsel %vm1220, %v5967, 0.0
    %v5984 = vsel %vm1220, %v5969, 0.0
    %v5985 = vadd.f32 %v5983, %v5984
    %v5986 = vsel %vm1220, %v5971, 0.0
    %v5987 = vadd.f32 %v5985, %v5986
    %v5988 = vsel %vm1220, %v5973, 0.0
    %v5989 = vadd.f32 %v5987, %v5988
    %v5990 = vsel %vm1220, %v5975, 0.0
    %v5991 = vadd.f32 %v5989, %v5990
    %v5992 = vsel %vm1220, %v5977, 0.0
    %v5993 = vadd.f32 %v5991, %v5992
    %v5994 = vsel %vm1220, %v5979, 0.0
    %v5995 = vadd.f32 %v5993, %v5994
    %v5996 = vsel %vm1220, %v5981, 0.0
    %v5997 = vadd.f32 %v5995, %v5996
    %v5998 = vsel %vm1220, %v5968, 0.0
    %v5999 = vsel %vm1220, %v5970, 0.0
    %v6000 = vadd.f32 %v5998, %v5999
    %v6001 = vsel %vm1220, %v5972, 0.0
    %v6002 = vadd.f32 %v6000, %v6001
    %v6003 = vsel %vm1220, %v5974, 0.0
    %v6004 = vadd.f32 %v6002, %v6003
    %v6005 = vsel %vm1220, %v5976, 0.0
    %v6006 = vadd.f32 %v6004, %v6005
    %v6007 = vsel %vm1220, %v5978, 0.0
    %v6008 = vadd.f32 %v6006, %v6007
    %v6009 = vsel %vm1220, %v5980, 0.0
    %v6010 = vadd.f32 %v6008, %v6009
    %v6011 = vsel %vm1220, %v5982, 0.0
    %v6012 = vadd.f32 %v6010, %v6011
    %v6013 = vmul.f32 %v5997, %v4433
    %v6014 = vmul.f32 %v6012, %v4433
    %v6015 = vadd.f32 %v6013, 1e-05
    %v6016 = vadd.f32 %v6014, 1e-05
    %v6017 = vrsqrt.pop %v6015
    %v6018 = vmul.f32 %v6017, %v6015
    %v6019 = vmul.f32 %v6018, %v6017
    %v6020 = vmul.f32 0.5, %v6019
    %v6021 = vsub.f32 1.5, %v6020
    %v6022 = vmul.f32 %v6017, %v6021
    %vm6023 = vweird.f32 %v6015
    %vm6024 = vweird.f32 %v6017
    %vm6025 = vmor %vm6023, %vm6024
    %v6026 = vsel %vm6025, %v6017, %v6022
    %v6027 = vrsqrt.pop %v6016
    %v6028 = vmul.f32 %v6027, %v6016
    %v6029 = vmul.f32 %v6028, %v6027
    %v6030 = vmul.f32 0.5, %v6029
    %v6031 = vsub.f32 1.5, %v6030
    %v6032 = vmul.f32 %v6027, %v6031
    %vm6033 = vweird.f32 %v6016
    %vm6034 = vweird.f32 %v6027
    %vm6035 = vmor %vm6033, %vm6034
    %v6036 = vsel %vm6035, %v6027, %v6032
    %v6037 = vmul.f32 %v5951, %v6026
    %v6038 = vmul.f32 %v5952, %v6036
    %v6039 = vmul.f32 %v5953, %v6026
    %v6040 = vmul.f32 %v5954, %v6036
    %v6041 = vmul.f32 %v5955, %v6026
    %v6042 = vmul.f32 %v5956, %v6036
    %v6043 = vmul.f32 %v5957, %v6026
    %v6044 = vmul.f32 %v5958, %v6036
    %v6045 = vmul.f32 %v5959, %v6026
    %v6046 = vmul.f32 %v5960, %v6036
    %v6047 = vmul.f32 %v5961, %v6026
    %v6048 = vmul.f32 %v5962, %v6036
    %v6049 = vmul.f32 %v5963, %v6026
    %v6050 = vmul.f32 %v5964, %v6036
    %v6051 = vmul.f32 %v5965, %v6026
    %v6052 = vmul.f32 %v5966, %v6036
    %6054 = vset.pattern.permute.xlu0 0
    %6055 = vperm.xlu0 %6054, %v5887
    %v6056 = vpop.permute.xlu0 %6055
    %6059 = vset.pattern.permute.xlu0 0
    %6060 = vperm.xlu0 %6059, %v5888
    %v6061 = vpop.permute.xlu0 %6060
    %6064 = vset.pattern.permute.xlu0 0
    %6065 = vperm.xlu0 %6064, %v5889
    %v6066 = vpop.permute.xlu0 %6065
    %6069 = vset.pattern.permute.xlu0 0
    %6070 = vperm.xlu0 %6069, %v5890
    %v6071 = vpop.permute.xlu0 %6070
    %6074 = vset.pattern.permute.xlu0 0
    %6075 = vperm.xlu0 %6074, %v5891
    %v6076 = vpop.permute.xlu0 %6075
    %6079 = vset.pattern.permute.xlu0 0
    %6080 = vperm.xlu0 %6079, %v5892
    %v6081 = vpop.permute.xlu0 %6080
    %6084 = vset.pattern.permute.xlu0 0
    %6085 = vperm.xlu0 %6084, %v5893
    %v6086 = vpop.permute.xlu0 %6085
    %6089 = vset.pattern.permute.xlu0 0
    %6090 = vperm.xlu0 %6089, %v5894
    %v6091 = vpop.permute.xlu0 %6090
    %6094 = vset.pattern.permute.xlu0 0
    %6095 = vperm.xlu0 %6094, %v5895
    %v6096 = vpop.permute.xlu0 %6095
    %6099 = vset.pattern.permute.xlu0 0
    %6100 = vperm.xlu0 %6099, %v5896
    %v6101 = vpop.permute.xlu0 %6100
    %6104 = vset.pattern.permute.xlu0 0
    %6105 = vperm.xlu0 %6104, %v5897
    %v6106 = vpop.permute.xlu0 %6105
    %6109 = vset.pattern.permute.xlu0 0
    %6110 = vperm.xlu0 %6109, %v5898
    %v6111 = vpop.permute.xlu0 %6110
    %6114 = vset.pattern.permute.xlu0 0
    %6115 = vperm.xlu0 %6114, %v5899
    %v6116 = vpop.permute.xlu0 %6115
    %6119 = vset.pattern.permute.xlu0 0
    %6120 = vperm.xlu0 %6119, %v5900
    %v6121 = vpop.permute.xlu0 %6120
    %6124 = vset.pattern.permute.xlu0 0
    %6125 = vperm.xlu0 %6124, %v5901
    %v6126 = vpop.permute.xlu0 %6125
    %6129 = vset.pattern.permute.xlu0 0
    %6130 = vperm.xlu0 %6129, %v5902
    %v6131 = vpop.permute.xlu0 %6130
    %v6133 = vmul.f32 %v6037, %v6056
    %v6134 = vmul.f32 %v6038, %v6061
    %v6135 = vmul.f32 %v6039, %v6066
    %v6136 = vmul.f32 %v6040, %v6071
    %v6137 = vmul.f32 %v6041, %v6076
    %v6138 = vmul.f32 %v6042, %v6081
    %v6139 = vmul.f32 %v6043, %v6086
    %v6140 = vmul.f32 %v6044, %v6091
    %v6141 = vmul.f32 %v6045, %v6096
    %v6142 = vmul.f32 %v6046, %v6101
    %v6143 = vmul.f32 %v6047, %v6106
    %v6144 = vmul.f32 %v6048, %v6111
    %v6145 = vmul.f32 %v6049, %v6116
    %v6146 = vmul.f32 %v6050, %v6121
    %v6147 = vmul.f32 %v6051, %v6126
    %v6148 = vmul.f32 %v6052, %v6131
    %6150 = vset.pattern.permute.xlu0 0
    %6151 = vperm.xlu0 %6150, %v5903
    %v6152 = vpop.permute.xlu0 %6151
    %6155 = vset.pattern.permute.xlu0 0
    %6156 = vperm.xlu0 %6155, %v5904
    %v6157 = vpop.permute.xlu0 %6156
    %6160 = vset.pattern.permute.xlu0 0
    %6161 = vperm.xlu0 %6160, %v5905
    %v6162 = vpop.permute.xlu0 %6161
    %6165 = vset.pattern.permute.xlu0 0
    %6166 = vperm.xlu0 %6165, %v5906
    %v6167 = vpop.permute.xlu0 %6166
    %6170 = vset.pattern.permute.xlu0 0
    %6171 = vperm.xlu0 %6170, %v5907
    %v6172 = vpop.permute.xlu0 %6171
    %6175 = vset.pattern.permute.xlu0 0
    %6176 = vperm.xlu0 %6175, %v5908
    %v6177 = vpop.permute.xlu0 %6176
    %6180 = vset.pattern.permute.xlu0 0
    %6181 = vperm.xlu0 %6180, %v5909
    %v6182 = vpop.permute.xlu0 %6181
    %6185 = vset.pattern.permute.xlu0 0
    %6186 = vperm.xlu0 %6185, %v5910
    %v6187 = vpop.permute.xlu0 %6186
    %6190 = vset.pattern.permute.xlu0 0
    %6191 = vperm.xlu0 %6190, %v5911
    %v6192 = vpop.permute.xlu0 %6191
    %6195 = vset.pattern.permute.xlu0 0
    %6196 = vperm.xlu0 %6195, %v5912
    %v6197 = vpop.permute.xlu0 %6196
    %6200 = vset.pattern.permute.xlu0 0
    %6201 = vperm.xlu0 %6200, %v5913
    %v6202 = vpop.permute.xlu0 %6201
    %6205 = vset.pattern.permute.xlu0 0
    %6206 = vperm.xlu0 %6205, %v5914
    %v6207 = vpop.permute.xlu0 %6206
    %6210 = vset.pattern.permute.xlu0 0
    %6211 = vperm.xlu0 %6210, %v5915
    %v6212 = vpop.permute.xlu0 %6211
    %6215 = vset.pattern.permute.xlu0 0
    %6216 = vperm.xlu0 %6215, %v5916
    %v6217 = vpop.permute.xlu0 %6216
    %6220 = vset.pattern.permute.xlu0 0
    %6221 = vperm.xlu0 %6220, %v5917
    %v6222 = vpop.permute.xlu0 %6221
    %6225 = vset.pattern.permute.xlu0 0
    %6226 = vperm.xlu0 %6225, %v5918
    %v6227 = vpop.permute.xlu0 %6226
    %v6229 = vadd.f32 %v6133, %v6152
    %v6230 = vadd.f32 %v6134, %v6157
    %v6231 = vadd.f32 %v6135, %v6162
    %v6232 = vadd.f32 %v6136, %v6167
    %v6233 = vadd.f32 %v6137, %v6172
    %v6234 = vadd.f32 %v6138, %v6177
    %v6235 = vadd.f32 %v6139, %v6182
    %v6236 = vadd.f32 %v6140, %v6187
    %v6237 = vadd.f32 %v6141, %v6192
    %v6238 = vadd.f32 %v6142, %v6197
    %v6239 = vadd.f32 %v6143, %v6202
    %v6240 = vadd.f32 %v6144, %v6207
    %v6241 = vadd.f32 %v6145, %v6212
    %v6242 = vadd.f32 %v6146, %v6217
    %v6243 = vadd.f32 %v6147, %v6222
    %v6244 = vadd.f32 %v6148, %v6227
    %s6245 = scalar_lea.vmem %s3, 384
    %v6246 = vld [vmem:[%s6245] sm:$0xff]
    %v6247 = vld [vmem:[%s6245 + $0x8] sm:$0xff]
    %v6248 = vld [vmem:[%s6245 + $0x10] sm:$0xff]
    %v6249 = vld [vmem:[%s6245 + $0x18] sm:$0xff]
    %v6250 = vld [vmem:[%s6245 + $0x20] sm:$0xff]
    %v6251 = vld [vmem:[%s6245 + $0x28] sm:$0xff]
    %v6252 = vld [vmem:[%s6245 + $0x30] sm:$0xff]
    %v6253 = vld [vmem:[%s6245 + $0x38] sm:$0xff]
    %v6254 = vld [vmem:[%s6245 + $0x40] sm:$0xff]
    %v6255 = vld [vmem:[%s6245 + $0x48] sm:$0xff]
    %v6256 = vld [vmem:[%s6245 + $0x50] sm:$0xff]
    %v6257 = vld [vmem:[%s6245 + $0x58] sm:$0xff]
    %v6258 = vld [vmem:[%s6245 + $0x60] sm:$0xff]
    %v6259 = vld [vmem:[%s6245 + $0x68] sm:$0xff]
    %v6260 = vld [vmem:[%s6245 + $0x70] sm:$0xff]
    %v6261 = vld [vmem:[%s6245 + $0x78] sm:$0xff]
    %v6262 = vld [vmem:[%s6245 + $0x80] sm:$0xff]
    %v6263 = vld [vmem:[%s6245 + $0x88] sm:$0xff]
    %v6264 = vld [vmem:[%s6245 + $0x90] sm:$0xff]
    %v6265 = vld [vmem:[%s6245 + $0x98] sm:$0xff]
    %v6266 = vld [vmem:[%s6245 + $0xa0] sm:$0xff]
    %v6267 = vld [vmem:[%s6245 + $0xa8] sm:$0xff]
    %v6268 = vld [vmem:[%s6245 + $0xb0] sm:$0xff]
    %v6269 = vld [vmem:[%s6245 + $0xb8] sm:$0xff]
    %v6270 = vld [vmem:[%s6245 + $0xc0] sm:$0xff]
    %v6271 = vld [vmem:[%s6245 + $0xc8] sm:$0xff]
    %v6272 = vld [vmem:[%s6245 + $0xd0] sm:$0xff]
    %v6273 = vld [vmem:[%s6245 + $0xd8] sm:$0xff]
    %v6274 = vld [vmem:[%s6245 + $0xe0] sm:$0xff]
    %v6275 = vld [vmem:[%s6245 + $0xe8] sm:$0xff]
    %v6276 = vld [vmem:[%s6245 + $0xf0] sm:$0xff]
    %v6277 = vld [vmem:[%s6245 + $0xf8] sm:$0xff]
    %v6278 = vld [vmem:[%s6245 + $0x100] sm:$0xff]
    %v6279 = vld [vmem:[%s6245 + $0x108] sm:$0xff]
    %v6280 = vld [vmem:[%s6245 + $0x110] sm:$0xff]
    %v6281 = vld [vmem:[%s6245 + $0x118] sm:$0xff]
    %v6282 = vld [vmem:[%s6245 + $0x120] sm:$0xff]
    %v6283 = vld [vmem:[%s6245 + $0x128] sm:$0xff]
    %v6284 = vld [vmem:[%s6245 + $0x130] sm:$0xff]
    %v6285 = vld [vmem:[%s6245 + $0x138] sm:$0xff]
    %v6286 = vld [vmem:[%s6245 + $0x140] sm:$0xff]
    %v6287 = vld [vmem:[%s6245 + $0x148] sm:$0xff]
    %v6288 = vld [vmem:[%s6245 + $0x150] sm:$0xff]
    %v6289 = vld [vmem:[%s6245 + $0x158] sm:$0xff]
    %v6290 = vld [vmem:[%s6245 + $0x160] sm:$0xff]
    %v6291 = vld [vmem:[%s6245 + $0x168] sm:$0xff]
    %v6292 = vld [vmem:[%s6245 + $0x170] sm:$0xff]
    %v6293 = vld [vmem:[%s6245 + $0x178] sm:$0xff]
    %s6294 = scalar_lea.vmem %s4, 384
    %v6295 = vld [vmem:[%s6294] sm:$0xff]
    %v6296 = vld [vmem:[%s6294 + $0x8] sm:$0xff]
    %v6297 = vld [vmem:[%s6294 + $0x10] sm:$0xff]
    %v6298 = vld [vmem:[%s6294 + $0x18] sm:$0xff]
    %v6299 = vld [vmem:[%s6294 + $0x20] sm:$0xff]
    %v6300 = vld [vmem:[%s6294 + $0x28] sm:$0xff]
    %v6301 = vld [vmem:[%s6294 + $0x30] sm:$0xff]
    %v6302 = vld [vmem:[%s6294 + $0x38] sm:$0xff]
    %v6303 = vld [vmem:[%s6294 + $0x40] sm:$0xff]
    %v6304 = vld [vmem:[%s6294 + $0x48] sm:$0xff]
    %v6305 = vld [vmem:[%s6294 + $0x50] sm:$0xff]
    %v6306 = vld [vmem:[%s6294 + $0x58] sm:$0xff]
    %v6307 = vld [vmem:[%s6294 + $0x60] sm:$0xff]
    %v6308 = vld [vmem:[%s6294 + $0x68] sm:$0xff]
    %v6309 = vld [vmem:[%s6294 + $0x70] sm:$0xff]
    %v6310 = vld [vmem:[%s6294 + $0x78] sm:$0xff]
    %v6311 = vld [vmem:[%s6294 + $0x80] sm:$0xff]
    %v6312 = vld [vmem:[%s6294 + $0x88] sm:$0xff]
    %v6313 = vld [vmem:[%s6294 + $0x90] sm:$0xff]
    %v6314 = vld [vmem:[%s6294 + $0x98] sm:$0xff]
    %v6315 = vld [vmem:[%s6294 + $0xa0] sm:$0xff]
    %v6316 = vld [vmem:[%s6294 + $0xa8] sm:$0xff]
    %v6317 = vld [vmem:[%s6294 + $0xb0] sm:$0xff]
    %v6318 = vld [vmem:[%s6294 + $0xb8] sm:$0xff]
    %v6319 = vld [vmem:[%s6294 + $0xc0] sm:$0xff]
    %v6320 = vld [vmem:[%s6294 + $0xc8] sm:$0xff]
    %v6321 = vld [vmem:[%s6294 + $0xd0] sm:$0xff]
    %v6322 = vld [vmem:[%s6294 + $0xd8] sm:$0xff]
    %v6323 = vld [vmem:[%s6294 + $0xe0] sm:$0xff]
    %v6324 = vld [vmem:[%s6294 + $0xe8] sm:$0xff]
    %v6325 = vld [vmem:[%s6294 + $0xf0] sm:$0xff]
    %v6326 = vld [vmem:[%s6294 + $0xf8] sm:$0xff]
    %v6327 = vld [vmem:[%s6294 + $0x100] sm:$0xff]
    %v6328 = vld [vmem:[%s6294 + $0x108] sm:$0xff]
    %v6329 = vld [vmem:[%s6294 + $0x110] sm:$0xff]
    %v6330 = vld [vmem:[%s6294 + $0x118] sm:$0xff]
    %v6331 = vld [vmem:[%s6294 + $0x120] sm:$0xff]
    %v6332 = vld [vmem:[%s6294 + $0x128] sm:$0xff]
    %v6333 = vld [vmem:[%s6294 + $0x130] sm:$0xff]
    %v6334 = vld [vmem:[%s6294 + $0x138] sm:$0xff]
    %v6335 = vld [vmem:[%s6294 + $0x140] sm:$0xff]
    %v6336 = vld [vmem:[%s6294 + $0x148] sm:$0xff]
    %v6337 = vld [vmem:[%s6294 + $0x150] sm:$0xff]
    %v6338 = vld [vmem:[%s6294 + $0x158] sm:$0xff]
    %v6339 = vld [vmem:[%s6294 + $0x160] sm:$0xff]
    %v6340 = vld [vmem:[%s6294 + $0x168] sm:$0xff]
    %v6341 = vld [vmem:[%s6294 + $0x170] sm:$0xff]
    %v6342 = vld [vmem:[%s6294 + $0x178] sm:$0xff]
    %6344 = vset.pattern.permute.xlu0 0
    %6345 = vperm.xlu0 %6344, %v6295
    %v6346 = vpop.permute.xlu0 %6345
    %6349 = vset.pattern.permute.xlu0 0
    %6350 = vperm.xlu0 %6349, %v6296
    %v6351 = vpop.permute.xlu0 %6350
    %6354 = vset.pattern.permute.xlu0 0
    %6355 = vperm.xlu0 %6354, %v6297
    %v6356 = vpop.permute.xlu0 %6355
    %6359 = vset.pattern.permute.xlu0 0
    %6360 = vperm.xlu0 %6359, %v6298
    %v6361 = vpop.permute.xlu0 %6360
    %6364 = vset.pattern.permute.xlu0 0
    %6365 = vperm.xlu0 %6364, %v6299
    %v6366 = vpop.permute.xlu0 %6365
    %6369 = vset.pattern.permute.xlu0 0
    %6370 = vperm.xlu0 %6369, %v6300
    %v6371 = vpop.permute.xlu0 %6370
    %6374 = vset.pattern.permute.xlu0 0
    %6375 = vperm.xlu0 %6374, %v6301
    %v6376 = vpop.permute.xlu0 %6375
    %6379 = vset.pattern.permute.xlu0 0
    %6380 = vperm.xlu0 %6379, %v6302
    %v6381 = vpop.permute.xlu0 %6380
    %6384 = vset.pattern.permute.xlu0 0
    %6385 = vperm.xlu0 %6384, %v6303
    %v6386 = vpop.permute.xlu0 %6385
    %6389 = vset.pattern.permute.xlu0 0
    %6390 = vperm.xlu0 %6389, %v6304
    %v6391 = vpop.permute.xlu0 %6390
    %6394 = vset.pattern.permute.xlu0 0
    %6395 = vperm.xlu0 %6394, %v6305
    %v6396 = vpop.permute.xlu0 %6395
    %6399 = vset.pattern.permute.xlu0 0
    %6400 = vperm.xlu0 %6399, %v6306
    %v6401 = vpop.permute.xlu0 %6400
    %6404 = vset.pattern.permute.xlu0 0
    %6405 = vperm.xlu0 %6404, %v6307
    %v6406 = vpop.permute.xlu0 %6405
    %6409 = vset.pattern.permute.xlu0 0
    %6410 = vperm.xlu0 %6409, %v6308
    %v6411 = vpop.permute.xlu0 %6410
    %6414 = vset.pattern.permute.xlu0 0
    %6415 = vperm.xlu0 %6414, %v6309
    %v6416 = vpop.permute.xlu0 %6415
    %6419 = vset.pattern.permute.xlu0 0
    %6420 = vperm.xlu0 %6419, %v6310
    %v6421 = vpop.permute.xlu0 %6420
    %6424 = vset.pattern.permute.xlu0 0
    %6425 = vperm.xlu0 %6424, %v6311
    %v6426 = vpop.permute.xlu0 %6425
    %6429 = vset.pattern.permute.xlu0 0
    %6430 = vperm.xlu0 %6429, %v6312
    %v6431 = vpop.permute.xlu0 %6430
    %6434 = vset.pattern.permute.xlu0 0
    %6435 = vperm.xlu0 %6434, %v6313
    %v6436 = vpop.permute.xlu0 %6435
    %6439 = vset.pattern.permute.xlu0 0
    %6440 = vperm.xlu0 %6439, %v6314
    %v6441 = vpop.permute.xlu0 %6440
    %6444 = vset.pattern.permute.xlu0 0
    %6445 = vperm.xlu0 %6444, %v6315
    %v6446 = vpop.permute.xlu0 %6445
    %6449 = vset.pattern.permute.xlu0 0
    %6450 = vperm.xlu0 %6449, %v6316
    %v6451 = vpop.permute.xlu0 %6450
    %6454 = vset.pattern.permute.xlu0 0
    %6455 = vperm.xlu0 %6454, %v6317
    %v6456 = vpop.permute.xlu0 %6455
    %6459 = vset.pattern.permute.xlu0 0
    %6460 = vperm.xlu0 %6459, %v6318
    %v6461 = vpop.permute.xlu0 %6460
    %6464 = vset.pattern.permute.xlu0 0
    %6465 = vperm.xlu0 %6464, %v6319
    %v6466 = vpop.permute.xlu0 %6465
    %6469 = vset.pattern.permute.xlu0 0
    %6470 = vperm.xlu0 %6469, %v6320
    %v6471 = vpop.permute.xlu0 %6470
    %6474 = vset.pattern.permute.xlu0 0
    %6475 = vperm.xlu0 %6474, %v6321
    %v6476 = vpop.permute.xlu0 %6475
    %6479 = vset.pattern.permute.xlu0 0
    %6480 = vperm.xlu0 %6479, %v6322
    %v6481 = vpop.permute.xlu0 %6480
    %6484 = vset.pattern.permute.xlu0 0
    %6485 = vperm.xlu0 %6484, %v6323
    %v6486 = vpop.permute.xlu0 %6485
    %6489 = vset.pattern.permute.xlu0 0
    %6490 = vperm.xlu0 %6489, %v6324
    %v6491 = vpop.permute.xlu0 %6490
    %6494 = vset.pattern.permute.xlu0 0
    %6495 = vperm.xlu0 %6494, %v6325
    %v6496 = vpop.permute.xlu0 %6495
    %6499 = vset.pattern.permute.xlu0 0
    %6500 = vperm.xlu0 %6499, %v6326
    %v6501 = vpop.permute.xlu0 %6500
    %6504 = vset.pattern.permute.xlu0 0
    %6505 = vperm.xlu0 %6504, %v6327
    %v6506 = vpop.permute.xlu0 %6505
    %6509 = vset.pattern.permute.xlu0 0
    %6510 = vperm.xlu0 %6509, %v6328
    %v6511 = vpop.permute.xlu0 %6510
    %6514 = vset.pattern.permute.xlu0 0
    %6515 = vperm.xlu0 %6514, %v6329
    %v6516 = vpop.permute.xlu0 %6515
    %6519 = vset.pattern.permute.xlu0 0
    %6520 = vperm.xlu0 %6519, %v6330
    %v6521 = vpop.permute.xlu0 %6520
    %6524 = vset.pattern.permute.xlu0 0
    %6525 = vperm.xlu0 %6524, %v6331
    %v6526 = vpop.permute.xlu0 %6525
    %6529 = vset.pattern.permute.xlu0 0
    %6530 = vperm.xlu0 %6529, %v6332
    %v6531 = vpop.permute.xlu0 %6530
    %6534 = vset.pattern.permute.xlu0 0
    %6535 = vperm.xlu0 %6534, %v6333
    %v6536 = vpop.permute.xlu0 %6535
    %6539 = vset.pattern.permute.xlu0 0
    %6540 = vperm.xlu0 %6539, %v6334
    %v6541 = vpop.permute.xlu0 %6540
    %6544 = vset.pattern.permute.xlu0 0
    %6545 = vperm.xlu0 %6544, %v6335
    %v6546 = vpop.permute.xlu0 %6545
    %6549 = vset.pattern.permute.xlu0 0
    %6550 = vperm.xlu0 %6549, %v6336
    %v6551 = vpop.permute.xlu0 %6550
    %6554 = vset.pattern.permute.xlu0 0
    %6555 = vperm.xlu0 %6554, %v6337
    %v6556 = vpop.permute.xlu0 %6555
    %6559 = vset.pattern.permute.xlu0 0
    %6560 = vperm.xlu0 %6559, %v6338
    %v6561 = vpop.permute.xlu0 %6560
    %6564 = vset.pattern.permute.xlu0 0
    %6565 = vperm.xlu0 %6564, %v6339
    %v6566 = vpop.permute.xlu0 %6565
    %6569 = vset.pattern.permute.xlu0 0
    %6570 = vperm.xlu0 %6569, %v6340
    %v6571 = vpop.permute.xlu0 %6570
    %6574 = vset.pattern.permute.xlu0 0
    %6575 = vperm.xlu0 %6574, %v6341
    %v6576 = vpop.permute.xlu0 %6575
    %6579 = vset.pattern.permute.xlu0 0
    %6580 = vperm.xlu0 %6579, %v6342
    %v6581 = vpop.permute.xlu0 %6580
    %6583 = vmatpush.msra.mxu0 %v6244
    %6584 = vmatpush.msra.mxu0 %v6243
    %6585 = vmatpush.msra.mxu0 %v6242
    %6586 = vmatpush.msra.mxu0 %v6241
    %6587 = vmatpush.msra.mxu0 %v6240
    %6588 = vmatpush.msra.mxu0 %v6239
    %6589 = vmatpush.msra.mxu0 %v6238
    %6590 = vmatpush.msra.mxu0 %v6237
    %6591 = vmatpush.msra.mxu0 %v6236
    %6592 = vmatpush.msra.mxu0 %v6235
    %6593 = vmatpush.msra.mxu0 %v6234
    %6594 = vmatpush.msra.mxu0 %v6233
    %6595 = vmatpush.msra.mxu0 %v6232
    %6596 = vmatpush.msra.mxu0 %v6231
    %6597 = vmatpush.msra.mxu0 %v6230
    %6598 = vmatpush.msra.mxu0 %v6229
    %6599 = vmatmul.f32.gmra.mxu0 %v6246
    %v6600 = vpop.f32.mrf.mxu0
    %v6601 = vadd.f32 %v6346, %v6600
    %6602 = vmatmul.f32.gmra.mxu0 %v6247
    %v6603 = vpop.f32.mrf.mxu0
    %v6604 = vadd.f32 %v6351, %v6603
    %6605 = vmatmul.f32.gmra.mxu0 %v6248
    %v6606 = vpop.f32.mrf.mxu0
    %v6607 = vadd.f32 %v6356, %v6606
    %6608 = vmatmul.f32.gmra.mxu0 %v6249
    %v6609 = vpop.f32.mrf.mxu0
    %v6610 = vadd.f32 %v6361, %v6609
    %6611 = vmatmul.f32.gmra.mxu0 %v6250
    %v6612 = vpop.f32.mrf.mxu0
    %v6613 = vadd.f32 %v6366, %v6612
    %6614 = vmatmul.f32.gmra.mxu0 %v6251
    %v6615 = vpop.f32.mrf.mxu0
    %v6616 = vadd.f32 %v6371, %v6615
    %6617 = vmatmul.f32.gmra.mxu0 %v6252
    %v6618 = vpop.f32.mrf.mxu0
    %v6619 = vadd.f32 %v6376, %v6618
    %6620 = vmatmul.f32.gmra.mxu0 %v6253
    %v6621 = vpop.f32.mrf.mxu0
    %v6622 = vadd.f32 %v6381, %v6621
    %6623 = vmatmul.f32.gmra.mxu0 %v6254
    %v6624 = vpop.f32.mrf.mxu0
    %v6625 = vadd.f32 %v6386, %v6624
    %6626 = vmatmul.f32.gmra.mxu0 %v6255
    %v6627 = vpop.f32.mrf.mxu0
    %v6628 = vadd.f32 %v6391, %v6627
    %6629 = vmatmul.f32.gmra.mxu0 %v6256
    %v6630 = vpop.f32.mrf.mxu0
    %v6631 = vadd.f32 %v6396, %v6630
    %6632 = vmatmul.f32.gmra.mxu0 %v6257
    %v6633 = vpop.f32.mrf.mxu0
    %v6634 = vadd.f32 %v6401, %v6633
    %6635 = vmatmul.f32.gmra.mxu0 %v6258
    %v6636 = vpop.f32.mrf.mxu0
    %v6637 = vadd.f32 %v6406, %v6636
    %6638 = vmatmul.f32.gmra.mxu0 %v6259
    %v6639 = vpop.f32.mrf.mxu0
    %v6640 = vadd.f32 %v6411, %v6639
    %6641 = vmatmul.f32.gmra.mxu0 %v6260
    %v6642 = vpop.f32.mrf.mxu0
    %v6643 = vadd.f32 %v6416, %v6642
    %6644 = vmatmul.f32.gmra.mxu0 %v6261
    %v6645 = vpop.f32.mrf.mxu0
    %v6646 = vadd.f32 %v6421, %v6645
    %6647 = vmatmul.f32.gmra.mxu0 %v6262
    %v6648 = vpop.f32.mrf.mxu0
    %v6649 = vadd.f32 %v6426, %v6648
    %6650 = vmatmul.f32.gmra.mxu0 %v6263
    %v6651 = vpop.f32.mrf.mxu0
    %v6652 = vadd.f32 %v6431, %v6651
    %6653 = vmatmul.f32.gmra.mxu0 %v6264
    %v6654 = vpop.f32.mrf.mxu0
    %v6655 = vadd.f32 %v6436, %v6654
    %6656 = vmatmul.f32.gmra.mxu0 %v6265
    %v6657 = vpop.f32.mrf.mxu0
    %v6658 = vadd.f32 %v6441, %v6657
    %6659 = vmatmul.f32.gmra.mxu0 %v6266
    %v6660 = vpop.f32.mrf.mxu0
    %v6661 = vadd.f32 %v6446, %v6660
    %6662 = vmatmul.f32.gmra.mxu0 %v6267
    %v6663 = vpop.f32.mrf.mxu0
    %v6664 = vadd.f32 %v6451, %v6663
    %6665 = vmatmul.f32.gmra.mxu0 %v6268
    %v6666 = vpop.f32.mrf.mxu0
    %v6667 = vadd.f32 %v6456, %v6666
    %6668 = vmatmul.f32.gmra.mxu0 %v6269
    %v6669 = vpop.f32.mrf.mxu0
    %v6670 = vadd.f32 %v6461, %v6669
    %6671 = vmatmul.f32.gmra.mxu0 %v6270
    %v6672 = vpop.f32.mrf.mxu0
    %v6673 = vadd.f32 %v6466, %v6672
    %6674 = vmatmul.f32.gmra.mxu0 %v6271
    %v6675 = vpop.f32.mrf.mxu0
    %v6676 = vadd.f32 %v6471, %v6675
    %6677 = vmatmul.f32.gmra.mxu0 %v6272
    %v6678 = vpop.f32.mrf.mxu0
    %v6679 = vadd.f32 %v6476, %v6678
    %6680 = vmatmul.f32.gmra.mxu0 %v6273
    %v6681 = vpop.f32.mrf.mxu0
    %v6682 = vadd.f32 %v6481, %v6681
    %6683 = vmatmul.f32.gmra.mxu0 %v6274
    %v6684 = vpop.f32.mrf.mxu0
    %v6685 = vadd.f32 %v6486, %v6684
    %6686 = vmatmul.f32.gmra.mxu0 %v6275
    %v6687 = vpop.f32.mrf.mxu0
    %v6688 = vadd.f32 %v6491, %v6687
    %6689 = vmatmul.f32.gmra.mxu0 %v6276
    %v6690 = vpop.f32.mrf.mxu0
    %v6691 = vadd.f32 %v6496, %v6690
    %6692 = vmatmul.f32.gmra.mxu0 %v6277
    %v6693 = vpop.f32.mrf.mxu0
    %v6694 = vadd.f32 %v6501, %v6693
    %6695 = vmatmul.f32.gmra.mxu0 %v6278
    %v6696 = vpop.f32.mrf.mxu0
    %v6697 = vadd.f32 %v6506, %v6696
    %6698 = vmatmul.f32.gmra.mxu0 %v6279
    %v6699 = vpop.f32.mrf.mxu0
    %v6700 = vadd.f32 %v6511, %v6699
    %6701 = vmatmul.f32.gmra.mxu0 %v6280
    %v6702 = vpop.f32.mrf.mxu0
    %v6703 = vadd.f32 %v6516, %v6702
    %6704 = vmatmul.f32.gmra.mxu0 %v6281
    %v6705 = vpop.f32.mrf.mxu0
    %v6706 = vadd.f32 %v6521, %v6705
    %6707 = vmatmul.f32.gmra.mxu0 %v6282
    %v6708 = vpop.f32.mrf.mxu0
    %v6709 = vadd.f32 %v6526, %v6708
    %6710 = vmatmul.f32.gmra.mxu0 %v6283
    %v6711 = vpop.f32.mrf.mxu0
    %v6712 = vadd.f32 %v6531, %v6711
    %6713 = vmatmul.f32.gmra.mxu0 %v6284
    %v6714 = vpop.f32.mrf.mxu0
    %v6715 = vadd.f32 %v6536, %v6714
    %6716 = vmatmul.f32.gmra.mxu0 %v6285
    %v6717 = vpop.f32.mrf.mxu0
    %v6718 = vadd.f32 %v6541, %v6717
    %6719 = vmatmul.f32.gmra.mxu0 %v6286
    %v6720 = vpop.f32.mrf.mxu0
    %v6721 = vadd.f32 %v6546, %v6720
    %6722 = vmatmul.f32.gmra.mxu0 %v6287
    %v6723 = vpop.f32.mrf.mxu0
    %v6724 = vadd.f32 %v6551, %v6723
    %6725 = vmatmul.f32.gmra.mxu0 %v6288
    %v6726 = vpop.f32.mrf.mxu0
    %v6727 = vadd.f32 %v6556, %v6726
    %6728 = vmatmul.f32.gmra.mxu0 %v6289
    %v6729 = vpop.f32.mrf.mxu0
    %v6730 = vadd.f32 %v6561, %v6729
    %6731 = vmatmul.f32.gmra.mxu0 %v6290
    %v6732 = vpop.f32.mrf.mxu0
    %v6733 = vadd.f32 %v6566, %v6732
    %6734 = vmatmul.f32.gmra.mxu0 %v6291
    %v6735 = vpop.f32.mrf.mxu0
    %v6736 = vadd.f32 %v6571, %v6735
    %6737 = vmatmul.f32.gmra.mxu0 %v6292
    %v6738 = vpop.f32.mrf.mxu0
    %v6739 = vadd.f32 %v6576, %v6738
    %6740 = vmatmul.f32.gmra.mxu0 %v6293
    %v6741 = vpop.f32.mrf.mxu0
    %v6742 = vadd.f32 %v6581, %v6741
    %6743 = vdwg.mxu0
    %v6746 = vrot.slane %v6601, 1
    %v6747 = vrot.slane %v6601, 2
    %v6748 = vrot.slane %v6601, 3
    %v6749 = vrot.slane %v6601, 4
    %v6750 = vrot.slane %v6601, 5
    %v6751 = vrot.slane %v6601, 6
    %v6752 = vrot.slane %v6601, 7
    %v6753 = vrot.slane %v6604, 1
    %v6754 = vrot.slane %v6604, 2
    %v6755 = vrot.slane %v6604, 3
    %v6756 = vrot.slane %v6604, 4
    %v6757 = vrot.slane %v6604, 5
    %v6758 = vrot.slane %v6604, 6
    %v6759 = vrot.slane %v6604, 7
    %v6760 = vperm.slane %v6601, 0
    %v6761 = vperm.slane %v6746, 0
    %v6762 = vperm.slane %v6747, 0
    %v6763 = vperm.slane %v6748, 0
    %v6764 = vperm.slane %v6749, 0
    %v6765 = vperm.slane %v6750, 0
    %v6766 = vperm.slane %v6751, 0
    %v6767 = vperm.slane %v6752, 0
    %v6768 = vperm.slane %v6604, 0
    %v6769 = vperm.slane %v6753, 0
    %v6770 = vperm.slane %v6754, 0
    %v6771 = vperm.slane %v6755, 0
    %v6772 = vperm.slane %v6756, 0
    %v6773 = vperm.slane %v6757, 0
    %v6774 = vperm.slane %v6758, 0
    %v6775 = vperm.slane %v6759, 0
    %v6792 = vmul.f32 %v6760, %v6649
    %v6793 = vmul.f32 %v6760, %v6652
    %v6794 = vmul.f32 %v6761, %v6649
    %v6795 = vmul.f32 %v6761, %v6652
    %v6796 = vmul.f32 %v6762, %v6649
    %v6797 = vmul.f32 %v6762, %v6652
    %v6798 = vmul.f32 %v6763, %v6649
    %v6799 = vmul.f32 %v6763, %v6652
    %v6800 = vmul.f32 %v6764, %v6649
    %v6801 = vmul.f32 %v6764, %v6652
    %v6802 = vmul.f32 %v6765, %v6649
    %v6803 = vmul.f32 %v6765, %v6652
    %v6804 = vmul.f32 %v6766, %v6649
    %v6805 = vmul.f32 %v6766, %v6652
    %v6806 = vmul.f32 %v6767, %v6649
    %v6807 = vmul.f32 %v6767, %v6652
    %v6808 = vmul.f32 %v6768, %v6649
    %v6809 = vmul.f32 %v6768, %v6652
    %v6810 = vmul.f32 %v6769, %v6649
    %v6811 = vmul.f32 %v6769, %v6652
    %v6812 = vmul.f32 %v6770, %v6649
    %v6813 = vmul.f32 %v6770, %v6652
    %v6814 = vmul.f32 %v6771, %v6649
    %v6815 = vmul.f32 %v6771, %v6652
    %v6816 = vmul.f32 %v6772, %v6649
    %v6817 = vmul.f32 %v6772, %v6652
    %v6818 = vmul.f32 %v6773, %v6649
    %v6819 = vmul.f32 %v6773, %v6652
    %v6820 = vmul.f32 %v6774, %v6649
    %v6821 = vmul.f32 %v6774, %v6652
    %v6822 = vmul.f32 %v6775, %v6649
    %v6823 = vmul.f32 %v6775, %v6652
    %v6826 = vrot.slane %v6607, 1
    %v6827 = vrot.slane %v6607, 2
    %v6828 = vrot.slane %v6607, 3
    %v6829 = vrot.slane %v6607, 4
    %v6830 = vrot.slane %v6607, 5
    %v6831 = vrot.slane %v6607, 6
    %v6832 = vrot.slane %v6607, 7
    %v6833 = vrot.slane %v6610, 1
    %v6834 = vrot.slane %v6610, 2
    %v6835 = vrot.slane %v6610, 3
    %v6836 = vrot.slane %v6610, 4
    %v6837 = vrot.slane %v6610, 5
    %v6838 = vrot.slane %v6610, 6
    %v6839 = vrot.slane %v6610, 7
    %v6840 = vperm.slane %v6607, 0
    %v6841 = vperm.slane %v6826, 0
    %v6842 = vperm.slane %v6827, 0
    %v6843 = vperm.slane %v6828, 0
    %v6844 = vperm.slane %v6829, 0
    %v6845 = vperm.slane %v6830, 0
    %v6846 = vperm.slane %v6831, 0
    %v6847 = vperm.slane %v6832, 0
    %v6848 = vperm.slane %v6610, 0
    %v6849 = vperm.slane %v6833, 0
    %v6850 = vperm.slane %v6834, 0
    %v6851 = vperm.slane %v6835, 0
    %v6852 = vperm.slane %v6836, 0
    %v6853 = vperm.slane %v6837, 0
    %v6854 = vperm.slane %v6838, 0
    %v6855 = vperm.slane %v6839, 0
    %v6872 = vmul.f32 %v6840, %v6655
    %v6873 = vmul.f32 %v6840, %v6658
    %v6874 = vmul.f32 %v6841, %v6655
    %v6875 = vmul.f32 %v6841, %v6658
    %v6876 = vmul.f32 %v6842, %v6655
    %v6877 = vmul.f32 %v6842, %v6658
    %v6878 = vmul.f32 %v6843, %v6655
    %v6879 = vmul.f32 %v6843, %v6658
    %v6880 = vmul.f32 %v6844, %v6655
    %v6881 = vmul.f32 %v6844, %v6658
    %v6882 = vmul.f32 %v6845, %v6655
    %v6883 = vmul.f32 %v6845, %v6658
    %v6884 = vmul.f32 %v6846, %v6655
    %v6885 = vmul.f32 %v6846, %v6658
    %v6886 = vmul.f32 %v6847, %v6655
    %v6887 = vmul.f32 %v6847, %v6658
    %v6888 = vmul.f32 %v6848, %v6655
    %v6889 = vmul.f32 %v6848, %v6658
    %v6890 = vmul.f32 %v6849, %v6655
    %v6891 = vmul.f32 %v6849, %v6658
    %v6892 = vmul.f32 %v6850, %v6655
    %v6893 = vmul.f32 %v6850, %v6658
    %v6894 = vmul.f32 %v6851, %v6655
    %v6895 = vmul.f32 %v6851, %v6658
    %v6896 = vmul.f32 %v6852, %v6655
    %v6897 = vmul.f32 %v6852, %v6658
    %v6898 = vmul.f32 %v6853, %v6655
    %v6899 = vmul.f32 %v6853, %v6658
    %v6900 = vmul.f32 %v6854, %v6655
    %v6901 = vmul.f32 %v6854, %v6658
    %v6902 = vmul.f32 %v6855, %v6655
    %v6903 = vmul.f32 %v6855, %v6658
    %v6904 = vadd.f32 %v6792, %v6872
    %v6905 = vadd.f32 %v6793, %v6873
    %v6906 = vadd.f32 %v6794, %v6874
    %v6907 = vadd.f32 %v6795, %v6875
    %v6908 = vadd.f32 %v6796, %v6876
    %v6909 = vadd.f32 %v6797, %v6877
    %v6910 = vadd.f32 %v6798, %v6878
    %v6911 = vadd.f32 %v6799, %v6879
    %v6912 = vadd.f32 %v6800, %v6880
    %v6913 = vadd.f32 %v6801, %v6881
    %v6914 = vadd.f32 %v6802, %v6882
    %v6915 = vadd.f32 %v6803, %v6883
    %v6916 = vadd.f32 %v6804, %v6884
    %v6917 = vadd.f32 %v6805, %v6885
    %v6918 = vadd.f32 %v6806, %v6886
    %v6919 = vadd.f32 %v6807, %v6887
    %v6920 = vadd.f32 %v6808, %v6888
    %v6921 = vadd.f32 %v6809, %v6889
    %v6922 = vadd.f32 %v6810, %v6890
    %v6923 = vadd.f32 %v6811, %v6891
    %v6924 = vadd.f32 %v6812, %v6892
    %v6925 = vadd.f32 %v6813, %v6893
    %v6926 = vadd.f32 %v6814, %v6894
    %v6927 = vadd.f32 %v6815, %v6895
    %v6928 = vadd.f32 %v6816, %v6896
    %v6929 = vadd.f32 %v6817, %v6897
    %v6930 = vadd.f32 %v6818, %v6898
    %v6931 = vadd.f32 %v6819, %v6899
    %v6932 = vadd.f32 %v6820, %v6900
    %v6933 = vadd.f32 %v6821, %v6901
    %v6934 = vadd.f32 %v6822, %v6902
    %v6935 = vadd.f32 %v6823, %v6903
    %v6938 = vrot.slane %v6613, 1
    %v6939 = vrot.slane %v6613, 2
    %v6940 = vrot.slane %v6613, 3
    %v6941 = vrot.slane %v6613, 4
    %v6942 = vrot.slane %v6613, 5
    %v6943 = vrot.slane %v6613, 6
    %v6944 = vrot.slane %v6613, 7
    %v6945 = vrot.slane %v6616, 1
    %v6946 = vrot.slane %v6616, 2
    %v6947 = vrot.slane %v6616, 3
    %v6948 = vrot.slane %v6616, 4
    %v6949 = vrot.slane %v6616, 5
    %v6950 = vrot.slane %v6616, 6
    %v6951 = vrot.slane %v6616, 7
    %v6952 = vperm.slane %v6613, 0
    %v6953 = vperm.slane %v6938, 0
    %v6954 = vperm.slane %v6939, 0
    %v6955 = vperm.slane %v6940, 0
    %v6956 = vperm.slane %v6941, 0
    %v6957 = vperm.slane %v6942, 0
    %v6958 = vperm.slane %v6943, 0
    %v6959 = vperm.slane %v6944, 0
    %v6960 = vperm.slane %v6616, 0
    %v6961 = vperm.slane %v6945, 0
    %v6962 = vperm.slane %v6946, 0
    %v6963 = vperm.slane %v6947, 0
    %v6964 = vperm.slane %v6948, 0
    %v6965 = vperm.slane %v6949, 0
    %v6966 = vperm.slane %v6950, 0
    %v6967 = vperm.slane %v6951, 0
    %v6984 = vmul.f32 %v6952, %v6661
    %v6985 = vmul.f32 %v6952, %v6664
    %v6986 = vmul.f32 %v6953, %v6661
    %v6987 = vmul.f32 %v6953, %v6664
    %v6988 = vmul.f32 %v6954, %v6661
    %v6989 = vmul.f32 %v6954, %v6664
    %v6990 = vmul.f32 %v6955, %v6661
    %v6991 = vmul.f32 %v6955, %v6664
    %v6992 = vmul.f32 %v6956, %v6661
    %v6993 = vmul.f32 %v6956, %v6664
    %v6994 = vmul.f32 %v6957, %v6661
    %v6995 = vmul.f32 %v6957, %v6664
    %v6996 = vmul.f32 %v6958, %v6661
    %v6997 = vmul.f32 %v6958, %v6664
    %v6998 = vmul.f32 %v6959, %v6661
    %v6999 = vmul.f32 %v6959, %v6664
    %v7000 = vmul.f32 %v6960, %v6661
    %v7001 = vmul.f32 %v6960, %v6664
    %v7002 = vmul.f32 %v6961, %v6661
    %v7003 = vmul.f32 %v6961, %v6664
    %v7004 = vmul.f32 %v6962, %v6661
    %v7005 = vmul.f32 %v6962, %v6664
    %v7006 = vmul.f32 %v6963, %v6661
    %v7007 = vmul.f32 %v6963, %v6664
    %v7008 = vmul.f32 %v6964, %v6661
    %v7009 = vmul.f32 %v6964, %v6664
    %v7010 = vmul.f32 %v6965, %v6661
    %v7011 = vmul.f32 %v6965, %v6664
    %v7012 = vmul.f32 %v6966, %v6661
    %v7013 = vmul.f32 %v6966, %v6664
    %v7014 = vmul.f32 %v6967, %v6661
    %v7015 = vmul.f32 %v6967, %v6664
    %v7016 = vadd.f32 %v6904, %v6984
    %v7017 = vadd.f32 %v6905, %v6985
    %v7018 = vadd.f32 %v6906, %v6986
    %v7019 = vadd.f32 %v6907, %v6987
    %v7020 = vadd.f32 %v6908, %v6988
    %v7021 = vadd.f32 %v6909, %v6989
    %v7022 = vadd.f32 %v6910, %v6990
    %v7023 = vadd.f32 %v6911, %v6991
    %v7024 = vadd.f32 %v6912, %v6992
    %v7025 = vadd.f32 %v6913, %v6993
    %v7026 = vadd.f32 %v6914, %v6994
    %v7027 = vadd.f32 %v6915, %v6995
    %v7028 = vadd.f32 %v6916, %v6996
    %v7029 = vadd.f32 %v6917, %v6997
    %v7030 = vadd.f32 %v6918, %v6998
    %v7031 = vadd.f32 %v6919, %v6999
    %v7032 = vadd.f32 %v6920, %v7000
    %v7033 = vadd.f32 %v6921, %v7001
    %v7034 = vadd.f32 %v6922, %v7002
    %v7035 = vadd.f32 %v6923, %v7003
    %v7036 = vadd.f32 %v6924, %v7004
    %v7037 = vadd.f32 %v6925, %v7005
    %v7038 = vadd.f32 %v6926, %v7006
    %v7039 = vadd.f32 %v6927, %v7007
    %v7040 = vadd.f32 %v6928, %v7008
    %v7041 = vadd.f32 %v6929, %v7009
    %v7042 = vadd.f32 %v6930, %v7010
    %v7043 = vadd.f32 %v6931, %v7011
    %v7044 = vadd.f32 %v6932, %v7012
    %v7045 = vadd.f32 %v6933, %v7013
    %v7046 = vadd.f32 %v6934, %v7014
    %v7047 = vadd.f32 %v6935, %v7015
    %v7050 = vrot.slane %v6619, 1
    %v7051 = vrot.slane %v6619, 2
    %v7052 = vrot.slane %v6619, 3
    %v7053 = vrot.slane %v6619, 4
    %v7054 = vrot.slane %v6619, 5
    %v7055 = vrot.slane %v6619, 6
    %v7056 = vrot.slane %v6619, 7
    %v7057 = vrot.slane %v6622, 1
    %v7058 = vrot.slane %v6622, 2
    %v7059 = vrot.slane %v6622, 3
    %v7060 = vrot.slane %v6622, 4
    %v7061 = vrot.slane %v6622, 5
    %v7062 = vrot.slane %v6622, 6
    %v7063 = vrot.slane %v6622, 7
    %v7064 = vperm.slane %v6619, 0
    %v7065 = vperm.slane %v7050, 0
    %v7066 = vperm.slane %v7051, 0
    %v7067 = vperm.slane %v7052, 0
    %v7068 = vperm.slane %v7053, 0
    %v7069 = vperm.slane %v7054, 0
    %v7070 = vperm.slane %v7055, 0
    %v7071 = vperm.slane %v7056, 0
    %v7072 = vperm.slane %v6622, 0
    %v7073 = vperm.slane %v7057, 0
    %v7074 = vperm.slane %v7058, 0
    %v7075 = vperm.slane %v7059, 0
    %v7076 = vperm.slane %v7060, 0
    %v7077 = vperm.slane %v7061, 0
    %v7078 = vperm.slane %v7062, 0
    %v7079 = vperm.slane %v7063, 0
    %v7096 = vmul.f32 %v7064, %v6667
    %v7097 = vmul.f32 %v7064, %v6670
    %v7098 = vmul.f32 %v7065, %v6667
    %v7099 = vmul.f32 %v7065, %v6670
    %v7100 = vmul.f32 %v7066, %v6667
    %v7101 = vmul.f32 %v7066, %v6670
    %v7102 = vmul.f32 %v7067, %v6667
    %v7103 = vmul.f32 %v7067, %v6670
    %v7104 = vmul.f32 %v7068, %v6667
    %v7105 = vmul.f32 %v7068, %v6670
    %v7106 = vmul.f32 %v7069, %v6667
    %v7107 = vmul.f32 %v7069, %v6670
    %v7108 = vmul.f32 %v7070, %v6667
    %v7109 = vmul.f32 %v7070, %v6670
    %v7110 = vmul.f32 %v7071, %v6667
    %v7111 = vmul.f32 %v7071, %v6670
    %v7112 = vmul.f32 %v7072, %v6667
    %v7113 = vmul.f32 %v7072, %v6670
    %v7114 = vmul.f32 %v7073, %v6667
    %v7115 = vmul.f32 %v7073, %v6670
    %v7116 = vmul.f32 %v7074, %v6667
    %v7117 = vmul.f32 %v7074, %v6670
    %v7118 = vmul.f32 %v7075, %v6667
    %v7119 = vmul.f32 %v7075, %v6670
    %v7120 = vmul.f32 %v7076, %v6667
    %v7121 = vmul.f32 %v7076, %v6670
    %v7122 = vmul.f32 %v7077, %v6667
    %v7123 = vmul.f32 %v7077, %v6670
    %v7124 = vmul.f32 %v7078, %v6667
    %v7125 = vmul.f32 %v7078, %v6670
    %v7126 = vmul.f32 %v7079, %v6667
    %v7127 = vmul.f32 %v7079, %v6670
    %v7128 = vadd.f32 %v7016, %v7096
    %v7129 = vadd.f32 %v7017, %v7097
    %v7130 = vadd.f32 %v7018, %v7098
    %v7131 = vadd.f32 %v7019, %v7099
    %v7132 = vadd.f32 %v7020, %v7100
    %v7133 = vadd.f32 %v7021, %v7101
    %v7134 = vadd.f32 %v7022, %v7102
    %v7135 = vadd.f32 %v7023, %v7103
    %v7136 = vadd.f32 %v7024, %v7104
    %v7137 = vadd.f32 %v7025, %v7105
    %v7138 = vadd.f32 %v7026, %v7106
    %v7139 = vadd.f32 %v7027, %v7107
    %v7140 = vadd.f32 %v7028, %v7108
    %v7141 = vadd.f32 %v7029, %v7109
    %v7142 = vadd.f32 %v7030, %v7110
    %v7143 = vadd.f32 %v7031, %v7111
    %v7144 = vadd.f32 %v7032, %v7112
    %v7145 = vadd.f32 %v7033, %v7113
    %v7146 = vadd.f32 %v7034, %v7114
    %v7147 = vadd.f32 %v7035, %v7115
    %v7148 = vadd.f32 %v7036, %v7116
    %v7149 = vadd.f32 %v7037, %v7117
    %v7150 = vadd.f32 %v7038, %v7118
    %v7151 = vadd.f32 %v7039, %v7119
    %v7152 = vadd.f32 %v7040, %v7120
    %v7153 = vadd.f32 %v7041, %v7121
    %v7154 = vadd.f32 %v7042, %v7122
    %v7155 = vadd.f32 %v7043, %v7123
    %v7156 = vadd.f32 %v7044, %v7124
    %v7157 = vadd.f32 %v7045, %v7125
    %v7158 = vadd.f32 %v7046, %v7126
    %v7159 = vadd.f32 %v7047, %v7127
    %v7160 = vsel %vm1220, %v7128, -inf
    %v7161 = vsel %vm1220, %v7129, -inf
    %v7162 = vmax.f32 %v7160, %v7161
    %v7163 = vrot.slane %v7162, 4
    %v7164 = vmax.f32 %v7162, %v7163
    %v7165 = vrot.slane %v7164, 2
    %v7166 = vmax.f32 %v7164, %v7165
    %v7167 = vrot.slane %v7166, 1
    %v7168 = vmax.f32 %v7166, %v7167
    %v7169 = vsel %vm1220, %v7130, -inf
    %v7170 = vsel %vm1220, %v7131, -inf
    %v7171 = vmax.f32 %v7169, %v7170
    %v7172 = vrot.slane %v7171, 4
    %v7173 = vmax.f32 %v7171, %v7172
    %v7174 = vrot.slane %v7173, 2
    %v7175 = vmax.f32 %v7173, %v7174
    %v7176 = vrot.slane %v7175, 1
    %v7177 = vmax.f32 %v7175, %v7176
    %v7178 = vsel %vm1220, %v7132, -inf
    %v7179 = vsel %vm1220, %v7133, -inf
    %v7180 = vmax.f32 %v7178, %v7179
    %v7181 = vrot.slane %v7180, 4
    %v7182 = vmax.f32 %v7180, %v7181
    %v7183 = vrot.slane %v7182, 2
    %v7184 = vmax.f32 %v7182, %v7183
    %v7185 = vrot.slane %v7184, 1
    %v7186 = vmax.f32 %v7184, %v7185
    %v7187 = vsel %vm1220, %v7134, -inf
    %v7188 = vsel %vm1220, %v7135, -inf
    %v7189 = vmax.f32 %v7187, %v7188
    %v7190 = vrot.slane %v7189, 4
    %v7191 = vmax.f32 %v7189, %v7190
    %v7192 = vrot.slane %v7191, 2
    %v7193 = vmax.f32 %v7191, %v7192
    %v7194 = vrot.slane %v7193, 1
    %v7195 = vmax.f32 %v7193, %v7194
    %v7196 = vsel %vm1220, %v7136, -inf
    %v7197 = vsel %vm1220, %v7137, -inf
    %v7198 = vmax.f32 %v7196, %v7197
    %v7199 = vrot.slane %v7198, 4
    %v7200 = vmax.f32 %v7198, %v7199
    %v7201 = vrot.slane %v7200, 2
    %v7202 = vmax.f32 %v7200, %v7201
    %v7203 = vrot.slane %v7202, 1
    %v7204 = vmax.f32 %v7202, %v7203
    %v7205 = vsel %vm1220, %v7138, -inf
    %v7206 = vsel %vm1220, %v7139, -inf
    %v7207 = vmax.f32 %v7205, %v7206
    %v7208 = vrot.slane %v7207, 4
    %v7209 = vmax.f32 %v7207, %v7208
    %v7210 = vrot.slane %v7209, 2
    %v7211 = vmax.f32 %v7209, %v7210
    %v7212 = vrot.slane %v7211, 1
    %v7213 = vmax.f32 %v7211, %v7212
    %v7214 = vsel %vm1220, %v7140, -inf
    %v7215 = vsel %vm1220, %v7141, -inf
    %v7216 = vmax.f32 %v7214, %v7215
    %v7217 = vrot.slane %v7216, 4
    %v7218 = vmax.f32 %v7216, %v7217
    %v7219 = vrot.slane %v7218, 2
    %v7220 = vmax.f32 %v7218, %v7219
    %v7221 = vrot.slane %v7220, 1
    %v7222 = vmax.f32 %v7220, %v7221
    %v7223 = vsel %vm1220, %v7142, -inf
    %v7224 = vsel %vm1220, %v7143, -inf
    %v7225 = vmax.f32 %v7223, %v7224
    %v7226 = vrot.slane %v7225, 4
    %v7227 = vmax.f32 %v7225, %v7226
    %v7228 = vrot.slane %v7227, 2
    %v7229 = vmax.f32 %v7227, %v7228
    %v7230 = vrot.slane %v7229, 1
    %v7231 = vmax.f32 %v7229, %v7230
    %v7232 = vsel %vm1220, %v7144, -inf
    %v7233 = vsel %vm1220, %v7145, -inf
    %v7234 = vmax.f32 %v7232, %v7233
    %v7235 = vrot.slane %v7234, 4
    %v7236 = vmax.f32 %v7234, %v7235
    %v7237 = vrot.slane %v7236, 2
    %v7238 = vmax.f32 %v7236, %v7237
    %v7239 = vrot.slane %v7238, 1
    %v7240 = vmax.f32 %v7238, %v7239
    %v7241 = vsel %vm1220, %v7146, -inf
    %v7242 = vsel %vm1220, %v7147, -inf
    %v7243 = vmax.f32 %v7241, %v7242
    %v7244 = vrot.slane %v7243, 4
    %v7245 = vmax.f32 %v7243, %v7244
    %v7246 = vrot.slane %v7245, 2
    %v7247 = vmax.f32 %v7245, %v7246
    %v7248 = vrot.slane %v7247, 1
    %v7249 = vmax.f32 %v7247, %v7248
    %v7250 = vsel %vm1220, %v7148, -inf
    %v7251 = vsel %vm1220, %v7149, -inf
    %v7252 = vmax.f32 %v7250, %v7251
    %v7253 = vrot.slane %v7252, 4
    %v7254 = vmax.f32 %v7252, %v7253
    %v7255 = vrot.slane %v7254, 2
    %v7256 = vmax.f32 %v7254, %v7255
    %v7257 = vrot.slane %v7256, 1
    %v7258 = vmax.f32 %v7256, %v7257
    %v7259 = vsel %vm1220, %v7150, -inf
    %v7260 = vsel %vm1220, %v7151, -inf
    %v7261 = vmax.f32 %v7259, %v7260
    %v7262 = vrot.slane %v7261, 4
    %v7263 = vmax.f32 %v7261, %v7262
    %v7264 = vrot.slane %v7263, 2
    %v7265 = vmax.f32 %v7263, %v7264
    %v7266 = vrot.slane %v7265, 1
    %v7267 = vmax.f32 %v7265, %v7266
    %v7268 = vsel %vm1220, %v7152, -inf
    %v7269 = vsel %vm1220, %v7153, -inf
    %v7270 = vmax.f32 %v7268, %v7269
    %v7271 = vrot.slane %v7270, 4
    %v7272 = vmax.f32 %v7270, %v7271
    %v7273 = vrot.slane %v7272, 2
    %v7274 = vmax.f32 %v7272, %v7273
    %v7275 = vrot.slane %v7274, 1
    %v7276 = vmax.f32 %v7274, %v7275
    %v7277 = vsel %vm1220, %v7154, -inf
    %v7278 = vsel %vm1220, %v7155, -inf
    %v7279 = vmax.f32 %v7277, %v7278
    %v7280 = vrot.slane %v7279, 4
    %v7281 = vmax.f32 %v7279, %v7280
    %v7282 = vrot.slane %v7281, 2
    %v7283 = vmax.f32 %v7281, %v7282
    %v7284 = vrot.slane %v7283, 1
    %v7285 = vmax.f32 %v7283, %v7284
    %v7286 = vsel %vm1220, %v7156, -inf
    %v7287 = vsel %vm1220, %v7157, -inf
    %v7288 = vmax.f32 %v7286, %v7287
    %v7289 = vrot.slane %v7288, 4
    %v7290 = vmax.f32 %v7288, %v7289
    %v7291 = vrot.slane %v7290, 2
    %v7292 = vmax.f32 %v7290, %v7291
    %v7293 = vrot.slane %v7292, 1
    %v7294 = vmax.f32 %v7292, %v7293
    %v7295 = vsel %vm1220, %v7158, -inf
    %v7296 = vsel %vm1220, %v7159, -inf
    %v7297 = vmax.f32 %v7295, %v7296
    %v7298 = vrot.slane %v7297, 4
    %v7299 = vmax.f32 %v7297, %v7298
    %v7300 = vrot.slane %v7299, 2
    %v7301 = vmax.f32 %v7299, %v7300
    %v7302 = vrot.slane %v7301, 1
    %v7303 = vmax.f32 %v7301, %v7302
    %v7304 = vsub.f32 %v7128, %v7168
    %v7305 = vsub.f32 %v7129, %v7168
    %v7306 = vsub.f32 %v7130, %v7177
    %v7307 = vsub.f32 %v7131, %v7177
    %v7308 = vsub.f32 %v7132, %v7186
    %v7309 = vsub.f32 %v7133, %v7186
    %v7310 = vsub.f32 %v7134, %v7195
    %v7311 = vsub.f32 %v7135, %v7195
    %v7312 = vsub.f32 %v7136, %v7204
    %v7313 = vsub.f32 %v7137, %v7204
    %v7314 = vsub.f32 %v7138, %v7213
    %v7315 = vsub.f32 %v7139, %v7213
    %v7316 = vsub.f32 %v7140, %v7222
    %v7317 = vsub.f32 %v7141, %v7222
    %v7318 = vsub.f32 %v7142, %v7231
    %v7319 = vsub.f32 %v7143, %v7231
    %v7320 = vsub.f32 %v7144, %v7240
    %v7321 = vsub.f32 %v7145, %v7240
    %v7322 = vsub.f32 %v7146, %v7249
    %v7323 = vsub.f32 %v7147, %v7249
    %v7324 = vsub.f32 %v7148, %v7258
    %v7325 = vsub.f32 %v7149, %v7258
    %v7326 = vsub.f32 %v7150, %v7267
    %v7327 = vsub.f32 %v7151, %v7267
    %v7328 = vsub.f32 %v7152, %v7276
    %v7329 = vsub.f32 %v7153, %v7276
    %v7330 = vsub.f32 %v7154, %v7285
    %v7331 = vsub.f32 %v7155, %v7285
    %v7332 = vsub.f32 %v7156, %v7294
    %v7333 = vsub.f32 %v7157, %v7294
    %v7334 = vsub.f32 %v7158, %v7303
    %v7335 = vsub.f32 %v7159, %v7303
    %v7336 = vmul.f32 %v7304, 1.442695
    %v7337 = vpow.pop %v7336
    %v7338 = vmul.f32 %v7305, 1.442695
    %v7339 = vpow.pop %v7338
    %v7340 = vmul.f32 %v7306, 1.442695
    %v7341 = vpow.pop %v7340
    %v7342 = vmul.f32 %v7307, 1.442695
    %v7343 = vpow.pop %v7342
    %v7344 = vmul.f32 %v7308, 1.442695
    %v7345 = vpow.pop %v7344
    %v7346 = vmul.f32 %v7309, 1.442695
    %v7347 = vpow.pop %v7346
    %v7348 = vmul.f32 %v7310, 1.442695
    %v7349 = vpow.pop %v7348
    %v7350 = vmul.f32 %v7311, 1.442695
    %v7351 = vpow.pop %v7350
    %v7352 = vmul.f32 %v7312, 1.442695
    %v7353 = vpow.pop %v7352
    %v7354 = vmul.f32 %v7313, 1.442695
    %v7355 = vpow.pop %v7354
    %v7356 = vmul.f32 %v7314, 1.442695
    %v7357 = vpow.pop %v7356
    %v7358 = vmul.f32 %v7315, 1.442695
    %v7359 = vpow.pop %v7358
    %v7360 = vmul.f32 %v7316, 1.442695
    %v7361 = vpow.pop %v7360
    %v7362 = vmul.f32 %v7317, 1.442695
    %v7363 = vpow.pop %v7362
    %v7364 = vmul.f32 %v7318, 1.442695
    %v7365 = vpow.pop %v7364
    %v7366 = vmul.f32 %v7319, 1.442695
    %v7367 = vpow.pop %v7366
    %v7368 = vmul.f32 %v7320, 1.442695
    %v7369 = vpow.pop %v7368
    %v7370 = vmul.f32 %v7321, 1.442695
    %v7371 = vpow.pop %v7370
    %v7372 = vmul.f32 %v7322, 1.442695
    %v7373 = vpow.pop %v7372
    %v7374 = vmul.f32 %v7323, 1.442695
    %v7375 = vpow.pop %v7374
    %v7376 = vmul.f32 %v7324, 1.442695
    %v7377 = vpow.pop %v7376
    %v7378 = vmul.f32 %v7325, 1.442695
    %v7379 = vpow.pop %v7378
    %v7380 = vmul.f32 %v7326, 1.442695
    %v7381 = vpow.pop %v7380
    %v7382 = vmul.f32 %v7327, 1.442695
    %v7383 = vpow.pop %v7382
    %v7384 = vmul.f32 %v7328, 1.442695
    %v7385 = vpow.pop %v7384
    %v7386 = vmul.f32 %v7329, 1.442695
    %v7387 = vpow.pop %v7386
    %v7388 = vmul.f32 %v7330, 1.442695
    %v7389 = vpow.pop %v7388
    %v7390 = vmul.f32 %v7331, 1.442695
    %v7391 = vpow.pop %v7390
    %v7392 = vmul.f32 %v7332, 1.442695
    %v7393 = vpow.pop %v7392
    %v7394 = vmul.f32 %v7333, 1.442695
    %v7395 = vpow.pop %v7394
    %v7396 = vmul.f32 %v7334, 1.442695
    %v7397 = vpow.pop %v7396
    %v7398 = vmul.f32 %v7335, 1.442695
    %v7399 = vpow.pop %v7398
    %v7400 = vsel %vm1220, %v7337, 0.0
    %v7401 = vsel %vm1220, %v7339, 0.0
    %v7402 = vadd.f32 %v7400, %v7401
    %v7403 = vrot.slane %v7402, 4
    %v7404 = vadd.f32 %v7402, %v7403
    %v7405 = vrot.slane %v7404, 2
    %v7406 = vadd.f32 %v7404, %v7405
    %v7407 = vrot.slane %v7406, 1
    %v7408 = vadd.f32 %v7406, %v7407
    %v7409 = vsel %vm1220, %v7341, 0.0
    %v7410 = vsel %vm1220, %v7343, 0.0
    %v7411 = vadd.f32 %v7409, %v7410
    %v7412 = vrot.slane %v7411, 4
    %v7413 = vadd.f32 %v7411, %v7412
    %v7414 = vrot.slane %v7413, 2
    %v7415 = vadd.f32 %v7413, %v7414
    %v7416 = vrot.slane %v7415, 1
    %v7417 = vadd.f32 %v7415, %v7416
    %v7418 = vsel %vm1220, %v7345, 0.0
    %v7419 = vsel %vm1220, %v7347, 0.0
    %v7420 = vadd.f32 %v7418, %v7419
    %v7421 = vrot.slane %v7420, 4
    %v7422 = vadd.f32 %v7420, %v7421
    %v7423 = vrot.slane %v7422, 2
    %v7424 = vadd.f32 %v7422, %v7423
    %v7425 = vrot.slane %v7424, 1
    %v7426 = vadd.f32 %v7424, %v7425
    %v7427 = vsel %vm1220, %v7349, 0.0
    %v7428 = vsel %vm1220, %v7351, 0.0
    %v7429 = vadd.f32 %v7427, %v7428
    %v7430 = vrot.slane %v7429, 4
    %v7431 = vadd.f32 %v7429, %v7430
    %v7432 = vrot.slane %v7431, 2
    %v7433 = vadd.f32 %v7431, %v7432
    %v7434 = vrot.slane %v7433, 1
    %v7435 = vadd.f32 %v7433, %v7434
    %v7436 = vsel %vm1220, %v7353, 0.0
    %v7437 = vsel %vm1220, %v7355, 0.0
    %v7438 = vadd.f32 %v7436, %v7437
    %v7439 = vrot.slane %v7438, 4
    %v7440 = vadd.f32 %v7438, %v7439
    %v7441 = vrot.slane %v7440, 2
    %v7442 = vadd.f32 %v7440, %v7441
    %v7443 = vrot.slane %v7442, 1
    %v7444 = vadd.f32 %v7442, %v7443
    %v7445 = vsel %vm1220, %v7357, 0.0
    %v7446 = vsel %vm1220, %v7359, 0.0
    %v7447 = vadd.f32 %v7445, %v7446
    %v7448 = vrot.slane %v7447, 4
    %v7449 = vadd.f32 %v7447, %v7448
    %v7450 = vrot.slane %v7449, 2
    %v7451 = vadd.f32 %v7449, %v7450
    %v7452 = vrot.slane %v7451, 1
    %v7453 = vadd.f32 %v7451, %v7452
    %v7454 = vsel %vm1220, %v7361, 0.0
    %v7455 = vsel %vm1220, %v7363, 0.0
    %v7456 = vadd.f32 %v7454, %v7455
    %v7457 = vrot.slane %v7456, 4
    %v7458 = vadd.f32 %v7456, %v7457
    %v7459 = vrot.slane %v7458, 2
    %v7460 = vadd.f32 %v7458, %v7459
    %v7461 = vrot.slane %v7460, 1
    %v7462 = vadd.f32 %v7460, %v7461
    %v7463 = vsel %vm1220, %v7365, 0.0
    %v7464 = vsel %vm1220, %v7367, 0.0
    %v7465 = vadd.f32 %v7463, %v7464
    %v7466 = vrot.slane %v7465, 4
    %v7467 = vadd.f32 %v7465, %v7466
    %v7468 = vrot.slane %v7467, 2
    %v7469 = vadd.f32 %v7467, %v7468
    %v7470 = vrot.slane %v7469, 1
    %v7471 = vadd.f32 %v7469, %v7470
    %v7472 = vsel %vm1220, %v7369, 0.0
    %v7473 = vsel %vm1220, %v7371, 0.0
    %v7474 = vadd.f32 %v7472, %v7473
    %v7475 = vrot.slane %v7474, 4
    %v7476 = vadd.f32 %v7474, %v7475
    %v7477 = vrot.slane %v7476, 2
    %v7478 = vadd.f32 %v7476, %v7477
    %v7479 = vrot.slane %v7478, 1
    %v7480 = vadd.f32 %v7478, %v7479
    %v7481 = vsel %vm1220, %v7373, 0.0
    %v7482 = vsel %vm1220, %v7375, 0.0
    %v7483 = vadd.f32 %v7481, %v7482
    %v7484 = vrot.slane %v7483, 4
    %v7485 = vadd.f32 %v7483, %v7484
    %v7486 = vrot.slane %v7485, 2
    %v7487 = vadd.f32 %v7485, %v7486
    %v7488 = vrot.slane %v7487, 1
    %v7489 = vadd.f32 %v7487, %v7488
    %v7490 = vsel %vm1220, %v7377, 0.0
    %v7491 = vsel %vm1220, %v7379, 0.0
    %v7492 = vadd.f32 %v7490, %v7491
    %v7493 = vrot.slane %v7492, 4
    %v7494 = vadd.f32 %v7492, %v7493
    %v7495 = vrot.slane %v7494, 2
    %v7496 = vadd.f32 %v7494, %v7495
    %v7497 = vrot.slane %v7496, 1
    %v7498 = vadd.f32 %v7496, %v7497
    %v7499 = vsel %vm1220, %v7381, 0.0
    %v7500 = vsel %vm1220, %v7383, 0.0
    %v7501 = vadd.f32 %v7499, %v7500
    %v7502 = vrot.slane %v7501, 4
    %v7503 = vadd.f32 %v7501, %v7502
    %v7504 = vrot.slane %v7503, 2
    %v7505 = vadd.f32 %v7503, %v7504
    %v7506 = vrot.slane %v7505, 1
    %v7507 = vadd.f32 %v7505, %v7506
    %v7508 = vsel %vm1220, %v7385, 0.0
    %v7509 = vsel %vm1220, %v7387, 0.0
    %v7510 = vadd.f32 %v7508, %v7509
    %v7511 = vrot.slane %v7510, 4
    %v7512 = vadd.f32 %v7510, %v7511
    %v7513 = vrot.slane %v7512, 2
    %v7514 = vadd.f32 %v7512, %v7513
    %v7515 = vrot.slane %v7514, 1
    %v7516 = vadd.f32 %v7514, %v7515
    %v7517 = vsel %vm1220, %v7389, 0.0
    %v7518 = vsel %vm1220, %v7391, 0.0
    %v7519 = vadd.f32 %v7517, %v7518
    %v7520 = vrot.slane %v7519, 4
    %v7521 = vadd.f32 %v7519, %v7520
    %v7522 = vrot.slane %v7521, 2
    %v7523 = vadd.f32 %v7521, %v7522
    %v7524 = vrot.slane %v7523, 1
    %v7525 = vadd.f32 %v7523, %v7524
    %v7526 = vsel %vm1220, %v7393, 0.0
    %v7527 = vsel %vm1220, %v7395, 0.0
    %v7528 = vadd.f32 %v7526, %v7527
    %v7529 = vrot.slane %v7528, 4
    %v7530 = vadd.f32 %v7528, %v7529
    %v7531 = vrot.slane %v7530, 2
    %v7532 = vadd.f32 %v7530, %v7531
    %v7533 = vrot.slane %v7532, 1
    %v7534 = vadd.f32 %v7532, %v7533
    %v7535 = vsel %vm1220, %v7397, 0.0
    %v7536 = vsel %vm1220, %v7399, 0.0
    %v7537 = vadd.f32 %v7535, %v7536
    %v7538 = vrot.slane %v7537, 4
    %v7539 = vadd.f32 %v7537, %v7538
    %v7540 = vrot.slane %v7539, 2
    %v7541 = vadd.f32 %v7539, %v7540
    %v7542 = vrot.slane %v7541, 1
    %v7543 = vadd.f32 %v7541, %v7542
    %v7544 = vrcp.pop %v7408
    %v7545 = vrcp.pop %v7417
    %v7546 = vrcp.pop %v7426
    %v7547 = vrcp.pop %v7435
    %v7548 = vrcp.pop %v7444
    %v7549 = vrcp.pop %v7453
    %v7550 = vrcp.pop %v7462
    %v7551 = vrcp.pop %v7471
    %v7552 = vrcp.pop %v7480
    %v7553 = vrcp.pop %v7489
    %v7554 = vrcp.pop %v7498
    %v7555 = vrcp.pop %v7507
    %v7556 = vrcp.pop %v7516
    %v7557 = vrcp.pop %v7525
    %v7558 = vrcp.pop %v7534
    %v7559 = vrcp.pop %v7543
    %v7560 = vmul.f32 %v7337, %v7544
    %v7561 = vmul.f32 %v7339, %v7544
    %v7562 = vmul.f32 %v7341, %v7545
    %v7563 = vmul.f32 %v7343, %v7545
    %v7564 = vmul.f32 %v7345, %v7546
    %v7565 = vmul.f32 %v7347, %v7546
    %v7566 = vmul.f32 %v7349, %v7547
    %v7567 = vmul.f32 %v7351, %v7547
    %v7568 = vmul.f32 %v7353, %v7548
    %v7569 = vmul.f32 %v7355, %v7548
    %v7570 = vmul.f32 %v7357, %v7549
    %v7571 = vmul.f32 %v7359, %v7549
    %v7572 = vmul.f32 %v7361, %v7550
    %v7573 = vmul.f32 %v7363, %v7550
    %v7574 = vmul.f32 %v7365, %v7551
    %v7575 = vmul.f32 %v7367, %v7551
    %v7576 = vmul.f32 %v7369, %v7552
    %v7577 = vmul.f32 %v7371, %v7552
    %v7578 = vmul.f32 %v7373, %v7553
    %v7579 = vmul.f32 %v7375, %v7553
    %v7580 = vmul.f32 %v7377, %v7554
    %v7581 = vmul.f32 %v7379, %v7554
    %v7582 = vmul.f32 %v7381, %v7555
    %v7583 = vmul.f32 %v7383, %v7555
    %v7584 = vmul.f32 %v7385, %v7556
    %v7585 = vmul.f32 %v7387, %v7556
    %v7586 = vmul.f32 %v7389, %v7557
    %v7587 = vmul.f32 %v7391, %v7557
    %v7588 = vmul.f32 %v7393, %v7558
    %v7589 = vmul.f32 %v7395, %v7558
    %v7590 = vmul.f32 %v7397, %v7559
    %v7591 = vmul.f32 %v7399, %v7559
    %v7592 = vmul.f32 %v7560, %v6697
    %v7593 = vmul.f32 %v7561, %v6700
    %v7594 = vmul.f32 %v7562, %v6697
    %v7595 = vmul.f32 %v7563, %v6700
    %v7596 = vmul.f32 %v7564, %v6697
    %v7597 = vmul.f32 %v7565, %v6700
    %v7598 = vmul.f32 %v7566, %v6697
    %v7599 = vmul.f32 %v7567, %v6700
    %v7600 = vmul.f32 %v7568, %v6697
    %v7601 = vmul.f32 %v7569, %v6700
    %v7602 = vmul.f32 %v7570, %v6697
    %v7603 = vmul.f32 %v7571, %v6700
    %v7604 = vmul.f32 %v7572, %v6697
    %v7605 = vmul.f32 %v7573, %v6700
    %v7606 = vmul.f32 %v7574, %v6697
    %v7607 = vmul.f32 %v7575, %v6700
    %v7608 = vmul.f32 %v7576, %v6697
    %v7609 = vmul.f32 %v7577, %v6700
    %v7610 = vmul.f32 %v7578, %v6697
    %v7611 = vmul.f32 %v7579, %v6700
    %v7612 = vmul.f32 %v7580, %v6697
    %v7613 = vmul.f32 %v7581, %v6700
    %v7614 = vmul.f32 %v7582, %v6697
    %v7615 = vmul.f32 %v7583, %v6700
    %v7616 = vmul.f32 %v7584, %v6697
    %v7617 = vmul.f32 %v7585, %v6700
    %v7618 = vmul.f32 %v7586, %v6697
    %v7619 = vmul.f32 %v7587, %v6700
    %v7620 = vmul.f32 %v7588, %v6697
    %v7621 = vmul.f32 %v7589, %v6700
    %v7622 = vmul.f32 %v7590, %v6697
    %v7623 = vmul.f32 %v7591, %v6700
    %v7624 = vsel %vm1220, %v7592, 0.0
    %v7625 = vsel %vm1220, %v7593, 0.0
    %v7626 = vadd.f32 %v7624, %v7625
    %v7627 = vrot.slane %v7626, 4
    %v7628 = vadd.f32 %v7626, %v7627
    %v7629 = vrot.slane %v7628, 2
    %v7630 = vadd.f32 %v7628, %v7629
    %v7631 = vrot.slane %v7630, 1
    %v7632 = vadd.f32 %v7630, %v7631
    %v7633 = vsel %vm1220, %v7594, 0.0
    %v7634 = vsel %vm1220, %v7595, 0.0
    %v7635 = vadd.f32 %v7633, %v7634
    %v7636 = vrot.slane %v7635, 4
    %v7637 = vadd.f32 %v7635, %v7636
    %v7638 = vrot.slane %v7637, 2
    %v7639 = vadd.f32 %v7637, %v7638
    %v7640 = vrot.slane %v7639, 1
    %v7641 = vadd.f32 %v7639, %v7640
    %v7642 = vsel %vm1220, %v7596, 0.0
    %v7643 = vsel %vm1220, %v7597, 0.0
    %v7644 = vadd.f32 %v7642, %v7643
    %v7645 = vrot.slane %v7644, 4
    %v7646 = vadd.f32 %v7644, %v7645
    %v7647 = vrot.slane %v7646, 2
    %v7648 = vadd.f32 %v7646, %v7647
    %v7649 = vrot.slane %v7648, 1
    %v7650 = vadd.f32 %v7648, %v7649
    %v7651 = vsel %vm1220, %v7598, 0.0
    %v7652 = vsel %vm1220, %v7599, 0.0
    %v7653 = vadd.f32 %v7651, %v7652
    %v7654 = vrot.slane %v7653, 4
    %v7655 = vadd.f32 %v7653, %v7654
    %v7656 = vrot.slane %v7655, 2
    %v7657 = vadd.f32 %v7655, %v7656
    %v7658 = vrot.slane %v7657, 1
    %v7659 = vadd.f32 %v7657, %v7658
    %v7660 = vsel %vm1220, %v7600, 0.0
    %v7661 = vsel %vm1220, %v7601, 0.0
    %v7662 = vadd.f32 %v7660, %v7661
    %v7663 = vrot.slane %v7662, 4
    %v7664 = vadd.f32 %v7662, %v7663
    %v7665 = vrot.slane %v7664, 2
    %v7666 = vadd.f32 %v7664, %v7665
    %v7667 = vrot.slane %v7666, 1
    %v7668 = vadd.f32 %v7666, %v7667
    %v7669 = vsel %vm1220, %v7602, 0.0
    %v7670 = vsel %vm1220, %v7603, 0.0
    %v7671 = vadd.f32 %v7669, %v7670
    %v7672 = vrot.slane %v7671, 4
    %v7673 = vadd.f32 %v7671, %v7672
    %v7674 = vrot.slane %v7673, 2
    %v7675 = vadd.f32 %v7673, %v7674
    %v7676 = vrot.slane %v7675, 1
    %v7677 = vadd.f32 %v7675, %v7676
    %v7678 = vsel %vm1220, %v7604, 0.0
    %v7679 = vsel %vm1220, %v7605, 0.0
    %v7680 = vadd.f32 %v7678, %v7679
    %v7681 = vrot.slane %v7680, 4
    %v7682 = vadd.f32 %v7680, %v7681
    %v7683 = vrot.slane %v7682, 2
    %v7684 = vadd.f32 %v7682, %v7683
    %v7685 = vrot.slane %v7684, 1
    %v7686 = vadd.f32 %v7684, %v7685
    %v7687 = vsel %vm1220, %v7606, 0.0
    %v7688 = vsel %vm1220, %v7607, 0.0
    %v7689 = vadd.f32 %v7687, %v7688
    %v7690 = vrot.slane %v7689, 4
    %v7691 = vadd.f32 %v7689, %v7690
    %v7692 = vrot.slane %v7691, 2
    %v7693 = vadd.f32 %v7691, %v7692
    %v7694 = vrot.slane %v7693, 1
    %v7695 = vadd.f32 %v7693, %v7694
    %v7696 = vsel %vm1220, %v7608, 0.0
    %v7697 = vsel %vm1220, %v7609, 0.0
    %v7698 = vadd.f32 %v7696, %v7697
    %v7699 = vrot.slane %v7698, 4
    %v7700 = vadd.f32 %v7698, %v7699
    %v7701 = vrot.slane %v7700, 2
    %v7702 = vadd.f32 %v7700, %v7701
    %v7703 = vrot.slane %v7702, 1
    %v7704 = vadd.f32 %v7702, %v7703
    %v7705 = vsel %vm1220, %v7610, 0.0
    %v7706 = vsel %vm1220, %v7611, 0.0
    %v7707 = vadd.f32 %v7705, %v7706
    %v7708 = vrot.slane %v7707, 4
    %v7709 = vadd.f32 %v7707, %v7708
    %v7710 = vrot.slane %v7709, 2
    %v7711 = vadd.f32 %v7709, %v7710
    %v7712 = vrot.slane %v7711, 1
    %v7713 = vadd.f32 %v7711, %v7712
    %v7714 = vsel %vm1220, %v7612, 0.0
    %v7715 = vsel %vm1220, %v7613, 0.0
    %v7716 = vadd.f32 %v7714, %v7715
    %v7717 = vrot.slane %v7716, 4
    %v7718 = vadd.f32 %v7716, %v7717
    %v7719 = vrot.slane %v7718, 2
    %v7720 = vadd.f32 %v7718, %v7719
    %v7721 = vrot.slane %v7720, 1
    %v7722 = vadd.f32 %v7720, %v7721
    %v7723 = vsel %vm1220, %v7614, 0.0
    %v7724 = vsel %vm1220, %v7615, 0.0
    %v7725 = vadd.f32 %v7723, %v7724
    %v7726 = vrot.slane %v7725, 4
    %v7727 = vadd.f32 %v7725, %v7726
    %v7728 = vrot.slane %v7727, 2
    %v7729 = vadd.f32 %v7727, %v7728
    %v7730 = vrot.slane %v7729, 1
    %v7731 = vadd.f32 %v7729, %v7730
    %v7732 = vsel %vm1220, %v7616, 0.0
    %v7733 = vsel %vm1220, %v7617, 0.0
    %v7734 = vadd.f32 %v7732, %v7733
    %v7735 = vrot.slane %v7734, 4
    %v7736 = vadd.f32 %v7734, %v7735
    %v7737 = vrot.slane %v7736, 2
    %v7738 = vadd.f32 %v7736, %v7737
    %v7739 = vrot.slane %v7738, 1
    %v7740 = vadd.f32 %v7738, %v7739
    %v7741 = vsel %vm1220, %v7618, 0.0
    %v7742 = vsel %vm1220, %v7619, 0.0
    %v7743 = vadd.f32 %v7741, %v7742
    %v7744 = vrot.slane %v7743, 4
    %v7745 = vadd.f32 %v7743, %v7744
    %v7746 = vrot.slane %v7745, 2
    %v7747 = vadd.f32 %v7745, %v7746
    %v7748 = vrot.slane %v7747, 1
    %v7749 = vadd.f32 %v7747, %v7748
    %v7750 = vsel %vm1220, %v7620, 0.0
    %v7751 = vsel %vm1220, %v7621, 0.0
    %v7752 = vadd.f32 %v7750, %v7751
    %v7753 = vrot.slane %v7752, 4
    %v7754 = vadd.f32 %v7752, %v7753
    %v7755 = vrot.slane %v7754, 2
    %v7756 = vadd.f32 %v7754, %v7755
    %v7757 = vrot.slane %v7756, 1
    %v7758 = vadd.f32 %v7756, %v7757
    %v7759 = vsel %vm1220, %v7622, 0.0
    %v7760 = vsel %vm1220, %v7623, 0.0
    %v7761 = vadd.f32 %v7759, %v7760
    %v7762 = vrot.slane %v7761, 4
    %v7763 = vadd.f32 %v7761, %v7762
    %v7764 = vrot.slane %v7763, 2
    %v7765 = vadd.f32 %v7763, %v7764
    %v7766 = vrot.slane %v7765, 1
    %v7767 = vadd.f32 %v7765, %v7766
    %v7768 = vmul.f32 %v7560, %v6703
    %v7769 = vmul.f32 %v7561, %v6706
    %v7770 = vmul.f32 %v7562, %v6703
    %v7771 = vmul.f32 %v7563, %v6706
    %v7772 = vmul.f32 %v7564, %v6703
    %v7773 = vmul.f32 %v7565, %v6706
    %v7774 = vmul.f32 %v7566, %v6703
    %v7775 = vmul.f32 %v7567, %v6706
    %v7776 = vmul.f32 %v7568, %v6703
    %v7777 = vmul.f32 %v7569, %v6706
    %v7778 = vmul.f32 %v7570, %v6703
    %v7779 = vmul.f32 %v7571, %v6706
    %v7780 = vmul.f32 %v7572, %v6703
    %v7781 = vmul.f32 %v7573, %v6706
    %v7782 = vmul.f32 %v7574, %v6703
    %v7783 = vmul.f32 %v7575, %v6706
    %v7784 = vmul.f32 %v7576, %v6703
    %v7785 = vmul.f32 %v7577, %v6706
    %v7786 = vmul.f32 %v7578, %v6703
    %v7787 = vmul.f32 %v7579, %v6706
    %v7788 = vmul.f32 %v7580, %v6703
    %v7789 = vmul.f32 %v7581, %v6706
    %v7790 = vmul.f32 %v7582, %v6703
    %v7791 = vmul.f32 %v7583, %v6706
    %v7792 = vmul.f32 %v7584, %v6703
    %v7793 = vmul.f32 %v7585, %v6706
    %v7794 = vmul.f32 %v7586, %v6703
    %v7795 = vmul.f32 %v7587, %v6706
    %v7796 = vmul.f32 %v7588, %v6703
    %v7797 = vmul.f32 %v7589, %v6706
    %v7798 = vmul.f32 %v7590, %v6703
    %v7799 = vmul.f32 %v7591, %v6706
    %v7800 = vsel %vm1220, %v7768, 0.0
    %v7801 = vsel %vm1220, %v7769, 0.0
    %v7802 = vadd.f32 %v7800, %v7801
    %v7803 = vrot.slane %v7802, 4
    %v7804 = vadd.f32 %v7802, %v7803
    %v7805 = vrot.slane %v7804, 2
    %v7806 = vadd.f32 %v7804, %v7805
    %v7807 = vrot.slane %v7806, 1
    %v7808 = vadd.f32 %v7806, %v7807
    %v7809 = vsel %vm1220, %v7770, 0.0
    %v7810 = vsel %vm1220, %v7771, 0.0
    %v7811 = vadd.f32 %v7809, %v7810
    %v7812 = vrot.slane %v7811, 4
    %v7813 = vadd.f32 %v7811, %v7812
    %v7814 = vrot.slane %v7813, 2
    %v7815 = vadd.f32 %v7813, %v7814
    %v7816 = vrot.slane %v7815, 1
    %v7817 = vadd.f32 %v7815, %v7816
    %v7818 = vsel %vm1220, %v7772, 0.0
    %v7819 = vsel %vm1220, %v7773, 0.0
    %v7820 = vadd.f32 %v7818, %v7819
    %v7821 = vrot.slane %v7820, 4
    %v7822 = vadd.f32 %v7820, %v7821
    %v7823 = vrot.slane %v7822, 2
    %v7824 = vadd.f32 %v7822, %v7823
    %v7825 = vrot.slane %v7824, 1
    %v7826 = vadd.f32 %v7824, %v7825
    %v7827 = vsel %vm1220, %v7774, 0.0
    %v7828 = vsel %vm1220, %v7775, 0.0
    %v7829 = vadd.f32 %v7827, %v7828
    %v7830 = vrot.slane %v7829, 4
    %v7831 = vadd.f32 %v7829, %v7830
    %v7832 = vrot.slane %v7831, 2
    %v7833 = vadd.f32 %v7831, %v7832
    %v7834 = vrot.slane %v7833, 1
    %v7835 = vadd.f32 %v7833, %v7834
    %v7836 = vsel %vm1220, %v7776, 0.0
    %v7837 = vsel %vm1220, %v7777, 0.0
    %v7838 = vadd.f32 %v7836, %v7837
    %v7839 = vrot.slane %v7838, 4
    %v7840 = vadd.f32 %v7838, %v7839
    %v7841 = vrot.slane %v7840, 2
    %v7842 = vadd.f32 %v7840, %v7841
    %v7843 = vrot.slane %v7842, 1
    %v7844 = vadd.f32 %v7842, %v7843
    %v7845 = vsel %vm1220, %v7778, 0.0
    %v7846 = vsel %vm1220, %v7779, 0.0
    %v7847 = vadd.f32 %v7845, %v7846
    %v7848 = vrot.slane %v7847, 4
    %v7849 = vadd.f32 %v7847, %v7848
    %v7850 = vrot.slane %v7849, 2
    %v7851 = vadd.f32 %v7849, %v7850
    %v7852 = vrot.slane %v7851, 1
    %v7853 = vadd.f32 %v7851, %v7852
    %v7854 = vsel %vm1220, %v7780, 0.0
    %v7855 = vsel %vm1220, %v7781, 0.0
    %v7856 = vadd.f32 %v7854, %v7855
    %v7857 = vrot.slane %v7856, 4
    %v7858 = vadd.f32 %v7856, %v7857
    %v7859 = vrot.slane %v7858, 2
    %v7860 = vadd.f32 %v7858, %v7859
    %v7861 = vrot.slane %v7860, 1
    %v7862 = vadd.f32 %v7860, %v7861
    %v7863 = vsel %vm1220, %v7782, 0.0
    %v7864 = vsel %vm1220, %v7783, 0.0
    %v7865 = vadd.f32 %v7863, %v7864
    %v7866 = vrot.slane %v7865, 4
    %v7867 = vadd.f32 %v7865, %v7866
    %v7868 = vrot.slane %v7867, 2
    %v7869 = vadd.f32 %v7867, %v7868
    %v7870 = vrot.slane %v7869, 1
    %v7871 = vadd.f32 %v7869, %v7870
    %v7872 = vsel %vm1220, %v7784, 0.0
    %v7873 = vsel %vm1220, %v7785, 0.0
    %v7874 = vadd.f32 %v7872, %v7873
    %v7875 = vrot.slane %v7874, 4
    %v7876 = vadd.f32 %v7874, %v7875
    %v7877 = vrot.slane %v7876, 2
    %v7878 = vadd.f32 %v7876, %v7877
    %v7879 = vrot.slane %v7878, 1
    %v7880 = vadd.f32 %v7878, %v7879
    %v7881 = vsel %vm1220, %v7786, 0.0
    %v7882 = vsel %vm1220, %v7787, 0.0
    %v7883 = vadd.f32 %v7881, %v7882
    %v7884 = vrot.slane %v7883, 4
    %v7885 = vadd.f32 %v7883, %v7884
    %v7886 = vrot.slane %v7885, 2
    %v7887 = vadd.f32 %v7885, %v7886
    %v7888 = vrot.slane %v7887, 1
    %v7889 = vadd.f32 %v7887, %v7888
    %v7890 = vsel %vm1220, %v7788, 0.0
    %v7891 = vsel %vm1220, %v7789, 0.0
    %v7892 = vadd.f32 %v7890, %v7891
    %v7893 = vrot.slane %v7892, 4
    %v7894 = vadd.f32 %v7892, %v7893
    %v7895 = vrot.slane %v7894, 2
    %v7896 = vadd.f32 %v7894, %v7895
    %v7897 = vrot.slane %v7896, 1
    %v7898 = vadd.f32 %v7896, %v7897
    %v7899 = vsel %vm1220, %v7790, 0.0
    %v7900 = vsel %vm1220, %v7791, 0.0
    %v7901 = vadd.f32 %v7899, %v7900
    %v7902 = vrot.slane %v7901, 4
    %v7903 = vadd.f32 %v7901, %v7902
    %v7904 = vrot.slane %v7903, 2
    %v7905 = vadd.f32 %v7903, %v7904
    %v7906 = vrot.slane %v7905, 1
    %v7907 = vadd.f32 %v7905, %v7906
    %v7908 = vsel %vm1220, %v7792, 0.0
    %v7909 = vsel %vm1220, %v7793, 0.0
    %v7910 = vadd.f32 %v7908, %v7909
    %v7911 = vrot.slane %v7910, 4
    %v7912 = vadd.f32 %v7910, %v7911
    %v7913 = vrot.slane %v7912, 2
    %v7914 = vadd.f32 %v7912, %v7913
    %v7915 = vrot.slane %v7914, 1
    %v7916 = vadd.f32 %v7914, %v7915
    %v7917 = vsel %vm1220, %v7794, 0.0
    %v7918 = vsel %vm1220, %v7795, 0.0
    %v7919 = vadd.f32 %v7917, %v7918
    %v7920 = vrot.slane %v7919, 4
    %v7921 = vadd.f32 %v7919, %v7920
    %v7922 = vrot.slane %v7921, 2
    %v7923 = vadd.f32 %v7921, %v7922
    %v7924 = vrot.slane %v7923, 1
    %v7925 = vadd.f32 %v7923, %v7924
    %v7926 = vsel %vm1220, %v7796, 0.0
    %v7927 = vsel %vm1220, %v7797, 0.0
    %v7928 = vadd.f32 %v7926, %v7927
    %v7929 = vrot.slane %v7928, 4
    %v7930 = vadd.f32 %v7928, %v7929
    %v7931 = vrot.slane %v7930, 2
    %v7932 = vadd.f32 %v7930, %v7931
    %v7933 = vrot.slane %v7932, 1
    %v7934 = vadd.f32 %v7932, %v7933
    %v7935 = vsel %vm1220, %v7798, 0.0
    %v7936 = vsel %vm1220, %v7799, 0.0
    %v7937 = vadd.f32 %v7935, %v7936
    %v7938 = vrot.slane %v7937, 4
    %v7939 = vadd.f32 %v7937, %v7938
    %v7940 = vrot.slane %v7939, 2
    %v7941 = vadd.f32 %v7939, %v7940
    %v7942 = vrot.slane %v7941, 1
    %v7943 = vadd.f32 %v7941, %v7942
    %v7944 = vmul.f32 %v7560, %v6709
    %v7945 = vmul.f32 %v7561, %v6712
    %v7946 = vmul.f32 %v7562, %v6709
    %v7947 = vmul.f32 %v7563, %v6712
    %v7948 = vmul.f32 %v7564, %v6709
    %v7949 = vmul.f32 %v7565, %v6712
    %v7950 = vmul.f32 %v7566, %v6709
    %v7951 = vmul.f32 %v7567, %v6712
    %v7952 = vmul.f32 %v7568, %v6709
    %v7953 = vmul.f32 %v7569, %v6712
    %v7954 = vmul.f32 %v7570, %v6709
    %v7955 = vmul.f32 %v7571, %v6712
    %v7956 = vmul.f32 %v7572, %v6709
    %v7957 = vmul.f32 %v7573, %v6712
    %v7958 = vmul.f32 %v7574, %v6709
    %v7959 = vmul.f32 %v7575, %v6712
    %v7960 = vmul.f32 %v7576, %v6709
    %v7961 = vmul.f32 %v7577, %v6712
    %v7962 = vmul.f32 %v7578, %v6709
    %v7963 = vmul.f32 %v7579, %v6712
    %v7964 = vmul.f32 %v7580, %v6709
    %v7965 = vmul.f32 %v7581, %v6712
    %v7966 = vmul.f32 %v7582, %v6709
    %v7967 = vmul.f32 %v7583, %v6712
    %v7968 = vmul.f32 %v7584, %v6709
    %v7969 = vmul.f32 %v7585, %v6712
    %v7970 = vmul.f32 %v7586, %v6709
    %v7971 = vmul.f32 %v7587, %v6712
    %v7972 = vmul.f32 %v7588, %v6709
    %v7973 = vmul.f32 %v7589, %v6712
    %v7974 = vmul.f32 %v7590, %v6709
    %v7975 = vmul.f32 %v7591, %v6712
    %v7976 = vsel %vm1220, %v7944, 0.0
    %v7977 = vsel %vm1220, %v7945, 0.0
    %v7978 = vadd.f32 %v7976, %v7977
    %v7979 = vrot.slane %v7978, 4
    %v7980 = vadd.f32 %v7978, %v7979
    %v7981 = vrot.slane %v7980, 2
    %v7982 = vadd.f32 %v7980, %v7981
    %v7983 = vrot.slane %v7982, 1
    %v7984 = vadd.f32 %v7982, %v7983
    %v7985 = vsel %vm1220, %v7946, 0.0
    %v7986 = vsel %vm1220, %v7947, 0.0
    %v7987 = vadd.f32 %v7985, %v7986
    %v7988 = vrot.slane %v7987, 4
    %v7989 = vadd.f32 %v7987, %v7988
    %v7990 = vrot.slane %v7989, 2
    %v7991 = vadd.f32 %v7989, %v7990
    %v7992 = vrot.slane %v7991, 1
    %v7993 = vadd.f32 %v7991, %v7992
    %v7994 = vsel %vm1220, %v7948, 0.0
    %v7995 = vsel %vm1220, %v7949, 0.0
    %v7996 = vadd.f32 %v7994, %v7995
    %v7997 = vrot.slane %v7996, 4
    %v7998 = vadd.f32 %v7996, %v7997
    %v7999 = vrot.slane %v7998, 2
    %v8000 = vadd.f32 %v7998, %v7999
    %v8001 = vrot.slane %v8000, 1
    %v8002 = vadd.f32 %v8000, %v8001
    %v8003 = vsel %vm1220, %v7950, 0.0
    %v8004 = vsel %vm1220, %v7951, 0.0
    %v8005 = vadd.f32 %v8003, %v8004
    %v8006 = vrot.slane %v8005, 4
    %v8007 = vadd.f32 %v8005, %v8006
    %v8008 = vrot.slane %v8007, 2
    %v8009 = vadd.f32 %v8007, %v8008
    %v8010 = vrot.slane %v8009, 1
    %v8011 = vadd.f32 %v8009, %v8010
    %v8012 = vsel %vm1220, %v7952, 0.0
    %v8013 = vsel %vm1220, %v7953, 0.0
    %v8014 = vadd.f32 %v8012, %v8013
    %v8015 = vrot.slane %v8014, 4
    %v8016 = vadd.f32 %v8014, %v8015
    %v8017 = vrot.slane %v8016, 2
    %v8018 = vadd.f32 %v8016, %v8017
    %v8019 = vrot.slane %v8018, 1
    %v8020 = vadd.f32 %v8018, %v8019
    %v8021 = vsel %vm1220, %v7954, 0.0
    %v8022 = vsel %vm1220, %v7955, 0.0
    %v8023 = vadd.f32 %v8021, %v8022
    %v8024 = vrot.slane %v8023, 4
    %v8025 = vadd.f32 %v8023, %v8024
    %v8026 = vrot.slane %v8025, 2
    %v8027 = vadd.f32 %v8025, %v8026
    %v8028 = vrot.slane %v8027, 1
    %v8029 = vadd.f32 %v8027, %v8028
    %v8030 = vsel %vm1220, %v7956, 0.0
    %v8031 = vsel %vm1220, %v7957, 0.0
    %v8032 = vadd.f32 %v8030, %v8031
    %v8033 = vrot.slane %v8032, 4
    %v8034 = vadd.f32 %v8032, %v8033
    %v8035 = vrot.slane %v8034, 2
    %v8036 = vadd.f32 %v8034, %v8035
    %v8037 = vrot.slane %v8036, 1
    %v8038 = vadd.f32 %v8036, %v8037
    %v8039 = vsel %vm1220, %v7958, 0.0
    %v8040 = vsel %vm1220, %v7959, 0.0
    %v8041 = vadd.f32 %v8039, %v8040
    %v8042 = vrot.slane %v8041, 4
    %v8043 = vadd.f32 %v8041, %v8042
    %v8044 = vrot.slane %v8043, 2
    %v8045 = vadd.f32 %v8043, %v8044
    %v8046 = vrot.slane %v8045, 1
    %v8047 = vadd.f32 %v8045, %v8046
    %v8048 = vsel %vm1220, %v7960, 0.0
    %v8049 = vsel %vm1220, %v7961, 0.0
    %v8050 = vadd.f32 %v8048, %v8049
    %v8051 = vrot.slane %v8050, 4
    %v8052 = vadd.f32 %v8050, %v8051
    %v8053 = vrot.slane %v8052, 2
    %v8054 = vadd.f32 %v8052, %v8053
    %v8055 = vrot.slane %v8054, 1
    %v8056 = vadd.f32 %v8054, %v8055
    %v8057 = vsel %vm1220, %v7962, 0.0
    %v8058 = vsel %vm1220, %v7963, 0.0
    %v8059 = vadd.f32 %v8057, %v8058
    %v8060 = vrot.slane %v8059, 4
    %v8061 = vadd.f32 %v8059, %v8060
    %v8062 = vrot.slane %v8061, 2
    %v8063 = vadd.f32 %v8061, %v8062
    %v8064 = vrot.slane %v8063, 1
    %v8065 = vadd.f32 %v8063, %v8064
    %v8066 = vsel %vm1220, %v7964, 0.0
    %v8067 = vsel %vm1220, %v7965, 0.0
    %v8068 = vadd.f32 %v8066, %v8067
    %v8069 = vrot.slane %v8068, 4
    %v8070 = vadd.f32 %v8068, %v8069
    %v8071 = vrot.slane %v8070, 2
    %v8072 = vadd.f32 %v8070, %v8071
    %v8073 = vrot.slane %v8072, 1
    %v8074 = vadd.f32 %v8072, %v8073
    %v8075 = vsel %vm1220, %v7966, 0.0
    %v8076 = vsel %vm1220, %v7967, 0.0
    %v8077 = vadd.f32 %v8075, %v8076
    %v8078 = vrot.slane %v8077, 4
    %v8079 = vadd.f32 %v8077, %v8078
    %v8080 = vrot.slane %v8079, 2
    %v8081 = vadd.f32 %v8079, %v8080
    %v8082 = vrot.slane %v8081, 1
    %v8083 = vadd.f32 %v8081, %v8082
    %v8084 = vsel %vm1220, %v7968, 0.0
    %v8085 = vsel %vm1220, %v7969, 0.0
    %v8086 = vadd.f32 %v8084, %v8085
    %v8087 = vrot.slane %v8086, 4
    %v8088 = vadd.f32 %v8086, %v8087
    %v8089 = vrot.slane %v8088, 2
    %v8090 = vadd.f32 %v8088, %v8089
    %v8091 = vrot.slane %v8090, 1
    %v8092 = vadd.f32 %v8090, %v8091
    %v8093 = vsel %vm1220, %v7970, 0.0
    %v8094 = vsel %vm1220, %v7971, 0.0
    %v8095 = vadd.f32 %v8093, %v8094
    %v8096 = vrot.slane %v8095, 4
    %v8097 = vadd.f32 %v8095, %v8096
    %v8098 = vrot.slane %v8097, 2
    %v8099 = vadd.f32 %v8097, %v8098
    %v8100 = vrot.slane %v8099, 1
    %v8101 = vadd.f32 %v8099, %v8100
    %v8102 = vsel %vm1220, %v7972, 0.0
    %v8103 = vsel %vm1220, %v7973, 0.0
    %v8104 = vadd.f32 %v8102, %v8103
    %v8105 = vrot.slane %v8104, 4
    %v8106 = vadd.f32 %v8104, %v8105
    %v8107 = vrot.slane %v8106, 2
    %v8108 = vadd.f32 %v8106, %v8107
    %v8109 = vrot.slane %v8108, 1
    %v8110 = vadd.f32 %v8108, %v8109
    %v8111 = vsel %vm1220, %v7974, 0.0
    %v8112 = vsel %vm1220, %v7975, 0.0
    %v8113 = vadd.f32 %v8111, %v8112
    %v8114 = vrot.slane %v8113, 4
    %v8115 = vadd.f32 %v8113, %v8114
    %v8116 = vrot.slane %v8115, 2
    %v8117 = vadd.f32 %v8115, %v8116
    %v8118 = vrot.slane %v8117, 1
    %v8119 = vadd.f32 %v8117, %v8118
    %v8120 = vmul.f32 %v7560, %v6715
    %v8121 = vmul.f32 %v7561, %v6718
    %v8122 = vmul.f32 %v7562, %v6715
    %v8123 = vmul.f32 %v7563, %v6718
    %v8124 = vmul.f32 %v7564, %v6715
    %v8125 = vmul.f32 %v7565, %v6718
    %v8126 = vmul.f32 %v7566, %v6715
    %v8127 = vmul.f32 %v7567, %v6718
    %v8128 = vmul.f32 %v7568, %v6715
    %v8129 = vmul.f32 %v7569, %v6718
    %v8130 = vmul.f32 %v7570, %v6715
    %v8131 = vmul.f32 %v7571, %v6718
    %v8132 = vmul.f32 %v7572, %v6715
    %v8133 = vmul.f32 %v7573, %v6718
    %v8134 = vmul.f32 %v7574, %v6715
    %v8135 = vmul.f32 %v7575, %v6718
    %v8136 = vmul.f32 %v7576, %v6715
    %v8137 = vmul.f32 %v7577, %v6718
    %v8138 = vmul.f32 %v7578, %v6715
    %v8139 = vmul.f32 %v7579, %v6718
    %v8140 = vmul.f32 %v7580, %v6715
    %v8141 = vmul.f32 %v7581, %v6718
    %v8142 = vmul.f32 %v7582, %v6715
    %v8143 = vmul.f32 %v7583, %v6718
    %v8144 = vmul.f32 %v7584, %v6715
    %v8145 = vmul.f32 %v7585, %v6718
    %v8146 = vmul.f32 %v7586, %v6715
    %v8147 = vmul.f32 %v7587, %v6718
    %v8148 = vmul.f32 %v7588, %v6715
    %v8149 = vmul.f32 %v7589, %v6718
    %v8150 = vmul.f32 %v7590, %v6715
    %v8151 = vmul.f32 %v7591, %v6718
    %v8152 = vsel %vm1220, %v8120, 0.0
    %v8153 = vsel %vm1220, %v8121, 0.0
    %v8154 = vadd.f32 %v8152, %v8153
    %v8155 = vrot.slane %v8154, 4
    %v8156 = vadd.f32 %v8154, %v8155
    %v8157 = vrot.slane %v8156, 2
    %v8158 = vadd.f32 %v8156, %v8157
    %v8159 = vrot.slane %v8158, 1
    %v8160 = vadd.f32 %v8158, %v8159
    %v8161 = vsel %vm1220, %v8122, 0.0
    %v8162 = vsel %vm1220, %v8123, 0.0
    %v8163 = vadd.f32 %v8161, %v8162
    %v8164 = vrot.slane %v8163, 4
    %v8165 = vadd.f32 %v8163, %v8164
    %v8166 = vrot.slane %v8165, 2
    %v8167 = vadd.f32 %v8165, %v8166
    %v8168 = vrot.slane %v8167, 1
    %v8169 = vadd.f32 %v8167, %v8168
    %v8170 = vsel %vm1220, %v8124, 0.0
    %v8171 = vsel %vm1220, %v8125, 0.0
    %v8172 = vadd.f32 %v8170, %v8171
    %v8173 = vrot.slane %v8172, 4
    %v8174 = vadd.f32 %v8172, %v8173
    %v8175 = vrot.slane %v8174, 2
    %v8176 = vadd.f32 %v8174, %v8175
    %v8177 = vrot.slane %v8176, 1
    %v8178 = vadd.f32 %v8176, %v8177
    %v8179 = vsel %vm1220, %v8126, 0.0
    %v8180 = vsel %vm1220, %v8127, 0.0
    %v8181 = vadd.f32 %v8179, %v8180
    %v8182 = vrot.slane %v8181, 4
    %v8183 = vadd.f32 %v8181, %v8182
    %v8184 = vrot.slane %v8183, 2
    %v8185 = vadd.f32 %v8183, %v8184
    %v8186 = vrot.slane %v8185, 1
    %v8187 = vadd.f32 %v8185, %v8186
    %v8188 = vsel %vm1220, %v8128, 0.0
    %v8189 = vsel %vm1220, %v8129, 0.0
    %v8190 = vadd.f32 %v8188, %v8189
    %v8191 = vrot.slane %v8190, 4
    %v8192 = vadd.f32 %v8190, %v8191
    %v8193 = vrot.slane %v8192, 2
    %v8194 = vadd.f32 %v8192, %v8193
    %v8195 = vrot.slane %v8194, 1
    %v8196 = vadd.f32 %v8194, %v8195
    %v8197 = vsel %vm1220, %v8130, 0.0
    %v8198 = vsel %vm1220, %v8131, 0.0
    %v8199 = vadd.f32 %v8197, %v8198
    %v8200 = vrot.slane %v8199, 4
    %v8201 = vadd.f32 %v8199, %v8200
    %v8202 = vrot.slane %v8201, 2
    %v8203 = vadd.f32 %v8201, %v8202
    %v8204 = vrot.slane %v8203, 1
    %v8205 = vadd.f32 %v8203, %v8204
    %v8206 = vsel %vm1220, %v8132, 0.0
    %v8207 = vsel %vm1220, %v8133, 0.0
    %v8208 = vadd.f32 %v8206, %v8207
    %v8209 = vrot.slane %v8208, 4
    %v8210 = vadd.f32 %v8208, %v8209
    %v8211 = vrot.slane %v8210, 2
    %v8212 = vadd.f32 %v8210, %v8211
    %v8213 = vrot.slane %v8212, 1
    %v8214 = vadd.f32 %v8212, %v8213
    %v8215 = vsel %vm1220, %v8134, 0.0
    %v8216 = vsel %vm1220, %v8135, 0.0
    %v8217 = vadd.f32 %v8215, %v8216
    %v8218 = vrot.slane %v8217, 4
    %v8219 = vadd.f32 %v8217, %v8218
    %v8220 = vrot.slane %v8219, 2
    %v8221 = vadd.f32 %v8219, %v8220
    %v8222 = vrot.slane %v8221, 1
    %v8223 = vadd.f32 %v8221, %v8222
    %v8224 = vsel %vm1220, %v8136, 0.0
    %v8225 = vsel %vm1220, %v8137, 0.0
    %v8226 = vadd.f32 %v8224, %v8225
    %v8227 = vrot.slane %v8226, 4
    %v8228 = vadd.f32 %v8226, %v8227
    %v8229 = vrot.slane %v8228, 2
    %v8230 = vadd.f32 %v8228, %v8229
    %v8231 = vrot.slane %v8230, 1
    %v8232 = vadd.f32 %v8230, %v8231
    %v8233 = vsel %vm1220, %v8138, 0.0
    %v8234 = vsel %vm1220, %v8139, 0.0
    %v8235 = vadd.f32 %v8233, %v8234
    %v8236 = vrot.slane %v8235, 4
    %v8237 = vadd.f32 %v8235, %v8236
    %v8238 = vrot.slane %v8237, 2
    %v8239 = vadd.f32 %v8237, %v8238
    %v8240 = vrot.slane %v8239, 1
    %v8241 = vadd.f32 %v8239, %v8240
    %v8242 = vsel %vm1220, %v8140, 0.0
    %v8243 = vsel %vm1220, %v8141, 0.0
    %v8244 = vadd.f32 %v8242, %v8243
    %v8245 = vrot.slane %v8244, 4
    %v8246 = vadd.f32 %v8244, %v8245
    %v8247 = vrot.slane %v8246, 2
    %v8248 = vadd.f32 %v8246, %v8247
    %v8249 = vrot.slane %v8248, 1
    %v8250 = vadd.f32 %v8248, %v8249
    %v8251 = vsel %vm1220, %v8142, 0.0
    %v8252 = vsel %vm1220, %v8143, 0.0
    %v8253 = vadd.f32 %v8251, %v8252
    %v8254 = vrot.slane %v8253, 4
    %v8255 = vadd.f32 %v8253, %v8254
    %v8256 = vrot.slane %v8255, 2
    %v8257 = vadd.f32 %v8255, %v8256
    %v8258 = vrot.slane %v8257, 1
    %v8259 = vadd.f32 %v8257, %v8258
    %v8260 = vsel %vm1220, %v8144, 0.0
    %v8261 = vsel %vm1220, %v8145, 0.0
    %v8262 = vadd.f32 %v8260, %v8261
    %v8263 = vrot.slane %v8262, 4
    %v8264 = vadd.f32 %v8262, %v8263
    %v8265 = vrot.slane %v8264, 2
    %v8266 = vadd.f32 %v8264, %v8265
    %v8267 = vrot.slane %v8266, 1
    %v8268 = vadd.f32 %v8266, %v8267
    %v8269 = vsel %vm1220, %v8146, 0.0
    %v8270 = vsel %vm1220, %v8147, 0.0
    %v8271 = vadd.f32 %v8269, %v8270
    %v8272 = vrot.slane %v8271, 4
    %v8273 = vadd.f32 %v8271, %v8272
    %v8274 = vrot.slane %v8273, 2
    %v8275 = vadd.f32 %v8273, %v8274
    %v8276 = vrot.slane %v8275, 1
    %v8277 = vadd.f32 %v8275, %v8276
    %v8278 = vsel %vm1220, %v8148, 0.0
    %v8279 = vsel %vm1220, %v8149, 0.0
    %v8280 = vadd.f32 %v8278, %v8279
    %v8281 = vrot.slane %v8280, 4
    %v8282 = vadd.f32 %v8280, %v8281
    %v8283 = vrot.slane %v8282, 2
    %v8284 = vadd.f32 %v8282, %v8283
    %v8285 = vrot.slane %v8284, 1
    %v8286 = vadd.f32 %v8284, %v8285
    %v8287 = vsel %vm1220, %v8150, 0.0
    %v8288 = vsel %vm1220, %v8151, 0.0
    %v8289 = vadd.f32 %v8287, %v8288
    %v8290 = vrot.slane %v8289, 4
    %v8291 = vadd.f32 %v8289, %v8290
    %v8292 = vrot.slane %v8291, 2
    %v8293 = vadd.f32 %v8291, %v8292
    %v8294 = vrot.slane %v8293, 1
    %v8295 = vadd.f32 %v8293, %v8294
    %v8298 = vrot.slane %v6625, 1
    %v8299 = vrot.slane %v6625, 2
    %v8300 = vrot.slane %v6625, 3
    %v8301 = vrot.slane %v6625, 4
    %v8302 = vrot.slane %v6625, 5
    %v8303 = vrot.slane %v6625, 6
    %v8304 = vrot.slane %v6625, 7
    %v8305 = vrot.slane %v6628, 1
    %v8306 = vrot.slane %v6628, 2
    %v8307 = vrot.slane %v6628, 3
    %v8308 = vrot.slane %v6628, 4
    %v8309 = vrot.slane %v6628, 5
    %v8310 = vrot.slane %v6628, 6
    %v8311 = vrot.slane %v6628, 7
    %v8312 = vperm.slane %v6625, 0
    %v8313 = vperm.slane %v8298, 0
    %v8314 = vperm.slane %v8299, 0
    %v8315 = vperm.slane %v8300, 0
    %v8316 = vperm.slane %v8301, 0
    %v8317 = vperm.slane %v8302, 0
    %v8318 = vperm.slane %v8303, 0
    %v8319 = vperm.slane %v8304, 0
    %v8320 = vperm.slane %v6628, 0
    %v8321 = vperm.slane %v8305, 0
    %v8322 = vperm.slane %v8306, 0
    %v8323 = vperm.slane %v8307, 0
    %v8324 = vperm.slane %v8308, 0
    %v8325 = vperm.slane %v8309, 0
    %v8326 = vperm.slane %v8310, 0
    %v8327 = vperm.slane %v8311, 0
    %v8344 = vmul.f32 %v8312, %v6673
    %v8345 = vmul.f32 %v8312, %v6676
    %v8346 = vmul.f32 %v8313, %v6673
    %v8347 = vmul.f32 %v8313, %v6676
    %v8348 = vmul.f32 %v8314, %v6673
    %v8349 = vmul.f32 %v8314, %v6676
    %v8350 = vmul.f32 %v8315, %v6673
    %v8351 = vmul.f32 %v8315, %v6676
    %v8352 = vmul.f32 %v8316, %v6673
    %v8353 = vmul.f32 %v8316, %v6676
    %v8354 = vmul.f32 %v8317, %v6673
    %v8355 = vmul.f32 %v8317, %v6676
    %v8356 = vmul.f32 %v8318, %v6673
    %v8357 = vmul.f32 %v8318, %v6676
    %v8358 = vmul.f32 %v8319, %v6673
    %v8359 = vmul.f32 %v8319, %v6676
    %v8360 = vmul.f32 %v8320, %v6673
    %v8361 = vmul.f32 %v8320, %v6676
    %v8362 = vmul.f32 %v8321, %v6673
    %v8363 = vmul.f32 %v8321, %v6676
    %v8364 = vmul.f32 %v8322, %v6673
    %v8365 = vmul.f32 %v8322, %v6676
    %v8366 = vmul.f32 %v8323, %v6673
    %v8367 = vmul.f32 %v8323, %v6676
    %v8368 = vmul.f32 %v8324, %v6673
    %v8369 = vmul.f32 %v8324, %v6676
    %v8370 = vmul.f32 %v8325, %v6673
    %v8371 = vmul.f32 %v8325, %v6676
    %v8372 = vmul.f32 %v8326, %v6673
    %v8373 = vmul.f32 %v8326, %v6676
    %v8374 = vmul.f32 %v8327, %v6673
    %v8375 = vmul.f32 %v8327, %v6676
    %v8378 = vrot.slane %v6631, 1
    %v8379 = vrot.slane %v6631, 2
    %v8380 = vrot.slane %v6631, 3
    %v8381 = vrot.slane %v6631, 4
    %v8382 = vrot.slane %v6631, 5
    %v8383 = vrot.slane %v6631, 6
    %v8384 = vrot.slane %v6631, 7
    %v8385 = vrot.slane %v6634, 1
    %v8386 = vrot.slane %v6634, 2
    %v8387 = vrot.slane %v6634, 3
    %v8388 = vrot.slane %v6634, 4
    %v8389 = vrot.slane %v6634, 5
    %v8390 = vrot.slane %v6634, 6
    %v8391 = vrot.slane %v6634, 7
    %v8392 = vperm.slane %v6631, 0
    %v8393 = vperm.slane %v8378, 0
    %v8394 = vperm.slane %v8379, 0
    %v8395 = vperm.slane %v8380, 0
    %v8396 = vperm.slane %v8381, 0
    %v8397 = vperm.slane %v8382, 0
    %v8398 = vperm.slane %v8383, 0
    %v8399 = vperm.slane %v8384, 0
    %v8400 = vperm.slane %v6634, 0
    %v8401 = vperm.slane %v8385, 0
    %v8402 = vperm.slane %v8386, 0
    %v8403 = vperm.slane %v8387, 0
    %v8404 = vperm.slane %v8388, 0
    %v8405 = vperm.slane %v8389, 0
    %v8406 = vperm.slane %v8390, 0
    %v8407 = vperm.slane %v8391, 0
    %v8424 = vmul.f32 %v8392, %v6679
    %v8425 = vmul.f32 %v8392, %v6682
    %v8426 = vmul.f32 %v8393, %v6679
    %v8427 = vmul.f32 %v8393, %v6682
    %v8428 = vmul.f32 %v8394, %v6679
    %v8429 = vmul.f32 %v8394, %v6682
    %v8430 = vmul.f32 %v8395, %v6679
    %v8431 = vmul.f32 %v8395, %v6682
    %v8432 = vmul.f32 %v8396, %v6679
    %v8433 = vmul.f32 %v8396, %v6682
    %v8434 = vmul.f32 %v8397, %v6679
    %v8435 = vmul.f32 %v8397, %v6682
    %v8436 = vmul.f32 %v8398, %v6679
    %v8437 = vmul.f32 %v8398, %v6682
    %v8438 = vmul.f32 %v8399, %v6679
    %v8439 = vmul.f32 %v8399, %v6682
    %v8440 = vmul.f32 %v8400, %v6679
    %v8441 = vmul.f32 %v8400, %v6682
    %v8442 = vmul.f32 %v8401, %v6679
    %v8443 = vmul.f32 %v8401, %v6682
    %v8444 = vmul.f32 %v8402, %v6679
    %v8445 = vmul.f32 %v8402, %v6682
    %v8446 = vmul.f32 %v8403, %v6679
    %v8447 = vmul.f32 %v8403, %v6682
    %v8448 = vmul.f32 %v8404, %v6679
    %v8449 = vmul.f32 %v8404, %v6682
    %v8450 = vmul.f32 %v8405, %v6679
    %v8451 = vmul.f32 %v8405, %v6682
    %v8452 = vmul.f32 %v8406, %v6679
    %v8453 = vmul.f32 %v8406, %v6682
    %v8454 = vmul.f32 %v8407, %v6679
    %v8455 = vmul.f32 %v8407, %v6682
    %v8456 = vadd.f32 %v8344, %v8424
    %v8457 = vadd.f32 %v8345, %v8425
    %v8458 = vadd.f32 %v8346, %v8426
    %v8459 = vadd.f32 %v8347, %v8427
    %v8460 = vadd.f32 %v8348, %v8428
    %v8461 = vadd.f32 %v8349, %v8429
    %v8462 = vadd.f32 %v8350, %v8430
    %v8463 = vadd.f32 %v8351, %v8431
    %v8464 = vadd.f32 %v8352, %v8432
    %v8465 = vadd.f32 %v8353, %v8433
    %v8466 = vadd.f32 %v8354, %v8434
    %v8467 = vadd.f32 %v8355, %v8435
    %v8468 = vadd.f32 %v8356, %v8436
    %v8469 = vadd.f32 %v8357, %v8437
    %v8470 = vadd.f32 %v8358, %v8438
    %v8471 = vadd.f32 %v8359, %v8439
    %v8472 = vadd.f32 %v8360, %v8440
    %v8473 = vadd.f32 %v8361, %v8441
    %v8474 = vadd.f32 %v8362, %v8442
    %v8475 = vadd.f32 %v8363, %v8443
    %v8476 = vadd.f32 %v8364, %v8444
    %v8477 = vadd.f32 %v8365, %v8445
    %v8478 = vadd.f32 %v8366, %v8446
    %v8479 = vadd.f32 %v8367, %v8447
    %v8480 = vadd.f32 %v8368, %v8448
    %v8481 = vadd.f32 %v8369, %v8449
    %v8482 = vadd.f32 %v8370, %v8450
    %v8483 = vadd.f32 %v8371, %v8451
    %v8484 = vadd.f32 %v8372, %v8452
    %v8485 = vadd.f32 %v8373, %v8453
    %v8486 = vadd.f32 %v8374, %v8454
    %v8487 = vadd.f32 %v8375, %v8455
    %v8490 = vrot.slane %v6637, 1
    %v8491 = vrot.slane %v6637, 2
    %v8492 = vrot.slane %v6637, 3
    %v8493 = vrot.slane %v6637, 4
    %v8494 = vrot.slane %v6637, 5
    %v8495 = vrot.slane %v6637, 6
    %v8496 = vrot.slane %v6637, 7
    %v8497 = vrot.slane %v6640, 1
    %v8498 = vrot.slane %v6640, 2
    %v8499 = vrot.slane %v6640, 3
    %v8500 = vrot.slane %v6640, 4
    %v8501 = vrot.slane %v6640, 5
    %v8502 = vrot.slane %v6640, 6
    %v8503 = vrot.slane %v6640, 7
    %v8504 = vperm.slane %v6637, 0
    %v8505 = vperm.slane %v8490, 0
    %v8506 = vperm.slane %v8491, 0
    %v8507 = vperm.slane %v8492, 0
    %v8508 = vperm.slane %v8493, 0
    %v8509 = vperm.slane %v8494, 0
    %v8510 = vperm.slane %v8495, 0
    %v8511 = vperm.slane %v8496, 0
    %v8512 = vperm.slane %v6640, 0
    %v8513 = vperm.slane %v8497, 0
    %v8514 = vperm.slane %v8498, 0
    %v8515 = vperm.slane %v8499, 0
    %v8516 = vperm.slane %v8500, 0
    %v8517 = vperm.slane %v8501, 0
    %v8518 = vperm.slane %v8502, 0
    %v8519 = vperm.slane %v8503, 0
    %v8536 = vmul.f32 %v8504, %v6685
    %v8537 = vmul.f32 %v8504, %v6688
    %v8538 = vmul.f32 %v8505, %v6685
    %v8539 = vmul.f32 %v8505, %v6688
    %v8540 = vmul.f32 %v8506, %v6685
    %v8541 = vmul.f32 %v8506, %v6688
    %v8542 = vmul.f32 %v8507, %v6685
    %v8543 = vmul.f32 %v8507, %v6688
    %v8544 = vmul.f32 %v8508, %v6685
    %v8545 = vmul.f32 %v8508, %v6688
    %v8546 = vmul.f32 %v8509, %v6685
    %v8547 = vmul.f32 %v8509, %v6688
    %v8548 = vmul.f32 %v8510, %v6685
    %v8549 = vmul.f32 %v8510, %v6688
    %v8550 = vmul.f32 %v8511, %v6685
    %v8551 = vmul.f32 %v8511, %v6688
    %v8552 = vmul.f32 %v8512, %v6685
    %v8553 = vmul.f32 %v8512, %v6688
    %v8554 = vmul.f32 %v8513, %v6685
    %v8555 = vmul.f32 %v8513, %v6688
    %v8556 = vmul.f32 %v8514, %v6685
    %v8557 = vmul.f32 %v8514, %v6688
    %v8558 = vmul.f32 %v8515, %v6685
    %v8559 = vmul.f32 %v8515, %v6688
    %v8560 = vmul.f32 %v8516, %v6685
    %v8561 = vmul.f32 %v8516, %v6688
    %v8562 = vmul.f32 %v8517, %v6685
    %v8563 = vmul.f32 %v8517, %v6688
    %v8564 = vmul.f32 %v8518, %v6685
    %v8565 = vmul.f32 %v8518, %v6688
    %v8566 = vmul.f32 %v8519, %v6685
    %v8567 = vmul.f32 %v8519, %v6688
    %v8568 = vadd.f32 %v8456, %v8536
    %v8569 = vadd.f32 %v8457, %v8537
    %v8570 = vadd.f32 %v8458, %v8538
    %v8571 = vadd.f32 %v8459, %v8539
    %v8572 = vadd.f32 %v8460, %v8540
    %v8573 = vadd.f32 %v8461, %v8541
    %v8574 = vadd.f32 %v8462, %v8542
    %v8575 = vadd.f32 %v8463, %v8543
    %v8576 = vadd.f32 %v8464, %v8544
    %v8577 = vadd.f32 %v8465, %v8545
    %v8578 = vadd.f32 %v8466, %v8546
    %v8579 = vadd.f32 %v8467, %v8547
    %v8580 = vadd.f32 %v8468, %v8548
    %v8581 = vadd.f32 %v8469, %v8549
    %v8582 = vadd.f32 %v8470, %v8550
    %v8583 = vadd.f32 %v8471, %v8551
    %v8584 = vadd.f32 %v8472, %v8552
    %v8585 = vadd.f32 %v8473, %v8553
    %v8586 = vadd.f32 %v8474, %v8554
    %v8587 = vadd.f32 %v8475, %v8555
    %v8588 = vadd.f32 %v8476, %v8556
    %v8589 = vadd.f32 %v8477, %v8557
    %v8590 = vadd.f32 %v8478, %v8558
    %v8591 = vadd.f32 %v8479, %v8559
    %v8592 = vadd.f32 %v8480, %v8560
    %v8593 = vadd.f32 %v8481, %v8561
    %v8594 = vadd.f32 %v8482, %v8562
    %v8595 = vadd.f32 %v8483, %v8563
    %v8596 = vadd.f32 %v8484, %v8564
    %v8597 = vadd.f32 %v8485, %v8565
    %v8598 = vadd.f32 %v8486, %v8566
    %v8599 = vadd.f32 %v8487, %v8567
    %v8602 = vrot.slane %v6643, 1
    %v8603 = vrot.slane %v6643, 2
    %v8604 = vrot.slane %v6643, 3
    %v8605 = vrot.slane %v6643, 4
    %v8606 = vrot.slane %v6643, 5
    %v8607 = vrot.slane %v6643, 6
    %v8608 = vrot.slane %v6643, 7
    %v8609 = vrot.slane %v6646, 1
    %v8610 = vrot.slane %v6646, 2
    %v8611 = vrot.slane %v6646, 3
    %v8612 = vrot.slane %v6646, 4
    %v8613 = vrot.slane %v6646, 5
    %v8614 = vrot.slane %v6646, 6
    %v8615 = vrot.slane %v6646, 7
    %v8616 = vperm.slane %v6643, 0
    %v8617 = vperm.slane %v8602, 0
    %v8618 = vperm.slane %v8603, 0
    %v8619 = vperm.slane %v8604, 0
    %v8620 = vperm.slane %v8605, 0
    %v8621 = vperm.slane %v8606, 0
    %v8622 = vperm.slane %v8607, 0
    %v8623 = vperm.slane %v8608, 0
    %v8624 = vperm.slane %v6646, 0
    %v8625 = vperm.slane %v8609, 0
    %v8626 = vperm.slane %v8610, 0
    %v8627 = vperm.slane %v8611, 0
    %v8628 = vperm.slane %v8612, 0
    %v8629 = vperm.slane %v8613, 0
    %v8630 = vperm.slane %v8614, 0
    %v8631 = vperm.slane %v8615, 0
    %v8648 = vmul.f32 %v8616, %v6691
    %v8649 = vmul.f32 %v8616, %v6694
    %v8650 = vmul.f32 %v8617, %v6691
    %v8651 = vmul.f32 %v8617, %v6694
    %v8652 = vmul.f32 %v8618, %v6691
    %v8653 = vmul.f32 %v8618, %v6694
    %v8654 = vmul.f32 %v8619, %v6691
    %v8655 = vmul.f32 %v8619, %v6694
    %v8656 = vmul.f32 %v8620, %v6691
    %v8657 = vmul.f32 %v8620, %v6694
    %v8658 = vmul.f32 %v8621, %v6691
    %v8659 = vmul.f32 %v8621, %v6694
    %v8660 = vmul.f32 %v8622, %v6691
    %v8661 = vmul.f32 %v8622, %v6694
    %v8662 = vmul.f32 %v8623, %v6691
    %v8663 = vmul.f32 %v8623, %v6694
    %v8664 = vmul.f32 %v8624, %v6691
    %v8665 = vmul.f32 %v8624, %v6694
    %v8666 = vmul.f32 %v8625, %v6691
    %v8667 = vmul.f32 %v8625, %v6694
    %v8668 = vmul.f32 %v8626, %v6691
    %v8669 = vmul.f32 %v8626, %v6694
    %v8670 = vmul.f32 %v8627, %v6691
    %v8671 = vmul.f32 %v8627, %v6694
    %v8672 = vmul.f32 %v8628, %v6691
    %v8673 = vmul.f32 %v8628, %v6694
    %v8674 = vmul.f32 %v8629, %v6691
    %v8675 = vmul.f32 %v8629, %v6694
    %v8676 = vmul.f32 %v8630, %v6691
    %v8677 = vmul.f32 %v8630, %v6694
    %v8678 = vmul.f32 %v8631, %v6691
    %v8679 = vmul.f32 %v8631, %v6694
    %v8680 = vadd.f32 %v8568, %v8648
    %v8681 = vadd.f32 %v8569, %v8649
    %v8682 = vadd.f32 %v8570, %v8650
    %v8683 = vadd.f32 %v8571, %v8651
    %v8684 = vadd.f32 %v8572, %v8652
    %v8685 = vadd.f32 %v8573, %v8653
    %v8686 = vadd.f32 %v8574, %v8654
    %v8687 = vadd.f32 %v8575, %v8655
    %v8688 = vadd.f32 %v8576, %v8656
    %v8689 = vadd.f32 %v8577, %v8657
    %v8690 = vadd.f32 %v8578, %v8658
    %v8691 = vadd.f32 %v8579, %v8659
    %v8692 = vadd.f32 %v8580, %v8660
    %v8693 = vadd.f32 %v8581, %v8661
    %v8694 = vadd.f32 %v8582, %v8662
    %v8695 = vadd.f32 %v8583, %v8663
    %v8696 = vadd.f32 %v8584, %v8664
    %v8697 = vadd.f32 %v8585, %v8665
    %v8698 = vadd.f32 %v8586, %v8666
    %v8699 = vadd.f32 %v8587, %v8667
    %v8700 = vadd.f32 %v8588, %v8668
    %v8701 = vadd.f32 %v8589, %v8669
    %v8702 = vadd.f32 %v8590, %v8670
    %v8703 = vadd.f32 %v8591, %v8671
    %v8704 = vadd.f32 %v8592, %v8672
    %v8705 = vadd.f32 %v8593, %v8673
    %v8706 = vadd.f32 %v8594, %v8674
    %v8707 = vadd.f32 %v8595, %v8675
    %v8708 = vadd.f32 %v8596, %v8676
    %v8709 = vadd.f32 %v8597, %v8677
    %v8710 = vadd.f32 %v8598, %v8678
    %v8711 = vadd.f32 %v8599, %v8679
    %v8712 = vsel %vm1220, %v8680, -inf
    %v8713 = vsel %vm1220, %v8681, -inf
    %v8714 = vmax.f32 %v8712, %v8713
    %v8715 = vrot.slane %v8714, 4
    %v8716 = vmax.f32 %v8714, %v8715
    %v8717 = vrot.slane %v8716, 2
    %v8718 = vmax.f32 %v8716, %v8717
    %v8719 = vrot.slane %v8718, 1
    %v8720 = vmax.f32 %v8718, %v8719
    %v8721 = vsel %vm1220, %v8682, -inf
    %v8722 = vsel %vm1220, %v8683, -inf
    %v8723 = vmax.f32 %v8721, %v8722
    %v8724 = vrot.slane %v8723, 4
    %v8725 = vmax.f32 %v8723, %v8724
    %v8726 = vrot.slane %v8725, 2
    %v8727 = vmax.f32 %v8725, %v8726
    %v8728 = vrot.slane %v8727, 1
    %v8729 = vmax.f32 %v8727, %v8728
    %v8730 = vsel %vm1220, %v8684, -inf
    %v8731 = vsel %vm1220, %v8685, -inf
    %v8732 = vmax.f32 %v8730, %v8731
    %v8733 = vrot.slane %v8732, 4
    %v8734 = vmax.f32 %v8732, %v8733
    %v8735 = vrot.slane %v8734, 2
    %v8736 = vmax.f32 %v8734, %v8735
    %v8737 = vrot.slane %v8736, 1
    %v8738 = vmax.f32 %v8736, %v8737
    %v8739 = vsel %vm1220, %v8686, -inf
    %v8740 = vsel %vm1220, %v8687, -inf
    %v8741 = vmax.f32 %v8739, %v8740
    %v8742 = vrot.slane %v8741, 4
    %v8743 = vmax.f32 %v8741, %v8742
    %v8744 = vrot.slane %v8743, 2
    %v8745 = vmax.f32 %v8743, %v8744
    %v8746 = vrot.slane %v8745, 1
    %v8747 = vmax.f32 %v8745, %v8746
    %v8748 = vsel %vm1220, %v8688, -inf
    %v8749 = vsel %vm1220, %v8689, -inf
    %v8750 = vmax.f32 %v8748, %v8749
    %v8751 = vrot.slane %v8750, 4
    %v8752 = vmax.f32 %v8750, %v8751
    %v8753 = vrot.slane %v8752, 2
    %v8754 = vmax.f32 %v8752, %v8753
    %v8755 = vrot.slane %v8754, 1
    %v8756 = vmax.f32 %v8754, %v8755
    %v8757 = vsel %vm1220, %v8690, -inf
    %v8758 = vsel %vm1220, %v8691, -inf
    %v8759 = vmax.f32 %v8757, %v8758
    %v8760 = vrot.slane %v8759, 4
    %v8761 = vmax.f32 %v8759, %v8760
    %v8762 = vrot.slane %v8761, 2
    %v8763 = vmax.f32 %v8761, %v8762
    %v8764 = vrot.slane %v8763, 1
    %v8765 = vmax.f32 %v8763, %v8764
    %v8766 = vsel %vm1220, %v8692, -inf
    %v8767 = vsel %vm1220, %v8693, -inf
    %v8768 = vmax.f32 %v8766, %v8767
    %v8769 = vrot.slane %v8768, 4
    %v8770 = vmax.f32 %v8768, %v8769
    %v8771 = vrot.slane %v8770, 2
    %v8772 = vmax.f32 %v8770, %v8771
    %v8773 = vrot.slane %v8772, 1
    %v8774 = vmax.f32 %v8772, %v8773
    %v8775 = vsel %vm1220, %v8694, -inf
    %v8776 = vsel %vm1220, %v8695, -inf
    %v8777 = vmax.f32 %v8775, %v8776
    %v8778 = vrot.slane %v8777, 4
    %v8779 = vmax.f32 %v8777, %v8778
    %v8780 = vrot.slane %v8779, 2
    %v8781 = vmax.f32 %v8779, %v8780
    %v8782 = vrot.slane %v8781, 1
    %v8783 = vmax.f32 %v8781, %v8782
    %v8784 = vsel %vm1220, %v8696, -inf
    %v8785 = vsel %vm1220, %v8697, -inf
    %v8786 = vmax.f32 %v8784, %v8785
    %v8787 = vrot.slane %v8786, 4
    %v8788 = vmax.f32 %v8786, %v8787
    %v8789 = vrot.slane %v8788, 2
    %v8790 = vmax.f32 %v8788, %v8789
    %v8791 = vrot.slane %v8790, 1
    %v8792 = vmax.f32 %v8790, %v8791
    %v8793 = vsel %vm1220, %v8698, -inf
    %v8794 = vsel %vm1220, %v8699, -inf
    %v8795 = vmax.f32 %v8793, %v8794
    %v8796 = vrot.slane %v8795, 4
    %v8797 = vmax.f32 %v8795, %v8796
    %v8798 = vrot.slane %v8797, 2
    %v8799 = vmax.f32 %v8797, %v8798
    %v8800 = vrot.slane %v8799, 1
    %v8801 = vmax.f32 %v8799, %v8800
    %v8802 = vsel %vm1220, %v8700, -inf
    %v8803 = vsel %vm1220, %v8701, -inf
    %v8804 = vmax.f32 %v8802, %v8803
    %v8805 = vrot.slane %v8804, 4
    %v8806 = vmax.f32 %v8804, %v8805
    %v8807 = vrot.slane %v8806, 2
    %v8808 = vmax.f32 %v8806, %v8807
    %v8809 = vrot.slane %v8808, 1
    %v8810 = vmax.f32 %v8808, %v8809
    %v8811 = vsel %vm1220, %v8702, -inf
    %v8812 = vsel %vm1220, %v8703, -inf
    %v8813 = vmax.f32 %v8811, %v8812
    %v8814 = vrot.slane %v8813, 4
    %v8815 = vmax.f32 %v8813, %v8814
    %v8816 = vrot.slane %v8815, 2
    %v8817 = vmax.f32 %v8815, %v8816
    %v8818 = vrot.slane %v8817, 1
    %v8819 = vmax.f32 %v8817, %v8818
    %v8820 = vsel %vm1220, %v8704, -inf
    %v8821 = vsel %vm1220, %v8705, -inf
    %v8822 = vmax.f32 %v8820, %v8821
    %v8823 = vrot.slane %v8822, 4
    %v8824 = vmax.f32 %v8822, %v8823
    %v8825 = vrot.slane %v8824, 2
    %v8826 = vmax.f32 %v8824, %v8825
    %v8827 = vrot.slane %v8826, 1
    %v8828 = vmax.f32 %v8826, %v8827
    %v8829 = vsel %vm1220, %v8706, -inf
    %v8830 = vsel %vm1220, %v8707, -inf
    %v8831 = vmax.f32 %v8829, %v8830
    %v8832 = vrot.slane %v8831, 4
    %v8833 = vmax.f32 %v8831, %v8832
    %v8834 = vrot.slane %v8833, 2
    %v8835 = vmax.f32 %v8833, %v8834
    %v8836 = vrot.slane %v8835, 1
    %v8837 = vmax.f32 %v8835, %v8836
    %v8838 = vsel %vm1220, %v8708, -inf
    %v8839 = vsel %vm1220, %v8709, -inf
    %v8840 = vmax.f32 %v8838, %v8839
    %v8841 = vrot.slane %v8840, 4
    %v8842 = vmax.f32 %v8840, %v8841
    %v8843 = vrot.slane %v8842, 2
    %v8844 = vmax.f32 %v8842, %v8843
    %v8845 = vrot.slane %v8844, 1
    %v8846 = vmax.f32 %v8844, %v8845
    %v8847 = vsel %vm1220, %v8710, -inf
    %v8848 = vsel %vm1220, %v8711, -inf
    %v8849 = vmax.f32 %v8847, %v8848
    %v8850 = vrot.slane %v8849, 4
    %v8851 = vmax.f32 %v8849, %v8850
    %v8852 = vrot.slane %v8851, 2
    %v8853 = vmax.f32 %v8851, %v8852
    %v8854 = vrot.slane %v8853, 1
    %v8855 = vmax.f32 %v8853, %v8854
    %v8856 = vsub.f32 %v8680, %v8720
    %v8857 = vsub.f32 %v8681, %v8720
    %v8858 = vsub.f32 %v8682, %v8729
    %v8859 = vsub.f32 %v8683, %v8729
    %v8860 = vsub.f32 %v8684, %v8738
    %v8861 = vsub.f32 %v8685, %v8738
    %v8862 = vsub.f32 %v8686, %v8747
    %v8863 = vsub.f32 %v8687, %v8747
    %v8864 = vsub.f32 %v8688, %v8756
    %v8865 = vsub.f32 %v8689, %v8756
    %v8866 = vsub.f32 %v8690, %v8765
    %v8867 = vsub.f32 %v8691, %v8765
    %v8868 = vsub.f32 %v8692, %v8774
    %v8869 = vsub.f32 %v8693, %v8774
    %v8870 = vsub.f32 %v8694, %v8783
    %v8871 = vsub.f32 %v8695, %v8783
    %v8872 = vsub.f32 %v8696, %v8792
    %v8873 = vsub.f32 %v8697, %v8792
    %v8874 = vsub.f32 %v8698, %v8801
    %v8875 = vsub.f32 %v8699, %v8801
    %v8876 = vsub.f32 %v8700, %v8810
    %v8877 = vsub.f32 %v8701, %v8810
    %v8878 = vsub.f32 %v8702, %v8819
    %v8879 = vsub.f32 %v8703, %v8819
    %v8880 = vsub.f32 %v8704, %v8828
    %v8881 = vsub.f32 %v8705, %v8828
    %v8882 = vsub.f32 %v8706, %v8837
    %v8883 = vsub.f32 %v8707, %v8837
    %v8884 = vsub.f32 %v8708, %v8846
    %v8885 = vsub.f32 %v8709, %v8846
    %v8886 = vsub.f32 %v8710, %v8855
    %v8887 = vsub.f32 %v8711, %v8855
    %v8888 = vmul.f32 %v8856, 1.442695
    %v8889 = vpow.pop %v8888
    %v8890 = vmul.f32 %v8857, 1.442695
    %v8891 = vpow.pop %v8890
    %v8892 = vmul.f32 %v8858, 1.442695
    %v8893 = vpow.pop %v8892
    %v8894 = vmul.f32 %v8859, 1.442695
    %v8895 = vpow.pop %v8894
    %v8896 = vmul.f32 %v8860, 1.442695
    %v8897 = vpow.pop %v8896
    %v8898 = vmul.f32 %v8861, 1.442695
    %v8899 = vpow.pop %v8898
    %v8900 = vmul.f32 %v8862, 1.442695
    %v8901 = vpow.pop %v8900
    %v8902 = vmul.f32 %v8863, 1.442695
    %v8903 = vpow.pop %v8902
    %v8904 = vmul.f32 %v8864, 1.442695
    %v8905 = vpow.pop %v8904
    %v8906 = vmul.f32 %v8865, 1.442695
    %v8907 = vpow.pop %v8906
    %v8908 = vmul.f32 %v8866, 1.442695
    %v8909 = vpow.pop %v8908
    %v8910 = vmul.f32 %v8867, 1.442695
    %v8911 = vpow.pop %v8910
    %v8912 = vmul.f32 %v8868, 1.442695
    %v8913 = vpow.pop %v8912
    %v8914 = vmul.f32 %v8869, 1.442695
    %v8915 = vpow.pop %v8914
    %v8916 = vmul.f32 %v8870, 1.442695
    %v8917 = vpow.pop %v8916
    %v8918 = vmul.f32 %v8871, 1.442695
    %v8919 = vpow.pop %v8918
    %v8920 = vmul.f32 %v8872, 1.442695
    %v8921 = vpow.pop %v8920
    %v8922 = vmul.f32 %v8873, 1.442695
    %v8923 = vpow.pop %v8922
    %v8924 = vmul.f32 %v8874, 1.442695
    %v8925 = vpow.pop %v8924
    %v8926 = vmul.f32 %v8875, 1.442695
    %v8927 = vpow.pop %v8926
    %v8928 = vmul.f32 %v8876, 1.442695
    %v8929 = vpow.pop %v8928
    %v8930 = vmul.f32 %v8877, 1.442695
    %v8931 = vpow.pop %v8930
    %v8932 = vmul.f32 %v8878, 1.442695
    %v8933 = vpow.pop %v8932
    %v8934 = vmul.f32 %v8879, 1.442695
    %v8935 = vpow.pop %v8934
    %v8936 = vmul.f32 %v8880, 1.442695
    %v8937 = vpow.pop %v8936
    %v8938 = vmul.f32 %v8881, 1.442695
    %v8939 = vpow.pop %v8938
    %v8940 = vmul.f32 %v8882, 1.442695
    %v8941 = vpow.pop %v8940
    %v8942 = vmul.f32 %v8883, 1.442695
    %v8943 = vpow.pop %v8942
    %v8944 = vmul.f32 %v8884, 1.442695
    %v8945 = vpow.pop %v8944
    %v8946 = vmul.f32 %v8885, 1.442695
    %v8947 = vpow.pop %v8946
    %v8948 = vmul.f32 %v8886, 1.442695
    %v8949 = vpow.pop %v8948
    %v8950 = vmul.f32 %v8887, 1.442695
    %v8951 = vpow.pop %v8950
    %v8952 = vsel %vm1220, %v8889, 0.0
    %v8953 = vsel %vm1220, %v8891, 0.0
    %v8954 = vadd.f32 %v8952, %v8953
    %v8955 = vrot.slane %v8954, 4
    %v8956 = vadd.f32 %v8954, %v8955
    %v8957 = vrot.slane %v8956, 2
    %v8958 = vadd.f32 %v8956, %v8957
    %v8959 = vrot.slane %v8958, 1
    %v8960 = vadd.f32 %v8958, %v8959
    %v8961 = vsel %vm1220, %v8893, 0.0
    %v8962 = vsel %vm1220, %v8895, 0.0
    %v8963 = vadd.f32 %v8961, %v8962
    %v8964 = vrot.slane %v8963, 4
    %v8965 = vadd.f32 %v8963, %v8964
    %v8966 = vrot.slane %v8965, 2
    %v8967 = vadd.f32 %v8965, %v8966
    %v8968 = vrot.slane %v8967, 1
    %v8969 = vadd.f32 %v8967, %v8968
    %v8970 = vsel %vm1220, %v8897, 0.0
    %v8971 = vsel %vm1220, %v8899, 0.0
    %v8972 = vadd.f32 %v8970, %v8971
    %v8973 = vrot.slane %v8972, 4
    %v8974 = vadd.f32 %v8972, %v8973
    %v8975 = vrot.slane %v8974, 2
    %v8976 = vadd.f32 %v8974, %v8975
    %v8977 = vrot.slane %v8976, 1
    %v8978 = vadd.f32 %v8976, %v8977
    %v8979 = vsel %vm1220, %v8901, 0.0
    %v8980 = vsel %vm1220, %v8903, 0.0
    %v8981 = vadd.f32 %v8979, %v8980
    %v8982 = vrot.slane %v8981, 4
    %v8983 = vadd.f32 %v8981, %v8982
    %v8984 = vrot.slane %v8983, 2
    %v8985 = vadd.f32 %v8983, %v8984
    %v8986 = vrot.slane %v8985, 1
    %v8987 = vadd.f32 %v8985, %v8986
    %v8988 = vsel %vm1220, %v8905, 0.0
    %v8989 = vsel %vm1220, %v8907, 0.0
    %v8990 = vadd.f32 %v8988, %v8989
    %v8991 = vrot.slane %v8990, 4
    %v8992 = vadd.f32 %v8990, %v8991
    %v8993 = vrot.slane %v8992, 2
    %v8994 = vadd.f32 %v8992, %v8993
    %v8995 = vrot.slane %v8994, 1
    %v8996 = vadd.f32 %v8994, %v8995
    %v8997 = vsel %vm1220, %v8909, 0.0
    %v8998 = vsel %vm1220, %v8911, 0.0
    %v8999 = vadd.f32 %v8997, %v8998
    %v9000 = vrot.slane %v8999, 4
    %v9001 = vadd.f32 %v8999, %v9000
    %v9002 = vrot.slane %v9001, 2
    %v9003 = vadd.f32 %v9001, %v9002
    %v9004 = vrot.slane %v9003, 1
    %v9005 = vadd.f32 %v9003, %v9004
    %v9006 = vsel %vm1220, %v8913, 0.0
    %v9007 = vsel %vm1220, %v8915, 0.0
    %v9008 = vadd.f32 %v9006, %v9007
    %v9009 = vrot.slane %v9008, 4
    %v9010 = vadd.f32 %v9008, %v9009
    %v9011 = vrot.slane %v9010, 2
    %v9012 = vadd.f32 %v9010, %v9011
    %v9013 = vrot.slane %v9012, 1
    %v9014 = vadd.f32 %v9012, %v9013
    %v9015 = vsel %vm1220, %v8917, 0.0
    %v9016 = vsel %vm1220, %v8919, 0.0
    %v9017 = vadd.f32 %v9015, %v9016
    %v9018 = vrot.slane %v9017, 4
    %v9019 = vadd.f32 %v9017, %v9018
    %v9020 = vrot.slane %v9019, 2
    %v9021 = vadd.f32 %v9019, %v9020
    %v9022 = vrot.slane %v9021, 1
    %v9023 = vadd.f32 %v9021, %v9022
    %v9024 = vsel %vm1220, %v8921, 0.0
    %v9025 = vsel %vm1220, %v8923, 0.0
    %v9026 = vadd.f32 %v9024, %v9025
    %v9027 = vrot.slane %v9026, 4
    %v9028 = vadd.f32 %v9026, %v9027
    %v9029 = vrot.slane %v9028, 2
    %v9030 = vadd.f32 %v9028, %v9029
    %v9031 = vrot.slane %v9030, 1
    %v9032 = vadd.f32 %v9030, %v9031
    %v9033 = vsel %vm1220, %v8925, 0.0
    %v9034 = vsel %vm1220, %v8927, 0.0
    %v9035 = vadd.f32 %v9033, %v9034
    %v9036 = vrot.slane %v9035, 4
    %v9037 = vadd.f32 %v9035, %v9036
    %v9038 = vrot.slane %v9037, 2
    %v9039 = vadd.f32 %v9037, %v9038
    %v9040 = vrot.slane %v9039, 1
    %v9041 = vadd.f32 %v9039, %v9040
    %v9042 = vsel %vm1220, %v8929, 0.0
    %v9043 = vsel %vm1220, %v8931, 0.0
    %v9044 = vadd.f32 %v9042, %v9043
    %v9045 = vrot.slane %v9044, 4
    %v9046 = vadd.f32 %v9044, %v9045
    %v9047 = vrot.slane %v9046, 2
    %v9048 = vadd.f32 %v9046, %v9047
    %v9049 = vrot.slane %v9048, 1
    %v9050 = vadd.f32 %v9048, %v9049
    %v9051 = vsel %vm1220, %v8933, 0.0
    %v9052 = vsel %vm1220, %v8935, 0.0
    %v9053 = vadd.f32 %v9051, %v9052
    %v9054 = vrot.slane %v9053, 4
    %v9055 = vadd.f32 %v9053, %v9054
    %v9056 = vrot.slane %v9055, 2
    %v9057 = vadd.f32 %v9055, %v9056
    %v9058 = vrot.slane %v9057, 1
    %v9059 = vadd.f32 %v9057, %v9058
    %v9060 = vsel %vm1220, %v8937, 0.0
    %v9061 = vsel %vm1220, %v8939, 0.0
    %v9062 = vadd.f32 %v9060, %v9061
    %v9063 = vrot.slane %v9062, 4
    %v9064 = vadd.f32 %v9062, %v9063
    %v9065 = vrot.slane %v9064, 2
    %v9066 = vadd.f32 %v9064, %v9065
    %v9067 = vrot.slane %v9066, 1
    %v9068 = vadd.f32 %v9066, %v9067
    %v9069 = vsel %vm1220, %v8941, 0.0
    %v9070 = vsel %vm1220, %v8943, 0.0
    %v9071 = vadd.f32 %v9069, %v9070
    %v9072 = vrot.slane %v9071, 4
    %v9073 = vadd.f32 %v9071, %v9072
    %v9074 = vrot.slane %v9073, 2
    %v9075 = vadd.f32 %v9073, %v9074
    %v9076 = vrot.slane %v9075, 1
    %v9077 = vadd.f32 %v9075, %v9076
    %v9078 = vsel %vm1220, %v8945, 0.0
    %v9079 = vsel %vm1220, %v8947, 0.0
    %v9080 = vadd.f32 %v9078, %v9079
    %v9081 = vrot.slane %v9080, 4
    %v9082 = vadd.f32 %v9080, %v9081
    %v9083 = vrot.slane %v9082, 2
    %v9084 = vadd.f32 %v9082, %v9083
    %v9085 = vrot.slane %v9084, 1
    %v9086 = vadd.f32 %v9084, %v9085
    %v9087 = vsel %vm1220, %v8949, 0.0
    %v9088 = vsel %vm1220, %v8951, 0.0
    %v9089 = vadd.f32 %v9087, %v9088
    %v9090 = vrot.slane %v9089, 4
    %v9091 = vadd.f32 %v9089, %v9090
    %v9092 = vrot.slane %v9091, 2
    %v9093 = vadd.f32 %v9091, %v9092
    %v9094 = vrot.slane %v9093, 1
    %v9095 = vadd.f32 %v9093, %v9094
    %v9096 = vrcp.pop %v8960
    %v9097 = vrcp.pop %v8969
    %v9098 = vrcp.pop %v8978
    %v9099 = vrcp.pop %v8987
    %v9100 = vrcp.pop %v8996
    %v9101 = vrcp.pop %v9005
    %v9102 = vrcp.pop %v9014
    %v9103 = vrcp.pop %v9023
    %v9104 = vrcp.pop %v9032
    %v9105 = vrcp.pop %v9041
    %v9106 = vrcp.pop %v9050
    %v9107 = vrcp.pop %v9059
    %v9108 = vrcp.pop %v9068
    %v9109 = vrcp.pop %v9077
    %v9110 = vrcp.pop %v9086
    %v9111 = vrcp.pop %v9095
    %v9112 = vmul.f32 %v8889, %v9096
    %v9113 = vmul.f32 %v8891, %v9096
    %v9114 = vmul.f32 %v8893, %v9097
    %v9115 = vmul.f32 %v8895, %v9097
    %v9116 = vmul.f32 %v8897, %v9098
    %v9117 = vmul.f32 %v8899, %v9098
    %v9118 = vmul.f32 %v8901, %v9099
    %v9119 = vmul.f32 %v8903, %v9099
    %v9120 = vmul.f32 %v8905, %v9100
    %v9121 = vmul.f32 %v8907, %v9100
    %v9122 = vmul.f32 %v8909, %v9101
    %v9123 = vmul.f32 %v8911, %v9101
    %v9124 = vmul.f32 %v8913, %v9102
    %v9125 = vmul.f32 %v8915, %v9102
    %v9126 = vmul.f32 %v8917, %v9103
    %v9127 = vmul.f32 %v8919, %v9103
    %v9128 = vmul.f32 %v8921, %v9104
    %v9129 = vmul.f32 %v8923, %v9104
    %v9130 = vmul.f32 %v8925, %v9105
    %v9131 = vmul.f32 %v8927, %v9105
    %v9132 = vmul.f32 %v8929, %v9106
    %v9133 = vmul.f32 %v8931, %v9106
    %v9134 = vmul.f32 %v8933, %v9107
    %v9135 = vmul.f32 %v8935, %v9107
    %v9136 = vmul.f32 %v8937, %v9108
    %v9137 = vmul.f32 %v8939, %v9108
    %v9138 = vmul.f32 %v8941, %v9109
    %v9139 = vmul.f32 %v8943, %v9109
    %v9140 = vmul.f32 %v8945, %v9110
    %v9141 = vmul.f32 %v8947, %v9110
    %v9142 = vmul.f32 %v8949, %v9111
    %v9143 = vmul.f32 %v8951, %v9111
    %v9144 = vmul.f32 %v9112, %v6721
    %v9145 = vmul.f32 %v9113, %v6724
    %v9146 = vmul.f32 %v9114, %v6721
    %v9147 = vmul.f32 %v9115, %v6724
    %v9148 = vmul.f32 %v9116, %v6721
    %v9149 = vmul.f32 %v9117, %v6724
    %v9150 = vmul.f32 %v9118, %v6721
    %v9151 = vmul.f32 %v9119, %v6724
    %v9152 = vmul.f32 %v9120, %v6721
    %v9153 = vmul.f32 %v9121, %v6724
    %v9154 = vmul.f32 %v9122, %v6721
    %v9155 = vmul.f32 %v9123, %v6724
    %v9156 = vmul.f32 %v9124, %v6721
    %v9157 = vmul.f32 %v9125, %v6724
    %v9158 = vmul.f32 %v9126, %v6721
    %v9159 = vmul.f32 %v9127, %v6724
    %v9160 = vmul.f32 %v9128, %v6721
    %v9161 = vmul.f32 %v9129, %v6724
    %v9162 = vmul.f32 %v9130, %v6721
    %v9163 = vmul.f32 %v9131, %v6724
    %v9164 = vmul.f32 %v9132, %v6721
    %v9165 = vmul.f32 %v9133, %v6724
    %v9166 = vmul.f32 %v9134, %v6721
    %v9167 = vmul.f32 %v9135, %v6724
    %v9168 = vmul.f32 %v9136, %v6721
    %v9169 = vmul.f32 %v9137, %v6724
    %v9170 = vmul.f32 %v9138, %v6721
    %v9171 = vmul.f32 %v9139, %v6724
    %v9172 = vmul.f32 %v9140, %v6721
    %v9173 = vmul.f32 %v9141, %v6724
    %v9174 = vmul.f32 %v9142, %v6721
    %v9175 = vmul.f32 %v9143, %v6724
    %v9176 = vsel %vm1220, %v9144, 0.0
    %v9177 = vsel %vm1220, %v9145, 0.0
    %v9178 = vadd.f32 %v9176, %v9177
    %v9179 = vrot.slane %v9178, 4
    %v9180 = vadd.f32 %v9178, %v9179
    %v9181 = vrot.slane %v9180, 2
    %v9182 = vadd.f32 %v9180, %v9181
    %v9183 = vrot.slane %v9182, 1
    %v9184 = vadd.f32 %v9182, %v9183
    %v9185 = vsel %vm1220, %v9146, 0.0
    %v9186 = vsel %vm1220, %v9147, 0.0
    %v9187 = vadd.f32 %v9185, %v9186
    %v9188 = vrot.slane %v9187, 4
    %v9189 = vadd.f32 %v9187, %v9188
    %v9190 = vrot.slane %v9189, 2
    %v9191 = vadd.f32 %v9189, %v9190
    %v9192 = vrot.slane %v9191, 1
    %v9193 = vadd.f32 %v9191, %v9192
    %v9194 = vsel %vm1220, %v9148, 0.0
    %v9195 = vsel %vm1220, %v9149, 0.0
    %v9196 = vadd.f32 %v9194, %v9195
    %v9197 = vrot.slane %v9196, 4
    %v9198 = vadd.f32 %v9196, %v9197
    %v9199 = vrot.slane %v9198, 2
    %v9200 = vadd.f32 %v9198, %v9199
    %v9201 = vrot.slane %v9200, 1
    %v9202 = vadd.f32 %v9200, %v9201
    %v9203 = vsel %vm1220, %v9150, 0.0
    %v9204 = vsel %vm1220, %v9151, 0.0
    %v9205 = vadd.f32 %v9203, %v9204
    %v9206 = vrot.slane %v9205, 4
    %v9207 = vadd.f32 %v9205, %v9206
    %v9208 = vrot.slane %v9207, 2
    %v9209 = vadd.f32 %v9207, %v9208
    %v9210 = vrot.slane %v9209, 1
    %v9211 = vadd.f32 %v9209, %v9210
    %v9212 = vsel %vm1220, %v9152, 0.0
    %v9213 = vsel %vm1220, %v9153, 0.0
    %v9214 = vadd.f32 %v9212, %v9213
    %v9215 = vrot.slane %v9214, 4
    %v9216 = vadd.f32 %v9214, %v9215
    %v9217 = vrot.slane %v9216, 2
    %v9218 = vadd.f32 %v9216, %v9217
    %v9219 = vrot.slane %v9218, 1
    %v9220 = vadd.f32 %v9218, %v9219
    %v9221 = vsel %vm1220, %v9154, 0.0
    %v9222 = vsel %vm1220, %v9155, 0.0
    %v9223 = vadd.f32 %v9221, %v9222
    %v9224 = vrot.slane %v9223, 4
    %v9225 = vadd.f32 %v9223, %v9224
    %v9226 = vrot.slane %v9225, 2
    %v9227 = vadd.f32 %v9225, %v9226
    %v9228 = vrot.slane %v9227, 1
    %v9229 = vadd.f32 %v9227, %v9228
    %v9230 = vsel %vm1220, %v9156, 0.0
    %v9231 = vsel %vm1220, %v9157, 0.0
    %v9232 = vadd.f32 %v9230, %v9231
    %v9233 = vrot.slane %v9232, 4
    %v9234 = vadd.f32 %v9232, %v9233
    %v9235 = vrot.slane %v9234, 2
    %v9236 = vadd.f32 %v9234, %v9235
    %v9237 = vrot.slane %v9236, 1
    %v9238 = vadd.f32 %v9236, %v9237
    %v9239 = vsel %vm1220, %v9158, 0.0
    %v9240 = vsel %vm1220, %v9159, 0.0
    %v9241 = vadd.f32 %v9239, %v9240
    %v9242 = vrot.slane %v9241, 4
    %v9243 = vadd.f32 %v9241, %v9242
    %v9244 = vrot.slane %v9243, 2
    %v9245 = vadd.f32 %v9243, %v9244
    %v9246 = vrot.slane %v9245, 1
    %v9247 = vadd.f32 %v9245, %v9246
    %v9248 = vsel %vm1220, %v9160, 0.0
    %v9249 = vsel %vm1220, %v9161, 0.0
    %v9250 = vadd.f32 %v9248, %v9249
    %v9251 = vrot.slane %v9250, 4
    %v9252 = vadd.f32 %v9250, %v9251
    %v9253 = vrot.slane %v9252, 2
    %v9254 = vadd.f32 %v9252, %v9253
    %v9255 = vrot.slane %v9254, 1
    %v9256 = vadd.f32 %v9254, %v9255
    %v9257 = vsel %vm1220, %v9162, 0.0
    %v9258 = vsel %vm1220, %v9163, 0.0
    %v9259 = vadd.f32 %v9257, %v9258
    %v9260 = vrot.slane %v9259, 4
    %v9261 = vadd.f32 %v9259, %v9260
    %v9262 = vrot.slane %v9261, 2
    %v9263 = vadd.f32 %v9261, %v9262
    %v9264 = vrot.slane %v9263, 1
    %v9265 = vadd.f32 %v9263, %v9264
    %v9266 = vsel %vm1220, %v9164, 0.0
    %v9267 = vsel %vm1220, %v9165, 0.0
    %v9268 = vadd.f32 %v9266, %v9267
    %v9269 = vrot.slane %v9268, 4
    %v9270 = vadd.f32 %v9268, %v9269
    %v9271 = vrot.slane %v9270, 2
    %v9272 = vadd.f32 %v9270, %v9271
    %v9273 = vrot.slane %v9272, 1
    %v9274 = vadd.f32 %v9272, %v9273
    %v9275 = vsel %vm1220, %v9166, 0.0
    %v9276 = vsel %vm1220, %v9167, 0.0
    %v9277 = vadd.f32 %v9275, %v9276
    %v9278 = vrot.slane %v9277, 4
    %v9279 = vadd.f32 %v9277, %v9278
    %v9280 = vrot.slane %v9279, 2
    %v9281 = vadd.f32 %v9279, %v9280
    %v9282 = vrot.slane %v9281, 1
    %v9283 = vadd.f32 %v9281, %v9282
    %v9284 = vsel %vm1220, %v9168, 0.0
    %v9285 = vsel %vm1220, %v9169, 0.0
    %v9286 = vadd.f32 %v9284, %v9285
    %v9287 = vrot.slane %v9286, 4
    %v9288 = vadd.f32 %v9286, %v9287
    %v9289 = vrot.slane %v9288, 2
    %v9290 = vadd.f32 %v9288, %v9289
    %v9291 = vrot.slane %v9290, 1
    %v9292 = vadd.f32 %v9290, %v9291
    %v9293 = vsel %vm1220, %v9170, 0.0
    %v9294 = vsel %vm1220, %v9171, 0.0
    %v9295 = vadd.f32 %v9293, %v9294
    %v9296 = vrot.slane %v9295, 4
    %v9297 = vadd.f32 %v9295, %v9296
    %v9298 = vrot.slane %v9297, 2
    %v9299 = vadd.f32 %v9297, %v9298
    %v9300 = vrot.slane %v9299, 1
    %v9301 = vadd.f32 %v9299, %v9300
    %v9302 = vsel %vm1220, %v9172, 0.0
    %v9303 = vsel %vm1220, %v9173, 0.0
    %v9304 = vadd.f32 %v9302, %v9303
    %v9305 = vrot.slane %v9304, 4
    %v9306 = vadd.f32 %v9304, %v9305
    %v9307 = vrot.slane %v9306, 2
    %v9308 = vadd.f32 %v9306, %v9307
    %v9309 = vrot.slane %v9308, 1
    %v9310 = vadd.f32 %v9308, %v9309
    %v9311 = vsel %vm1220, %v9174, 0.0
    %v9312 = vsel %vm1220, %v9175, 0.0
    %v9313 = vadd.f32 %v9311, %v9312
    %v9314 = vrot.slane %v9313, 4
    %v9315 = vadd.f32 %v9313, %v9314
    %v9316 = vrot.slane %v9315, 2
    %v9317 = vadd.f32 %v9315, %v9316
    %v9318 = vrot.slane %v9317, 1
    %v9319 = vadd.f32 %v9317, %v9318
    %v9320 = vmul.f32 %v9112, %v6727
    %v9321 = vmul.f32 %v9113, %v6730
    %v9322 = vmul.f32 %v9114, %v6727
    %v9323 = vmul.f32 %v9115, %v6730
    %v9324 = vmul.f32 %v9116, %v6727
    %v9325 = vmul.f32 %v9117, %v6730
    %v9326 = vmul.f32 %v9118, %v6727
    %v9327 = vmul.f32 %v9119, %v6730
    %v9328 = vmul.f32 %v9120, %v6727
    %v9329 = vmul.f32 %v9121, %v6730
    %v9330 = vmul.f32 %v9122, %v6727
    %v9331 = vmul.f32 %v9123, %v6730
    %v9332 = vmul.f32 %v9124, %v6727
    %v9333 = vmul.f32 %v9125, %v6730
    %v9334 = vmul.f32 %v9126, %v6727
    %v9335 = vmul.f32 %v9127, %v6730
    %v9336 = vmul.f32 %v9128, %v6727
    %v9337 = vmul.f32 %v9129, %v6730
    %v9338 = vmul.f32 %v9130, %v6727
    %v9339 = vmul.f32 %v9131, %v6730
    %v9340 = vmul.f32 %v9132, %v6727
    %v9341 = vmul.f32 %v9133, %v6730
    %v9342 = vmul.f32 %v9134, %v6727
    %v9343 = vmul.f32 %v9135, %v6730
    %v9344 = vmul.f32 %v9136, %v6727
    %v9345 = vmul.f32 %v9137, %v6730
    %v9346 = vmul.f32 %v9138, %v6727
    %v9347 = vmul.f32 %v9139, %v6730
    %v9348 = vmul.f32 %v9140, %v6727
    %v9349 = vmul.f32 %v9141, %v6730
    %v9350 = vmul.f32 %v9142, %v6727
    %v9351 = vmul.f32 %v9143, %v6730
    %v9352 = vsel %vm1220, %v9320, 0.0
    %v9353 = vsel %vm1220, %v9321, 0.0
    %v9354 = vadd.f32 %v9352, %v9353
    %v9355 = vrot.slane %v9354, 4
    %v9356 = vadd.f32 %v9354, %v9355
    %v9357 = vrot.slane %v9356, 2
    %v9358 = vadd.f32 %v9356, %v9357
    %v9359 = vrot.slane %v9358, 1
    %v9360 = vadd.f32 %v9358, %v9359
    %v9361 = vsel %vm1220, %v9322, 0.0
    %v9362 = vsel %vm1220, %v9323, 0.0
    %v9363 = vadd.f32 %v9361, %v9362
    %v9364 = vrot.slane %v9363, 4
    %v9365 = vadd.f32 %v9363, %v9364
    %v9366 = vrot.slane %v9365, 2
    %v9367 = vadd.f32 %v9365, %v9366
    %v9368 = vrot.slane %v9367, 1
    %v9369 = vadd.f32 %v9367, %v9368
    %v9370 = vsel %vm1220, %v9324, 0.0
    %v9371 = vsel %vm1220, %v9325, 0.0
    %v9372 = vadd.f32 %v9370, %v9371
    %v9373 = vrot.slane %v9372, 4
    %v9374 = vadd.f32 %v9372, %v9373
    %v9375 = vrot.slane %v9374, 2
    %v9376 = vadd.f32 %v9374, %v9375
    %v9377 = vrot.slane %v9376, 1
    %v9378 = vadd.f32 %v9376, %v9377
    %v9379 = vsel %vm1220, %v9326, 0.0
    %v9380 = vsel %vm1220, %v9327, 0.0
    %v9381 = vadd.f32 %v9379, %v9380
    %v9382 = vrot.slane %v9381, 4
    %v9383 = vadd.f32 %v9381, %v9382
    %v9384 = vrot.slane %v9383, 2
    %v9385 = vadd.f32 %v9383, %v9384
    %v9386 = vrot.slane %v9385, 1
    %v9387 = vadd.f32 %v9385, %v9386
    %v9388 = vsel %vm1220, %v9328, 0.0
    %v9389 = vsel %vm1220, %v9329, 0.0
    %v9390 = vadd.f32 %v9388, %v9389
    %v9391 = vrot.slane %v9390, 4
    %v9392 = vadd.f32 %v9390, %v9391
    %v9393 = vrot.slane %v9392, 2
    %v9394 = vadd.f32 %v9392, %v9393
    %v9395 = vrot.slane %v9394, 1
    %v9396 = vadd.f32 %v9394, %v9395
    %v9397 = vsel %vm1220, %v9330, 0.0
    %v9398 = vsel %vm1220, %v9331, 0.0
    %v9399 = vadd.f32 %v9397, %v9398
    %v9400 = vrot.slane %v9399, 4
    %v9401 = vadd.f32 %v9399, %v9400
    %v9402 = vrot.slane %v9401, 2
    %v9403 = vadd.f32 %v9401, %v9402
    %v9404 = vrot.slane %v9403, 1
    %v9405 = vadd.f32 %v9403, %v9404
    %v9406 = vsel %vm1220, %v9332, 0.0
    %v9407 = vsel %vm1220, %v9333, 0.0
    %v9408 = vadd.f32 %v9406, %v9407
    %v9409 = vrot.slane %v9408, 4
    %v9410 = vadd.f32 %v9408, %v9409
    %v9411 = vrot.slane %v9410, 2
    %v9412 = vadd.f32 %v9410, %v9411
    %v9413 = vrot.slane %v9412, 1
    %v9414 = vadd.f32 %v9412, %v9413
    %v9415 = vsel %vm1220, %v9334, 0.0
    %v9416 = vsel %vm1220, %v9335, 0.0
    %v9417 = vadd.f32 %v9415, %v9416
    %v9418 = vrot.slane %v9417, 4
    %v9419 = vadd.f32 %v9417, %v9418
    %v9420 = vrot.slane %v9419, 2
    %v9421 = vadd.f32 %v9419, %v9420
    %v9422 = vrot.slane %v9421, 1
    %v9423 = vadd.f32 %v9421, %v9422
    %v9424 = vsel %vm1220, %v9336, 0.0
    %v9425 = vsel %vm1220, %v9337, 0.0
    %v9426 = vadd.f32 %v9424, %v9425
    %v9427 = vrot.slane %v9426, 4
    %v9428 = vadd.f32 %v9426, %v9427
    %v9429 = vrot.slane %v9428, 2
    %v9430 = vadd.f32 %v9428, %v9429
    %v9431 = vrot.slane %v9430, 1
    %v9432 = vadd.f32 %v9430, %v9431
    %v9433 = vsel %vm1220, %v9338, 0.0
    %v9434 = vsel %vm1220, %v9339, 0.0
    %v9435 = vadd.f32 %v9433, %v9434
    %v9436 = vrot.slane %v9435, 4
    %v9437 = vadd.f32 %v9435, %v9436
    %v9438 = vrot.slane %v9437, 2
    %v9439 = vadd.f32 %v9437, %v9438
    %v9440 = vrot.slane %v9439, 1
    %v9441 = vadd.f32 %v9439, %v9440
    %v9442 = vsel %vm1220, %v9340, 0.0
    %v9443 = vsel %vm1220, %v9341, 0.0
    %v9444 = vadd.f32 %v9442, %v9443
    %v9445 = vrot.slane %v9444, 4
    %v9446 = vadd.f32 %v9444, %v9445
    %v9447 = vrot.slane %v9446, 2
    %v9448 = vadd.f32 %v9446, %v9447
    %v9449 = vrot.slane %v9448, 1
    %v9450 = vadd.f32 %v9448, %v9449
    %v9451 = vsel %vm1220, %v9342, 0.0
    %v9452 = vsel %vm1220, %v9343, 0.0
    %v9453 = vadd.f32 %v9451, %v9452
    %v9454 = vrot.slane %v9453, 4
    %v9455 = vadd.f32 %v9453, %v9454
    %v9456 = vrot.slane %v9455, 2
    %v9457 = vadd.f32 %v9455, %v9456
    %v9458 = vrot.slane %v9457, 1
    %v9459 = vadd.f32 %v9457, %v9458
    %v9460 = vsel %vm1220, %v9344, 0.0
    %v9461 = vsel %vm1220, %v9345, 0.0
    %v9462 = vadd.f32 %v9460, %v9461
    %v9463 = vrot.slane %v9462, 4
    %v9464 = vadd.f32 %v9462, %v9463
    %v9465 = vrot.slane %v9464, 2
    %v9466 = vadd.f32 %v9464, %v9465
    %v9467 = vrot.slane %v9466, 1
    %v9468 = vadd.f32 %v9466, %v9467
    %v9469 = vsel %vm1220, %v9346, 0.0
    %v9470 = vsel %vm1220, %v9347, 0.0
    %v9471 = vadd.f32 %v9469, %v9470
    %v9472 = vrot.slane %v9471, 4
    %v9473 = vadd.f32 %v9471, %v9472
    %v9474 = vrot.slane %v9473, 2
    %v9475 = vadd.f32 %v9473, %v9474
    %v9476 = vrot.slane %v9475, 1
    %v9477 = vadd.f32 %v9475, %v9476
    %v9478 = vsel %vm1220, %v9348, 0.0
    %v9479 = vsel %vm1220, %v9349, 0.0
    %v9480 = vadd.f32 %v9478, %v9479
    %v9481 = vrot.slane %v9480, 4
    %v9482 = vadd.f32 %v9480, %v9481
    %v9483 = vrot.slane %v9482, 2
    %v9484 = vadd.f32 %v9482, %v9483
    %v9485 = vrot.slane %v9484, 1
    %v9486 = vadd.f32 %v9484, %v9485
    %v9487 = vsel %vm1220, %v9350, 0.0
    %v9488 = vsel %vm1220, %v9351, 0.0
    %v9489 = vadd.f32 %v9487, %v9488
    %v9490 = vrot.slane %v9489, 4
    %v9491 = vadd.f32 %v9489, %v9490
    %v9492 = vrot.slane %v9491, 2
    %v9493 = vadd.f32 %v9491, %v9492
    %v9494 = vrot.slane %v9493, 1
    %v9495 = vadd.f32 %v9493, %v9494
    %v9496 = vmul.f32 %v9112, %v6733
    %v9497 = vmul.f32 %v9113, %v6736
    %v9498 = vmul.f32 %v9114, %v6733
    %v9499 = vmul.f32 %v9115, %v6736
    %v9500 = vmul.f32 %v9116, %v6733
    %v9501 = vmul.f32 %v9117, %v6736
    %v9502 = vmul.f32 %v9118, %v6733
    %v9503 = vmul.f32 %v9119, %v6736
    %v9504 = vmul.f32 %v9120, %v6733
    %v9505 = vmul.f32 %v9121, %v6736
    %v9506 = vmul.f32 %v9122, %v6733
    %v9507 = vmul.f32 %v9123, %v6736
    %v9508 = vmul.f32 %v9124, %v6733
    %v9509 = vmul.f32 %v9125, %v6736
    %v9510 = vmul.f32 %v9126, %v6733
    %v9511 = vmul.f32 %v9127, %v6736
    %v9512 = vmul.f32 %v9128, %v6733
    %v9513 = vmul.f32 %v9129, %v6736
    %v9514 = vmul.f32 %v9130, %v6733
    %v9515 = vmul.f32 %v9131, %v6736
    %v9516 = vmul.f32 %v9132, %v6733
    %v9517 = vmul.f32 %v9133, %v6736
    %v9518 = vmul.f32 %v9134, %v6733
    %v9519 = vmul.f32 %v9135, %v6736
    %v9520 = vmul.f32 %v9136, %v6733
    %v9521 = vmul.f32 %v9137, %v6736
    %v9522 = vmul.f32 %v9138, %v6733
    %v9523 = vmul.f32 %v9139, %v6736
    %v9524 = vmul.f32 %v9140, %v6733
    %v9525 = vmul.f32 %v9141, %v6736
    %v9526 = vmul.f32 %v9142, %v6733
    %v9527 = vmul.f32 %v9143, %v6736
    %v9528 = vsel %vm1220, %v9496, 0.0
    %v9529 = vsel %vm1220, %v9497, 0.0
    %v9530 = vadd.f32 %v9528, %v9529
    %v9531 = vrot.slane %v9530, 4
    %v9532 = vadd.f32 %v9530, %v9531
    %v9533 = vrot.slane %v9532, 2
    %v9534 = vadd.f32 %v9532, %v9533
    %v9535 = vrot.slane %v9534, 1
    %v9536 = vadd.f32 %v9534, %v9535
    %v9537 = vsel %vm1220, %v9498, 0.0
    %v9538 = vsel %vm1220, %v9499, 0.0
    %v9539 = vadd.f32 %v9537, %v9538
    %v9540 = vrot.slane %v9539, 4
    %v9541 = vadd.f32 %v9539, %v9540
    %v9542 = vrot.slane %v9541, 2
    %v9543 = vadd.f32 %v9541, %v9542
    %v9544 = vrot.slane %v9543, 1
    %v9545 = vadd.f32 %v9543, %v9544
    %v9546 = vsel %vm1220, %v9500, 0.0
    %v9547 = vsel %vm1220, %v9501, 0.0
    %v9548 = vadd.f32 %v9546, %v9547
    %v9549 = vrot.slane %v9548, 4
    %v9550 = vadd.f32 %v9548, %v9549
    %v9551 = vrot.slane %v9550, 2
    %v9552 = vadd.f32 %v9550, %v9551
    %v9553 = vrot.slane %v9552, 1
    %v9554 = vadd.f32 %v9552, %v9553
    %v9555 = vsel %vm1220, %v9502, 0.0
    %v9556 = vsel %vm1220, %v9503, 0.0
    %v9557 = vadd.f32 %v9555, %v9556
    %v9558 = vrot.slane %v9557, 4
    %v9559 = vadd.f32 %v9557, %v9558
    %v9560 = vrot.slane %v9559, 2
    %v9561 = vadd.f32 %v9559, %v9560
    %v9562 = vrot.slane %v9561, 1
    %v9563 = vadd.f32 %v9561, %v9562
    %v9564 = vsel %vm1220, %v9504, 0.0
    %v9565 = vsel %vm1220, %v9505, 0.0
    %v9566 = vadd.f32 %v9564, %v9565
    %v9567 = vrot.slane %v9566, 4
    %v9568 = vadd.f32 %v9566, %v9567
    %v9569 = vrot.slane %v9568, 2
    %v9570 = vadd.f32 %v9568, %v9569
    %v9571 = vrot.slane %v9570, 1
    %v9572 = vadd.f32 %v9570, %v9571
    %v9573 = vsel %vm1220, %v9506, 0.0
    %v9574 = vsel %vm1220, %v9507, 0.0
    %v9575 = vadd.f32 %v9573, %v9574
    %v9576 = vrot.slane %v9575, 4
    %v9577 = vadd.f32 %v9575, %v9576
    %v9578 = vrot.slane %v9577, 2
    %v9579 = vadd.f32 %v9577, %v9578
    %v9580 = vrot.slane %v9579, 1
    %v9581 = vadd.f32 %v9579, %v9580
    %v9582 = vsel %vm1220, %v9508, 0.0
    %v9583 = vsel %vm1220, %v9509, 0.0
    %v9584 = vadd.f32 %v9582, %v9583
    %v9585 = vrot.slane %v9584, 4
    %v9586 = vadd.f32 %v9584, %v9585
    %v9587 = vrot.slane %v9586, 2
    %v9588 = vadd.f32 %v9586, %v9587
    %v9589 = vrot.slane %v9588, 1
    %v9590 = vadd.f32 %v9588, %v9589
    %v9591 = vsel %vm1220, %v9510, 0.0
    %v9592 = vsel %vm1220, %v9511, 0.0
    %v9593 = vadd.f32 %v9591, %v9592
    %v9594 = vrot.slane %v9593, 4
    %v9595 = vadd.f32 %v9593, %v9594
    %v9596 = vrot.slane %v9595, 2
    %v9597 = vadd.f32 %v9595, %v9596
    %v9598 = vrot.slane %v9597, 1
    %v9599 = vadd.f32 %v9597, %v9598
    %v9600 = vsel %vm1220, %v9512, 0.0
    %v9601 = vsel %vm1220, %v9513, 0.0
    %v9602 = vadd.f32 %v9600, %v9601
    %v9603 = vrot.slane %v9602, 4
    %v9604 = vadd.f32 %v9602, %v9603
    %v9605 = vrot.slane %v9604, 2
    %v9606 = vadd.f32 %v9604, %v9605
    %v9607 = vrot.slane %v9606, 1
    %v9608 = vadd.f32 %v9606, %v9607
    %v9609 = vsel %vm1220, %v9514, 0.0
    %v9610 = vsel %vm1220, %v9515, 0.0
    %v9611 = vadd.f32 %v9609, %v9610
    %v9612 = vrot.slane %v9611, 4
    %v9613 = vadd.f32 %v9611, %v9612
    %v9614 = vrot.slane %v9613, 2
    %v9615 = vadd.f32 %v9613, %v9614
    %v9616 = vrot.slane %v9615, 1
    %v9617 = vadd.f32 %v9615, %v9616
    %v9618 = vsel %vm1220, %v9516, 0.0
    %v9619 = vsel %vm1220, %v9517, 0.0
    %v9620 = vadd.f32 %v9618, %v9619
    %v9621 = vrot.slane %v9620, 4
    %v9622 = vadd.f32 %v9620, %v9621
    %v9623 = vrot.slane %v9622, 2
    %v9624 = vadd.f32 %v9622, %v9623
    %v9625 = vrot.slane %v9624, 1
    %v9626 = vadd.f32 %v9624, %v9625
    %v9627 = vsel %vm1220, %v9518, 0.0
    %v9628 = vsel %vm1220, %v9519, 0.0
    %v9629 = vadd.f32 %v9627, %v9628
    %v9630 = vrot.slane %v9629, 4
    %v9631 = vadd.f32 %v9629, %v9630
    %v9632 = vrot.slane %v9631, 2
    %v9633 = vadd.f32 %v9631, %v9632
    %v9634 = vrot.slane %v9633, 1
    %v9635 = vadd.f32 %v9633, %v9634
    %v9636 = vsel %vm1220, %v9520, 0.0
    %v9637 = vsel %vm1220, %v9521, 0.0
    %v9638 = vadd.f32 %v9636, %v9637
    %v9639 = vrot.slane %v9638, 4
    %v9640 = vadd.f32 %v9638, %v9639
    %v9641 = vrot.slane %v9640, 2
    %v9642 = vadd.f32 %v9640, %v9641
    %v9643 = vrot.slane %v9642, 1
    %v9644 = vadd.f32 %v9642, %v9643
    %v9645 = vsel %vm1220, %v9522, 0.0
    %v9646 = vsel %vm1220, %v9523, 0.0
    %v9647 = vadd.f32 %v9645, %v9646
    %v9648 = vrot.slane %v9647, 4
    %v9649 = vadd.f32 %v9647, %v9648
    %v9650 = vrot.slane %v9649, 2
    %v9651 = vadd.f32 %v9649, %v9650
    %v9652 = vrot.slane %v9651, 1
    %v9653 = vadd.f32 %v9651, %v9652
    %v9654 = vsel %vm1220, %v9524, 0.0
    %v9655 = vsel %vm1220, %v9525, 0.0
    %v9656 = vadd.f32 %v9654, %v9655
    %v9657 = vrot.slane %v9656, 4
    %v9658 = vadd.f32 %v9656, %v9657
    %v9659 = vrot.slane %v9658, 2
    %v9660 = vadd.f32 %v9658, %v9659
    %v9661 = vrot.slane %v9660, 1
    %v9662 = vadd.f32 %v9660, %v9661
    %v9663 = vsel %vm1220, %v9526, 0.0
    %v9664 = vsel %vm1220, %v9527, 0.0
    %v9665 = vadd.f32 %v9663, %v9664
    %v9666 = vrot.slane %v9665, 4
    %v9667 = vadd.f32 %v9665, %v9666
    %v9668 = vrot.slane %v9667, 2
    %v9669 = vadd.f32 %v9667, %v9668
    %v9670 = vrot.slane %v9669, 1
    %v9671 = vadd.f32 %v9669, %v9670
    %v9672 = vmul.f32 %v9112, %v6739
    %v9673 = vmul.f32 %v9113, %v6742
    %v9674 = vmul.f32 %v9114, %v6739
    %v9675 = vmul.f32 %v9115, %v6742
    %v9676 = vmul.f32 %v9116, %v6739
    %v9677 = vmul.f32 %v9117, %v6742
    %v9678 = vmul.f32 %v9118, %v6739
    %v9679 = vmul.f32 %v9119, %v6742
    %v9680 = vmul.f32 %v9120, %v6739
    %v9681 = vmul.f32 %v9121, %v6742
    %v9682 = vmul.f32 %v9122, %v6739
    %v9683 = vmul.f32 %v9123, %v6742
    %v9684 = vmul.f32 %v9124, %v6739
    %v9685 = vmul.f32 %v9125, %v6742
    %v9686 = vmul.f32 %v9126, %v6739
    %v9687 = vmul.f32 %v9127, %v6742
    %v9688 = vmul.f32 %v9128, %v6739
    %v9689 = vmul.f32 %v9129, %v6742
    %v9690 = vmul.f32 %v9130, %v6739
    %v9691 = vmul.f32 %v9131, %v6742
    %v9692 = vmul.f32 %v9132, %v6739
    %v9693 = vmul.f32 %v9133, %v6742
    %v9694 = vmul.f32 %v9134, %v6739
    %v9695 = vmul.f32 %v9135, %v6742
    %v9696 = vmul.f32 %v9136, %v6739
    %v9697 = vmul.f32 %v9137, %v6742
    %v9698 = vmul.f32 %v9138, %v6739
    %v9699 = vmul.f32 %v9139, %v6742
    %v9700 = vmul.f32 %v9140, %v6739
    %v9701 = vmul.f32 %v9141, %v6742
    %v9702 = vmul.f32 %v9142, %v6739
    %v9703 = vmul.f32 %v9143, %v6742
    %v9704 = vsel %vm1220, %v9672, 0.0
    %v9705 = vsel %vm1220, %v9673, 0.0
    %v9706 = vadd.f32 %v9704, %v9705
    %v9707 = vrot.slane %v9706, 4
    %v9708 = vadd.f32 %v9706, %v9707
    %v9709 = vrot.slane %v9708, 2
    %v9710 = vadd.f32 %v9708, %v9709
    %v9711 = vrot.slane %v9710, 1
    %v9712 = vadd.f32 %v9710, %v9711
    %v9713 = vsel %vm1220, %v9674, 0.0
    %v9714 = vsel %vm1220, %v9675, 0.0
    %v9715 = vadd.f32 %v9713, %v9714
    %v9716 = vrot.slane %v9715, 4
    %v9717 = vadd.f32 %v9715, %v9716
    %v9718 = vrot.slane %v9717, 2
    %v9719 = vadd.f32 %v9717, %v9718
    %v9720 = vrot.slane %v9719, 1
    %v9721 = vadd.f32 %v9719, %v9720
    %v9722 = vsel %vm1220, %v9676, 0.0
    %v9723 = vsel %vm1220, %v9677, 0.0
    %v9724 = vadd.f32 %v9722, %v9723
    %v9725 = vrot.slane %v9724, 4
    %v9726 = vadd.f32 %v9724, %v9725
    %v9727 = vrot.slane %v9726, 2
    %v9728 = vadd.f32 %v9726, %v9727
    %v9729 = vrot.slane %v9728, 1
    %v9730 = vadd.f32 %v9728, %v9729
    %v9731 = vsel %vm1220, %v9678, 0.0
    %v9732 = vsel %vm1220, %v9679, 0.0
    %v9733 = vadd.f32 %v9731, %v9732
    %v9734 = vrot.slane %v9733, 4
    %v9735 = vadd.f32 %v9733, %v9734
    %v9736 = vrot.slane %v9735, 2
    %v9737 = vadd.f32 %v9735, %v9736
    %v9738 = vrot.slane %v9737, 1
    %v9739 = vadd.f32 %v9737, %v9738
    %v9740 = vsel %vm1220, %v9680, 0.0
    %v9741 = vsel %vm1220, %v9681, 0.0
    %v9742 = vadd.f32 %v9740, %v9741
    %v9743 = vrot.slane %v9742, 4
    %v9744 = vadd.f32 %v9742, %v9743
    %v9745 = vrot.slane %v9744, 2
    %v9746 = vadd.f32 %v9744, %v9745
    %v9747 = vrot.slane %v9746, 1
    %v9748 = vadd.f32 %v9746, %v9747
    %v9749 = vsel %vm1220, %v9682, 0.0
    %v9750 = vsel %vm1220, %v9683, 0.0
    %v9751 = vadd.f32 %v9749, %v9750
    %v9752 = vrot.slane %v9751, 4
    %v9753 = vadd.f32 %v9751, %v9752
    %v9754 = vrot.slane %v9753, 2
    %v9755 = vadd.f32 %v9753, %v9754
    %v9756 = vrot.slane %v9755, 1
    %v9757 = vadd.f32 %v9755, %v9756
    %v9758 = vsel %vm1220, %v9684, 0.0
    %v9759 = vsel %vm1220, %v9685, 0.0
    %v9760 = vadd.f32 %v9758, %v9759
    %v9761 = vrot.slane %v9760, 4
    %v9762 = vadd.f32 %v9760, %v9761
    %v9763 = vrot.slane %v9762, 2
    %v9764 = vadd.f32 %v9762, %v9763
    %v9765 = vrot.slane %v9764, 1
    %v9766 = vadd.f32 %v9764, %v9765
    %v9767 = vsel %vm1220, %v9686, 0.0
    %v9768 = vsel %vm1220, %v9687, 0.0
    %v9769 = vadd.f32 %v9767, %v9768
    %v9770 = vrot.slane %v9769, 4
    %v9771 = vadd.f32 %v9769, %v9770
    %v9772 = vrot.slane %v9771, 2
    %v9773 = vadd.f32 %v9771, %v9772
    %v9774 = vrot.slane %v9773, 1
    %v9775 = vadd.f32 %v9773, %v9774
    %v9776 = vsel %vm1220, %v9688, 0.0
    %v9777 = vsel %vm1220, %v9689, 0.0
    %v9778 = vadd.f32 %v9776, %v9777
    %v9779 = vrot.slane %v9778, 4
    %v9780 = vadd.f32 %v9778, %v9779
    %v9781 = vrot.slane %v9780, 2
    %v9782 = vadd.f32 %v9780, %v9781
    %v9783 = vrot.slane %v9782, 1
    %v9784 = vadd.f32 %v9782, %v9783
    %v9785 = vsel %vm1220, %v9690, 0.0
    %v9786 = vsel %vm1220, %v9691, 0.0
    %v9787 = vadd.f32 %v9785, %v9786
    %v9788 = vrot.slane %v9787, 4
    %v9789 = vadd.f32 %v9787, %v9788
    %v9790 = vrot.slane %v9789, 2
    %v9791 = vadd.f32 %v9789, %v9790
    %v9792 = vrot.slane %v9791, 1
    %v9793 = vadd.f32 %v9791, %v9792
    %v9794 = vsel %vm1220, %v9692, 0.0
    %v9795 = vsel %vm1220, %v9693, 0.0
    %v9796 = vadd.f32 %v9794, %v9795
    %v9797 = vrot.slane %v9796, 4
    %v9798 = vadd.f32 %v9796, %v9797
    %v9799 = vrot.slane %v9798, 2
    %v9800 = vadd.f32 %v9798, %v9799
    %v9801 = vrot.slane %v9800, 1
    %v9802 = vadd.f32 %v9800, %v9801
    %v9803 = vsel %vm1220, %v9694, 0.0
    %v9804 = vsel %vm1220, %v9695, 0.0
    %v9805 = vadd.f32 %v9803, %v9804
    %v9806 = vrot.slane %v9805, 4
    %v9807 = vadd.f32 %v9805, %v9806
    %v9808 = vrot.slane %v9807, 2
    %v9809 = vadd.f32 %v9807, %v9808
    %v9810 = vrot.slane %v9809, 1
    %v9811 = vadd.f32 %v9809, %v9810
    %v9812 = vsel %vm1220, %v9696, 0.0
    %v9813 = vsel %vm1220, %v9697, 0.0
    %v9814 = vadd.f32 %v9812, %v9813
    %v9815 = vrot.slane %v9814, 4
    %v9816 = vadd.f32 %v9814, %v9815
    %v9817 = vrot.slane %v9816, 2
    %v9818 = vadd.f32 %v9816, %v9817
    %v9819 = vrot.slane %v9818, 1
    %v9820 = vadd.f32 %v9818, %v9819
    %v9821 = vsel %vm1220, %v9698, 0.0
    %v9822 = vsel %vm1220, %v9699, 0.0
    %v9823 = vadd.f32 %v9821, %v9822
    %v9824 = vrot.slane %v9823, 4
    %v9825 = vadd.f32 %v9823, %v9824
    %v9826 = vrot.slane %v9825, 2
    %v9827 = vadd.f32 %v9825, %v9826
    %v9828 = vrot.slane %v9827, 1
    %v9829 = vadd.f32 %v9827, %v9828
    %v9830 = vsel %vm1220, %v9700, 0.0
    %v9831 = vsel %vm1220, %v9701, 0.0
    %v9832 = vadd.f32 %v9830, %v9831
    %v9833 = vrot.slane %v9832, 4
    %v9834 = vadd.f32 %v9832, %v9833
    %v9835 = vrot.slane %v9834, 2
    %v9836 = vadd.f32 %v9834, %v9835
    %v9837 = vrot.slane %v9836, 1
    %v9838 = vadd.f32 %v9836, %v9837
    %v9839 = vsel %vm1220, %v9702, 0.0
    %v9840 = vsel %vm1220, %v9703, 0.0
    %v9841 = vadd.f32 %v9839, %v9840
    %v9842 = vrot.slane %v9841, 4
    %v9843 = vadd.f32 %v9841, %v9842
    %v9844 = vrot.slane %v9843, 2
    %v9845 = vadd.f32 %v9843, %v9844
    %v9846 = vrot.slane %v9845, 1
    %v9847 = vadd.f32 %v9845, %v9846
    %v9864 = vsel %vm3925, %v7641, %v7632
    %v9865 = vsel %vm3927, %v7650, %v9864
    %v9866 = vsel %vm3929, %v7659, %v9865
    %v9867 = vsel %vm3931, %v7668, %v9866
    %v9868 = vsel %vm3933, %v7677, %v9867
    %v9869 = vsel %vm3935, %v7686, %v9868
    %v9870 = vsel %vm3937, %v7695, %v9869
    %v9871 = vsel %vm3925, %v7713, %v7704
    %v9872 = vsel %vm3927, %v7722, %v9871
    %v9873 = vsel %vm3929, %v7731, %v9872
    %v9874 = vsel %vm3931, %v7740, %v9873
    %v9875 = vsel %vm3933, %v7749, %v9874
    %v9876 = vsel %vm3935, %v7758, %v9875
    %v9877 = vsel %vm3937, %v7767, %v9876
    %v9896 = vsel %vm3925, %v7817, %v7808
    %v9897 = vsel %vm3927, %v7826, %v9896
    %v9898 = vsel %vm3929, %v7835, %v9897
    %v9899 = vsel %vm3931, %v7844, %v9898
    %v9900 = vsel %vm3933, %v7853, %v9899
    %v9901 = vsel %vm3935, %v7862, %v9900
    %v9902 = vsel %vm3937, %v7871, %v9901
    %v9903 = vsel %vm3925, %v7889, %v7880
    %v9904 = vsel %vm3927, %v7898, %v9903
    %v9905 = vsel %vm3929, %v7907, %v9904
    %v9906 = vsel %vm3931, %v7916, %v9905
    %v9907 = vsel %vm3933, %v7925, %v9906
    %v9908 = vsel %vm3935, %v7934, %v9907
    %v9909 = vsel %vm3937, %v7943, %v9908
    %v9928 = vsel %vm3925, %v7993, %v7984
    %v9929 = vsel %vm3927, %v8002, %v9928
    %v9930 = vsel %vm3929, %v8011, %v9929
    %v9931 = vsel %vm3931, %v8020, %v9930
    %v9932 = vsel %vm3933, %v8029, %v9931
    %v9933 = vsel %vm3935, %v8038, %v9932
    %v9934 = vsel %vm3937, %v8047, %v9933
    %v9935 = vsel %vm3925, %v8065, %v8056
    %v9936 = vsel %vm3927, %v8074, %v9935
    %v9937 = vsel %vm3929, %v8083, %v9936
    %v9938 = vsel %vm3931, %v8092, %v9937
    %v9939 = vsel %vm3933, %v8101, %v9938
    %v9940 = vsel %vm3935, %v8110, %v9939
    %v9941 = vsel %vm3937, %v8119, %v9940
    %v9960 = vsel %vm3925, %v8169, %v8160
    %v9961 = vsel %vm3927, %v8178, %v9960
    %v9962 = vsel %vm3929, %v8187, %v9961
    %v9963 = vsel %vm3931, %v8196, %v9962
    %v9964 = vsel %vm3933, %v8205, %v9963
    %v9965 = vsel %vm3935, %v8214, %v9964
    %v9966 = vsel %vm3937, %v8223, %v9965
    %v9967 = vsel %vm3925, %v8241, %v8232
    %v9968 = vsel %vm3927, %v8250, %v9967
    %v9969 = vsel %vm3929, %v8259, %v9968
    %v9970 = vsel %vm3931, %v8268, %v9969
    %v9971 = vsel %vm3933, %v8277, %v9970
    %v9972 = vsel %vm3935, %v8286, %v9971
    %v9973 = vsel %vm3937, %v8295, %v9972
    %v9992 = vsel %vm3925, %v9193, %v9184
    %v9993 = vsel %vm3927, %v9202, %v9992
    %v9994 = vsel %vm3929, %v9211, %v9993
    %v9995 = vsel %vm3931, %v9220, %v9994
    %v9996 = vsel %vm3933, %v9229, %v9995
    %v9997 = vsel %vm3935, %v9238, %v9996
    %v9998 = vsel %vm3937, %v9247, %v9997
    %v9999 = vsel %vm3925, %v9265, %v9256
    %v10000 = vsel %vm3927, %v9274, %v9999
    %v10001 = vsel %vm3929, %v9283, %v10000
    %v10002 = vsel %vm3931, %v9292, %v10001
    %v10003 = vsel %vm3933, %v9301, %v10002
    %v10004 = vsel %vm3935, %v9310, %v10003
    %v10005 = vsel %vm3937, %v9319, %v10004
    %v10024 = vsel %vm3925, %v9369, %v9360
    %v10025 = vsel %vm3927, %v9378, %v10024
    %v10026 = vsel %vm3929, %v9387, %v10025
    %v10027 = vsel %vm3931, %v9396, %v10026
    %v10028 = vsel %vm3933, %v9405, %v10027
    %v10029 = vsel %vm3935, %v9414, %v10028
    %v10030 = vsel %vm3937, %v9423, %v10029
    %v10031 = vsel %vm3925, %v9441, %v9432
    %v10032 = vsel %vm3927, %v9450, %v10031
    %v10033 = vsel %vm3929, %v9459, %v10032
    %v10034 = vsel %vm3931, %v9468, %v10033
    %v10035 = vsel %vm3933, %v9477, %v10034
    %v10036 = vsel %vm3935, %v9486, %v10035
    %v10037 = vsel %vm3937, %v9495, %v10036
    %v10056 = vsel %vm3925, %v9545, %v9536
    %v10057 = vsel %vm3927, %v9554, %v10056
    %v10058 = vsel %vm3929, %v9563, %v10057
    %v10059 = vsel %vm3931, %v9572, %v10058
    %v10060 = vsel %vm3933, %v9581, %v10059
    %v10061 = vsel %vm3935, %v9590, %v10060
    %v10062 = vsel %vm3937, %v9599, %v10061
    %v10063 = vsel %vm3925, %v9617, %v9608
    %v10064 = vsel %vm3927, %v9626, %v10063
    %v10065 = vsel %vm3929, %v9635, %v10064
    %v10066 = vsel %vm3931, %v9644, %v10065
    %v10067 = vsel %vm3933, %v9653, %v10066
    %v10068 = vsel %vm3935, %v9662, %v10067
    %v10069 = vsel %vm3937, %v9671, %v10068
    %v10088 = vsel %vm3925, %v9721, %v9712
    %v10089 = vsel %vm3927, %v9730, %v10088
    %v10090 = vsel %vm3929, %v9739, %v10089
    %v10091 = vsel %vm3931, %v9748, %v10090
    %v10092 = vsel %vm3933, %v9757, %v10091
    %v10093 = vsel %vm3935, %v9766, %v10092
    %v10094 = vsel %vm3937, %v9775, %v10093
    %v10095 = vsel %vm3925, %v9793, %v9784
    %v10096 = vsel %vm3927, %v9802, %v10095
    %v10097 = vsel %vm3929, %v9811, %v10096
    %v10098 = vsel %vm3931, %v9820, %v10097
    %v10099 = vsel %vm3933, %v9829, %v10098
    %v10100 = vsel %vm3935, %v9838, %v10099
    %v10101 = vsel %vm3937, %v9847, %v10100
    %s10104 = scalar_lea.vmem %s5, 128
    %v10105 = vld [vmem:[%s10104] sm:$0xff]
    %v10106 = vld [vmem:[%s10104 + $0x8] sm:$0xff]
    %v10107 = vld [vmem:[%s10104 + $0x10] sm:$0xff]
    %v10108 = vld [vmem:[%s10104 + $0x18] sm:$0xff]
    %v10109 = vld [vmem:[%s10104 + $0x20] sm:$0xff]
    %v10110 = vld [vmem:[%s10104 + $0x28] sm:$0xff]
    %v10111 = vld [vmem:[%s10104 + $0x30] sm:$0xff]
    %v10112 = vld [vmem:[%s10104 + $0x38] sm:$0xff]
    %v10113 = vld [vmem:[%s10104 + $0x40] sm:$0xff]
    %v10114 = vld [vmem:[%s10104 + $0x48] sm:$0xff]
    %v10115 = vld [vmem:[%s10104 + $0x50] sm:$0xff]
    %v10116 = vld [vmem:[%s10104 + $0x58] sm:$0xff]
    %v10117 = vld [vmem:[%s10104 + $0x60] sm:$0xff]
    %v10118 = vld [vmem:[%s10104 + $0x68] sm:$0xff]
    %v10119 = vld [vmem:[%s10104 + $0x70] sm:$0xff]
    %v10120 = vld [vmem:[%s10104 + $0x78] sm:$0xff]
    %s10121 = scalar_lea.vmem %s6, 128
    %v10122 = vld [vmem:[%s10121] sm:$0xff]
    %v10123 = vld [vmem:[%s10121 + $0x8] sm:$0xff]
    %v10124 = vld [vmem:[%s10121 + $0x10] sm:$0xff]
    %v10125 = vld [vmem:[%s10121 + $0x18] sm:$0xff]
    %v10126 = vld [vmem:[%s10121 + $0x20] sm:$0xff]
    %v10127 = vld [vmem:[%s10121 + $0x28] sm:$0xff]
    %v10128 = vld [vmem:[%s10121 + $0x30] sm:$0xff]
    %v10129 = vld [vmem:[%s10121 + $0x38] sm:$0xff]
    %v10130 = vld [vmem:[%s10121 + $0x40] sm:$0xff]
    %v10131 = vld [vmem:[%s10121 + $0x48] sm:$0xff]
    %v10132 = vld [vmem:[%s10121 + $0x50] sm:$0xff]
    %v10133 = vld [vmem:[%s10121 + $0x58] sm:$0xff]
    %v10134 = vld [vmem:[%s10121 + $0x60] sm:$0xff]
    %v10135 = vld [vmem:[%s10121 + $0x68] sm:$0xff]
    %v10136 = vld [vmem:[%s10121 + $0x70] sm:$0xff]
    %v10137 = vld [vmem:[%s10121 + $0x78] sm:$0xff]
    %10139 = vset.pattern.permute.xlu0 0
    %10140 = vperm.xlu0 %10139, %v10122
    %v10141 = vpop.permute.xlu0 %10140
    %10144 = vset.pattern.permute.xlu0 0
    %10145 = vperm.xlu0 %10144, %v10123
    %v10146 = vpop.permute.xlu0 %10145
    %10149 = vset.pattern.permute.xlu0 0
    %10150 = vperm.xlu0 %10149, %v10124
    %v10151 = vpop.permute.xlu0 %10150
    %10154 = vset.pattern.permute.xlu0 0
    %10155 = vperm.xlu0 %10154, %v10125
    %v10156 = vpop.permute.xlu0 %10155
    %10159 = vset.pattern.permute.xlu0 0
    %10160 = vperm.xlu0 %10159, %v10126
    %v10161 = vpop.permute.xlu0 %10160
    %10164 = vset.pattern.permute.xlu0 0
    %10165 = vperm.xlu0 %10164, %v10127
    %v10166 = vpop.permute.xlu0 %10165
    %10169 = vset.pattern.permute.xlu0 0
    %10170 = vperm.xlu0 %10169, %v10128
    %v10171 = vpop.permute.xlu0 %10170
    %10174 = vset.pattern.permute.xlu0 0
    %10175 = vperm.xlu0 %10174, %v10129
    %v10176 = vpop.permute.xlu0 %10175
    %10179 = vset.pattern.permute.xlu0 0
    %10180 = vperm.xlu0 %10179, %v10130
    %v10181 = vpop.permute.xlu0 %10180
    %10184 = vset.pattern.permute.xlu0 0
    %10185 = vperm.xlu0 %10184, %v10131
    %v10186 = vpop.permute.xlu0 %10185
    %10189 = vset.pattern.permute.xlu0 0
    %10190 = vperm.xlu0 %10189, %v10132
    %v10191 = vpop.permute.xlu0 %10190
    %10194 = vset.pattern.permute.xlu0 0
    %10195 = vperm.xlu0 %10194, %v10133
    %v10196 = vpop.permute.xlu0 %10195
    %10199 = vset.pattern.permute.xlu0 0
    %10200 = vperm.xlu0 %10199, %v10134
    %v10201 = vpop.permute.xlu0 %10200
    %10204 = vset.pattern.permute.xlu0 0
    %10205 = vperm.xlu0 %10204, %v10135
    %v10206 = vpop.permute.xlu0 %10205
    %10209 = vset.pattern.permute.xlu0 0
    %10210 = vperm.xlu0 %10209, %v10136
    %v10211 = vpop.permute.xlu0 %10210
    %10214 = vset.pattern.permute.xlu0 0
    %10215 = vperm.xlu0 %10214, %v10137
    %v10216 = vpop.permute.xlu0 %10215
    %10218 = vmatpush.msra.mxu0 %v10101
    %10219 = vmatpush.msra.mxu0 %v10094
    %10220 = vmatpush.msra.mxu0 %v10069
    %10221 = vmatpush.msra.mxu0 %v10062
    %10222 = vmatpush.msra.mxu0 %v10037
    %10223 = vmatpush.msra.mxu0 %v10030
    %10224 = vmatpush.msra.mxu0 %v10005
    %10225 = vmatpush.msra.mxu0 %v9998
    %10226 = vmatpush.msra.mxu0 %v9973
    %10227 = vmatpush.msra.mxu0 %v9966
    %10228 = vmatpush.msra.mxu0 %v9941
    %10229 = vmatpush.msra.mxu0 %v9934
    %10230 = vmatpush.msra.mxu0 %v9909
    %10231 = vmatpush.msra.mxu0 %v9902
    %10232 = vmatpush.msra.mxu0 %v9877
    %10233 = vmatpush.msra.mxu0 %v9870
    %10234 = vmatmul.f32.gmra.mxu0 %v10105
    %v10235 = vpop.f32.mrf.mxu0
    %v10236 = vadd.f32 %v10141, %v10235
    %10237 = vmatmul.f32.gmra.mxu0 %v10106
    %v10238 = vpop.f32.mrf.mxu0
    %v10239 = vadd.f32 %v10146, %v10238
    %10240 = vmatmul.f32.gmra.mxu0 %v10107
    %v10241 = vpop.f32.mrf.mxu0
    %v10242 = vadd.f32 %v10151, %v10241
    %10243 = vmatmul.f32.gmra.mxu0 %v10108
    %v10244 = vpop.f32.mrf.mxu0
    %v10245 = vadd.f32 %v10156, %v10244
    %10246 = vmatmul.f32.gmra.mxu0 %v10109
    %v10247 = vpop.f32.mrf.mxu0
    %v10248 = vadd.f32 %v10161, %v10247
    %10249 = vmatmul.f32.gmra.mxu0 %v10110
    %v10250 = vpop.f32.mrf.mxu0
    %v10251 = vadd.f32 %v10166, %v10250
    %10252 = vmatmul.f32.gmra.mxu0 %v10111
    %v10253 = vpop.f32.mrf.mxu0
    %v10254 = vadd.f32 %v10171, %v10253
    %10255 = vmatmul.f32.gmra.mxu0 %v10112
    %v10256 = vpop.f32.mrf.mxu0
    %v10257 = vadd.f32 %v10176, %v10256
    %10258 = vmatmul.f32.gmra.mxu0 %v10113
    %v10259 = vpop.f32.mrf.mxu0
    %v10260 = vadd.f32 %v10181, %v10259
    %10261 = vmatmul.f32.gmra.mxu0 %v10114
    %v10262 = vpop.f32.mrf.mxu0
    %v10263 = vadd.f32 %v10186, %v10262
    %10264 = vmatmul.f32.gmra.mxu0 %v10115
    %v10265 = vpop.f32.mrf.mxu0
    %v10266 = vadd.f32 %v10191, %v10265
    %10267 = vmatmul.f32.gmra.mxu0 %v10116
    %v10268 = vpop.f32.mrf.mxu0
    %v10269 = vadd.f32 %v10196, %v10268
    %10270 = vmatmul.f32.gmra.mxu0 %v10117
    %v10271 = vpop.f32.mrf.mxu0
    %v10272 = vadd.f32 %v10201, %v10271
    %10273 = vmatmul.f32.gmra.mxu0 %v10118
    %v10274 = vpop.f32.mrf.mxu0
    %v10275 = vadd.f32 %v10206, %v10274
    %10276 = vmatmul.f32.gmra.mxu0 %v10119
    %v10277 = vpop.f32.mrf.mxu0
    %v10278 = vadd.f32 %v10211, %v10277
    %10279 = vmatmul.f32.gmra.mxu0 %v10120
    %v10280 = vpop.f32.mrf.mxu0
    %v10281 = vadd.f32 %v10216, %v10280
    %10282 = vdwg.mxu0
    %v10283 = vadd.f32 %v6229, %v10236
    %v10284 = vadd.f32 %v6230, %v10239
    %v10285 = vadd.f32 %v6231, %v10242
    %v10286 = vadd.f32 %v6232, %v10245
    %v10287 = vadd.f32 %v6233, %v10248
    %v10288 = vadd.f32 %v6234, %v10251
    %v10289 = vadd.f32 %v6235, %v10254
    %v10290 = vadd.f32 %v6236, %v10257
    %v10291 = vadd.f32 %v6237, %v10260
    %v10292 = vadd.f32 %v6238, %v10263
    %v10293 = vadd.f32 %v6239, %v10266
    %v10294 = vadd.f32 %v6240, %v10269
    %v10295 = vadd.f32 %v6241, %v10272
    %v10296 = vadd.f32 %v6242, %v10275
    %v10297 = vadd.f32 %v6243, %v10278
    %v10298 = vadd.f32 %v6244, %v10281
    %s10299 = scalar_lea.vmem %s7, 128
    %v10300 = vld [vmem:[%s10299] sm:$0xff]
    %v10301 = vld [vmem:[%s10299 + $0x8] sm:$0xff]
    %v10302 = vld [vmem:[%s10299 + $0x10] sm:$0xff]
    %v10303 = vld [vmem:[%s10299 + $0x18] sm:$0xff]
    %v10304 = vld [vmem:[%s10299 + $0x20] sm:$0xff]
    %v10305 = vld [vmem:[%s10299 + $0x28] sm:$0xff]
    %v10306 = vld [vmem:[%s10299 + $0x30] sm:$0xff]
    %v10307 = vld [vmem:[%s10299 + $0x38] sm:$0xff]
    %v10308 = vld [vmem:[%s10299 + $0x40] sm:$0xff]
    %v10309 = vld [vmem:[%s10299 + $0x48] sm:$0xff]
    %v10310 = vld [vmem:[%s10299 + $0x50] sm:$0xff]
    %v10311 = vld [vmem:[%s10299 + $0x58] sm:$0xff]
    %v10312 = vld [vmem:[%s10299 + $0x60] sm:$0xff]
    %v10313 = vld [vmem:[%s10299 + $0x68] sm:$0xff]
    %v10314 = vld [vmem:[%s10299 + $0x70] sm:$0xff]
    %v10315 = vld [vmem:[%s10299 + $0x78] sm:$0xff]
    %s10316 = scalar_lea.vmem %s8, 128
    %v10317 = vld [vmem:[%s10316] sm:$0xff]
    %v10318 = vld [vmem:[%s10316 + $0x8] sm:$0xff]
    %v10319 = vld [vmem:[%s10316 + $0x10] sm:$0xff]
    %v10320 = vld [vmem:[%s10316 + $0x18] sm:$0xff]
    %v10321 = vld [vmem:[%s10316 + $0x20] sm:$0xff]
    %v10322 = vld [vmem:[%s10316 + $0x28] sm:$0xff]
    %v10323 = vld [vmem:[%s10316 + $0x30] sm:$0xff]
    %v10324 = vld [vmem:[%s10316 + $0x38] sm:$0xff]
    %v10325 = vld [vmem:[%s10316 + $0x40] sm:$0xff]
    %v10326 = vld [vmem:[%s10316 + $0x48] sm:$0xff]
    %v10327 = vld [vmem:[%s10316 + $0x50] sm:$0xff]
    %v10328 = vld [vmem:[%s10316 + $0x58] sm:$0xff]
    %v10329 = vld [vmem:[%s10316 + $0x60] sm:$0xff]
    %v10330 = vld [vmem:[%s10316 + $0x68] sm:$0xff]
    %v10331 = vld [vmem:[%s10316 + $0x70] sm:$0xff]
    %v10332 = vld [vmem:[%s10316 + $0x78] sm:$0xff]
    %v10333 = vsel %vm1220, %v10283, 0.0
    %v10334 = vsel %vm1220, %v10285, 0.0
    %v10335 = vadd.f32 %v10333, %v10334
    %v10336 = vsel %vm1220, %v10287, 0.0
    %v10337 = vadd.f32 %v10335, %v10336
    %v10338 = vsel %vm1220, %v10289, 0.0
    %v10339 = vadd.f32 %v10337, %v10338
    %v10340 = vsel %vm1220, %v10291, 0.0
    %v10341 = vadd.f32 %v10339, %v10340
    %v10342 = vsel %vm1220, %v10293, 0.0
    %v10343 = vadd.f32 %v10341, %v10342
    %v10344 = vsel %vm1220, %v10295, 0.0
    %v10345 = vadd.f32 %v10343, %v10344
    %v10346 = vsel %vm1220, %v10297, 0.0
    %v10347 = vadd.f32 %v10345, %v10346
    %v10348 = vsel %vm1220, %v10284, 0.0
    %v10349 = vsel %vm1220, %v10286, 0.0
    %v10350 = vadd.f32 %v10348, %v10349
    %v10351 = vsel %vm1220, %v10288, 0.0
    %v10352 = vadd.f32 %v10350, %v10351
    %v10353 = vsel %vm1220, %v10290, 0.0
    %v10354 = vadd.f32 %v10352, %v10353
    %v10355 = vsel %vm1220, %v10292, 0.0
    %v10356 = vadd.f32 %v10354, %v10355
    %v10357 = vsel %vm1220, %v10294, 0.0
    %v10358 = vadd.f32 %v10356, %v10357
    %v10359 = vsel %vm1220, %v10296, 0.0
    %v10360 = vadd.f32 %v10358, %v10359
    %v10361 = vsel %vm1220, %v10298, 0.0
    %v10362 = vadd.f32 %v10360, %v10361
    %v10363 = vmul.f32 %v10347, %v4433
    %v10364 = vmul.f32 %v10362, %v4433
    %v10365 = vsub.f32 %v10283, %v10363
    %v10366 = vsub.f32 %v10284, %v10364
    %v10367 = vsub.f32 %v10285, %v10363
    %v10368 = vsub.f32 %v10286, %v10364
    %v10369 = vsub.f32 %v10287, %v10363
    %v10370 = vsub.f32 %v10288, %v10364
    %v10371 = vsub.f32 %v10289, %v10363
    %v10372 = vsub.f32 %v10290, %v10364
    %v10373 = vsub.f32 %v10291, %v10363
    %v10374 = vsub.f32 %v10292, %v10364
    %v10375 = vsub.f32 %v10293, %v10363
    %v10376 = vsub.f32 %v10294, %v10364
    %v10377 = vsub.f32 %v10295, %v10363
    %v10378 = vsub.f32 %v10296, %v10364
    %v10379 = vsub.f32 %v10297, %v10363
    %v10380 = vsub.f32 %v10298, %v10364
    %v10381 = vmul.f32 %v10365, %v10365
    %v10382 = vmul.f32 %v10366, %v10366
    %v10383 = vmul.f32 %v10367, %v10367
    %v10384 = vmul.f32 %v10368, %v10368
    %v10385 = vmul.f32 %v10369, %v10369
    %v10386 = vmul.f32 %v10370, %v10370
    %v10387 = vmul.f32 %v10371, %v10371
    %v10388 = vmul.f32 %v10372, %v10372
    %v10389 = vmul.f32 %v10373, %v10373
    %v10390 = vmul.f32 %v10374, %v10374
    %v10391 = vmul.f32 %v10375, %v10375
    %v10392 = vmul.f32 %v10376, %v10376
    %v10393 = vmul.f32 %v10377, %v10377
    %v10394 = vmul.f32 %v10378, %v10378
    %v10395 = vmul.f32 %v10379, %v10379
    %v10396 = vmul.f32 %v10380, %v10380
    %v10397 = vsel %vm1220, %v10381, 0.0
    %v10398 = vsel %vm1220, %v10383, 0.0
    %v10399 = vadd.f32 %v10397, %v10398
    %v10400 = vsel %vm1220, %v10385, 0.0
    %v10401 = vadd.f32 %v10399, %v10400
    %v10402 = vsel %vm1220, %v10387, 0.0
    %v10403 = vadd.f32 %v10401, %v10402
    %v10404 = vsel %vm1220, %v10389, 0.0
    %v10405 = vadd.f32 %v10403, %v10404
    %v10406 = vsel %vm1220, %v10391, 0.0
    %v10407 = vadd.f32 %v10405, %v10406
    %v10408 = vsel %vm1220, %v10393, 0.0
    %v10409 = vadd.f32 %v10407, %v10408
    %v10410 = vsel %vm1220, %v10395, 0.0
    %v10411 = vadd.f32 %v10409, %v10410
    %v10412 = vsel %vm1220, %v10382, 0.0
    %v10413 = vsel %vm1220, %v10384, 0.0
    %v10414 = vadd.f32 %v10412, %v10413
    %v10415 = vsel %vm1220, %v10386, 0.0
    %v10416 = vadd.f32 %v10414, %v10415
    %v10417 = vsel %vm1220, %v10388, 0.0
    %v10418 = vadd.f32 %v10416, %v10417
    %v10419 = vsel %vm1220, %v10390, 0.0
    %v10420 = vadd.f32 %v10418, %v10419
    %v10421 = vsel %vm1220, %v10392, 0.0
    %v10422 = vadd.f32 %v10420, %v10421
    %v10423 = vsel %vm1220, %v10394, 0.0
    %v10424 = vadd.f32 %v10422, %v10423
    %v10425 = vsel %vm1220, %v10396, 0.0
    %v10426 = vadd.f32 %v10424, %v10425
    %v10427 = vmul.f32 %v10411, %v4433
    %v10428 = vmul.f32 %v10426, %v4433
    %v10429 = vadd.f32 %v10427, 1e-05
    %v10430 = vadd.f32 %v10428, 1e-05
    %v10431 = vrsqrt.pop %v10429
    %v10432 = vmul.f32 %v10431, %v10429
    %v10433 = vmul.f32 %v10432, %v10431
    %v10434 = vmul.f32 0.5, %v10433
    %v10435 = vsub.f32 1.5, %v10434
    %v10436 = vmul.f32 %v10431, %v10435
    %vm10437 = vweird.f32 %v10429
    %vm10438 = vweird.f32 %v10431
    %vm10439 = vmor %vm10437, %vm10438
    %v10440 = vsel %vm10439, %v10431, %v10436
    %v10441 = vrsqrt.pop %v10430
    %v10442 = vmul.f32 %v10441, %v10430
    %v10443 = vmul.f32 %v10442, %v10441
    %v10444 = vmul.f32 0.5, %v10443
    %v10445 = vsub.f32 1.5, %v10444
    %v10446 = vmul.f32 %v10441, %v10445
    %vm10447 = vweird.f32 %v10430
    %vm10448 = vweird.f32 %v10441
    %vm10449 = vmor %vm10447, %vm10448
    %v10450 = vsel %vm10449, %v10441, %v10446
    %v10451 = vmul.f32 %v10365, %v10440
    %v10452 = vmul.f32 %v10366, %v10450
    %v10453 = vmul.f32 %v10367, %v10440
    %v10454 = vmul.f32 %v10368, %v10450
    %v10455 = vmul.f32 %v10369, %v10440
    %v10456 = vmul.f32 %v10370, %v10450
    %v10457 = vmul.f32 %v10371, %v10440
    %v10458 = vmul.f32 %v10372, %v10450
    %v10459 = vmul.f32 %v10373, %v10440
    %v10460 = vmul.f32 %v10374, %v10450
    %v10461 = vmul.f32 %v10375, %v10440
    %v10462 = vmul.f32 %v10376, %v10450
    %v10463 = vmul.f32 %v10377, %v10440
    %v10464 = vmul.f32 %v10378, %v10450
    %v10465 = vmul.f32 %v10379, %v10440
    %v10466 = vmul.f32 %v10380, %v10450
    %10468 = vset.pattern.permute.xlu0 0
    %10469 = vperm.xlu0 %10468, %v10300
    %v10470 = vpop.permute.xlu0 %10469
    %10473 = vset.pattern.permute.xlu0 0
    %10474 = vperm.xlu0 %10473, %v10301
    %v10475 = vpop.permute.xlu0 %10474
    %10478 = vset.pattern.permute.xlu0 0
    %10479 = vperm.xlu0 %10478, %v10302
    %v10480 = vpop.permute.xlu0 %10479
    %10483 = vset.pattern.permute.xlu0 0
    %10484 = vperm.xlu0 %10483, %v10303
    %v10485 = vpop.permute.xlu0 %10484
    %10488 = vset.pattern.permute.xlu0 0
    %10489 = vperm.xlu0 %10488, %v10304
    %v10490 = vpop.permute.xlu0 %10489
    %10493 = vset.pattern.permute.xlu0 0
    %10494 = vperm.xlu0 %10493, %v10305
    %v10495 = vpop.permute.xlu0 %10494
    %10498 = vset.pattern.permute.xlu0 0
    %10499 = vperm.xlu0 %10498, %v10306
    %v10500 = vpop.permute.xlu0 %10499
    %10503 = vset.pattern.permute.xlu0 0
    %10504 = vperm.xlu0 %10503, %v10307
    %v10505 = vpop.permute.xlu0 %10504
    %10508 = vset.pattern.permute.xlu0 0
    %10509 = vperm.xlu0 %10508, %v10308
    %v10510 = vpop.permute.xlu0 %10509
    %10513 = vset.pattern.permute.xlu0 0
    %10514 = vperm.xlu0 %10513, %v10309
    %v10515 = vpop.permute.xlu0 %10514
    %10518 = vset.pattern.permute.xlu0 0
    %10519 = vperm.xlu0 %10518, %v10310
    %v10520 = vpop.permute.xlu0 %10519
    %10523 = vset.pattern.permute.xlu0 0
    %10524 = vperm.xlu0 %10523, %v10311
    %v10525 = vpop.permute.xlu0 %10524
    %10528 = vset.pattern.permute.xlu0 0
    %10529 = vperm.xlu0 %10528, %v10312
    %v10530 = vpop.permute.xlu0 %10529
    %10533 = vset.pattern.permute.xlu0 0
    %10534 = vperm.xlu0 %10533, %v10313
    %v10535 = vpop.permute.xlu0 %10534
    %10538 = vset.pattern.permute.xlu0 0
    %10539 = vperm.xlu0 %10538, %v10314
    %v10540 = vpop.permute.xlu0 %10539
    %10543 = vset.pattern.permute.xlu0 0
    %10544 = vperm.xlu0 %10543, %v10315
    %v10545 = vpop.permute.xlu0 %10544
    %v10547 = vmul.f32 %v10451, %v10470
    %v10548 = vmul.f32 %v10452, %v10475
    %v10549 = vmul.f32 %v10453, %v10480
    %v10550 = vmul.f32 %v10454, %v10485
    %v10551 = vmul.f32 %v10455, %v10490
    %v10552 = vmul.f32 %v10456, %v10495
    %v10553 = vmul.f32 %v10457, %v10500
    %v10554 = vmul.f32 %v10458, %v10505
    %v10555 = vmul.f32 %v10459, %v10510
    %v10556 = vmul.f32 %v10460, %v10515
    %v10557 = vmul.f32 %v10461, %v10520
    %v10558 = vmul.f32 %v10462, %v10525
    %v10559 = vmul.f32 %v10463, %v10530
    %v10560 = vmul.f32 %v10464, %v10535
    %v10561 = vmul.f32 %v10465, %v10540
    %v10562 = vmul.f32 %v10466, %v10545
    %10564 = vset.pattern.permute.xlu0 0
    %10565 = vperm.xlu0 %10564, %v10317
    %v10566 = vpop.permute.xlu0 %10565
    %10569 = vset.pattern.permute.xlu0 0
    %10570 = vperm.xlu0 %10569, %v10318
    %v10571 = vpop.permute.xlu0 %10570
    %10574 = vset.pattern.permute.xlu0 0
    %10575 = vperm.xlu0 %10574, %v10319
    %v10576 = vpop.permute.xlu0 %10575
    %10579 = vset.pattern.permute.xlu0 0
    %10580 = vperm.xlu0 %10579, %v10320
    %v10581 = vpop.permute.xlu0 %10580
    %10584 = vset.pattern.permute.xlu0 0
    %10585 = vperm.xlu0 %10584, %v10321
    %v10586 = vpop.permute.xlu0 %10585
    %10589 = vset.pattern.permute.xlu0 0
    %10590 = vperm.xlu0 %10589, %v10322
    %v10591 = vpop.permute.xlu0 %10590
    %10594 = vset.pattern.permute.xlu0 0
    %10595 = vperm.xlu0 %10594, %v10323
    %v10596 = vpop.permute.xlu0 %10595
    %10599 = vset.pattern.permute.xlu0 0
    %10600 = vperm.xlu0 %10599, %v10324
    %v10601 = vpop.permute.xlu0 %10600
    %10604 = vset.pattern.permute.xlu0 0
    %10605 = vperm.xlu0 %10604, %v10325
    %v10606 = vpop.permute.xlu0 %10605
    %10609 = vset.pattern.permute.xlu0 0
    %10610 = vperm.xlu0 %10609, %v10326
    %v10611 = vpop.permute.xlu0 %10610
    %10614 = vset.pattern.permute.xlu0 0
    %10615 = vperm.xlu0 %10614, %v10327
    %v10616 = vpop.permute.xlu0 %10615
    %10619 = vset.pattern.permute.xlu0 0
    %10620 = vperm.xlu0 %10619, %v10328
    %v10621 = vpop.permute.xlu0 %10620
    %10624 = vset.pattern.permute.xlu0 0
    %10625 = vperm.xlu0 %10624, %v10329
    %v10626 = vpop.permute.xlu0 %10625
    %10629 = vset.pattern.permute.xlu0 0
    %10630 = vperm.xlu0 %10629, %v10330
    %v10631 = vpop.permute.xlu0 %10630
    %10634 = vset.pattern.permute.xlu0 0
    %10635 = vperm.xlu0 %10634, %v10331
    %v10636 = vpop.permute.xlu0 %10635
    %10639 = vset.pattern.permute.xlu0 0
    %10640 = vperm.xlu0 %10639, %v10332
    %v10641 = vpop.permute.xlu0 %10640
    %v10643 = vadd.f32 %v10547, %v10566
    %v10644 = vadd.f32 %v10548, %v10571
    %v10645 = vadd.f32 %v10549, %v10576
    %v10646 = vadd.f32 %v10550, %v10581
    %v10647 = vadd.f32 %v10551, %v10586
    %v10648 = vadd.f32 %v10552, %v10591
    %v10649 = vadd.f32 %v10553, %v10596
    %v10650 = vadd.f32 %v10554, %v10601
    %v10651 = vadd.f32 %v10555, %v10606
    %v10652 = vadd.f32 %v10556, %v10611
    %v10653 = vadd.f32 %v10557, %v10616
    %v10654 = vadd.f32 %v10558, %v10621
    %v10655 = vadd.f32 %v10559, %v10626
    %v10656 = vadd.f32 %v10560, %v10631
    %v10657 = vadd.f32 %v10561, %v10636
    %v10658 = vadd.f32 %v10562, %v10641
    %s10659 = scalar_lea.vmem %s9, 512
    %v10660 = vld [vmem:[%s10659] sm:$0xff]
    %v10661 = vld [vmem:[%s10659 + $0x8] sm:$0xff]
    %v10662 = vld [vmem:[%s10659 + $0x10] sm:$0xff]
    %v10663 = vld [vmem:[%s10659 + $0x18] sm:$0xff]
    %v10664 = vld [vmem:[%s10659 + $0x20] sm:$0xff]
    %v10665 = vld [vmem:[%s10659 + $0x28] sm:$0xff]
    %v10666 = vld [vmem:[%s10659 + $0x30] sm:$0xff]
    %v10667 = vld [vmem:[%s10659 + $0x38] sm:$0xff]
    %v10668 = vld [vmem:[%s10659 + $0x40] sm:$0xff]
    %v10669 = vld [vmem:[%s10659 + $0x48] sm:$0xff]
    %v10670 = vld [vmem:[%s10659 + $0x50] sm:$0xff]
    %v10671 = vld [vmem:[%s10659 + $0x58] sm:$0xff]
    %v10672 = vld [vmem:[%s10659 + $0x60] sm:$0xff]
    %v10673 = vld [vmem:[%s10659 + $0x68] sm:$0xff]
    %v10674 = vld [vmem:[%s10659 + $0x70] sm:$0xff]
    %v10675 = vld [vmem:[%s10659 + $0x78] sm:$0xff]
    %v10676 = vld [vmem:[%s10659 + $0x80] sm:$0xff]
    %v10677 = vld [vmem:[%s10659 + $0x88] sm:$0xff]
    %v10678 = vld [vmem:[%s10659 + $0x90] sm:$0xff]
    %v10679 = vld [vmem:[%s10659 + $0x98] sm:$0xff]
    %v10680 = vld [vmem:[%s10659 + $0xa0] sm:$0xff]
    %v10681 = vld [vmem:[%s10659 + $0xa8] sm:$0xff]
    %v10682 = vld [vmem:[%s10659 + $0xb0] sm:$0xff]
    %v10683 = vld [vmem:[%s10659 + $0xb8] sm:$0xff]
    %v10684 = vld [vmem:[%s10659 + $0xc0] sm:$0xff]
    %v10685 = vld [vmem:[%s10659 + $0xc8] sm:$0xff]
    %v10686 = vld [vmem:[%s10659 + $0xd0] sm:$0xff]
    %v10687 = vld [vmem:[%s10659 + $0xd8] sm:$0xff]
    %v10688 = vld [vmem:[%s10659 + $0xe0] sm:$0xff]
    %v10689 = vld [vmem:[%s10659 + $0xe8] sm:$0xff]
    %v10690 = vld [vmem:[%s10659 + $0xf0] sm:$0xff]
    %v10691 = vld [vmem:[%s10659 + $0xf8] sm:$0xff]
    %v10692 = vld [vmem:[%s10659 + $0x100] sm:$0xff]
    %v10693 = vld [vmem:[%s10659 + $0x108] sm:$0xff]
    %v10694 = vld [vmem:[%s10659 + $0x110] sm:$0xff]
    %v10695 = vld [vmem:[%s10659 + $0x118] sm:$0xff]
    %v10696 = vld [vmem:[%s10659 + $0x120] sm:$0xff]
    %v10697 = vld [vmem:[%s10659 + $0x128] sm:$0xff]
    %v10698 = vld [vmem:[%s10659 + $0x130] sm:$0xff]
    %v10699 = vld [vmem:[%s10659 + $0x138] sm:$0xff]
    %v10700 = vld [vmem:[%s10659 + $0x140] sm:$0xff]
    %v10701 = vld [vmem:[%s10659 + $0x148] sm:$0xff]
    %v10702 = vld [vmem:[%s10659 + $0x150] sm:$0xff]
    %v10703 = vld [vmem:[%s10659 + $0x158] sm:$0xff]
    %v10704 = vld [vmem:[%s10659 + $0x160] sm:$0xff]
    %v10705 = vld [vmem:[%s10659 + $0x168] sm:$0xff]
    %v10706 = vld [vmem:[%s10659 + $0x170] sm:$0xff]
    %v10707 = vld [vmem:[%s10659 + $0x178] sm:$0xff]
    %v10708 = vld [vmem:[%s10659 + $0x180] sm:$0xff]
    %v10709 = vld [vmem:[%s10659 + $0x188] sm:$0xff]
    %v10710 = vld [vmem:[%s10659 + $0x190] sm:$0xff]
    %v10711 = vld [vmem:[%s10659 + $0x198] sm:$0xff]
    %v10712 = vld [vmem:[%s10659 + $0x1a0] sm:$0xff]
    %v10713 = vld [vmem:[%s10659 + $0x1a8] sm:$0xff]
    %v10714 = vld [vmem:[%s10659 + $0x1b0] sm:$0xff]
    %v10715 = vld [vmem:[%s10659 + $0x1b8] sm:$0xff]
    %v10716 = vld [vmem:[%s10659 + $0x1c0] sm:$0xff]
    %v10717 = vld [vmem:[%s10659 + $0x1c8] sm:$0xff]
    %v10718 = vld [vmem:[%s10659 + $0x1d0] sm:$0xff]
    %v10719 = vld [vmem:[%s10659 + $0x1d8] sm:$0xff]
    %v10720 = vld [vmem:[%s10659 + $0x1e0] sm:$0xff]
    %v10721 = vld [vmem:[%s10659 + $0x1e8] sm:$0xff]
    %v10722 = vld [vmem:[%s10659 + $0x1f0] sm:$0xff]
    %v10723 = vld [vmem:[%s10659 + $0x1f8] sm:$0xff]
    %s10724 = scalar_lea.vmem %s10, 512
    %v10725 = vld [vmem:[%s10724] sm:$0xff]
    %v10726 = vld [vmem:[%s10724 + $0x8] sm:$0xff]
    %v10727 = vld [vmem:[%s10724 + $0x10] sm:$0xff]
    %v10728 = vld [vmem:[%s10724 + $0x18] sm:$0xff]
    %v10729 = vld [vmem:[%s10724 + $0x20] sm:$0xff]
    %v10730 = vld [vmem:[%s10724 + $0x28] sm:$0xff]
    %v10731 = vld [vmem:[%s10724 + $0x30] sm:$0xff]
    %v10732 = vld [vmem:[%s10724 + $0x38] sm:$0xff]
    %v10733 = vld [vmem:[%s10724 + $0x40] sm:$0xff]
    %v10734 = vld [vmem:[%s10724 + $0x48] sm:$0xff]
    %v10735 = vld [vmem:[%s10724 + $0x50] sm:$0xff]
    %v10736 = vld [vmem:[%s10724 + $0x58] sm:$0xff]
    %v10737 = vld [vmem:[%s10724 + $0x60] sm:$0xff]
    %v10738 = vld [vmem:[%s10724 + $0x68] sm:$0xff]
    %v10739 = vld [vmem:[%s10724 + $0x70] sm:$0xff]
    %v10740 = vld [vmem:[%s10724 + $0x78] sm:$0xff]
    %v10741 = vld [vmem:[%s10724 + $0x80] sm:$0xff]
    %v10742 = vld [vmem:[%s10724 + $0x88] sm:$0xff]
    %v10743 = vld [vmem:[%s10724 + $0x90] sm:$0xff]
    %v10744 = vld [vmem:[%s10724 + $0x98] sm:$0xff]
    %v10745 = vld [vmem:[%s10724 + $0xa0] sm:$0xff]
    %v10746 = vld [vmem:[%s10724 + $0xa8] sm:$0xff]
    %v10747 = vld [vmem:[%s10724 + $0xb0] sm:$0xff]
    %v10748 = vld [vmem:[%s10724 + $0xb8] sm:$0xff]
    %v10749 = vld [vmem:[%s10724 + $0xc0] sm:$0xff]
    %v10750 = vld [vmem:[%s10724 + $0xc8] sm:$0xff]
    %v10751 = vld [vmem:[%s10724 + $0xd0] sm:$0xff]
    %v10752 = vld [vmem:[%s10724 + $0xd8] sm:$0xff]
    %v10753 = vld [vmem:[%s10724 + $0xe0] sm:$0xff]
    %v10754 = vld [vmem:[%s10724 + $0xe8] sm:$0xff]
    %v10755 = vld [vmem:[%s10724 + $0xf0] sm:$0xff]
    %v10756 = vld [vmem:[%s10724 + $0xf8] sm:$0xff]
    %v10757 = vld [vmem:[%s10724 + $0x100] sm:$0xff]
    %v10758 = vld [vmem:[%s10724 + $0x108] sm:$0xff]
    %v10759 = vld [vmem:[%s10724 + $0x110] sm:$0xff]
    %v10760 = vld [vmem:[%s10724 + $0x118] sm:$0xff]
    %v10761 = vld [vmem:[%s10724 + $0x120] sm:$0xff]
    %v10762 = vld [vmem:[%s10724 + $0x128] sm:$0xff]
    %v10763 = vld [vmem:[%s10724 + $0x130] sm:$0xff]
    %v10764 = vld [vmem:[%s10724 + $0x138] sm:$0xff]
    %v10765 = vld [vmem:[%s10724 + $0x140] sm:$0xff]
    %v10766 = vld [vmem:[%s10724 + $0x148] sm:$0xff]
    %v10767 = vld [vmem:[%s10724 + $0x150] sm:$0xff]
    %v10768 = vld [vmem:[%s10724 + $0x158] sm:$0xff]
    %v10769 = vld [vmem:[%s10724 + $0x160] sm:$0xff]
    %v10770 = vld [vmem:[%s10724 + $0x168] sm:$0xff]
    %v10771 = vld [vmem:[%s10724 + $0x170] sm:$0xff]
    %v10772 = vld [vmem:[%s10724 + $0x178] sm:$0xff]
    %v10773 = vld [vmem:[%s10724 + $0x180] sm:$0xff]
    %v10774 = vld [vmem:[%s10724 + $0x188] sm:$0xff]
    %v10775 = vld [vmem:[%s10724 + $0x190] sm:$0xff]
    %v10776 = vld [vmem:[%s10724 + $0x198] sm:$0xff]
    %v10777 = vld [vmem:[%s10724 + $0x1a0] sm:$0xff]
    %v10778 = vld [vmem:[%s10724 + $0x1a8] sm:$0xff]
    %v10779 = vld [vmem:[%s10724 + $0x1b0] sm:$0xff]
    %v10780 = vld [vmem:[%s10724 + $0x1b8] sm:$0xff]
    %v10781 = vld [vmem:[%s10724 + $0x1c0] sm:$0xff]
    %v10782 = vld [vmem:[%s10724 + $0x1c8] sm:$0xff]
    %v10783 = vld [vmem:[%s10724 + $0x1d0] sm:$0xff]
    %v10784 = vld [vmem:[%s10724 + $0x1d8] sm:$0xff]
    %v10785 = vld [vmem:[%s10724 + $0x1e0] sm:$0xff]
    %v10786 = vld [vmem:[%s10724 + $0x1e8] sm:$0xff]
    %v10787 = vld [vmem:[%s10724 + $0x1f0] sm:$0xff]
    %v10788 = vld [vmem:[%s10724 + $0x1f8] sm:$0xff]
    %10790 = vset.pattern.permute.xlu0 0
    %10791 = vperm.xlu0 %10790, %v10725
    %v10792 = vpop.permute.xlu0 %10791
    %10795 = vset.pattern.permute.xlu0 0
    %10796 = vperm.xlu0 %10795, %v10726
    %v10797 = vpop.permute.xlu0 %10796
    %10800 = vset.pattern.permute.xlu0 0
    %10801 = vperm.xlu0 %10800, %v10727
    %v10802 = vpop.permute.xlu0 %10801
    %10805 = vset.pattern.permute.xlu0 0
    %10806 = vperm.xlu0 %10805, %v10728
    %v10807 = vpop.permute.xlu0 %10806
    %10810 = vset.pattern.permute.xlu0 0
    %10811 = vperm.xlu0 %10810, %v10729
    %v10812 = vpop.permute.xlu0 %10811
    %10815 = vset.pattern.permute.xlu0 0
    %10816 = vperm.xlu0 %10815, %v10730
    %v10817 = vpop.permute.xlu0 %10816
    %10820 = vset.pattern.permute.xlu0 0
    %10821 = vperm.xlu0 %10820, %v10731
    %v10822 = vpop.permute.xlu0 %10821
    %10825 = vset.pattern.permute.xlu0 0
    %10826 = vperm.xlu0 %10825, %v10732
    %v10827 = vpop.permute.xlu0 %10826
    %10830 = vset.pattern.permute.xlu0 0
    %10831 = vperm.xlu0 %10830, %v10733
    %v10832 = vpop.permute.xlu0 %10831
    %10835 = vset.pattern.permute.xlu0 0
    %10836 = vperm.xlu0 %10835, %v10734
    %v10837 = vpop.permute.xlu0 %10836
    %10840 = vset.pattern.permute.xlu0 0
    %10841 = vperm.xlu0 %10840, %v10735
    %v10842 = vpop.permute.xlu0 %10841
    %10845 = vset.pattern.permute.xlu0 0
    %10846 = vperm.xlu0 %10845, %v10736
    %v10847 = vpop.permute.xlu0 %10846
    %10850 = vset.pattern.permute.xlu0 0
    %10851 = vperm.xlu0 %10850, %v10737
    %v10852 = vpop.permute.xlu0 %10851
    %10855 = vset.pattern.permute.xlu0 0
    %10856 = vperm.xlu0 %10855, %v10738
    %v10857 = vpop.permute.xlu0 %10856
    %10860 = vset.pattern.permute.xlu0 0
    %10861 = vperm.xlu0 %10860, %v10739
    %v10862 = vpop.permute.xlu0 %10861
    %10865 = vset.pattern.permute.xlu0 0
    %10866 = vperm.xlu0 %10865, %v10740
    %v10867 = vpop.permute.xlu0 %10866
    %10870 = vset.pattern.permute.xlu0 0
    %10871 = vperm.xlu0 %10870, %v10741
    %v10872 = vpop.permute.xlu0 %10871
    %10875 = vset.pattern.permute.xlu0 0
    %10876 = vperm.xlu0 %10875, %v10742
    %v10877 = vpop.permute.xlu0 %10876
    %10880 = vset.pattern.permute.xlu0 0
    %10881 = vperm.xlu0 %10880, %v10743
    %v10882 = vpop.permute.xlu0 %10881
    %10885 = vset.pattern.permute.xlu0 0
    %10886 = vperm.xlu0 %10885, %v10744
    %v10887 = vpop.permute.xlu0 %10886
    %10890 = vset.pattern.permute.xlu0 0
    %10891 = vperm.xlu0 %10890, %v10745
    %v10892 = vpop.permute.xlu0 %10891
    %10895 = vset.pattern.permute.xlu0 0
    %10896 = vperm.xlu0 %10895, %v10746
    %v10897 = vpop.permute.xlu0 %10896
    %10900 = vset.pattern.permute.xlu0 0
    %10901 = vperm.xlu0 %10900, %v10747
    %v10902 = vpop.permute.xlu0 %10901
    %10905 = vset.pattern.permute.xlu0 0
    %10906 = vperm.xlu0 %10905, %v10748
    %v10907 = vpop.permute.xlu0 %10906
    %10910 = vset.pattern.permute.xlu0 0
    %10911 = vperm.xlu0 %10910, %v10749
    %v10912 = vpop.permute.xlu0 %10911
    %10915 = vset.pattern.permute.xlu0 0
    %10916 = vperm.xlu0 %10915, %v10750
    %v10917 = vpop.permute.xlu0 %10916
    %10920 = vset.pattern.permute.xlu0 0
    %10921 = vperm.xlu0 %10920, %v10751
    %v10922 = vpop.permute.xlu0 %10921
    %10925 = vset.pattern.permute.xlu0 0
    %10926 = vperm.xlu0 %10925, %v10752
    %v10927 = vpop.permute.xlu0 %10926
    %10930 = vset.pattern.permute.xlu0 0
    %10931 = vperm.xlu0 %10930, %v10753
    %v10932 = vpop.permute.xlu0 %10931
    %10935 = vset.pattern.permute.xlu0 0
    %10936 = vperm.xlu0 %10935, %v10754
    %v10937 = vpop.permute.xlu0 %10936
    %10940 = vset.pattern.permute.xlu0 0
    %10941 = vperm.xlu0 %10940, %v10755
    %v10942 = vpop.permute.xlu0 %10941
    %10945 = vset.pattern.permute.xlu0 0
    %10946 = vperm.xlu0 %10945, %v10756
    %v10947 = vpop.permute.xlu0 %10946
    %10950 = vset.pattern.permute.xlu0 0
    %10951 = vperm.xlu0 %10950, %v10757
    %v10952 = vpop.permute.xlu0 %10951
    %10955 = vset.pattern.permute.xlu0 0
    %10956 = vperm.xlu0 %10955, %v10758
    %v10957 = vpop.permute.xlu0 %10956
    %10960 = vset.pattern.permute.xlu0 0
    %10961 = vperm.xlu0 %10960, %v10759
    %v10962 = vpop.permute.xlu0 %10961
    %10965 = vset.pattern.permute.xlu0 0
    %10966 = vperm.xlu0 %10965, %v10760
    %v10967 = vpop.permute.xlu0 %10966
    %10970 = vset.pattern.permute.xlu0 0
    %10971 = vperm.xlu0 %10970, %v10761
    %v10972 = vpop.permute.xlu0 %10971
    %10975 = vset.pattern.permute.xlu0 0
    %10976 = vperm.xlu0 %10975, %v10762
    %v10977 = vpop.permute.xlu0 %10976
    %10980 = vset.pattern.permute.xlu0 0
    %10981 = vperm.xlu0 %10980, %v10763
    %v10982 = vpop.permute.xlu0 %10981
    %10985 = vset.pattern.permute.xlu0 0
    %10986 = vperm.xlu0 %10985, %v10764
    %v10987 = vpop.permute.xlu0 %10986
    %10990 = vset.pattern.permute.xlu0 0
    %10991 = vperm.xlu0 %10990, %v10765
    %v10992 = vpop.permute.xlu0 %10991
    %10995 = vset.pattern.permute.xlu0 0
    %10996 = vperm.xlu0 %10995, %v10766
    %v10997 = vpop.permute.xlu0 %10996
    %11000 = vset.pattern.permute.xlu0 0
    %11001 = vperm.xlu0 %11000, %v10767
    %v11002 = vpop.permute.xlu0 %11001
    %11005 = vset.pattern.permute.xlu0 0
    %11006 = vperm.xlu0 %11005, %v10768
    %v11007 = vpop.permute.xlu0 %11006
    %11010 = vset.pattern.permute.xlu0 0
    %11011 = vperm.xlu0 %11010, %v10769
    %v11012 = vpop.permute.xlu0 %11011
    %11015 = vset.pattern.permute.xlu0 0
    %11016 = vperm.xlu0 %11015, %v10770
    %v11017 = vpop.permute.xlu0 %11016
    %11020 = vset.pattern.permute.xlu0 0
    %11021 = vperm.xlu0 %11020, %v10771
    %v11022 = vpop.permute.xlu0 %11021
    %11025 = vset.pattern.permute.xlu0 0
    %11026 = vperm.xlu0 %11025, %v10772
    %v11027 = vpop.permute.xlu0 %11026
    %11030 = vset.pattern.permute.xlu0 0
    %11031 = vperm.xlu0 %11030, %v10773
    %v11032 = vpop.permute.xlu0 %11031
    %11035 = vset.pattern.permute.xlu0 0
    %11036 = vperm.xlu0 %11035, %v10774
    %v11037 = vpop.permute.xlu0 %11036
    %11040 = vset.pattern.permute.xlu0 0
    %11041 = vperm.xlu0 %11040, %v10775
    %v11042 = vpop.permute.xlu0 %11041
    %11045 = vset.pattern.permute.xlu0 0
    %11046 = vperm.xlu0 %11045, %v10776
    %v11047 = vpop.permute.xlu0 %11046
    %11050 = vset.pattern.permute.xlu0 0
    %11051 = vperm.xlu0 %11050, %v10777
    %v11052 = vpop.permute.xlu0 %11051
    %11055 = vset.pattern.permute.xlu0 0
    %11056 = vperm.xlu0 %11055, %v10778
    %v11057 = vpop.permute.xlu0 %11056
    %11060 = vset.pattern.permute.xlu0 0
    %11061 = vperm.xlu0 %11060, %v10779
    %v11062 = vpop.permute.xlu0 %11061
    %11065 = vset.pattern.permute.xlu0 0
    %11066 = vperm.xlu0 %11065, %v10780
    %v11067 = vpop.permute.xlu0 %11066
    %11070 = vset.pattern.permute.xlu0 0
    %11071 = vperm.xlu0 %11070, %v10781
    %v11072 = vpop.permute.xlu0 %11071
    %11075 = vset.pattern.permute.xlu0 0
    %11076 = vperm.xlu0 %11075, %v10782
    %v11077 = vpop.permute.xlu0 %11076
    %11080 = vset.pattern.permute.xlu0 0
    %11081 = vperm.xlu0 %11080, %v10783
    %v11082 = vpop.permute.xlu0 %11081
    %11085 = vset.pattern.permute.xlu0 0
    %11086 = vperm.xlu0 %11085, %v10784
    %v11087 = vpop.permute.xlu0 %11086
    %11090 = vset.pattern.permute.xlu0 0
    %11091 = vperm.xlu0 %11090, %v10785
    %v11092 = vpop.permute.xlu0 %11091
    %11095 = vset.pattern.permute.xlu0 0
    %11096 = vperm.xlu0 %11095, %v10786
    %v11097 = vpop.permute.xlu0 %11096
    %11100 = vset.pattern.permute.xlu0 0
    %11101 = vperm.xlu0 %11100, %v10787
    %v11102 = vpop.permute.xlu0 %11101
    %11105 = vset.pattern.permute.xlu0 0
    %11106 = vperm.xlu0 %11105, %v10788
    %v11107 = vpop.permute.xlu0 %11106
    %11109 = vmatpush.msra.mxu0 %v10658
    %11110 = vmatpush.msra.mxu0 %v10657
    %11111 = vmatpush.msra.mxu0 %v10656
    %11112 = vmatpush.msra.mxu0 %v10655
    %11113 = vmatpush.msra.mxu0 %v10654
    %11114 = vmatpush.msra.mxu0 %v10653
    %11115 = vmatpush.msra.mxu0 %v10652
    %11116 = vmatpush.msra.mxu0 %v10651
    %11117 = vmatpush.msra.mxu0 %v10650
    %11118 = vmatpush.msra.mxu0 %v10649
    %11119 = vmatpush.msra.mxu0 %v10648
    %11120 = vmatpush.msra.mxu0 %v10647
    %11121 = vmatpush.msra.mxu0 %v10646
    %11122 = vmatpush.msra.mxu0 %v10645
    %11123 = vmatpush.msra.mxu0 %v10644
    %11124 = vmatpush.msra.mxu0 %v10643
    %11125 = vmatmul.f32.gmra.mxu0 %v10660
    %v11126 = vpop.f32.mrf.mxu0
    %v11127 = vadd.f32 %v10792, %v11126
    %11128 = vmatmul.f32.gmra.mxu0 %v10661
    %v11129 = vpop.f32.mrf.mxu0
    %v11130 = vadd.f32 %v10797, %v11129
    %11131 = vmatmul.f32.gmra.mxu0 %v10662
    %v11132 = vpop.f32.mrf.mxu0
    %v11133 = vadd.f32 %v10802, %v11132
    %11134 = vmatmul.f32.gmra.mxu0 %v10663
    %v11135 = vpop.f32.mrf.mxu0
    %v11136 = vadd.f32 %v10807, %v11135
    %11137 = vmatmul.f32.gmra.mxu0 %v10664
    %v11138 = vpop.f32.mrf.mxu0
    %v11139 = vadd.f32 %v10812, %v11138
    %11140 = vmatmul.f32.gmra.mxu0 %v10665
    %v11141 = vpop.f32.mrf.mxu0
    %v11142 = vadd.f32 %v10817, %v11141
    %11143 = vmatmul.f32.gmra.mxu0 %v10666
    %v11144 = vpop.f32.mrf.mxu0
    %v11145 = vadd.f32 %v10822, %v11144
    %11146 = vmatmul.f32.gmra.mxu0 %v10667
    %v11147 = vpop.f32.mrf.mxu0
    %v11148 = vadd.f32 %v10827, %v11147
    %11149 = vmatmul.f32.gmra.mxu0 %v10668
    %v11150 = vpop.f32.mrf.mxu0
    %v11151 = vadd.f32 %v10832, %v11150
    %11152 = vmatmul.f32.gmra.mxu0 %v10669
    %v11153 = vpop.f32.mrf.mxu0
    %v11154 = vadd.f32 %v10837, %v11153
    %11155 = vmatmul.f32.gmra.mxu0 %v10670
    %v11156 = vpop.f32.mrf.mxu0
    %v11157 = vadd.f32 %v10842, %v11156
    %11158 = vmatmul.f32.gmra.mxu0 %v10671
    %v11159 = vpop.f32.mrf.mxu0
    %v11160 = vadd.f32 %v10847, %v11159
    %11161 = vmatmul.f32.gmra.mxu0 %v10672
    %v11162 = vpop.f32.mrf.mxu0
    %v11163 = vadd.f32 %v10852, %v11162
    %11164 = vmatmul.f32.gmra.mxu0 %v10673
    %v11165 = vpop.f32.mrf.mxu0
    %v11166 = vadd.f32 %v10857, %v11165
    %11167 = vmatmul.f32.gmra.mxu0 %v10674
    %v11168 = vpop.f32.mrf.mxu0
    %v11169 = vadd.f32 %v10862, %v11168
    %11170 = vmatmul.f32.gmra.mxu0 %v10675
    %v11171 = vpop.f32.mrf.mxu0
    %v11172 = vadd.f32 %v10867, %v11171
    %11173 = vmatmul.f32.gmra.mxu0 %v10676
    %v11174 = vpop.f32.mrf.mxu0
    %v11175 = vadd.f32 %v10872, %v11174
    %11176 = vmatmul.f32.gmra.mxu0 %v10677
    %v11177 = vpop.f32.mrf.mxu0
    %v11178 = vadd.f32 %v10877, %v11177
    %11179 = vmatmul.f32.gmra.mxu0 %v10678
    %v11180 = vpop.f32.mrf.mxu0
    %v11181 = vadd.f32 %v10882, %v11180
    %11182 = vmatmul.f32.gmra.mxu0 %v10679
    %v11183 = vpop.f32.mrf.mxu0
    %v11184 = vadd.f32 %v10887, %v11183
    %11185 = vmatmul.f32.gmra.mxu0 %v10680
    %v11186 = vpop.f32.mrf.mxu0
    %v11187 = vadd.f32 %v10892, %v11186
    %11188 = vmatmul.f32.gmra.mxu0 %v10681
    %v11189 = vpop.f32.mrf.mxu0
    %v11190 = vadd.f32 %v10897, %v11189
    %11191 = vmatmul.f32.gmra.mxu0 %v10682
    %v11192 = vpop.f32.mrf.mxu0
    %v11193 = vadd.f32 %v10902, %v11192
    %11194 = vmatmul.f32.gmra.mxu0 %v10683
    %v11195 = vpop.f32.mrf.mxu0
    %v11196 = vadd.f32 %v10907, %v11195
    %11197 = vmatmul.f32.gmra.mxu0 %v10684
    %v11198 = vpop.f32.mrf.mxu0
    %v11199 = vadd.f32 %v10912, %v11198
    %11200 = vmatmul.f32.gmra.mxu0 %v10685
    %v11201 = vpop.f32.mrf.mxu0
    %v11202 = vadd.f32 %v10917, %v11201
    %11203 = vmatmul.f32.gmra.mxu0 %v10686
    %v11204 = vpop.f32.mrf.mxu0
    %v11205 = vadd.f32 %v10922, %v11204
    %11206 = vmatmul.f32.gmra.mxu0 %v10687
    %v11207 = vpop.f32.mrf.mxu0
    %v11208 = vadd.f32 %v10927, %v11207
    %11209 = vmatmul.f32.gmra.mxu0 %v10688
    %v11210 = vpop.f32.mrf.mxu0
    %v11211 = vadd.f32 %v10932, %v11210
    %11212 = vmatmul.f32.gmra.mxu0 %v10689
    %v11213 = vpop.f32.mrf.mxu0
    %v11214 = vadd.f32 %v10937, %v11213
    %11215 = vmatmul.f32.gmra.mxu0 %v10690
    %v11216 = vpop.f32.mrf.mxu0
    %v11217 = vadd.f32 %v10942, %v11216
    %11218 = vmatmul.f32.gmra.mxu0 %v10691
    %v11219 = vpop.f32.mrf.mxu0
    %v11220 = vadd.f32 %v10947, %v11219
    %11221 = vmatmul.f32.gmra.mxu0 %v10692
    %v11222 = vpop.f32.mrf.mxu0
    %v11223 = vadd.f32 %v10952, %v11222
    %11224 = vmatmul.f32.gmra.mxu0 %v10693
    %v11225 = vpop.f32.mrf.mxu0
    %v11226 = vadd.f32 %v10957, %v11225
    %11227 = vmatmul.f32.gmra.mxu0 %v10694
    %v11228 = vpop.f32.mrf.mxu0
    %v11229 = vadd.f32 %v10962, %v11228
    %11230 = vmatmul.f32.gmra.mxu0 %v10695
    %v11231 = vpop.f32.mrf.mxu0
    %v11232 = vadd.f32 %v10967, %v11231
    %11233 = vmatmul.f32.gmra.mxu0 %v10696
    %v11234 = vpop.f32.mrf.mxu0
    %v11235 = vadd.f32 %v10972, %v11234
    %11236 = vmatmul.f32.gmra.mxu0 %v10697
    %v11237 = vpop.f32.mrf.mxu0
    %v11238 = vadd.f32 %v10977, %v11237
    %11239 = vmatmul.f32.gmra.mxu0 %v10698
    %v11240 = vpop.f32.mrf.mxu0
    %v11241 = vadd.f32 %v10982, %v11240
    %11242 = vmatmul.f32.gmra.mxu0 %v10699
    %v11243 = vpop.f32.mrf.mxu0
    %v11244 = vadd.f32 %v10987, %v11243
    %11245 = vmatmul.f32.gmra.mxu0 %v10700
    %v11246 = vpop.f32.mrf.mxu0
    %v11247 = vadd.f32 %v10992, %v11246
    %11248 = vmatmul.f32.gmra.mxu0 %v10701
    %v11249 = vpop.f32.mrf.mxu0
    %v11250 = vadd.f32 %v10997, %v11249
    %11251 = vmatmul.f32.gmra.mxu0 %v10702
    %v11252 = vpop.f32.mrf.mxu0
    %v11253 = vadd.f32 %v11002, %v11252
    %11254 = vmatmul.f32.gmra.mxu0 %v10703
    %v11255 = vpop.f32.mrf.mxu0
    %v11256 = vadd.f32 %v11007, %v11255
    %11257 = vmatmul.f32.gmra.mxu0 %v10704
    %v11258 = vpop.f32.mrf.mxu0
    %v11259 = vadd.f32 %v11012, %v11258
    %11260 = vmatmul.f32.gmra.mxu0 %v10705
    %v11261 = vpop.f32.mrf.mxu0
    %v11262 = vadd.f32 %v11017, %v11261
    %11263 = vmatmul.f32.gmra.mxu0 %v10706
    %v11264 = vpop.f32.mrf.mxu0
    %v11265 = vadd.f32 %v11022, %v11264
    %11266 = vmatmul.f32.gmra.mxu0 %v10707
    %v11267 = vpop.f32.mrf.mxu0
    %v11268 = vadd.f32 %v11027, %v11267
    %11269 = vmatmul.f32.gmra.mxu0 %v10708
    %v11270 = vpop.f32.mrf.mxu0
    %v11271 = vadd.f32 %v11032, %v11270
    %11272 = vmatmul.f32.gmra.mxu0 %v10709
    %v11273 = vpop.f32.mrf.mxu0
    %v11274 = vadd.f32 %v11037, %v11273
    %11275 = vmatmul.f32.gmra.mxu0 %v10710
    %v11276 = vpop.f32.mrf.mxu0
    %v11277 = vadd.f32 %v11042, %v11276
    %11278 = vmatmul.f32.gmra.mxu0 %v10711
    %v11279 = vpop.f32.mrf.mxu0
    %v11280 = vadd.f32 %v11047, %v11279
    %11281 = vmatmul.f32.gmra.mxu0 %v10712
    %v11282 = vpop.f32.mrf.mxu0
    %v11283 = vadd.f32 %v11052, %v11282
    %11284 = vmatmul.f32.gmra.mxu0 %v10713
    %v11285 = vpop.f32.mrf.mxu0
    %v11286 = vadd.f32 %v11057, %v11285
    %11287 = vmatmul.f32.gmra.mxu0 %v10714
    %v11288 = vpop.f32.mrf.mxu0
    %v11289 = vadd.f32 %v11062, %v11288
    %11290 = vmatmul.f32.gmra.mxu0 %v10715
    %v11291 = vpop.f32.mrf.mxu0
    %v11292 = vadd.f32 %v11067, %v11291
    %11293 = vmatmul.f32.gmra.mxu0 %v10716
    %v11294 = vpop.f32.mrf.mxu0
    %v11295 = vadd.f32 %v11072, %v11294
    %11296 = vmatmul.f32.gmra.mxu0 %v10717
    %v11297 = vpop.f32.mrf.mxu0
    %v11298 = vadd.f32 %v11077, %v11297
    %11299 = vmatmul.f32.gmra.mxu0 %v10718
    %v11300 = vpop.f32.mrf.mxu0
    %v11301 = vadd.f32 %v11082, %v11300
    %11302 = vmatmul.f32.gmra.mxu0 %v10719
    %v11303 = vpop.f32.mrf.mxu0
    %v11304 = vadd.f32 %v11087, %v11303
    %11305 = vmatmul.f32.gmra.mxu0 %v10720
    %v11306 = vpop.f32.mrf.mxu0
    %v11307 = vadd.f32 %v11092, %v11306
    %11308 = vmatmul.f32.gmra.mxu0 %v10721
    %v11309 = vpop.f32.mrf.mxu0
    %v11310 = vadd.f32 %v11097, %v11309
    %11311 = vmatmul.f32.gmra.mxu0 %v10722
    %v11312 = vpop.f32.mrf.mxu0
    %v11313 = vadd.f32 %v11102, %v11312
    %11314 = vmatmul.f32.gmra.mxu0 %v10723
    %v11315 = vpop.f32.mrf.mxu0
    %v11316 = vadd.f32 %v11107, %v11315
    %11317 = vdwg.mxu0
    %v11318 = vmax.f32 %v11127, 0.0
    %v11319 = vmax.f32 %v11130, 0.0
    %v11320 = vmax.f32 %v11133, 0.0
    %v11321 = vmax.f32 %v11136, 0.0
    %v11322 = vmax.f32 %v11139, 0.0
    %v11323 = vmax.f32 %v11142, 0.0
    %v11324 = vmax.f32 %v11145, 0.0
    %v11325 = vmax.f32 %v11148, 0.0
    %v11326 = vmax.f32 %v11151, 0.0
    %v11327 = vmax.f32 %v11154, 0.0
    %v11328 = vmax.f32 %v11157, 0.0
    %v11329 = vmax.f32 %v11160, 0.0
    %v11330 = vmax.f32 %v11163, 0.0
    %v11331 = vmax.f32 %v11166, 0.0
    %v11332 = vmax.f32 %v11169, 0.0
    %v11333 = vmax.f32 %v11172, 0.0
    %v11334 = vmax.f32 %v11175, 0.0
    %v11335 = vmax.f32 %v11178, 0.0
    %v11336 = vmax.f32 %v11181, 0.0
    %v11337 = vmax.f32 %v11184, 0.0
    %v11338 = vmax.f32 %v11187, 0.0
    %v11339 = vmax.f32 %v11190, 0.0
    %v11340 = vmax.f32 %v11193, 0.0
    %v11341 = vmax.f32 %v11196, 0.0
    %v11342 = vmax.f32 %v11199, 0.0
    %v11343 = vmax.f32 %v11202, 0.0
    %v11344 = vmax.f32 %v11205, 0.0
    %v11345 = vmax.f32 %v11208, 0.0
    %v11346 = vmax.f32 %v11211, 0.0
    %v11347 = vmax.f32 %v11214, 0.0
    %v11348 = vmax.f32 %v11217, 0.0
    %v11349 = vmax.f32 %v11220, 0.0
    %v11350 = vmax.f32 %v11223, 0.0
    %v11351 = vmax.f32 %v11226, 0.0
    %v11352 = vmax.f32 %v11229, 0.0
    %v11353 = vmax.f32 %v11232, 0.0
    %v11354 = vmax.f32 %v11235, 0.0
    %v11355 = vmax.f32 %v11238, 0.0
    %v11356 = vmax.f32 %v11241, 0.0
    %v11357 = vmax.f32 %v11244, 0.0
    %v11358 = vmax.f32 %v11247, 0.0
    %v11359 = vmax.f32 %v11250, 0.0
    %v11360 = vmax.f32 %v11253, 0.0
    %v11361 = vmax.f32 %v11256, 0.0
    %v11362 = vmax.f32 %v11259, 0.0
    %v11363 = vmax.f32 %v11262, 0.0
    %v11364 = vmax.f32 %v11265, 0.0
    %v11365 = vmax.f32 %v11268, 0.0
    %v11366 = vmax.f32 %v11271, 0.0
    %v11367 = vmax.f32 %v11274, 0.0
    %v11368 = vmax.f32 %v11277, 0.0
    %v11369 = vmax.f32 %v11280, 0.0
    %v11370 = vmax.f32 %v11283, 0.0
    %v11371 = vmax.f32 %v11286, 0.0
    %v11372 = vmax.f32 %v11289, 0.0
    %v11373 = vmax.f32 %v11292, 0.0
    %v11374 = vmax.f32 %v11295, 0.0
    %v11375 = vmax.f32 %v11298, 0.0
    %v11376 = vmax.f32 %v11301, 0.0
    %v11377 = vmax.f32 %v11304, 0.0
    %v11378 = vmax.f32 %v11307, 0.0
    %v11379 = vmax.f32 %v11310, 0.0
    %v11380 = vmax.f32 %v11313, 0.0
    %v11381 = vmax.f32 %v11316, 0.0
    %s11382 = scalar_lea.vmem [#allocation2], 512
    %v11383 = vld [vmem:[%s11382] sm:$0xff]
    %v11384 = vld [vmem:[%s11382 + $0x8] sm:$0xff]
    %v11385 = vld [vmem:[%s11382 + $0x10] sm:$0xff]
    %v11386 = vld [vmem:[%s11382 + $0x18] sm:$0xff]
    %v11387 = vld [vmem:[%s11382 + $0x20] sm:$0xff]
    %v11388 = vld [vmem:[%s11382 + $0x28] sm:$0xff]
    %v11389 = vld [vmem:[%s11382 + $0x30] sm:$0xff]
    %v11390 = vld [vmem:[%s11382 + $0x38] sm:$0xff]
    %v11391 = vld [vmem:[%s11382 + $0x40] sm:$0xff]
    %v11392 = vld [vmem:[%s11382 + $0x48] sm:$0xff]
    %v11393 = vld [vmem:[%s11382 + $0x50] sm:$0xff]
    %v11394 = vld [vmem:[%s11382 + $0x58] sm:$0xff]
    %v11395 = vld [vmem:[%s11382 + $0x60] sm:$0xff]
    %v11396 = vld [vmem:[%s11382 + $0x68] sm:$0xff]
    %v11397 = vld [vmem:[%s11382 + $0x70] sm:$0xff]
    %v11398 = vld [vmem:[%s11382 + $0x78] sm:$0xff]
    %v11399 = vld [vmem:[%s11382 + $0x80] sm:$0xff]
    %v11400 = vld [vmem:[%s11382 + $0x88] sm:$0xff]
    %v11401 = vld [vmem:[%s11382 + $0x90] sm:$0xff]
    %v11402 = vld [vmem:[%s11382 + $0x98] sm:$0xff]
    %v11403 = vld [vmem:[%s11382 + $0xa0] sm:$0xff]
    %v11404 = vld [vmem:[%s11382 + $0xa8] sm:$0xff]
    %v11405 = vld [vmem:[%s11382 + $0xb0] sm:$0xff]
    %v11406 = vld [vmem:[%s11382 + $0xb8] sm:$0xff]
    %v11407 = vld [vmem:[%s11382 + $0xc0] sm:$0xff]
    %v11408 = vld [vmem:[%s11382 + $0xc8] sm:$0xff]
    %v11409 = vld [vmem:[%s11382 + $0xd0] sm:$0xff]
    %v11410 = vld [vmem:[%s11382 + $0xd8] sm:$0xff]
    %v11411 = vld [vmem:[%s11382 + $0xe0] sm:$0xff]
    %v11412 = vld [vmem:[%s11382 + $0xe8] sm:$0xff]
    %v11413 = vld [vmem:[%s11382 + $0xf0] sm:$0xff]
    %v11414 = vld [vmem:[%s11382 + $0xf8] sm:$0xff]
    %v11415 = vld [vmem:[%s11382 + $0x100] sm:$0xff]
    %v11416 = vld [vmem:[%s11382 + $0x108] sm:$0xff]
    %v11417 = vld [vmem:[%s11382 + $0x110] sm:$0xff]
    %v11418 = vld [vmem:[%s11382 + $0x118] sm:$0xff]
    %v11419 = vld [vmem:[%s11382 + $0x120] sm:$0xff]
    %v11420 = vld [vmem:[%s11382 + $0x128] sm:$0xff]
    %v11421 = vld [vmem:[%s11382 + $0x130] sm:$0xff]
    %v11422 = vld [vmem:[%s11382 + $0x138] sm:$0xff]
    %v11423 = vld [vmem:[%s11382 + $0x140] sm:$0xff]
    %v11424 = vld [vmem:[%s11382 + $0x148] sm:$0xff]
    %v11425 = vld [vmem:[%s11382 + $0x150] sm:$0xff]
    %v11426 = vld [vmem:[%s11382 + $0x158] sm:$0xff]
    %v11427 = vld [vmem:[%s11382 + $0x160] sm:$0xff]
    %v11428 = vld [vmem:[%s11382 + $0x168] sm:$0xff]
    %v11429 = vld [vmem:[%s11382 + $0x170] sm:$0xff]
    %v11430 = vld [vmem:[%s11382 + $0x178] sm:$0xff]
    %v11431 = vld [vmem:[%s11382 + $0x180] sm:$0xff]
    %v11432 = vld [vmem:[%s11382 + $0x188] sm:$0xff]
    %v11433 = vld [vmem:[%s11382 + $0x190] sm:$0xff]
    %v11434 = vld [vmem:[%s11382 + $0x198] sm:$0xff]
    %v11435 = vld [vmem:[%s11382 + $0x1a0] sm:$0xff]
    %v11436 = vld [vmem:[%s11382 + $0x1a8] sm:$0xff]
    %v11437 = vld [vmem:[%s11382 + $0x1b0] sm:$0xff]
    %v11438 = vld [vmem:[%s11382 + $0x1b8] sm:$0xff]
    %v11439 = vld [vmem:[%s11382 + $0x1c0] sm:$0xff]
    %v11440 = vld [vmem:[%s11382 + $0x1c8] sm:$0xff]
    %v11441 = vld [vmem:[%s11382 + $0x1d0] sm:$0xff]
    %v11442 = vld [vmem:[%s11382 + $0x1d8] sm:$0xff]
    %v11443 = vld [vmem:[%s11382 + $0x1e0] sm:$0xff]
    %v11444 = vld [vmem:[%s11382 + $0x1e8] sm:$0xff]
    %v11445 = vld [vmem:[%s11382 + $0x1f0] sm:$0xff]
    %v11446 = vld [vmem:[%s11382 + $0x1f8] sm:$0xff]
    %s11447 = scalar_lea.vmem %s12, 128
    %v11448 = vld [vmem:[%s11447] sm:$0xff]
    %v11449 = vld [vmem:[%s11447 + $0x8] sm:$0xff]
    %v11450 = vld [vmem:[%s11447 + $0x10] sm:$0xff]
    %v11451 = vld [vmem:[%s11447 + $0x18] sm:$0xff]
    %v11452 = vld [vmem:[%s11447 + $0x20] sm:$0xff]
    %v11453 = vld [vmem:[%s11447 + $0x28] sm:$0xff]
    %v11454 = vld [vmem:[%s11447 + $0x30] sm:$0xff]
    %v11455 = vld [vmem:[%s11447 + $0x38] sm:$0xff]
    %v11456 = vld [vmem:[%s11447 + $0x40] sm:$0xff]
    %v11457 = vld [vmem:[%s11447 + $0x48] sm:$0xff]
    %v11458 = vld [vmem:[%s11447 + $0x50] sm:$0xff]
    %v11459 = vld [vmem:[%s11447 + $0x58] sm:$0xff]
    %v11460 = vld [vmem:[%s11447 + $0x60] sm:$0xff]
    %v11461 = vld [vmem:[%s11447 + $0x68] sm:$0xff]
    %v11462 = vld [vmem:[%s11447 + $0x70] sm:$0xff]
    %v11463 = vld [vmem:[%s11447 + $0x78] sm:$0xff]
    %11465 = vset.pattern.permute.xlu0 0
    %11466 = vperm.xlu0 %11465, %v11448
    %v11467 = vpop.permute.xlu0 %11466
    %11470 = vset.pattern.permute.xlu0 0
    %11471 = vperm.xlu0 %11470, %v11449
    %v11472 = vpop.permute.xlu0 %11471
    %11475 = vset.pattern.permute.xlu0 0
    %11476 = vperm.xlu0 %11475, %v11450
    %v11477 = vpop.permute.xlu0 %11476
    %11480 = vset.pattern.permute.xlu0 0
    %11481 = vperm.xlu0 %11480, %v11451
    %v11482 = vpop.permute.xlu0 %11481
    %11485 = vset.pattern.permute.xlu0 0
    %11486 = vperm.xlu0 %11485, %v11452
    %v11487 = vpop.permute.xlu0 %11486
    %11490 = vset.pattern.permute.xlu0 0
    %11491 = vperm.xlu0 %11490, %v11453
    %v11492 = vpop.permute.xlu0 %11491
    %11495 = vset.pattern.permute.xlu0 0
    %11496 = vperm.xlu0 %11495, %v11454
    %v11497 = vpop.permute.xlu0 %11496
    %11500 = vset.pattern.permute.xlu0 0
    %11501 = vperm.xlu0 %11500, %v11455
    %v11502 = vpop.permute.xlu0 %11501
    %11505 = vset.pattern.permute.xlu0 0
    %11506 = vperm.xlu0 %11505, %v11456
    %v11507 = vpop.permute.xlu0 %11506
    %11510 = vset.pattern.permute.xlu0 0
    %11511 = vperm.xlu0 %11510, %v11457
    %v11512 = vpop.permute.xlu0 %11511
    %11515 = vset.pattern.permute.xlu0 0
    %11516 = vperm.xlu0 %11515, %v11458
    %v11517 = vpop.permute.xlu0 %11516
    %11520 = vset.pattern.permute.xlu0 0
    %11521 = vperm.xlu0 %11520, %v11459
    %v11522 = vpop.permute.xlu0 %11521
    %11525 = vset.pattern.permute.xlu0 0
    %11526 = vperm.xlu0 %11525, %v11460
    %v11527 = vpop.permute.xlu0 %11526
    %11530 = vset.pattern.permute.xlu0 0
    %11531 = vperm.xlu0 %11530, %v11461
    %v11532 = vpop.permute.xlu0 %11531
    %11535 = vset.pattern.permute.xlu0 0
    %11536 = vperm.xlu0 %11535, %v11462
    %v11537 = vpop.permute.xlu0 %11536
    %11540 = vset.pattern.permute.xlu0 0
    %11541 = vperm.xlu0 %11540, %v11463
    %v11542 = vpop.permute.xlu0 %11541
    %11544 = vmatpush.msra.mxu0 %v11333
    %11545 = vmatpush.msra.mxu0 %v11332
    %11546 = vmatpush.msra.mxu0 %v11331
    %11547 = vmatpush.msra.mxu0 %v11330
    %11548 = vmatpush.msra.mxu0 %v11329
    %11549 = vmatpush.msra.mxu0 %v11328
    %11550 = vmatpush.msra.mxu0 %v11327
    %11551 = vmatpush.msra.mxu0 %v11326
    %11552 = vmatpush.msra.mxu0 %v11325
    %11553 = vmatpush.msra.mxu0 %v11324
    %11554 = vmatpush.msra.mxu0 %v11323
    %11555 = vmatpush.msra.mxu0 %v11322
    %11556 = vmatpush.msra.mxu0 %v11321
    %11557 = vmatpush.msra.mxu0 %v11320
    %11558 = vmatpush.msra.mxu0 %v11319
    %11559 = vmatpush.msra.mxu0 %v11318
    %11560 = vmatmul.f32.gmra.mxu0 %v11383
    %v11561 = vpop.f32.mrf.mxu0
    %v11562 = vadd.f32 %v11467, %v11561
    %11563 = vmatmul.f32.gmra.mxu0 %v11387
    %v11564 = vpop.f32.mrf.mxu0
    %v11565 = vadd.f32 %v11472, %v11564
    %11566 = vmatmul.f32.gmra.mxu0 %v11391
    %v11567 = vpop.f32.mrf.mxu0
    %v11568 = vadd.f32 %v11477, %v11567
    %11569 = vmatmul.f32.gmra.mxu0 %v11395
    %v11570 = vpop.f32.mrf.mxu0
    %v11571 = vadd.f32 %v11482, %v11570
    %11572 = vmatmul.f32.gmra.mxu0 %v11399
    %v11573 = vpop.f32.mrf.mxu0
    %v11574 = vadd.f32 %v11487, %v11573
    %11575 = vmatmul.f32.gmra.mxu0 %v11403
    %v11576 = vpop.f32.mrf.mxu0
    %v11577 = vadd.f32 %v11492, %v11576
    %11578 = vmatmul.f32.gmra.mxu0 %v11407
    %v11579 = vpop.f32.mrf.mxu0
    %v11580 = vadd.f32 %v11497, %v11579
    %11581 = vmatmul.f32.gmra.mxu0 %v11411
    %v11582 = vpop.f32.mrf.mxu0
    %v11583 = vadd.f32 %v11502, %v11582
    %11584 = vmatmul.f32.gmra.mxu0 %v11415
    %v11585 = vpop.f32.mrf.mxu0
    %v11586 = vadd.f32 %v11507, %v11585
    %11587 = vmatmul.f32.gmra.mxu0 %v11419
    %v11588 = vpop.f32.mrf.mxu0
    %v11589 = vadd.f32 %v11512, %v11588
    %11590 = vmatmul.f32.gmra.mxu0 %v11423
    %v11591 = vpop.f32.mrf.mxu0
    %v11592 = vadd.f32 %v11517, %v11591
    %11593 = vmatmul.f32.gmra.mxu0 %v11427
    %v11594 = vpop.f32.mrf.mxu0
    %v11595 = vadd.f32 %v11522, %v11594
    %11596 = vmatmul.f32.gmra.mxu0 %v11431
    %v11597 = vpop.f32.mrf.mxu0
    %v11598 = vadd.f32 %v11527, %v11597
    %11599 = vmatmul.f32.gmra.mxu0 %v11435
    %v11600 = vpop.f32.mrf.mxu0
    %v11601 = vadd.f32 %v11532, %v11600
    %11602 = vmatmul.f32.gmra.mxu0 %v11439
    %v11603 = vpop.f32.mrf.mxu0
    %v11604 = vadd.f32 %v11537, %v11603
    %11605 = vmatmul.f32.gmra.mxu0 %v11443
    %v11606 = vpop.f32.mrf.mxu0
    %v11607 = vadd.f32 %v11542, %v11606
    %11608 = vdwg.mxu0
    %11609 = vmatpush.msra.mxu0 %v11349
    %11610 = vmatpush.msra.mxu0 %v11348
    %11611 = vmatpush.msra.mxu0 %v11347
    %11612 = vmatpush.msra.mxu0 %v11346
    %11613 = vmatpush.msra.mxu0 %v11345
    %11614 = vmatpush.msra.mxu0 %v11344
    %11615 = vmatpush.msra.mxu0 %v11343
    %11616 = vmatpush.msra.mxu0 %v11342
    %11617 = vmatpush.msra.mxu0 %v11341
    %11618 = vmatpush.msra.mxu0 %v11340
    %11619 = vmatpush.msra.mxu0 %v11339
    %11620 = vmatpush.msra.mxu0 %v11338
    %11621 = vmatpush.msra.mxu0 %v11337
    %11622 = vmatpush.msra.mxu0 %v11336
    %11623 = vmatpush.msra.mxu0 %v11335
    %11624 = vmatpush.msra.mxu0 %v11334
    %11625 = vmatmul.f32.gmra.mxu0 %v11384
    %v11626 = vpop.f32.mrf.mxu0
    %v11627 = vadd.f32 %v11562, %v11626
    %11628 = vmatmul.f32.gmra.mxu0 %v11388
    %v11629 = vpop.f32.mrf.mxu0
    %v11630 = vadd.f32 %v11565, %v11629
    %11631 = vmatmul.f32.gmra.mxu0 %v11392
    %v11632 = vpop.f32.mrf.mxu0
    %v11633 = vadd.f32 %v11568, %v11632
    %11634 = vmatmul.f32.gmra.mxu0 %v11396
    %v11635 = vpop.f32.mrf.mxu0
    %v11636 = vadd.f32 %v11571, %v11635
    %11637 = vmatmul.f32.gmra.mxu0 %v11400
    %v11638 = vpop.f32.mrf.mxu0
    %v11639 = vadd.f32 %v11574, %v11638
    %11640 = vmatmul.f32.gmra.mxu0 %v11404
    %v11641 = vpop.f32.mrf.mxu0
    %v11642 = vadd.f32 %v11577, %v11641
    %11643 = vmatmul.f32.gmra.mxu0 %v11408
    %v11644 = vpop.f32.mrf.mxu0
    %v11645 = vadd.f32 %v11580, %v11644
    %11646 = vmatmul.f32.gmra.mxu0 %v11412
    %v11647 = vpop.f32.mrf.mxu0
    %v11648 = vadd.f32 %v11583, %v11647
    %11649 = vmatmul.f32.gmra.mxu0 %v11416
    %v11650 = vpop.f32.mrf.mxu0
    %v11651 = vadd.f32 %v11586, %v11650
    %11652 = vmatmul.f32.gmra.mxu0 %v11420
    %v11653 = vpop.f32.mrf.mxu0
    %v11654 = vadd.f32 %v11589, %v11653
    %11655 = vmatmul.f32.gmra.mxu0 %v11424
    %v11656 = vpop.f32.mrf.mxu0
    %v11657 = vadd.f32 %v11592, %v11656
    %11658 = vmatmul.f32.gmra.mxu0 %v11428
    %v11659 = vpop.f32.mrf.mxu0
    %v11660 = vadd.f32 %v11595, %v11659
    %11661 = vmatmul.f32.gmra.mxu0 %v11432
    %v11662 = vpop.f32.mrf.mxu0
    %v11663 = vadd.f32 %v11598, %v11662
    %11664 = vmatmul.f32.gmra.mxu0 %v11436
    %v11665 = vpop.f32.mrf.mxu0
    %v11666 = vadd.f32 %v11601, %v11665
    %11667 = vmatmul.f32.gmra.mxu0 %v11440
    %v11668 = vpop.f32.mrf.mxu0
    %v11669 = vadd.f32 %v11604, %v11668
    %11670 = vmatmul.f32.gmra.mxu0 %v11444
    %v11671 = vpop.f32.mrf.mxu0
    %v11672 = vadd.f32 %v11607, %v11671
    %11673 = vdwg.mxu0
    %11674 = vmatpush.msra.mxu0 %v11365
    %11675 = vmatpush.msra.mxu0 %v11364
    %11676 = vmatpush.msra.mxu0 %v11363
    %11677 = vmatpush.msra.mxu0 %v11362
    %11678 = vmatpush.msra.mxu0 %v11361
    %11679 = vmatpush.msra.mxu0 %v11360
    %11680 = vmatpush.msra.mxu0 %v11359
    %11681 = vmatpush.msra.mxu0 %v11358
    %11682 = vmatpush.msra.mxu0 %v11357
    %11683 = vmatpush.msra.mxu0 %v11356
    %11684 = vmatpush.msra.mxu0 %v11355
    %11685 = vmatpush.msra.mxu0 %v11354
    %11686 = vmatpush.msra.mxu0 %v11353
    %11687 = vmatpush.msra.mxu0 %v11352
    %11688 = vmatpush.msra.mxu0 %v11351
    %11689 = vmatpush.msra.mxu0 %v11350
    %11690 = vmatmul.f32.gmra.mxu0 %v11385
    %v11691 = vpop.f32.mrf.mxu0
    %v11692 = vadd.f32 %v11627, %v11691
    %11693 = vmatmul.f32.gmra.mxu0 %v11389
    %v11694 = vpop.f32.mrf.mxu0
    %v11695 = vadd.f32 %v11630, %v11694
    %11696 = vmatmul.f32.gmra.mxu0 %v11393
    %v11697 = vpop.f32.mrf.mxu0
    %v11698 = vadd.f32 %v11633, %v11697
    %11699 = vmatmul.f32.gmra.mxu0 %v11397
    %v11700 = vpop.f32.mrf.mxu0
    %v11701 = vadd.f32 %v11636, %v11700
    %11702 = vmatmul.f32.gmra.mxu0 %v11401
    %v11703 = vpop.f32.mrf.mxu0
    %v11704 = vadd.f32 %v11639, %v11703
    %11705 = vmatmul.f32.gmra.mxu0 %v11405
    %v11706 = vpop.f32.mrf.mxu0
    %v11707 = vadd.f32 %v11642, %v11706
    %11708 = vmatmul.f32.gmra.mxu0 %v11409
    %v11709 = vpop.f32.mrf.mxu0
    %v11710 = vadd.f32 %v11645, %v11709
    %11711 = vmatmul.f32.gmra.mxu0 %v11413
    %v11712 = vpop.f32.mrf.mxu0
    %v11713 = vadd.f32 %v11648, %v11712
    %11714 = vmatmul.f32.gmra.mxu0 %v11417
    %v11715 = vpop.f32.mrf.mxu0
    %v11716 = vadd.f32 %v11651, %v11715
    %11717 = vmatmul.f32.gmra.mxu0 %v11421
    %v11718 = vpop.f32.mrf.mxu0
    %v11719 = vadd.f32 %v11654, %v11718
    %11720 = vmatmul.f32.gmra.mxu0 %v11425
    %v11721 = vpop.f32.mrf.mxu0
    %v11722 = vadd.f32 %v11657, %v11721
    %11723 = vmatmul.f32.gmra.mxu0 %v11429
    %v11724 = vpop.f32.mrf.mxu0
    %v11725 = vadd.f32 %v11660, %v11724
    %11726 = vmatmul.f32.gmra.mxu0 %v11433
    %v11727 = vpop.f32.mrf.mxu0
    %v11728 = vadd.f32 %v11663, %v11727
    %11729 = vmatmul.f32.gmra.mxu0 %v11437
    %v11730 = vpop.f32.mrf.mxu0
    %v11731 = vadd.f32 %v11666, %v11730
    %11732 = vmatmul.f32.gmra.mxu0 %v11441
    %v11733 = vpop.f32.mrf.mxu0
    %v11734 = vadd.f32 %v11669, %v11733
    %11735 = vmatmul.f32.gmra.mxu0 %v11445
    %v11736 = vpop.f32.mrf.mxu0
    %v11737 = vadd.f32 %v11672, %v11736
    %11738 = vdwg.mxu0
    %11739 = vmatpush.msra.mxu0 %v11381
    %11740 = vmatpush.msra.mxu0 %v11380
    %11741 = vmatpush.msra.mxu0 %v11379
    %11742 = vmatpush.msra.mxu0 %v11378
    %11743 = vmatpush.msra.mxu0 %v11377
    %11744 = vmatpush.msra.mxu0 %v11376
    %11745 = vmatpush.msra.mxu0 %v11375
    %11746 = vmatpush.msra.mxu0 %v11374
    %11747 = vmatpush.msra.mxu0 %v11373
    %11748 = vmatpush.msra.mxu0 %v11372
    %11749 = vmatpush.msra.mxu0 %v11371
    %11750 = vmatpush.msra.mxu0 %v11370
    %11751 = vmatpush.msra.mxu0 %v11369
    %11752 = vmatpush.msra.mxu0 %v11368
    %11753 = vmatpush.msra.mxu0 %v11367
    %11754 = vmatpush.msra.mxu0 %v11366
    %11755 = vmatmul.f32.gmra.mxu0 %v11386
    %v11756 = vpop.f32.mrf.mxu0
    %v11757 = vadd.f32 %v11692, %v11756
    %11758 = vmatmul.f32.gmra.mxu0 %v11390
    %v11759 = vpop.f32.mrf.mxu0
    %v11760 = vadd.f32 %v11695, %v11759
    %11761 = vmatmul.f32.gmra.mxu0 %v11394
    %v11762 = vpop.f32.mrf.mxu0
    %v11763 = vadd.f32 %v11698, %v11762
    %11764 = vmatmul.f32.gmra.mxu0 %v11398
    %v11765 = vpop.f32.mrf.mxu0
    %v11766 = vadd.f32 %v11701, %v11765
    %11767 = vmatmul.f32.gmra.mxu0 %v11402
    %v11768 = vpop.f32.mrf.mxu0
    %v11769 = vadd.f32 %v11704, %v11768
    %11770 = vmatmul.f32.gmra.mxu0 %v11406
    %v11771 = vpop.f32.mrf.mxu0
    %v11772 = vadd.f32 %v11707, %v11771
    %11773 = vmatmul.f32.gmra.mxu0 %v11410
    %v11774 = vpop.f32.mrf.mxu0
    %v11775 = vadd.f32 %v11710, %v11774
    %11776 = vmatmul.f32.gmra.mxu0 %v11414
    %v11777 = vpop.f32.mrf.mxu0
    %v11778 = vadd.f32 %v11713, %v11777
    %11779 = vmatmul.f32.gmra.mxu0 %v11418
    %v11780 = vpop.f32.mrf.mxu0
    %v11781 = vadd.f32 %v11716, %v11780
    %11782 = vmatmul.f32.gmra.mxu0 %v11422
    %v11783 = vpop.f32.mrf.mxu0
    %v11784 = vadd.f32 %v11719, %v11783
    %11785 = vmatmul.f32.gmra.mxu0 %v11426
    %v11786 = vpop.f32.mrf.mxu0
    %v11787 = vadd.f32 %v11722, %v11786
    %11788 = vmatmul.f32.gmra.mxu0 %v11430
    %v11789 = vpop.f32.mrf.mxu0
    %v11790 = vadd.f32 %v11725, %v11789
    %11791 = vmatmul.f32.gmra.mxu0 %v11434
    %v11792 = vpop.f32.mrf.mxu0
    %v11793 = vadd.f32 %v11728, %v11792
    %11794 = vmatmul.f32.gmra.mxu0 %v11438
    %v11795 = vpop.f32.mrf.mxu0
    %v11796 = vadd.f32 %v11731, %v11795
    %11797 = vmatmul.f32.gmra.mxu0 %v11442
    %v11798 = vpop.f32.mrf.mxu0
    %v11799 = vadd.f32 %v11734, %v11798
    %11800 = vmatmul.f32.gmra.mxu0 %v11446
    %v11801 = vpop.f32.mrf.mxu0
    %v11802 = vadd.f32 %v11737, %v11801
    %11803 = vdwg.mxu0
    %v11804 = vadd.f32 %v10643, %v11757
    %v11805 = vadd.f32 %v10644, %v11760
    %v11806 = vadd.f32 %v10645, %v11763
    %v11807 = vadd.f32 %v10646, %v11766
    %v11808 = vadd.f32 %v10647, %v11769
    %v11809 = vadd.f32 %v10648, %v11772
    %v11810 = vadd.f32 %v10649, %v11775
    %v11811 = vadd.f32 %v10650, %v11778
    %v11812 = vadd.f32 %v10651, %v11781
    %v11813 = vadd.f32 %v10652, %v11784
    %v11814 = vadd.f32 %v10653, %v11787
    %v11815 = vadd.f32 %v10654, %v11790
    %v11816 = vadd.f32 %v10655, %v11793
    %v11817 = vadd.f32 %v10656, %v11796
    %v11818 = vadd.f32 %v10657, %v11799
    %v11819 = vadd.f32 %v10658, %v11802
    %s11820 = scalar_lea.vmem %s13, 128
    %v11821 = vld [vmem:[%s11820] sm:$0xff]
    %v11822 = vld [vmem:[%s11820 + $0x8] sm:$0xff]
    %v11823 = vld [vmem:[%s11820 + $0x10] sm:$0xff]
    %v11824 = vld [vmem:[%s11820 + $0x18] sm:$0xff]
    %v11825 = vld [vmem:[%s11820 + $0x20] sm:$0xff]
    %v11826 = vld [vmem:[%s11820 + $0x28] sm:$0xff]
    %v11827 = vld [vmem:[%s11820 + $0x30] sm:$0xff]
    %v11828 = vld [vmem:[%s11820 + $0x38] sm:$0xff]
    %v11829 = vld [vmem:[%s11820 + $0x40] sm:$0xff]
    %v11830 = vld [vmem:[%s11820 + $0x48] sm:$0xff]
    %v11831 = vld [vmem:[%s11820 + $0x50] sm:$0xff]
    %v11832 = vld [vmem:[%s11820 + $0x58] sm:$0xff]
    %v11833 = vld [vmem:[%s11820 + $0x60] sm:$0xff]
    %v11834 = vld [vmem:[%s11820 + $0x68] sm:$0xff]
    %v11835 = vld [vmem:[%s11820 + $0x70] sm:$0xff]
    %v11836 = vld [vmem:[%s11820 + $0x78] sm:$0xff]
    %s11837 = scalar_lea.vmem %s14, 128
    %v11838 = vld [vmem:[%s11837] sm:$0xff]
    %v11839 = vld [vmem:[%s11837 + $0x8] sm:$0xff]
    %v11840 = vld [vmem:[%s11837 + $0x10] sm:$0xff]
    %v11841 = vld [vmem:[%s11837 + $0x18] sm:$0xff]
    %v11842 = vld [vmem:[%s11837 + $0x20] sm:$0xff]
    %v11843 = vld [vmem:[%s11837 + $0x28] sm:$0xff]
    %v11844 = vld [vmem:[%s11837 + $0x30] sm:$0xff]
    %v11845 = vld [vmem:[%s11837 + $0x38] sm:$0xff]
    %v11846 = vld [vmem:[%s11837 + $0x40] sm:$0xff]
    %v11847 = vld [vmem:[%s11837 + $0x48] sm:$0xff]
    %v11848 = vld [vmem:[%s11837 + $0x50] sm:$0xff]
    %v11849 = vld [vmem:[%s11837 + $0x58] sm:$0xff]
    %v11850 = vld [vmem:[%s11837 + $0x60] sm:$0xff]
    %v11851 = vld [vmem:[%s11837 + $0x68] sm:$0xff]
    %v11852 = vld [vmem:[%s11837 + $0x70] sm:$0xff]
    %v11853 = vld [vmem:[%s11837 + $0x78] sm:$0xff]
    %v11854 = vsel %vm1220, %v11804, 0.0
    %v11855 = vsel %vm1220, %v11806, 0.0
    %v11856 = vadd.f32 %v11854, %v11855
    %v11857 = vsel %vm1220, %v11808, 0.0
    %v11858 = vadd.f32 %v11856, %v11857
    %v11859 = vsel %vm1220, %v11810, 0.0
    %v11860 = vadd.f32 %v11858, %v11859
    %v11861 = vsel %vm1220, %v11812, 0.0
    %v11862 = vadd.f32 %v11860, %v11861
    %v11863 = vsel %vm1220, %v11814, 0.0
    %v11864 = vadd.f32 %v11862, %v11863
    %v11865 = vsel %vm1220, %v11816, 0.0
    %v11866 = vadd.f32 %v11864, %v11865
    %v11867 = vsel %vm1220, %v11818, 0.0
    %v11868 = vadd.f32 %v11866, %v11867
    %v11869 = vsel %vm1220, %v11805, 0.0
    %v11870 = vsel %vm1220, %v11807, 0.0
    %v11871 = vadd.f32 %v11869, %v11870
    %v11872 = vsel %vm1220, %v11809, 0.0
    %v11873 = vadd.f32 %v11871, %v11872
    %v11874 = vsel %vm1220, %v11811, 0.0
    %v11875 = vadd.f32 %v11873, %v11874
    %v11876 = vsel %vm1220, %v11813, 0.0
    %v11877 = vadd.f32 %v11875, %v11876
    %v11878 = vsel %vm1220, %v11815, 0.0
    %v11879 = vadd.f32 %v11877, %v11878
    %v11880 = vsel %vm1220, %v11817, 0.0
    %v11881 = vadd.f32 %v11879, %v11880
    %v11882 = vsel %vm1220, %v11819, 0.0
    %v11883 = vadd.f32 %v11881, %v11882
    %v11884 = vmul.f32 %v11868, %v4433
    %v11885 = vmul.f32 %v11883, %v4433
    %v11886 = vsub.f32 %v11804, %v11884
    %v11887 = vsub.f32 %v11805, %v11885
    %v11888 = vsub.f32 %v11806, %v11884
    %v11889 = vsub.f32 %v11807, %v11885
    %v11890 = vsub.f32 %v11808, %v11884
    %v11891 = vsub.f32 %v11809, %v11885
    %v11892 = vsub.f32 %v11810, %v11884
    %v11893 = vsub.f32 %v11811, %v11885
    %v11894 = vsub.f32 %v11812, %v11884
    %v11895 = vsub.f32 %v11813, %v11885
    %v11896 = vsub.f32 %v11814, %v11884
    %v11897 = vsub.f32 %v11815, %v11885
    %v11898 = vsub.f32 %v11816, %v11884
    %v11899 = vsub.f32 %v11817, %v11885
    %v11900 = vsub.f32 %v11818, %v11884
    %v11901 = vsub.f32 %v11819, %v11885
    %v11902 = vmul.f32 %v11886, %v11886
    %v11903 = vmul.f32 %v11887, %v11887
    %v11904 = vmul.f32 %v11888, %v11888
    %v11905 = vmul.f32 %v11889, %v11889
    %v11906 = vmul.f32 %v11890, %v11890
    %v11907 = vmul.f32 %v11891, %v11891
    %v11908 = vmul.f32 %v11892, %v11892
    %v11909 = vmul.f32 %v11893, %v11893
    %v11910 = vmul.f32 %v11894, %v11894
    %v11911 = vmul.f32 %v11895, %v11895
    %v11912 = vmul.f32 %v11896, %v11896
    %v11913 = vmul.f32 %v11897, %v11897
    %v11914 = vmul.f32 %v11898, %v11898
    %v11915 = vmul.f32 %v11899, %v11899
    %v11916 = vmul.f32 %v11900, %v11900
    %v11917 = vmul.f32 %v11901, %v11901
    %v11918 = vsel %vm1220, %v11902, 0.0
    %v11919 = vsel %vm1220, %v11904, 0.0
    %v11920 = vadd.f32 %v11918, %v11919
    %v11921 = vsel %vm1220, %v11906, 0.0
    %v11922 = vadd.f32 %v11920, %v11921
    %v11923 = vsel %vm1220, %v11908, 0.0
    %v11924 = vadd.f32 %v11922, %v11923
    %v11925 = vsel %vm1220, %v11910, 0.0
    %v11926 = vadd.f32 %v11924, %v11925
    %v11927 = vsel %vm1220, %v11912, 0.0
    %v11928 = vadd.f32 %v11926, %v11927
    %v11929 = vsel %vm1220, %v11914, 0.0
    %v11930 = vadd.f32 %v11928, %v11929
    %v11931 = vsel %vm1220, %v11916, 0.0
    %v11932 = vadd.f32 %v11930, %v11931
    %v11933 = vsel %vm1220, %v11903, 0.0
    %v11934 = vsel %vm1220, %v11905, 0.0
    %v11935 = vadd.f32 %v11933, %v11934
    %v11936 = vsel %vm1220, %v11907, 0.0
    %v11937 = vadd.f32 %v11935, %v11936
    %v11938 = vsel %vm1220, %v11909, 0.0
    %v11939 = vadd.f32 %v11937, %v11938
    %v11940 = vsel %vm1220, %v11911, 0.0
    %v11941 = vadd.f32 %v11939, %v11940
    %v11942 = vsel %vm1220, %v11913, 0.0
    %v11943 = vadd.f32 %v11941, %v11942
    %v11944 = vsel %vm1220, %v11915, 0.0
    %v11945 = vadd.f32 %v11943, %v11944
    %v11946 = vsel %vm1220, %v11917, 0.0
    %v11947 = vadd.f32 %v11945, %v11946
    %v11948 = vmul.f32 %v11932, %v4433
    %v11949 = vmul.f32 %v11947, %v4433
    %v11950 = vadd.f32 %v11948, 1e-05
    %v11951 = vadd.f32 %v11949, 1e-05
    %v11952 = vrsqrt.pop %v11950
    %v11953 = vmul.f32 %v11952, %v11950
    %v11954 = vmul.f32 %v11953, %v11952
    %v11955 = vmul.f32 0.5, %v11954
    %v11956 = vsub.f32 1.5, %v11955
    %v11957 = vmul.f32 %v11952, %v11956
    %vm11958 = vweird.f32 %v11950
    %vm11959 = vweird.f32 %v11952
    %vm11960 = vmor %vm11958, %vm11959
    %v11961 = vsel %vm11960, %v11952, %v11957
    %v11962 = vrsqrt.pop %v11951
    %v11963 = vmul.f32 %v11962, %v11951
    %v11964 = vmul.f32 %v11963, %v11962
    %v11965 = vmul.f32 0.5, %v11964
    %v11966 = vsub.f32 1.5, %v11965
    %v11967 = vmul.f32 %v11962, %v11966
    %vm11968 = vweird.f32 %v11951
    %vm11969 = vweird.f32 %v11962
    %vm11970 = vmor %vm11968, %vm11969
    %v11971 = vsel %vm11970, %v11962, %v11967
    %v11972 = vmul.f32 %v11886, %v11961
    %v11973 = vmul.f32 %v11887, %v11971
    %v11974 = vmul.f32 %v11888, %v11961
    %v11975 = vmul.f32 %v11889, %v11971
    %v11976 = vmul.f32 %v11890, %v11961
    %v11977 = vmul.f32 %v11891, %v11971
    %v11978 = vmul.f32 %v11892, %v11961
    %v11979 = vmul.f32 %v11893, %v11971
    %v11980 = vmul.f32 %v11894, %v11961
    %v11981 = vmul.f32 %v11895, %v11971
    %v11982 = vmul.f32 %v11896, %v11961
    %v11983 = vmul.f32 %v11897, %v11971
    %v11984 = vmul.f32 %v11898, %v11961
    %v11985 = vmul.f32 %v11899, %v11971
    %v11986 = vmul.f32 %v11900, %v11961
    %v11987 = vmul.f32 %v11901, %v11971
    %11989 = vset.pattern.permute.xlu0 0
    %11990 = vperm.xlu0 %11989, %v11821
    %v11991 = vpop.permute.xlu0 %11990
    %11994 = vset.pattern.permute.xlu0 0
    %11995 = vperm.xlu0 %11994, %v11822
    %v11996 = vpop.permute.xlu0 %11995
    %11999 = vset.pattern.permute.xlu0 0
    %12000 = vperm.xlu0 %11999, %v11823
    %v12001 = vpop.permute.xlu0 %12000
    %12004 = vset.pattern.permute.xlu0 0
    %12005 = vperm.xlu0 %12004, %v11824
    %v12006 = vpop.permute.xlu0 %12005
    %12009 = vset.pattern.permute.xlu0 0
    %12010 = vperm.xlu0 %12009, %v11825
    %v12011 = vpop.permute.xlu0 %12010
    %12014 = vset.pattern.permute.xlu0 0
    %12015 = vperm.xlu0 %12014, %v11826
    %v12016 = vpop.permute.xlu0 %12015
    %12019 = vset.pattern.permute.xlu0 0
    %12020 = vperm.xlu0 %12019, %v11827
    %v12021 = vpop.permute.xlu0 %12020
    %12024 = vset.pattern.permute.xlu0 0
    %12025 = vperm.xlu0 %12024, %v11828
    %v12026 = vpop.permute.xlu0 %12025
    %12029 = vset.pattern.permute.xlu0 0
    %12030 = vperm.xlu0 %12029, %v11829
    %v12031 = vpop.permute.xlu0 %12030
    %12034 = vset.pattern.permute.xlu0 0
    %12035 = vperm.xlu0 %12034, %v11830
    %v12036 = vpop.permute.xlu0 %12035
    %12039 = vset.pattern.permute.xlu0 0
    %12040 = vperm.xlu0 %12039, %v11831
    %v12041 = vpop.permute.xlu0 %12040
    %12044 = vset.pattern.permute.xlu0 0
    %12045 = vperm.xlu0 %12044, %v11832
    %v12046 = vpop.permute.xlu0 %12045
    %12049 = vset.pattern.permute.xlu0 0
    %12050 = vperm.xlu0 %12049, %v11833
    %v12051 = vpop.permute.xlu0 %12050
    %12054 = vset.pattern.permute.xlu0 0
    %12055 = vperm.xlu0 %12054, %v11834
    %v12056 = vpop.permute.xlu0 %12055
    %12059 = vset.pattern.permute.xlu0 0
    %12060 = vperm.xlu0 %12059, %v11835
    %v12061 = vpop.permute.xlu0 %12060
    %12064 = vset.pattern.permute.xlu0 0
    %12065 = vperm.xlu0 %12064, %v11836
    %v12066 = vpop.permute.xlu0 %12065
    %v12068 = vmul.f32 %v11972, %v11991
    %v12069 = vmul.f32 %v11973, %v11996
    %v12070 = vmul.f32 %v11974, %v12001
    %v12071 = vmul.f32 %v11975, %v12006
    %v12072 = vmul.f32 %v11976, %v12011
    %v12073 = vmul.f32 %v11977, %v12016
    %v12074 = vmul.f32 %v11978, %v12021
    %v12075 = vmul.f32 %v11979, %v12026
    %v12076 = vmul.f32 %v11980, %v12031
    %v12077 = vmul.f32 %v11981, %v12036
    %v12078 = vmul.f32 %v11982, %v12041
    %v12079 = vmul.f32 %v11983, %v12046
    %v12080 = vmul.f32 %v11984, %v12051
    %v12081 = vmul.f32 %v11985, %v12056
    %v12082 = vmul.f32 %v11986, %v12061
    %v12083 = vmul.f32 %v11987, %v12066
    %12085 = vset.pattern.permute.xlu0 0
    %12086 = vperm.xlu0 %12085, %v11838
    %v12087 = vpop.permute.xlu0 %12086
    %12090 = vset.pattern.permute.xlu0 0
    %12091 = vperm.xlu0 %12090, %v11839
    %v12092 = vpop.permute.xlu0 %12091
    %12095 = vset.pattern.permute.xlu0 0
    %12096 = vperm.xlu0 %12095, %v11840
    %v12097 = vpop.permute.xlu0 %12096
    %12100 = vset.pattern.permute.xlu0 0
    %12101 = vperm.xlu0 %12100, %v11841
    %v12102 = vpop.permute.xlu0 %12101
    %12105 = vset.pattern.permute.xlu0 0
    %12106 = vperm.xlu0 %12105, %v11842
    %v12107 = vpop.permute.xlu0 %12106
    %12110 = vset.pattern.permute.xlu0 0
    %12111 = vperm.xlu0 %12110, %v11843
    %v12112 = vpop.permute.xlu0 %12111
    %12115 = vset.pattern.permute.xlu0 0
    %12116 = vperm.xlu0 %12115, %v11844
    %v12117 = vpop.permute.xlu0 %12116
    %12120 = vset.pattern.permute.xlu0 0
    %12121 = vperm.xlu0 %12120, %v11845
    %v12122 = vpop.permute.xlu0 %12121
    %12125 = vset.pattern.permute.xlu0 0
    %12126 = vperm.xlu0 %12125, %v11846
    %v12127 = vpop.permute.xlu0 %12126
    %12130 = vset.pattern.permute.xlu0 0
    %12131 = vperm.xlu0 %12130, %v11847
    %v12132 = vpop.permute.xlu0 %12131
    %12135 = vset.pattern.permute.xlu0 0
    %12136 = vperm.xlu0 %12135, %v11848
    %v12137 = vpop.permute.xlu0 %12136
    %12140 = vset.pattern.permute.xlu0 0
    %12141 = vperm.xlu0 %12140, %v11849
    %v12142 = vpop.permute.xlu0 %12141
    %12145 = vset.pattern.permute.xlu0 0
    %12146 = vperm.xlu0 %12145, %v11850
    %v12147 = vpop.permute.xlu0 %12146
    %12150 = vset.pattern.permute.xlu0 0
    %12151 = vperm.xlu0 %12150, %v11851
    %v12152 = vpop.permute.xlu0 %12151
    %12155 = vset.pattern.permute.xlu0 0
    %12156 = vperm.xlu0 %12155, %v11852
    %v12157 = vpop.permute.xlu0 %12156
    %12160 = vset.pattern.permute.xlu0 0
    %12161 = vperm.xlu0 %12160, %v11853
    %v12162 = vpop.permute.xlu0 %12161
    %v12164 = vadd.f32 %v12068, %v12087
    %v12165 = vadd.f32 %v12069, %v12092
    %v12166 = vadd.f32 %v12070, %v12097
    %v12167 = vadd.f32 %v12071, %v12102
    %v12168 = vadd.f32 %v12072, %v12107
    %v12169 = vadd.f32 %v12073, %v12112
    %v12170 = vadd.f32 %v12074, %v12117
    %v12171 = vadd.f32 %v12075, %v12122
    %v12172 = vadd.f32 %v12076, %v12127
    %v12173 = vadd.f32 %v12077, %v12132
    %v12174 = vadd.f32 %v12078, %v12137
    %v12175 = vadd.f32 %v12079, %v12142
    %v12176 = vadd.f32 %v12080, %v12147
    %v12177 = vadd.f32 %v12081, %v12152
    %v12178 = vadd.f32 %v12082, %v12157
    %v12179 = vadd.f32 %v12083, %v12162
    %v12180 = vld [vmem:[%s15] sm:$0xff]
    %v12181 = vld [vmem:[%s15 + $0x8] sm:$0xff]
    %v12182 = vld [vmem:[%s16] sm:$0xff]
    %v12183 = vld [vmem:[%s16 + $0x8] sm:$0xff]
    %12185 = vset.pattern.permute.xlu0 0
    %12186 = vperm.xlu0 %12185, %v12182
    %v12187 = vpop.permute.xlu0 %12186
    %12190 = vset.pattern.permute.xlu0 0
    %12191 = vperm.xlu0 %12190, %v12183
    %v12192 = vpop.permute.xlu0 %12191
    %12194 = vmatpush.msra.mxu0 %v12179
    %12195 = vmatpush.msra.mxu0 %v12178
    %12196 = vmatpush.msra.mxu0 %v12177
    %12197 = vmatpush.msra.mxu0 %v12176
    %12198 = vmatpush.msra.mxu0 %v12175
    %12199 = vmatpush.msra.mxu0 %v12174
    %12200 = vmatpush.msra.mxu0 %v12173
    %12201 = vmatpush.msra.mxu0 %v12172
    %12202 = vmatpush.msra.mxu0 %v12171
    %12203 = vmatpush.msra.mxu0 %v12170
    %12204 = vmatpush.msra.mxu0 %v12169
    %12205 = vmatpush.msra.mxu0 %v12168
    %12206 = vmatpush.msra.mxu0 %v12167
    %12207 = vmatpush.msra.mxu0 %v12166
    %12208 = vmatpush.msra.mxu0 %v12165
    %12209 = vmatpush.msra.mxu0 %v12164
    %12210 = vmatmul.f32.gmra.mxu0 %v12180
    %v12211 = vpop.f32.mrf.mxu0
    %v12212 = vadd.f32 %v12187, %v12211
    %12213 = vmatmul.f32.gmra.mxu0 %v12181
    %v12214 = vpop.f32.mrf.mxu0
    %v12215 = vadd.f32 %v12192, %v12214
    %12216 = vdwg.mxu0
    %vm12217 = vcmp.gt.f32.partialorder %v12212, 0.0
    %vm12218 = vcmp.gt.f32.partialorder %v12215, 0.0
    %v12219 = vmul.f32 %v12212, 0.01
    %v12220 = vmul.f32 %v12215, 0.01
    %v12221 = vsel %vm12217, %v12212, %v12219
    %v12222 = vsel %vm12218, %v12215, %v12220
    %v12223 = vld [vmem:[%s17] sm:$0xff]
    %v12224 = vld [vmem:[%s18] sm:$0xff]
    %12226 = vset.pattern.permute.xlu0 0
    %12227 = vperm.xlu0 %12226, %v12224
    %v12228 = vpop.permute.xlu0 %12227
    %v12231 = vsel %vm193, %v12223, 0
    %12233 = vmatpush.msra.mxu0 0.0
    %12234 = vmatpush.msra.mxu0 0.0
    %12235 = vmatpush.msra.mxu0 0.0
    %12236 = vmatpush.msra.mxu0 0.0
    %12237 = vmatpush.msra.mxu0 0.0
    %12238 = vmatpush.msra.mxu0 0.0
    %12239 = vmatpush.msra.mxu0 0.0
    %12240 = vmatpush.msra.mxu0 0.0
    %12241 = vmatpush.msra.mxu0 0.0
    %12242 = vmatpush.msra.mxu0 0.0
    %12243 = vmatpush.msra.mxu0 0.0
    %12244 = vmatpush.msra.mxu0 0.0
    %12245 = vmatpush.msra.mxu0 0.0
    %12246 = vmatpush.msra.mxu0 0.0
    %12247 = vmatpush.msra.mxu0 %v12222
    %12248 = vmatpush.msra.mxu0 %v12221
    %12249 = vmatmul.f32.gmra.mxu0 %v12231
    %v12250 = vpop.f32.mrf.mxu0
    %v12251 = vadd.f32 %v12228, %v12250
    %12252 = vdwg.mxu0
    %12253 = vst.msk [vmem:[#allocation5] sm:$0xff] %vm1220, %v12251
    // Predicated region
    $region82: #{tpu_custom_call.1} parent=1 // pred_check
      _
    $region83: #{tpu_custom_call.1} parent=1 // pred_check_branch
      %12255 = sbr.rel (0) target = $region85
    $region84: #{tpu_custom_call.1} parent=1 // pred_region
      %12257 = vsyncadd [#allocation4], 0
      %s12259 = sshll.u32 [#allocation5], 4
      %s12260 = int_to_ptr.vmem [resolvable:$true] %s12259
      %s12261 = sshll.u32 %s19, 4
      %s12262 = int_to_ptr.hbm [resolvable:$true] %s12261
      %12264 = dma.vmem_to_hbm [thread:$0]  %s12260, 128, %s12262, [#allocation4]
    $region85: #{tpu_custom_call.1} parent=1 // pred_fallthru
      _
    // Predicated region
    $region86: #{tpu_custom_call.1} parent=1 // pred_check
      _
    $region87: #{tpu_custom_call.1} parent=1 // pred_check_branch
      %12266 = sbr.rel (0) target = $region89
    $region88: #{tpu_custom_call.1} parent=1 // pred_region
      %12268 = dma.done [#allocation4], 128
    $region89: #{tpu_custom_call.1} parent=1 // pred_fallthru
      _
    %12269 = vsyncpa [#allocation3], 1
    %12270 = vsyncpa [#allocation4], 1

</llo_original>
